<compile_context>
chip_gen: v6e
topology: v6e:2x2x1
jax: 0.10.0
libtpu: 0.0.40
codegen_flags: <defaults>
</compile_context>

<pallas_src>
import jax
import jax.numpy as jnp
from jax.experimental import pallas as pl
from jax.experimental.pallas import tpu as pltpu

# ---- sizes (small, consistent with the forward) ----
B = 2      # batch
H = 32     # decoder.hidden_size
E = 32     # embedding size
V = 128    # decoder.output_size (vocab)
T = 8      # max_len = trg.size(0)
S = 8      # encoder output length
L = 16     # sentences length (rows of `results`)
G = 4 * H  # LSTM gate width (=128)

PAD_IDX = 0   # vocab.getIndex(PAD_WORD)
SOS_IDX = 2   # vocab.getIndex(SOS_WORD)
EOS_IDX = 3   # vocab.getIndex(EOS_WORD)
TEMP = 0.5    # args.temp

# ---- bf16 weight-slab row offsets (all multiples of 32 -> bf16-tile aligned) ----
_R_FUSED = 0                  # (V, 4H)  embed_W @ Wih0[:E]
_R_WIH0C = _R_FUSED + V       # (H, 4H)
_R_WHH0 = _R_WIH0C + H        # (H, 4H)
_R_WIH1 = _R_WHH0 + H         # (H, 4H)
_R_WHH1 = _R_WIH1 + H         # (H, 4H)
_R_OUTWH = _R_WHH1 + H        # (H, V)
_R_OUTWC = _R_OUTWH + H       # (H, V)
_R_ATTNWH = _R_OUTWC + H      # (H, H) zero-padded to 128 cols
_R_EMBED = _R_ATTNWH + H      # (V, E) zero-padded to 128 cols
_R_TOTAL = _R_EMBED + V       # 480


# ------------------------------------------------------------------
# Fused kernel: greedy decode + special-token masking + temp softmax +
# soft-distribution embedding + masked scatter into results.
# ------------------------------------------------------------------
def fused_decoder_kernel(start_ref, end_ref,                 # scalar prefetch (SMEM)
                         hid_ref, trg0_ref, enc_ref, encp_ref,
                         w_ref, bias_ref, init_ref,
                         res_ref):
    f32 = jnp.float32
    bf16 = jnp.bfloat16

    # ---- hoisted, loop-invariant weight-slab slices (bf16) ----
    fusedW = w_ref[_R_FUSED:_R_FUSED + V, :]      # prev one-hot -> LSTM0 gate contrib
    Wih0c = w_ref[_R_WIH0C:_R_WIH0C + H, :]
    Whh0 = w_ref[_R_WHH0:_R_WHH0 + H, :]
    Wih1 = w_ref[_R_WIH1:_R_WIH1 + H, :]
    Whh1 = w_ref[_R_WHH1:_R_WHH1 + H, :]
    outWh = w_ref[_R_OUTWH:_R_OUTWH + H, :]
    outWc = w_ref[_R_OUTWC:_R_OUTWC + H, :]
    attnWh = w_ref[_R_ATTNWH:_R_ATTNWH + H, :]    # cols >= H are zero padding
    embedW = w_ref[_R_EMBED:_R_EMBED + V, :]      # cols >= E are zero padding

    biases = bias_ref[...]                                         # (4, 128) f32
    attnv_b = jnp.broadcast_to(biases[0:1, :H], (S, H))            # hoisted bcasts
    b0_b = jnp.broadcast_to(biases[1:2, :], (B, G))
    b1_b = jnp.broadcast_to(biases[2:3, :], (B, G))
    outb_b = jnp.broadcast_to(biases[3:4, :], (B, V))

    iota_bv = jax.lax.broadcasted_iota(jnp.int32, (B, V), 1)
    nll_row = (iota_bv == PAD_IDX).astype(f32)                     # one-hot PAD rows
    brow = jax.lax.broadcasted_iota(jnp.int32, (B, 1), 0)
    l_idx = jax.lax.broadcasted_iota(jnp.int32, (L, 1), 0)

    # per-batch encoder tiles + hoisted (host-precomputed) attention projection
    enc_b = [enc_ref[bb] for bb in range(B)]                       # (S, H) each
    encp_b = [encp_ref[bb] for bb in range(B)]                     # (S, H) each

    # recurrent state straight from the packed torch `hidden` (rows = batch)
    hid = hid_ref[...]                                             # (B, 4H)
    h0 = hid[:, 0:H]
    c0 = hid[:, H:2 * H]
    h1 = hid[:, 2 * H:3 * H]
    c1 = hid[:, 3 * H:4 * H]
    prev = trg0_ref[...]                                           # (B, V) one-hot trg[0]

    # results accumulator = decoder.embed(sentences); validity of the torch
    # `results[start:end, b] = ...` assignment (try/except) as a mask.
    accs, row_ok, starts = [], [], []
    for bb in range(B):
        s_bb = start_ref[bb]
        e_bb = end_ref[bb]
        valid = jnp.logical_and(e_bb - s_bb <= T - 1,
                                jnp.logical_and(e_bb <= L, s_bb >= 0))
        row_ok.append(jnp.logical_and(l_idx < e_bb, valid))        # (L, 1)
        starts.append(s_bb)
        accs.append(init_ref[bb])                                  # (L, E) f32

    def lstm_layer(g_pre, h_prev, c_prev, whh):
        g = g_pre + jnp.dot(h_prev.astype(bf16), whh, preferred_element_type=f32)
        sg = jax.nn.sigmoid(g)              # one full-width (B,4H) sigmoid (EUP x1)
        i_g = sg[:, 0:H]
        f_g = sg[:, H:2 * H]
        o_g = sg[:, 3 * H:4 * H]
        g_g = jnp.tanh(g[:, 2 * H:3 * H])
        c_new = f_g * c_prev + i_g * g_g
        h_new = o_g * jnp.tanh(c_new)
        return h_new, c_new

    for t in range(1, T):                   # fully unrolled, static trip count
        # ---- Bahdanau attention on the top-layer hidden state ----
        h_proj = jnp.dot(h1.astype(bf16), attnWh,
                         preferred_element_type=f32)[:, :H]        # (B, H)
        ctx_rows = []
        for bb in range(B):
            energy = jnp.maximum(h_proj[bb:bb + 1, :] + encp_b[bb], 0.0)   # (S, H)
            scores = jnp.sum(energy * attnv_b, axis=-1, keepdims=True)     # (S, 1)
            smax = jnp.max(scores, axis=0, keepdims=True)
            sexp = jnp.exp(scores - smax)
            attw = sexp * pl.reciprocal(jnp.sum(sexp, axis=0, keepdims=True),
                                        approx=True)
            ctx_rows.append(jnp.sum(attw * enc_b[bb], axis=0, keepdims=True))  # (1,H)
        # merge per-batch context rows into (B, H) via iota-select (no concat)
        context = jnp.broadcast_to(ctx_rows[0], (B, H))
        for bb in range(1, B):
            context = jnp.where(brow == bb,
                                jnp.broadcast_to(ctx_rows[bb], (B, H)), context)

        # ---- 2-layer LSTM, batch rows on sublanes; embedding pre-fused into fusedW ----
        g0 = (b0_b
              + jnp.dot(prev.astype(bf16), fusedW, preferred_element_type=f32)
              + jnp.dot(context.astype(bf16), Wih0c, preferred_element_type=f32))
        h0, c0 = lstm_layer(g0, h0, c0, Whh0)
        g1 = b1_b + jnp.dot(h0.astype(bf16), Wih1, preferred_element_type=f32)
        h1, c1 = lstm_layer(g1, h1, c1, Whh1)

        # ---- output projection (raw logits on [h1 ; context]) ----
        logits = (outb_b
                  + jnp.dot(h1.astype(bf16), outWh, preferred_element_type=f32)
                  + jnp.dot(context.astype(bf16), outWc, preferred_element_type=f32))

        # ---- greedy feedback: one-hot(argmax(logits)); reused below for masking ----
        m = jnp.max(logits, axis=-1, keepdims=True)
        top1 = jnp.min(jnp.where(logits == m, iota_bv, V),
                       axis=-1, keepdims=True)                     # (B, 1)
        prev = (iota_bv == top1).astype(f32)

        # ---- fused finalize for this step: EOS/SOS -> PAD one-hot, temp softmax,
        #      soft distribution @ embedding matrix ----
        is_special = jnp.logical_or(top1 == EOS_IDX, top1 == SOS_IDX)
        masked = jnp.where(is_special, nll_row, logits)
        scaled = masked * (1.0 / TEMP)
        rmax = jnp.max(scaled, axis=-1, keepdims=True)
        ex = jnp.exp(scaled - rmax)
        sm = ex * pl.reciprocal(jnp.sum(ex, axis=-1, keepdims=True), approx=True)
        proj = jnp.dot(sm.astype(bf16), embedW,
                       preferred_element_type=f32)[:, :E]          # (B, E)

        # results[start+t-1, b] = proj[b] whenever the torch slice assignment succeeds
        for bb in range(B):
            sel = jnp.logical_and(row_ok[bb], l_idx == starts[bb] + (t - 1))
            accs[bb] = jnp.where(sel,
                                 jnp.broadcast_to(proj[bb:bb + 1, :], (L, E)),
                                 accs[bb])

    for bb in range(B):
        res_ref[bb] = accs[bb]
    # TODO(synk): adv_sent / vocab.tensorConvertToLabels / debug prints are host-side
    # bookkeeping with no tensor output; dropout is identity at inference.


# ------------------------------------------------------------------
# Host-side weight packing (one-time, outside the per-call path).
# ------------------------------------------------------------------
def prepare_params(params):
    embed_W = params['embed_W']                       # (V, E)
    Wih0 = params['Wih0']                             # (E+H, 4H)
    fusedW = jnp.dot(embed_W, Wih0[:E])               # embedding folded into LSTM-0
    out_W = params['out_W']                           # (2H, V)

    def pad_lanes(w):
        return jnp.pad(w, ((0, 0), (0, G - w.shape[1])))

    w_slab = jnp.concatenate([
        fusedW,
        Wih0[E:],                                     # Wih0c
        params['Whh0'], params['Wih1'], params['Whh1'],
        out_W[:H], out_W[H:],
        pad_lanes(params['attn_Wh']),
        pad_lanes(embed_W),
    ], axis=0).astype(jnp.bfloat16)                   # (480, 128)

    bias_slab = jnp.concatenate([
        pad_lanes(params['attn_v']),
        params['b0'], params['b1'], params['out_b'],
    ], axis=0).astype(jnp.float32)                    # (4, 128)

    return {'w_slab': w_slab, 'bias_slab': bias_slab, 'embed_W': embed_W,
            'attn_We': params['attn_We'], 'attn_b': params['attn_b']}


# ------------------------------------------------------------------
# pallas_call wrapper + jitted forward
# ------------------------------------------------------------------
def run_fused(start, end, hidden, trg0_onehot, enc_bsh, enc_proj,
              w_slab, bias_slab, init_ble):
    grid_spec = pltpu.PrefetchScalarGridSpec(
        num_scalar_prefetch=2,
        grid=(1,),
        in_specs=[
            pl.BlockSpec((B, 4 * H), lambda i, s, e: (0, 0)),       # hidden
            pl.BlockSpec((B, V), lambda i, s, e: (0, 0)),           # trg0 one-hot
            pl.BlockSpec((B, S, H), lambda i, s, e: (0, 0, 0)),     # encoder outputs
            pl.BlockSpec((B, S, H), lambda i, s, e: (0, 0, 0)),     # enc projection
            pl.BlockSpec((_R_TOTAL, G), lambda i, s, e: (0, 0)),    # bf16 weight slab
            pl.BlockSpec((4, G), lambda i, s, e: (0, 0)),           # f32 bias slab
            pl.BlockSpec((B, L, E), lambda i, s, e: (0, 0, 0)),     # embed(sentences)
        ],
        out_specs=pl.BlockSpec((B, L, E), lambda i, s, e: (0, 0, 0)),
    )
    return pl.pallas_call(
        fused_decoder_kernel,
        out_shape=jax.ShapeDtypeStruct((B, L, E), jnp.float32),
        grid_spec=grid_spec,
        compiler_params=pltpu.CompilerParams(dimension_semantics=("arbitrary",)),
    )(start, end, hidden, trg0_onehot, enc_bsh, enc_proj,
      w_slab, bias_slab, init_ble)


@jax.jit
def wrapped_seq_decoder_forward(hidden, trg, encoder_output, sentences,
                                start, end, prep):
    # encoder layout (S,B,H) -> batch-major (B,S,H); the loop-invariant attention
    # projection (enc @ We.T + b) is hoisted to this single jitted wrapper.
    enc_bsh = jnp.transpose(encoder_output, (1, 0, 2))
    enc_proj = (jnp.einsum('bsh,oh->bso', enc_bsh, prep['attn_We'])
                + prep['attn_b']).astype(jnp.float32)
    trg0_onehot = jax.nn.one_hot(trg[0], V, dtype=jnp.float32)       # (B, V)
    init_ble = jnp.take(prep['embed_W'], jnp.transpose(sentences), axis=0)  # (B,L,E)

    res_ble = run_fused(start.astype(jnp.int32), end.astype(jnp.int32),
                        hidden, trg0_onehot, enc_bsh, enc_proj,
                        prep['w_slab'], prep['bias_slab'], init_ble)
    return jnp.transpose(res_ble, (1, 0, 2))                         # (L, B, E)


if __name__ == "__main__":
    key = jax.random.PRNGKey(0)
    ks = jax.random.split(key, 20)
    sc = 0.1
    params = {
        'embed_W': jax.random.normal(ks[0], (V, E), jnp.float32) * sc,
        # attn_Wh: right-multiply (H_in, H_out); attn_We: torch-style (H_out, H_in)
        'attn_Wh': jax.random.normal(ks[1], (H, H), jnp.float32) * sc,
        'attn_We': jax.random.normal(ks[2], (H, H), jnp.float32) * sc,
        'attn_b':  jax.random.normal(ks[3], (1, H), jnp.float32) * sc,
        'attn_v':  jax.random.normal(ks[4], (1, H), jnp.float32) * sc,
        'Wih0': jax.random.normal(ks[5], (E + H, 4 * H), jnp.float32) * sc,
        'Whh0': jax.random.normal(ks[6], (H, 4 * H), jnp.float32) * sc,
        'b0':   jax.random.normal(ks[7], (1, 4 * H), jnp.float32) * sc,
        'Wih1': jax.random.normal(ks[8], (H, 4 * H), jnp.float32) * sc,
        'Whh1': jax.random.normal(ks[9], (H, 4 * H), jnp.float32) * sc,
        'b1':   jax.random.normal(ks[10], (1, 4 * H), jnp.float32) * sc,
        'out_W': jax.random.normal(ks[11], (2 * H, V), jnp.float32) * sc,
        'out_b': jax.random.normal(ks[12], (1, V), jnp.float32) * sc,
    }
    hidden = jax.random.normal(ks[13], (B, 4 * H), jnp.float32)          # (B, 2*2*H)
    trg = jax.random.randint(ks[14], (T, B), 0, V, dtype=jnp.int32)      # (max_len, B)
    encoder_output = jax.random.normal(ks[15], (S, B, H), jnp.float32)   # (S, B, H)
    sentences = jax.random.randint(ks[16], (L, B), 0, V, dtype=jnp.int32)
    start = jnp.array([2, 1], dtype=jnp.int32)
    end = jnp.array([6, 5], dtype=jnp.int32)

    prep = prepare_params(params)   # one-time weight packing (outside per-call path)
    results = wrapped_seq_decoder_forward(hidden, trg, encoder_output,
                                          sentences, start, end, prep)
    results = jax.block_until_ready(results)
    assert results.shape == (L, B, E)
    assert bool(jnp.all(jnp.isfinite(results)))
    print("KERNEL_OK")
</pallas_src>

<mosaic_0001>
module attributes {stable_mosaic.version = 11 : i64} {
  func.func @fused_decoder_kernel(%arg0: i32, %arg1: memref<2xi32, #tpu.memory_space<smem>>, %arg2: memref<2xi32, #tpu.memory_space<smem>>, %arg3: memref<2x128xf32, #tpu.memory_space<vmem>>, %arg4: memref<2x128xf32, #tpu.memory_space<vmem>>, %arg5: memref<2x8x32xf32, #tpu.memory_space<vmem>>, %arg6: memref<2x8x32xf32, #tpu.memory_space<vmem>>, %arg7: memref<480x128xbf16, #tpu.memory_space<vmem>>, %arg8: memref<4x128xf32, #tpu.memory_space<vmem>>, %arg9: memref<2x16x32xf32, #tpu.memory_space<vmem>>, %arg10: memref<2x16x32xf32, #tpu.memory_space<vmem>>) attributes {dimension_semantics = [#tpu.dimension_semantics<arbitrary>], iteration_bounds = array<i64: 1>, scalar_prefetch = 2 : i64, scratch_operands = 0 : i64, tpu.core_type = #tpu.core_type<tc>, window_params = [{pipeline_mode = #tpu.pipeline_mode<synchronous>, transform_indices = @transform_0, window_bounds = array<i64: 2, 128>}, {pipeline_mode = #tpu.pipeline_mode<synchronous>, transform_indices = @transform_1, window_bounds = array<i64: 2, 128>}, {pipeline_mode = #tpu.pipeline_mode<synchronous>, transform_indices = @transform_2, window_bounds = array<i64: 2, 8, 32>}, {pipeline_mode = #tpu.pipeline_mode<synchronous>, transform_indices = @transform_3, window_bounds = array<i64: 2, 8, 32>}, {pipeline_mode = #tpu.pipeline_mode<synchronous>, transform_indices = @transform_4, window_bounds = array<i64: 480, 128>}, {pipeline_mode = #tpu.pipeline_mode<synchronous>, transform_indices = @transform_5, window_bounds = array<i64: 4, 128>}, {pipeline_mode = #tpu.pipeline_mode<synchronous>, transform_indices = @transform_6, window_bounds = array<i64: 2, 16, 32>}, {pipeline_mode = #tpu.pipeline_mode<synchronous>, transform_indices = @transform_7, window_bounds = array<i64: 2, 16, 32>}]} {
    %c0 = arith.constant 0 : index
    %c0_0 = arith.constant 0 : index
    %0 = vector.load %arg7[%c0, %c0_0] : memref<480x128xbf16, #tpu.memory_space<vmem>>, vector<128x128xbf16>
    %c128 = arith.constant 128 : index
    %c0_1 = arith.constant 0 : index
    %1 = vector.load %arg7[%c128, %c0_1] : memref<480x128xbf16, #tpu.memory_space<vmem>>, vector<32x128xbf16>
    %c160 = arith.constant 160 : index
    %c0_2 = arith.constant 0 : index
    %2 = vector.load %arg7[%c160, %c0_2] : memref<480x128xbf16, #tpu.memory_space<vmem>>, vector<32x128xbf16>
    %c192 = arith.constant 192 : index
    %c0_3 = arith.constant 0 : index
    %3 = vector.load %arg7[%c192, %c0_3] : memref<480x128xbf16, #tpu.memory_space<vmem>>, vector<32x128xbf16>
    %c224 = arith.constant 224 : index
    %c0_4 = arith.constant 0 : index
    %4 = vector.load %arg7[%c224, %c0_4] : memref<480x128xbf16, #tpu.memory_space<vmem>>, vector<32x128xbf16>
    %c256 = arith.constant 256 : index
    %c0_5 = arith.constant 0 : index
    %5 = vector.load %arg7[%c256, %c0_5] : memref<480x128xbf16, #tpu.memory_space<vmem>>, vector<32x128xbf16>
    %c288 = arith.constant 288 : index
    %c0_6 = arith.constant 0 : index
    %6 = vector.load %arg7[%c288, %c0_6] : memref<480x128xbf16, #tpu.memory_space<vmem>>, vector<32x128xbf16>
    %c320 = arith.constant 320 : index
    %c0_7 = arith.constant 0 : index
    %7 = vector.load %arg7[%c320, %c0_7] : memref<480x128xbf16, #tpu.memory_space<vmem>>, vector<32x128xbf16>
    %c352 = arith.constant 352 : index
    %c0_8 = arith.constant 0 : index
    %8 = vector.load %arg7[%c352, %c0_8] : memref<480x128xbf16, #tpu.memory_space<vmem>>, vector<128x128xbf16>
    %c0_9 = arith.constant 0 : index
    %c0_10 = arith.constant 0 : index
    %9 = vector.load %arg8[%c0_9, %c0_10] : memref<4x128xf32, #tpu.memory_space<vmem>>, vector<4x128xf32>
    %10 = vector.extract_strided_slice %9 {offsets = [0, 0], sizes = [1, 32], strides = [1, 1]} : vector<4x128xf32> to vector<1x32xf32>
    %11 = vector.shape_cast %10 : vector<1x32xf32> to vector<1x32xf32>
    %12 = vector.broadcast %11 : vector<1x32xf32> to vector<8x32xf32>
    %13 = vector.extract_strided_slice %9 {offsets = [1, 0], sizes = [1, 128], strides = [1, 1]} : vector<4x128xf32> to vector<1x128xf32>
    %14 = vector.shape_cast %13 : vector<1x128xf32> to vector<1x128xf32>
    %15 = vector.broadcast %14 : vector<1x128xf32> to vector<2x128xf32>
    %16 = vector.extract_strided_slice %9 {offsets = [2, 0], sizes = [1, 128], strides = [1, 1]} : vector<4x128xf32> to vector<1x128xf32>
    %17 = vector.shape_cast %16 : vector<1x128xf32> to vector<1x128xf32>
    %18 = vector.broadcast %17 : vector<1x128xf32> to vector<2x128xf32>
    %19 = vector.extract_strided_slice %9 {offsets = [3, 0], sizes = [1, 128], strides = [1, 1]} : vector<4x128xf32> to vector<1x128xf32>
    %20 = vector.shape_cast %19 : vector<1x128xf32> to vector<1x128xf32>
    %21 = vector.broadcast %20 : vector<1x128xf32> to vector<2x128xf32>
    %22 = tpu.iota {dimensions = array<i32: 1>} : vector<2x128xi32>
    %c0_i32 = arith.constant 0 : i32
    %23 = vector.broadcast %c0_i32 : i32 to vector<2x128xi32>
    %24 = arith.cmpi eq, %22, %23 : vector<2x128xi32>
    %25 = arith.extui %24 : vector<2x128xi1> to vector<2x128xi32>
    %26 = arith.sitofp %25 : vector<2x128xi32> to vector<2x128xf32>
    %27 = tpu.iota {dimensions = array<i32: 0>} : vector<2x1xi32>
    %28 = tpu.iota {dimensions = array<i32: 0>} : vector<16x1xi32>
    %c0_11 = arith.constant 0 : index
    %c0_12 = arith.constant 0 : index
    %c0_13 = arith.constant 0 : index
    %29 = vector.load %arg5[%c0_11, %c0_12, %c0_13] : memref<2x8x32xf32, #tpu.memory_space<vmem>>, vector<1x8x32xf32>
    %30 = vector.shape_cast %29 : vector<1x8x32xf32> to vector<8x32xf32>
    %c1 = arith.constant 1 : index
    %c0_14 = arith.constant 0 : index
    %c0_15 = arith.constant 0 : index
    %31 = vector.load %arg5[%c1, %c0_14, %c0_15] : memref<2x8x32xf32, #tpu.memory_space<vmem>>, vector<1x8x32xf32>
    %32 = vector.shape_cast %31 : vector<1x8x32xf32> to vector<8x32xf32>
    %c0_16 = arith.constant 0 : index
    %c0_17 = arith.constant 0 : index
    %c0_18 = arith.constant 0 : index
    %33 = vector.load %arg6[%c0_16, %c0_17, %c0_18] : memref<2x8x32xf32, #tpu.memory_space<vmem>>, vector<1x8x32xf32>
    %34 = vector.shape_cast %33 : vector<1x8x32xf32> to vector<8x32xf32>
    %c1_19 = arith.constant 1 : index
    %c0_20 = arith.constant 0 : index
    %c0_21 = arith.constant 0 : index
    %35 = vector.load %arg6[%c1_19, %c0_20, %c0_21] : memref<2x8x32xf32, #tpu.memory_space<vmem>>, vector<1x8x32xf32>
    %36 = vector.shape_cast %35 : vector<1x8x32xf32> to vector<8x32xf32>
    %c0_22 = arith.constant 0 : index
    %c0_23 = arith.constant 0 : index
    %37 = vector.load %arg3[%c0_22, %c0_23] : memref<2x128xf32, #tpu.memory_space<vmem>>, vector<2x128xf32>
    %38 = vector.extract_strided_slice %37 {offsets = [0, 0], sizes = [2, 32], strides = [1, 1]} : vector<2x128xf32> to vector<2x32xf32>
    %39 = vector.extract_strided_slice %37 {offsets = [0, 32], sizes = [2, 32], strides = [1, 1]} : vector<2x128xf32> to vector<2x32xf32>
    %40 = vector.extract_strided_slice %37 {offsets = [0, 64], sizes = [2, 32], strides = [1, 1]} : vector<2x128xf32> to vector<2x32xf32>
    %41 = vector.extract_strided_slice %37 {offsets = [0, 96], sizes = [2, 32], strides = [1, 1]} : vector<2x128xf32> to vector<2x32xf32>
    %c0_24 = arith.constant 0 : index
    %c0_25 = arith.constant 0 : index
    %42 = vector.load %arg4[%c0_24, %c0_25] : memref<2x128xf32, #tpu.memory_space<vmem>>, vector<2x128xf32>
    %c0_26 = arith.constant 0 : index
    %43 = memref.load %arg1[%c0_26] : memref<2xi32, #tpu.memory_space<smem>>
    %c0_27 = arith.constant 0 : index
    %44 = memref.load %arg2[%c0_27] : memref<2xi32, #tpu.memory_space<smem>>
    %45 = arith.subi %44, %43 : i32
    %c7_i32 = arith.constant 7 : i32
    %46 = arith.cmpi sle, %45, %c7_i32 : i32
    %c16_i32 = arith.constant 16 : i32
    %47 = arith.cmpi sle, %44, %c16_i32 : i32
    %c0_i32_28 = arith.constant 0 : i32
    %48 = arith.cmpi sge, %43, %c0_i32_28 : i32
    %49 = arith.andi %47, %48 : i1
    %50 = arith.andi %46, %49 : i1
    %51 = vector.broadcast %44 : i32 to vector<16x1xi32>
    %52 = arith.cmpi slt, %28, %51 : vector<16x1xi32>
    %53 = vector.broadcast %50 : i1 to vector<16x1xi1>
    %54 = arith.andi %52, %53 : vector<16x1xi1>
    %c0_29 = arith.constant 0 : index
    %c0_30 = arith.constant 0 : index
    %c0_31 = arith.constant 0 : index
    %55 = vector.load %arg9[%c0_29, %c0_30, %c0_31] : memref<2x16x32xf32, #tpu.memory_space<vmem>>, vector<1x16x32xf32>
    %56 = vector.shape_cast %55 : vector<1x16x32xf32> to vector<16x32xf32>
    %c1_32 = arith.constant 1 : index
    %57 = memref.load %arg1[%c1_32] : memref<2xi32, #tpu.memory_space<smem>>
    %c1_33 = arith.constant 1 : index
    %58 = memref.load %arg2[%c1_33] : memref<2xi32, #tpu.memory_space<smem>>
    %59 = arith.subi %58, %57 : i32
    %c7_i32_34 = arith.constant 7 : i32
    %60 = arith.cmpi sle, %59, %c7_i32_34 : i32
    %c16_i32_35 = arith.constant 16 : i32
    %61 = arith.cmpi sle, %58, %c16_i32_35 : i32
    %c0_i32_36 = arith.constant 0 : i32
    %62 = arith.cmpi sge, %57, %c0_i32_36 : i32
    %63 = arith.andi %61, %62 : i1
    %64 = arith.andi %60, %63 : i1
    %65 = vector.broadcast %58 : i32 to vector<16x1xi32>
    %66 = arith.cmpi slt, %28, %65 : vector<16x1xi32>
    %67 = vector.broadcast %64 : i1 to vector<16x1xi1>
    %68 = arith.andi %66, %67 : vector<16x1xi1>
    %c1_37 = arith.constant 1 : index
    %c0_38 = arith.constant 0 : index
    %c0_39 = arith.constant 0 : index
    %69 = vector.load %arg9[%c1_37, %c0_38, %c0_39] : memref<2x16x32xf32, #tpu.memory_space<vmem>>, vector<1x16x32xf32>
    %70 = vector.shape_cast %69 : vector<1x16x32xf32> to vector<16x32xf32>
    %71 = arith.truncf %40 : vector<2x32xf32> to vector<2x32xbf16>
    %cst = arith.constant dense<0.000000e+00> : vector<2x128xf32>
    %72 = tpu.matmul %71, %7, %cst {dimension_numbers = #tpu.dot_dimension_numbers<[1], [0], [0], [1], [0, 0, 1, 1], [], []>} : vector<2x32xbf16>, vector<32x128xbf16>, vector<2x128xf32> -> vector<2x128xf32>
    %73 = vector.extract_strided_slice %72 {offsets = [0, 0], sizes = [2, 32], strides = [1, 1]} : vector<2x128xf32> to vector<2x32xf32>
    %74 = vector.extract_strided_slice %73 {offsets = [0, 0], sizes = [1, 32], strides = [1, 1]} : vector<2x32xf32> to vector<1x32xf32>
    %75 = vector.broadcast %74 : vector<1x32xf32> to vector<8x32xf32>
    %76 = arith.addf %75, %34 : vector<8x32xf32>
    %cst_40 = arith.constant 0.000000e+00 : f32
    %77 = vector.broadcast %cst_40 : f32 to vector<8x32xf32>
    %78 = arith.maximumf %76, %77 : vector<8x32xf32>
    %79 = arith.mulf %78, %12 : vector<8x32xf32>
    %cst_41 = arith.constant dense<0.000000e+00> : vector<8xf32>
    %80 = vector.multi_reduction <add>, %79, %cst_41 [1] : vector<8x32xf32> to vector<8xf32>
    %81 = vector.shape_cast %80 : vector<8xf32> to vector<8x1xf32>
    %cst_42 = arith.constant dense<0xFF800000> : vector<1xf32>
    %82 = vector.multi_reduction <maximumf>, %81, %cst_42 [0] : vector<8x1xf32> to vector<1xf32>
    %83 = vector.shape_cast %82 : vector<1xf32> to vector<1x1xf32>
    %84 = vector.broadcast %83 : vector<1x1xf32> to vector<8x1xf32>
    %85 = arith.subf %81, %84 : vector<8x1xf32>
    %86 = math.exp %85 : vector<8x1xf32>
    %cst_43 = arith.constant dense<0.000000e+00> : vector<1xf32>
    %87 = vector.multi_reduction <add>, %86, %cst_43 [0] : vector<8x1xf32> to vector<1xf32>
    %88 = vector.shape_cast %87 : vector<1xf32> to vector<1x1xf32>
    %89 = tpu.reciprocal %88 {approx = true} : vector<1x1xf32> -> vector<1x1xf32>
    %90 = vector.broadcast %89 : vector<1x1xf32> to vector<8x1xf32>
    %91 = arith.mulf %86, %90 : vector<8x1xf32>
    %92 = vector.broadcast %91 : vector<8x1xf32> to vector<8x32xf32>
    %93 = arith.mulf %92, %30 : vector<8x32xf32>
    %cst_44 = arith.constant dense<0.000000e+00> : vector<32xf32>
    %94 = vector.multi_reduction <add>, %93, %cst_44 [0] : vector<8x32xf32> to vector<32xf32>
    %95 = vector.shape_cast %94 : vector<32xf32> to vector<1x32xf32>
    %96 = vector.extract_strided_slice %73 {offsets = [1, 0], sizes = [1, 32], strides = [1, 1]} : vector<2x32xf32> to vector<1x32xf32>
    %97 = vector.broadcast %96 : vector<1x32xf32> to vector<8x32xf32>
    %98 = arith.addf %97, %36 : vector<8x32xf32>
    %cst_45 = arith.constant 0.000000e+00 : f32
    %99 = vector.broadcast %cst_45 : f32 to vector<8x32xf32>
    %100 = arith.maximumf %98, %99 : vector<8x32xf32>
    %101 = arith.mulf %100, %12 : vector<8x32xf32>
    %cst_46 = arith.constant dense<0.000000e+00> : vector<8xf32>
    %102 = vector.multi_reduction <add>, %101, %cst_46 [1] : vector<8x32xf32> to vector<8xf32>
    %103 = vector.shape_cast %102 : vector<8xf32> to vector<8x1xf32>
    %cst_47 = arith.constant dense<0xFF800000> : vector<1xf32>
    %104 = vector.multi_reduction <maximumf>, %103, %cst_47 [0] : vector<8x1xf32> to vector<1xf32>
    %105 = vector.shape_cast %104 : vector<1xf32> to vector<1x1xf32>
    %106 = vector.broadcast %105 : vector<1x1xf32> to vector<8x1xf32>
    %107 = arith.subf %103, %106 : vector<8x1xf32>
    %108 = math.exp %107 : vector<8x1xf32>
    %cst_48 = arith.constant dense<0.000000e+00> : vector<1xf32>
    %109 = vector.multi_reduction <add>, %108, %cst_48 [0] : vector<8x1xf32> to vector<1xf32>
    %110 = vector.shape_cast %109 : vector<1xf32> to vector<1x1xf32>
    %111 = tpu.reciprocal %110 {approx = true} : vector<1x1xf32> -> vector<1x1xf32>
    %112 = vector.broadcast %111 : vector<1x1xf32> to vector<8x1xf32>
    %113 = arith.mulf %108, %112 : vector<8x1xf32>
    %114 = vector.broadcast %113 : vector<8x1xf32> to vector<8x32xf32>
    %115 = arith.mulf %114, %32 : vector<8x32xf32>
    %cst_49 = arith.constant dense<0.000000e+00> : vector<32xf32>
    %116 = vector.multi_reduction <add>, %115, %cst_49 [0] : vector<8x32xf32> to vector<32xf32>
    %117 = vector.shape_cast %116 : vector<32xf32> to vector<1x32xf32>
    %118 = vector.shape_cast %95 : vector<1x32xf32> to vector<1x32xf32>
    %119 = vector.broadcast %118 : vector<1x32xf32> to vector<2x32xf32>
    %c1_i32 = arith.constant 1 : i32
    %120 = vector.broadcast %c1_i32 : i32 to vector<2x1xi32>
    %121 = arith.cmpi eq, %27, %120 : vector<2x1xi32>
    %122 = vector.shape_cast %117 : vector<1x32xf32> to vector<1x32xf32>
    %123 = vector.broadcast %122 : vector<1x32xf32> to vector<2x32xf32>
    %124 = vector.shape_cast %121 : vector<2x1xi1> to vector<2x1xi1>
    %125 = vector.broadcast %124 : vector<2x1xi1> to vector<2x32xi1>
    %126 = arith.select %125, %123, %119 : vector<2x32xi1>, vector<2x32xf32>
    %127 = arith.truncf %42 : vector<2x128xf32> to vector<2x128xbf16>
    %cst_50 = arith.constant dense<0.000000e+00> : vector<2x128xf32>
    %128 = tpu.matmul %127, %0, %cst_50 {dimension_numbers = #tpu.dot_dimension_numbers<[1], [0], [0], [1], [0, 0, 1, 1], [], []>} : vector<2x128xbf16>, vector<128x128xbf16>, vector<2x128xf32> -> vector<2x128xf32>
    %129 = arith.addf %15, %128 : vector<2x128xf32>
    %130 = arith.truncf %126 : vector<2x32xf32> to vector<2x32xbf16>
    %cst_51 = arith.constant dense<0.000000e+00> : vector<2x128xf32>
    %131 = tpu.matmul %130, %1, %cst_51 {dimension_numbers = #tpu.dot_dimension_numbers<[1], [0], [0], [1], [0, 0, 1, 1], [], []>} : vector<2x32xbf16>, vector<32x128xbf16>, vector<2x128xf32> -> vector<2x128xf32>
    %132 = arith.addf %129, %131 : vector<2x128xf32>
    %133 = arith.truncf %38 : vector<2x32xf32> to vector<2x32xbf16>
    %cst_52 = arith.constant dense<0.000000e+00> : vector<2x128xf32>
    %134 = tpu.matmul %133, %2, %cst_52 {dimension_numbers = #tpu.dot_dimension_numbers<[1], [0], [0], [1], [0, 0, 1, 1], [], []>} : vector<2x32xbf16>, vector<32x128xbf16>, vector<2x128xf32> -> vector<2x128xf32>
    %135 = arith.addf %132, %134 : vector<2x128xf32>
    %136 = arith.negf %135 : vector<2x128xf32>
    %137 = math.exp %136 : vector<2x128xf32>
    %cst_53 = arith.constant 1.000000e+00 : f32
    %138 = vector.broadcast %cst_53 : f32 to vector<2x128xf32>
    %139 = arith.addf %138, %137 : vector<2x128xf32>
    %140 = arith.divf %138, %139 : vector<2x128xf32>
    %141 = vector.extract_strided_slice %140 {offsets = [0, 0], sizes = [2, 32], strides = [1, 1]} : vector<2x128xf32> to vector<2x32xf32>
    %142 = vector.extract_strided_slice %140 {offsets = [0, 32], sizes = [2, 32], strides = [1, 1]} : vector<2x128xf32> to vector<2x32xf32>
    %143 = vector.extract_strided_slice %140 {offsets = [0, 96], sizes = [2, 32], strides = [1, 1]} : vector<2x128xf32> to vector<2x32xf32>
    %144 = vector.extract_strided_slice %135 {offsets = [0, 64], sizes = [2, 32], strides = [1, 1]} : vector<2x128xf32> to vector<2x32xf32>
    %145 = math.tanh %144 : vector<2x32xf32>
    %146 = arith.mulf %142, %39 : vector<2x32xf32>
    %147 = arith.mulf %141, %145 : vector<2x32xf32>
    %148 = arith.addf %146, %147 : vector<2x32xf32>
    %149 = math.tanh %148 : vector<2x32xf32>
    %150 = arith.mulf %143, %149 : vector<2x32xf32>
    %151 = arith.truncf %150 : vector<2x32xf32> to vector<2x32xbf16>
    %cst_54 = arith.constant dense<0.000000e+00> : vector<2x128xf32>
    %152 = tpu.matmul %151, %3, %cst_54 {dimension_numbers = #tpu.dot_dimension_numbers<[1], [0], [0], [1], [0, 0, 1, 1], [], []>} : vector<2x32xbf16>, vector<32x128xbf16>, vector<2x128xf32> -> vector<2x128xf32>
    %153 = arith.addf %18, %152 : vector<2x128xf32>
    %154 = arith.truncf %40 : vector<2x32xf32> to vector<2x32xbf16>
    %cst_55 = arith.constant dense<0.000000e+00> : vector<2x128xf32>
    %155 = tpu.matmul %154, %4, %cst_55 {dimension_numbers = #tpu.dot_dimension_numbers<[1], [0], [0], [1], [0, 0, 1, 1], [], []>} : vector<2x32xbf16>, vector<32x128xbf16>, vector<2x128xf32> -> vector<2x128xf32>
    %156 = arith.addf %153, %155 : vector<2x128xf32>
    %157 = arith.negf %156 : vector<2x128xf32>
    %158 = math.exp %157 : vector<2x128xf32>
    %cst_56 = arith.constant 1.000000e+00 : f32
    %159 = vector.broadcast %cst_56 : f32 to vector<2x128xf32>
    %160 = arith.addf %159, %158 : vector<2x128xf32>
    %161 = arith.divf %159, %160 : vector<2x128xf32>
    %162 = vector.extract_strided_slice %161 {offsets = [0, 0], sizes = [2, 32], strides = [1, 1]} : vector<2x128xf32> to vector<2x32xf32>
    %163 = vector.extract_strided_slice %161 {offsets = [0, 32], sizes = [2, 32], strides = [1, 1]} : vector<2x128xf32> to vector<2x32xf32>
    %164 = vector.extract_strided_slice %161 {offsets = [0, 96], sizes = [2, 32], strides = [1, 1]} : vector<2x128xf32> to vector<2x32xf32>
    %165 = vector.extract_strided_slice %156 {offsets = [0, 64], sizes = [2, 32], strides = [1, 1]} : vector<2x128xf32> to vector<2x32xf32>
    %166 = math.tanh %165 : vector<2x32xf32>
    %167 = arith.mulf %163, %41 : vector<2x32xf32>
    %168 = arith.mulf %162, %166 : vector<2x32xf32>
    %169 = arith.addf %167, %168 : vector<2x32xf32>
    %170 = math.tanh %169 : vector<2x32xf32>
    %171 = arith.mulf %164, %170 : vector<2x32xf32>
    %172 = arith.truncf %171 : vector<2x32xf32> to vector<2x32xbf16>
    %cst_57 = arith.constant dense<0.000000e+00> : vector<2x128xf32>
    %173 = tpu.matmul %172, %5, %cst_57 {dimension_numbers = #tpu.dot_dimension_numbers<[1], [0], [0], [1], [0, 0, 1, 1], [], []>} : vector<2x32xbf16>, vector<32x128xbf16>, vector<2x128xf32> -> vector<2x128xf32>
    %174 = arith.addf %21, %173 : vector<2x128xf32>
    %175 = arith.truncf %126 : vector<2x32xf32> to vector<2x32xbf16>
    %cst_58 = arith.constant dense<0.000000e+00> : vector<2x128xf32>
    %176 = tpu.matmul %175, %6, %cst_58 {dimension_numbers = #tpu.dot_dimension_numbers<[1], [0], [0], [1], [0, 0, 1, 1], [], []>} : vector<2x32xbf16>, vector<32x128xbf16>, vector<2x128xf32> -> vector<2x128xf32>
    %177 = arith.addf %174, %176 : vector<2x128xf32>
    %cst_59 = arith.constant dense<0xFF800000> : vector<2xf32>
    %178 = vector.multi_reduction <maximumf>, %177, %cst_59 [1] : vector<2x128xf32> to vector<2xf32>
    %179 = vector.shape_cast %178 : vector<2xf32> to vector<2x1xf32>
    %180 = vector.broadcast %179 : vector<2x1xf32> to vector<2x128xf32>
    %181 = arith.cmpf oeq, %177, %180 : vector<2x128xf32>
    %c128_i32 = arith.constant 128 : i32
    %182 = vector.broadcast %c128_i32 : i32 to vector<2x128xi32>
    %183 = arith.select %181, %22, %182 : vector<2x128xi1>, vector<2x128xi32>
    %cst_60 = arith.constant dense<2147483647> : vector<2xi32>
    %184 = vector.multi_reduction <minsi>, %183, %cst_60 [1] : vector<2x128xi32> to vector<2xi32>
    %185 = vector.shape_cast %184 : vector<2xi32> to vector<2x1xi32>
    %186 = vector.broadcast %185 : vector<2x1xi32> to vector<2x128xi32>
    %187 = arith.cmpi eq, %22, %186 : vector<2x128xi32>
    %188 = arith.extui %187 : vector<2x128xi1> to vector<2x128xi32>
    %189 = arith.sitofp %188 : vector<2x128xi32> to vector<2x128xf32>
    %c3_i32 = arith.constant 3 : i32
    %190 = vector.broadcast %c3_i32 : i32 to vector<2x1xi32>
    %191 = arith.cmpi eq, %185, %190 : vector<2x1xi32>
    %c2_i32 = arith.constant 2 : i32
    %192 = vector.broadcast %c2_i32 : i32 to vector<2x1xi32>
    %193 = arith.cmpi eq, %185, %192 : vector<2x1xi32>
    %194 = arith.ori %191, %193 : vector<2x1xi1>
    %195 = vector.shape_cast %194 : vector<2x1xi1> to vector<2x1xi1>
    %196 = vector.broadcast %195 : vector<2x1xi1> to vector<2x128xi1>
    %197 = arith.select %196, %26, %177 : vector<2x128xi1>, vector<2x128xf32>
    %cst_61 = arith.constant 2.000000e+00 : f32
    %198 = vector.broadcast %cst_61 : f32 to vector<2x128xf32>
    %199 = arith.mulf %197, %198 : vector<2x128xf32>
    %cst_62 = arith.constant dense<0xFF800000> : vector<2xf32>
    %200 = vector.multi_reduction <maximumf>, %199, %cst_62 [1] : vector<2x128xf32> to vector<2xf32>
    %201 = vector.shape_cast %200 : vector<2xf32> to vector<2x1xf32>
    %202 = vector.broadcast %201 : vector<2x1xf32> to vector<2x128xf32>
    %203 = arith.subf %199, %202 : vector<2x128xf32>
    %204 = math.exp %203 : vector<2x128xf32>
    %cst_63 = arith.constant dense<0.000000e+00> : vector<2xf32>
    %205 = vector.multi_reduction <add>, %204, %cst_63 [1] : vector<2x128xf32> to vector<2xf32>
    %206 = vector.shape_cast %205 : vector<2xf32> to vector<2x1xf32>
    %207 = tpu.reciprocal %206 {approx = true} : vector<2x1xf32> -> vector<2x1xf32>
    %208 = vector.broadcast %207 : vector<2x1xf32> to vector<2x128xf32>
    %209 = arith.mulf %204, %208 : vector<2x128xf32>
    %210 = arith.truncf %209 : vector<2x128xf32> to vector<2x128xbf16>
    %cst_64 = arith.constant dense<0.000000e+00> : vector<2x128xf32>
    %211 = tpu.matmul %210, %8, %cst_64 {dimension_numbers = #tpu.dot_dimension_numbers<[1], [0], [0], [1], [0, 0, 1, 1], [], []>} : vector<2x128xbf16>, vector<128x128xbf16>, vector<2x128xf32> -> vector<2x128xf32>
    %212 = vector.extract_strided_slice %211 {offsets = [0, 0], sizes = [2, 32], strides = [1, 1]} : vector<2x128xf32> to vector<2x32xf32>
    %c0_i32_65 = arith.constant 0 : i32
    %213 = arith.addi %43, %c0_i32_65 : i32
    %214 = vector.broadcast %213 : i32 to vector<16x1xi32>
    %215 = arith.cmpi eq, %28, %214 : vector<16x1xi32>
    %216 = arith.andi %54, %215 : vector<16x1xi1>
    %217 = vector.extract_strided_slice %212 {offsets = [0, 0], sizes = [1, 32], strides = [1, 1]} : vector<2x32xf32> to vector<1x32xf32>
    %218 = vector.shape_cast %217 : vector<1x32xf32> to vector<1x32xf32>
    %219 = vector.broadcast %218 : vector<1x32xf32> to vector<16x32xf32>
    %220 = vector.shape_cast %216 : vector<16x1xi1> to vector<16x1xi1>
    %221 = vector.broadcast %220 : vector<16x1xi1> to vector<16x32xi1>
    %222 = arith.select %221, %219, %56 : vector<16x32xi1>, vector<16x32xf32>
    %c0_i32_66 = arith.constant 0 : i32
    %223 = arith.addi %57, %c0_i32_66 : i32
    %224 = vector.broadcast %223 : i32 to vector<16x1xi32>
    %225 = arith.cmpi eq, %28, %224 : vector<16x1xi32>
    %226 = arith.andi %68, %225 : vector<16x1xi1>
    %227 = vector.extract_strided_slice %212 {offsets = [1, 0], sizes = [1, 32], strides = [1, 1]} : vector<2x32xf32> to vector<1x32xf32>
    %228 = vector.shape_cast %227 : vector<1x32xf32> to vector<1x32xf32>
    %229 = vector.broadcast %228 : vector<1x32xf32> to vector<16x32xf32>
    %230 = vector.shape_cast %226 : vector<16x1xi1> to vector<16x1xi1>
    %231 = vector.broadcast %230 : vector<16x1xi1> to vector<16x32xi1>
    %232 = arith.select %231, %229, %70 : vector<16x32xi1>, vector<16x32xf32>
    %233 = arith.truncf %171 : vector<2x32xf32> to vector<2x32xbf16>
    %cst_67 = arith.constant dense<0.000000e+00> : vector<2x128xf32>
    %234 = tpu.matmul %233, %7, %cst_67 {dimension_numbers = #tpu.dot_dimension_numbers<[1], [0], [0], [1], [0, 0, 1, 1], [], []>} : vector<2x32xbf16>, vector<32x128xbf16>, vector<2x128xf32> -> vector<2x128xf32>
    %235 = vector.extract_strided_slice %234 {offsets = [0, 0], sizes = [2, 32], strides = [1, 1]} : vector<2x128xf32> to vector<2x32xf32>
    %236 = vector.extract_strided_slice %235 {offsets = [0, 0], sizes = [1, 32], strides = [1, 1]} : vector<2x32xf32> to vector<1x32xf32>
    %237 = vector.broadcast %236 : vector<1x32xf32> to vector<8x32xf32>
    %238 = arith.addf %237, %34 : vector<8x32xf32>
    %cst_68 = arith.constant 0.000000e+00 : f32
    %239 = vector.broadcast %cst_68 : f32 to vector<8x32xf32>
    %240 = arith.maximumf %238, %239 : vector<8x32xf32>
    %241 = arith.mulf %240, %12 : vector<8x32xf32>
    %cst_69 = arith.constant dense<0.000000e+00> : vector<8xf32>
    %242 = vector.multi_reduction <add>, %241, %cst_69 [1] : vector<8x32xf32> to vector<8xf32>
    %243 = vector.shape_cast %242 : vector<8xf32> to vector<8x1xf32>
    %cst_70 = arith.constant dense<0xFF800000> : vector<1xf32>
    %244 = vector.multi_reduction <maximumf>, %243, %cst_70 [0] : vector<8x1xf32> to vector<1xf32>
    %245 = vector.shape_cast %244 : vector<1xf32> to vector<1x1xf32>
    %246 = vector.broadcast %245 : vector<1x1xf32> to vector<8x1xf32>
    %247 = arith.subf %243, %246 : vector<8x1xf32>
    %248 = math.exp %247 : vector<8x1xf32>
    %cst_71 = arith.constant dense<0.000000e+00> : vector<1xf32>
    %249 = vector.multi_reduction <add>, %248, %cst_71 [0] : vector<8x1xf32> to vector<1xf32>
    %250 = vector.shape_cast %249 : vector<1xf32> to vector<1x1xf32>
    %251 = tpu.reciprocal %250 {approx = true} : vector<1x1xf32> -> vector<1x1xf32>
    %252 = vector.broadcast %251 : vector<1x1xf32> to vector<8x1xf32>
    %253 = arith.mulf %248, %252 : vector<8x1xf32>
    %254 = vector.broadcast %253 : vector<8x1xf32> to vector<8x32xf32>
    %255 = arith.mulf %254, %30 : vector<8x32xf32>
    %cst_72 = arith.constant dense<0.000000e+00> : vector<32xf32>
    %256 = vector.multi_reduction <add>, %255, %cst_72 [0] : vector<8x32xf32> to vector<32xf32>
    %257 = vector.shape_cast %256 : vector<32xf32> to vector<1x32xf32>
    %258 = vector.extract_strided_slice %235 {offsets = [1, 0], sizes = [1, 32], strides = [1, 1]} : vector<2x32xf32> to vector<1x32xf32>
    %259 = vector.broadcast %258 : vector<1x32xf32> to vector<8x32xf32>
    %260 = arith.addf %259, %36 : vector<8x32xf32>
    %cst_73 = arith.constant 0.000000e+00 : f32
    %261 = vector.broadcast %cst_73 : f32 to vector<8x32xf32>
    %262 = arith.maximumf %260, %261 : vector<8x32xf32>
    %263 = arith.mulf %262, %12 : vector<8x32xf32>
    %cst_74 = arith.constant dense<0.000000e+00> : vector<8xf32>
    %264 = vector.multi_reduction <add>, %263, %cst_74 [1] : vector<8x32xf32> to vector<8xf32>
    %265 = vector.shape_cast %264 : vector<8xf32> to vector<8x1xf32>
    %cst_75 = arith.constant dense<0xFF800000> : vector<1xf32>
    %266 = vector.multi_reduction <maximumf>, %265, %cst_75 [0] : vector<8x1xf32> to vector<1xf32>
    %267 = vector.shape_cast %266 : vector<1xf32> to vector<1x1xf32>
    %268 = vector.broadcast %267 : vector<1x1xf32> to vector<8x1xf32>
    %269 = arith.subf %265, %268 : vector<8x1xf32>
    %270 = math.exp %269 : vector<8x1xf32>
    %cst_76 = arith.constant dense<0.000000e+00> : vector<1xf32>
    %271 = vector.multi_reduction <add>, %270, %cst_76 [0] : vector<8x1xf32> to vector<1xf32>
    %272 = vector.shape_cast %271 : vector<1xf32> to vector<1x1xf32>
    %273 = tpu.reciprocal %272 {approx = true} : vector<1x1xf32> -> vector<1x1xf32>
    %274 = vector.broadcast %273 : vector<1x1xf32> to vector<8x1xf32>
    %275 = arith.mulf %270, %274 : vector<8x1xf32>
    %276 = vector.broadcast %275 : vector<8x1xf32> to vector<8x32xf32>
    %277 = arith.mulf %276, %32 : vector<8x32xf32>
    %cst_77 = arith.constant dense<0.000000e+00> : vector<32xf32>
    %278 = vector.multi_reduction <add>, %277, %cst_77 [0] : vector<8x32xf32> to vector<32xf32>
    %279 = vector.shape_cast %278 : vector<32xf32> to vector<1x32xf32>
    %280 = vector.shape_cast %257 : vector<1x32xf32> to vector<1x32xf32>
    %281 = vector.broadcast %280 : vector<1x32xf32> to vector<2x32xf32>
    %c1_i32_78 = arith.constant 1 : i32
    %282 = vector.broadcast %c1_i32_78 : i32 to vector<2x1xi32>
    %283 = arith.cmpi eq, %27, %282 : vector<2x1xi32>
    %284 = vector.shape_cast %279 : vector<1x32xf32> to vector<1x32xf32>
    %285 = vector.broadcast %284 : vector<1x32xf32> to vector<2x32xf32>
    %286 = vector.shape_cast %283 : vector<2x1xi1> to vector<2x1xi1>
    %287 = vector.broadcast %286 : vector<2x1xi1> to vector<2x32xi1>
    %288 = arith.select %287, %285, %281 : vector<2x32xi1>, vector<2x32xf32>
    %289 = arith.truncf %189 : vector<2x128xf32> to vector<2x128xbf16>
    %cst_79 = arith.constant dense<0.000000e+00> : vector<2x128xf32>
    %290 = tpu.matmul %289, %0, %cst_79 {dimension_numbers = #tpu.dot_dimension_numbers<[1], [0], [0], [1], [0, 0, 1, 1], [], []>} : vector<2x128xbf16>, vector<128x128xbf16>, vector<2x128xf32> -> vector<2x128xf32>
    %291 = arith.addf %15, %290 : vector<2x128xf32>
    %292 = arith.truncf %288 : vector<2x32xf32> to vector<2x32xbf16>
    %cst_80 = arith.constant dense<0.000000e+00> : vector<2x128xf32>
    %293 = tpu.matmul %292, %1, %cst_80 {dimension_numbers = #tpu.dot_dimension_numbers<[1], [0], [0], [1], [0, 0, 1, 1], [], []>} : vector<2x32xbf16>, vector<32x128xbf16>, vector<2x128xf32> -> vector<2x128xf32>
    %294 = arith.addf %291, %293 : vector<2x128xf32>
    %295 = arith.truncf %150 : vector<2x32xf32> to vector<2x32xbf16>
    %cst_81 = arith.constant dense<0.000000e+00> : vector<2x128xf32>
    %296 = tpu.matmul %295, %2, %cst_81 {dimension_numbers = #tpu.dot_dimension_numbers<[1], [0], [0], [1], [0, 0, 1, 1], [], []>} : vector<2x32xbf16>, vector<32x128xbf16>, vector<2x128xf32> -> vector<2x128xf32>
    %297 = arith.addf %294, %296 : vector<2x128xf32>
    %298 = arith.negf %297 : vector<2x128xf32>
    %299 = math.exp %298 : vector<2x128xf32>
    %cst_82 = arith.constant 1.000000e+00 : f32
    %300 = vector.broadcast %cst_82 : f32 to vector<2x128xf32>
    %301 = arith.addf %300, %299 : vector<2x128xf32>
    %302 = arith.divf %300, %301 : vector<2x128xf32>
    %303 = vector.extract_strided_slice %302 {offsets = [0, 0], sizes = [2, 32], strides = [1, 1]} : vector<2x128xf32> to vector<2x32xf32>
    %304 = vector.extract_strided_slice %302 {offsets = [0, 32], sizes = [2, 32], strides = [1, 1]} : vector<2x128xf32> to vector<2x32xf32>
    %305 = vector.extract_strided_slice %302 {offsets = [0, 96], sizes = [2, 32], strides = [1, 1]} : vector<2x128xf32> to vector<2x32xf32>
    %306 = vector.extract_strided_slice %297 {offsets = [0, 64], sizes = [2, 32], strides = [1, 1]} : vector<2x128xf32> to vector<2x32xf32>
    %307 = math.tanh %306 : vector<2x32xf32>
    %308 = arith.mulf %304, %148 : vector<2x32xf32>
    %309 = arith.mulf %303, %307 : vector<2x32xf32>
    %310 = arith.addf %308, %309 : vector<2x32xf32>
    %311 = math.tanh %310 : vector<2x32xf32>
    %312 = arith.mulf %305, %311 : vector<2x32xf32>
    %313 = arith.truncf %312 : vector<2x32xf32> to vector<2x32xbf16>
    %cst_83 = arith.constant dense<0.000000e+00> : vector<2x128xf32>
    %314 = tpu.matmul %313, %3, %cst_83 {dimension_numbers = #tpu.dot_dimension_numbers<[1], [0], [0], [1], [0, 0, 1, 1], [], []>} : vector<2x32xbf16>, vector<32x128xbf16>, vector<2x128xf32> -> vector<2x128xf32>
    %315 = arith.addf %18, %314 : vector<2x128xf32>
    %316 = arith.truncf %171 : vector<2x32xf32> to vector<2x32xbf16>
    %cst_84 = arith.constant dense<0.000000e+00> : vector<2x128xf32>
    %317 = tpu.matmul %316, %4, %cst_84 {dimension_numbers = #tpu.dot_dimension_numbers<[1], [0], [0], [1], [0, 0, 1, 1], [], []>} : vector<2x32xbf16>, vector<32x128xbf16>, vector<2x128xf32> -> vector<2x128xf32>
    %318 = arith.addf %315, %317 : vector<2x128xf32>
    %319 = arith.negf %318 : vector<2x128xf32>
    %320 = math.exp %319 : vector<2x128xf32>
    %cst_85 = arith.constant 1.000000e+00 : f32
    %321 = vector.broadcast %cst_85 : f32 to vector<2x128xf32>
    %322 = arith.addf %321, %320 : vector<2x128xf32>
    %323 = arith.divf %321, %322 : vector<2x128xf32>
    %324 = vector.extract_strided_slice %323 {offsets = [0, 0], sizes = [2, 32], strides = [1, 1]} : vector<2x128xf32> to vector<2x32xf32>
    %325 = vector.extract_strided_slice %323 {offsets = [0, 32], sizes = [2, 32], strides = [1, 1]} : vector<2x128xf32> to vector<2x32xf32>
    %326 = vector.extract_strided_slice %323 {offsets = [0, 96], sizes = [2, 32], strides = [1, 1]} : vector<2x128xf32> to vector<2x32xf32>
    %327 = vector.extract_strided_slice %318 {offsets = [0, 64], sizes = [2, 32], strides = [1, 1]} : vector<2x128xf32> to vector<2x32xf32>
    %328 = math.tanh %327 : vector<2x32xf32>
    %329 = arith.mulf %325, %169 : vector<2x32xf32>
    %330 = arith.mulf %324, %328 : vector<2x32xf32>
    %331 = arith.addf %329, %330 : vector<2x32xf32>
    %332 = math.tanh %331 : vector<2x32xf32>
    %333 = arith.mulf %326, %332 : vector<2x32xf32>
    %334 = arith.truncf %333 : vector<2x32xf32> to vector<2x32xbf16>
    %cst_86 = arith.constant dense<0.000000e+00> : vector<2x128xf32>
    %335 = tpu.matmul %334, %5, %cst_86 {dimension_numbers = #tpu.dot_dimension_numbers<[1], [0], [0], [1], [0, 0, 1, 1], [], []>} : vector<2x32xbf16>, vector<32x128xbf16>, vector<2x128xf32> -> vector<2x128xf32>
    %336 = arith.addf %21, %335 : vector<2x128xf32>
    %337 = arith.truncf %288 : vector<2x32xf32> to vector<2x32xbf16>
    %cst_87 = arith.constant dense<0.000000e+00> : vector<2x128xf32>
    %338 = tpu.matmul %337, %6, %cst_87 {dimension_numbers = #tpu.dot_dimension_numbers<[1], [0], [0], [1], [0, 0, 1, 1], [], []>} : vector<2x32xbf16>, vector<32x128xbf16>, vector<2x128xf32> -> vector<2x128xf32>
    %339 = arith.addf %336, %338 : vector<2x128xf32>
    %cst_88 = arith.constant dense<0xFF800000> : vector<2xf32>
    %340 = vector.multi_reduction <maximumf>, %339, %cst_88 [1] : vector<2x128xf32> to vector<2xf32>
    %341 = vector.shape_cast %340 : vector<2xf32> to vector<2x1xf32>
    %342 = vector.broadcast %341 : vector<2x1xf32> to vector<2x128xf32>
    %343 = arith.cmpf oeq, %339, %342 : vector<2x128xf32>
    %c128_i32_89 = arith.constant 128 : i32
    %344 = vector.broadcast %c128_i32_89 : i32 to vector<2x128xi32>
    %345 = arith.select %343, %22, %344 : vector<2x128xi1>, vector<2x128xi32>
    %cst_90 = arith.constant dense<2147483647> : vector<2xi32>
    %346 = vector.multi_reduction <minsi>, %345, %cst_90 [1] : vector<2x128xi32> to vector<2xi32>
    %347 = vector.shape_cast %346 : vector<2xi32> to vector<2x1xi32>
    %348 = vector.broadcast %347 : vector<2x1xi32> to vector<2x128xi32>
    %349 = arith.cmpi eq, %22, %348 : vector<2x128xi32>
    %350 = arith.extui %349 : vector<2x128xi1> to vector<2x128xi32>
    %351 = arith.sitofp %350 : vector<2x128xi32> to vector<2x128xf32>
    %c3_i32_91 = arith.constant 3 : i32
    %352 = vector.broadcast %c3_i32_91 : i32 to vector<2x1xi32>
    %353 = arith.cmpi eq, %347, %352 : vector<2x1xi32>
    %c2_i32_92 = arith.constant 2 : i32
    %354 = vector.broadcast %c2_i32_92 : i32 to vector<2x1xi32>
    %355 = arith.cmpi eq, %347, %354 : vector<2x1xi32>
    %356 = arith.ori %353, %355 : vector<2x1xi1>
    %357 = vector.shape_cast %356 : vector<2x1xi1> to vector<2x1xi1>
    %358 = vector.broadcast %357 : vector<2x1xi1> to vector<2x128xi1>
    %359 = arith.select %358, %26, %339 : vector<2x128xi1>, vector<2x128xf32>
    %cst_93 = arith.constant 2.000000e+00 : f32
    %360 = vector.broadcast %cst_93 : f32 to vector<2x128xf32>
    %361 = arith.mulf %359, %360 : vector<2x128xf32>
    %cst_94 = arith.constant dense<0xFF800000> : vector<2xf32>
    %362 = vector.multi_reduction <maximumf>, %361, %cst_94 [1] : vector<2x128xf32> to vector<2xf32>
    %363 = vector.shape_cast %362 : vector<2xf32> to vector<2x1xf32>
    %364 = vector.broadcast %363 : vector<2x1xf32> to vector<2x128xf32>
    %365 = arith.subf %361, %364 : vector<2x128xf32>
    %366 = math.exp %365 : vector<2x128xf32>
    %cst_95 = arith.constant dense<0.000000e+00> : vector<2xf32>
    %367 = vector.multi_reduction <add>, %366, %cst_95 [1] : vector<2x128xf32> to vector<2xf32>
    %368 = vector.shape_cast %367 : vector<2xf32> to vector<2x1xf32>
    %369 = tpu.reciprocal %368 {approx = true} : vector<2x1xf32> -> vector<2x1xf32>
    %370 = vector.broadcast %369 : vector<2x1xf32> to vector<2x128xf32>
    %371 = arith.mulf %366, %370 : vector<2x128xf32>
    %372 = arith.truncf %371 : vector<2x128xf32> to vector<2x128xbf16>
    %cst_96 = arith.constant dense<0.000000e+00> : vector<2x128xf32>
    %373 = tpu.matmul %372, %8, %cst_96 {dimension_numbers = #tpu.dot_dimension_numbers<[1], [0], [0], [1], [0, 0, 1, 1], [], []>} : vector<2x128xbf16>, vector<128x128xbf16>, vector<2x128xf32> -> vector<2x128xf32>
    %374 = vector.extract_strided_slice %373 {offsets = [0, 0], sizes = [2, 32], strides = [1, 1]} : vector<2x128xf32> to vector<2x32xf32>
    %c1_i32_97 = arith.constant 1 : i32
    %375 = arith.addi %43, %c1_i32_97 : i32
    %376 = vector.broadcast %375 : i32 to vector<16x1xi32>
    %377 = arith.cmpi eq, %28, %376 : vector<16x1xi32>
    %378 = arith.andi %54, %377 : vector<16x1xi1>
    %379 = vector.extract_strided_slice %374 {offsets = [0, 0], sizes = [1, 32], strides = [1, 1]} : vector<2x32xf32> to vector<1x32xf32>
    %380 = vector.shape_cast %379 : vector<1x32xf32> to vector<1x32xf32>
    %381 = vector.broadcast %380 : vector<1x32xf32> to vector<16x32xf32>
    %382 = vector.shape_cast %378 : vector<16x1xi1> to vector<16x1xi1>
    %383 = vector.broadcast %382 : vector<16x1xi1> to vector<16x32xi1>
    %384 = arith.select %383, %381, %222 : vector<16x32xi1>, vector<16x32xf32>
    %c1_i32_98 = arith.constant 1 : i32
    %385 = arith.addi %57, %c1_i32_98 : i32
    %386 = vector.broadcast %385 : i32 to vector<16x1xi32>
    %387 = arith.cmpi eq, %28, %386 : vector<16x1xi32>
    %388 = arith.andi %68, %387 : vector<16x1xi1>
    %389 = vector.extract_strided_slice %374 {offsets = [1, 0], sizes = [1, 32], strides = [1, 1]} : vector<2x32xf32> to vector<1x32xf32>
    %390 = vector.shape_cast %389 : vector<1x32xf32> to vector<1x32xf32>
    %391 = vector.broadcast %390 : vector<1x32xf32> to vector<16x32xf32>
    %392 = vector.shape_cast %388 : vector<16x1xi1> to vector<16x1xi1>
    %393 = vector.broadcast %392 : vector<16x1xi1> to vector<16x32xi1>
    %394 = arith.select %393, %391, %232 : vector<16x32xi1>, vector<16x32xf32>
    %395 = arith.truncf %333 : vector<2x32xf32> to vector<2x32xbf16>
    %cst_99 = arith.constant dense<0.000000e+00> : vector<2x128xf32>
    %396 = tpu.matmul %395, %7, %cst_99 {dimension_numbers = #tpu.dot_dimension_numbers<[1], [0], [0], [1], [0, 0, 1, 1], [], []>} : vector<2x32xbf16>, vector<32x128xbf16>, vector<2x128xf32> -> vector<2x128xf32>
    %397 = vector.extract_strided_slice %396 {offsets = [0, 0], sizes = [2, 32], strides = [1, 1]} : vector<2x128xf32> to vector<2x32xf32>
    %398 = vector.extract_strided_slice %397 {offsets = [0, 0], sizes = [1, 32], strides = [1, 1]} : vector<2x32xf32> to vector<1x32xf32>
    %399 = vector.broadcast %398 : vector<1x32xf32> to vector<8x32xf32>
    %400 = arith.addf %399, %34 : vector<8x32xf32>
    %cst_100 = arith.constant 0.000000e+00 : f32
    %401 = vector.broadcast %cst_100 : f32 to vector<8x32xf32>
    %402 = arith.maximumf %400, %401 : vector<8x32xf32>
    %403 = arith.mulf %402, %12 : vector<8x32xf32>
    %cst_101 = arith.constant dense<0.000000e+00> : vector<8xf32>
    %404 = vector.multi_reduction <add>, %403, %cst_101 [1] : vector<8x32xf32> to vector<8xf32>
    %405 = vector.shape_cast %404 : vector<8xf32> to vector<8x1xf32>
    %cst_102 = arith.constant dense<0xFF800000> : vector<1xf32>
    %406 = vector.multi_reduction <maximumf>, %405, %cst_102 [0] : vector<8x1xf32> to vector<1xf32>
    %407 = vector.shape_cast %406 : vector<1xf32> to vector<1x1xf32>
    %408 = vector.broadcast %407 : vector<1x1xf32> to vector<8x1xf32>
    %409 = arith.subf %405, %408 : vector<8x1xf32>
    %410 = math.exp %409 : vector<8x1xf32>
    %cst_103 = arith.constant dense<0.000000e+00> : vector<1xf32>
    %411 = vector.multi_reduction <add>, %410, %cst_103 [0] : vector<8x1xf32> to vector<1xf32>
    %412 = vector.shape_cast %411 : vector<1xf32> to vector<1x1xf32>
    %413 = tpu.reciprocal %412 {approx = true} : vector<1x1xf32> -> vector<1x1xf32>
    %414 = vector.broadcast %413 : vector<1x1xf32> to vector<8x1xf32>
    %415 = arith.mulf %410, %414 : vector<8x1xf32>
    %416 = vector.broadcast %415 : vector<8x1xf32> to vector<8x32xf32>
    %417 = arith.mulf %416, %30 : vector<8x32xf32>
    %cst_104 = arith.constant dense<0.000000e+00> : vector<32xf32>
    %418 = vector.multi_reduction <add>, %417, %cst_104 [0] : vector<8x32xf32> to vector<32xf32>
    %419 = vector.shape_cast %418 : vector<32xf32> to vector<1x32xf32>
    %420 = vector.extract_strided_slice %397 {offsets = [1, 0], sizes = [1, 32], strides = [1, 1]} : vector<2x32xf32> to vector<1x32xf32>
    %421 = vector.broadcast %420 : vector<1x32xf32> to vector<8x32xf32>
    %422 = arith.addf %421, %36 : vector<8x32xf32>
    %cst_105 = arith.constant 0.000000e+00 : f32
    %423 = vector.broadcast %cst_105 : f32 to vector<8x32xf32>
    %424 = arith.maximumf %422, %423 : vector<8x32xf32>
    %425 = arith.mulf %424, %12 : vector<8x32xf32>
    %cst_106 = arith.constant dense<0.000000e+00> : vector<8xf32>
    %426 = vector.multi_reduction <add>, %425, %cst_106 [1] : vector<8x32xf32> to vector<8xf32>
    %427 = vector.shape_cast %426 : vector<8xf32> to vector<8x1xf32>
    %cst_107 = arith.constant dense<0xFF800000> : vector<1xf32>
    %428 = vector.multi_reduction <maximumf>, %427, %cst_107 [0] : vector<8x1xf32> to vector<1xf32>
    %429 = vector.shape_cast %428 : vector<1xf32> to vector<1x1xf32>
    %430 = vector.broadcast %429 : vector<1x1xf32> to vector<8x1xf32>
    %431 = arith.subf %427, %430 : vector<8x1xf32>
    %432 = math.exp %431 : vector<8x1xf32>
    %cst_108 = arith.constant dense<0.000000e+00> : vector<1xf32>
    %433 = vector.multi_reduction <add>, %432, %cst_108 [0] : vector<8x1xf32> to vector<1xf32>
    %434 = vector.shape_cast %433 : vector<1xf32> to vector<1x1xf32>
    %435 = tpu.reciprocal %434 {approx = true} : vector<1x1xf32> -> vector<1x1xf32>
    %436 = vector.broadcast %435 : vector<1x1xf32> to vector<8x1xf32>
    %437 = arith.mulf %432, %436 : vector<8x1xf32>
    %438 = vector.broadcast %437 : vector<8x1xf32> to vector<8x32xf32>
    %439 = arith.mulf %438, %32 : vector<8x32xf32>
    %cst_109 = arith.constant dense<0.000000e+00> : vector<32xf32>
    %440 = vector.multi_reduction <add>, %439, %cst_109 [0] : vector<8x32xf32> to vector<32xf32>
    %441 = vector.shape_cast %440 : vector<32xf32> to vector<1x32xf32>
    %442 = vector.shape_cast %419 : vector<1x32xf32> to vector<1x32xf32>
    %443 = vector.broadcast %442 : vector<1x32xf32> to vector<2x32xf32>
    %c1_i32_110 = arith.constant 1 : i32
    %444 = vector.broadcast %c1_i32_110 : i32 to vector<2x1xi32>
    %445 = arith.cmpi eq, %27, %444 : vector<2x1xi32>
    %446 = vector.shape_cast %441 : vector<1x32xf32> to vector<1x32xf32>
    %447 = vector.broadcast %446 : vector<1x32xf32> to vector<2x32xf32>
    %448 = vector.shape_cast %445 : vector<2x1xi1> to vector<2x1xi1>
    %449 = vector.broadcast %448 : vector<2x1xi1> to vector<2x32xi1>
    %450 = arith.select %449, %447, %443 : vector<2x32xi1>, vector<2x32xf32>
    %451 = arith.truncf %351 : vector<2x128xf32> to vector<2x128xbf16>
    %cst_111 = arith.constant dense<0.000000e+00> : vector<2x128xf32>
    %452 = tpu.matmul %451, %0, %cst_111 {dimension_numbers = #tpu.dot_dimension_numbers<[1], [0], [0], [1], [0, 0, 1, 1], [], []>} : vector<2x128xbf16>, vector<128x128xbf16>, vector<2x128xf32> -> vector<2x128xf32>
    %453 = arith.addf %15, %452 : vector<2x128xf32>
    %454 = arith.truncf %450 : vector<2x32xf32> to vector<2x32xbf16>
    %cst_112 = arith.constant dense<0.000000e+00> : vector<2x128xf32>
    %455 = tpu.matmul %454, %1, %cst_112 {dimension_numbers = #tpu.dot_dimension_numbers<[1], [0], [0], [1], [0, 0, 1, 1], [], []>} : vector<2x32xbf16>, vector<32x128xbf16>, vector<2x128xf32> -> vector<2x128xf32>
    %456 = arith.addf %453, %455 : vector<2x128xf32>
    %457 = arith.truncf %312 : vector<2x32xf32> to vector<2x32xbf16>
    %cst_113 = arith.constant dense<0.000000e+00> : vector<2x128xf32>
    %458 = tpu.matmul %457, %2, %cst_113 {dimension_numbers = #tpu.dot_dimension_numbers<[1], [0], [0], [1], [0, 0, 1, 1], [], []>} : vector<2x32xbf16>, vector<32x128xbf16>, vector<2x128xf32> -> vector<2x128xf32>
    %459 = arith.addf %456, %458 : vector<2x128xf32>
    %460 = arith.negf %459 : vector<2x128xf32>
    %461 = math.exp %460 : vector<2x128xf32>
    %cst_114 = arith.constant 1.000000e+00 : f32
    %462 = vector.broadcast %cst_114 : f32 to vector<2x128xf32>
    %463 = arith.addf %462, %461 : vector<2x128xf32>
    %464 = arith.divf %462, %463 : vector<2x128xf32>
    %465 = vector.extract_strided_slice %464 {offsets = [0, 0], sizes = [2, 32], strides = [1, 1]} : vector<2x128xf32> to vector<2x32xf32>
    %466 = vector.extract_strided_slice %464 {offsets = [0, 32], sizes = [2, 32], strides = [1, 1]} : vector<2x128xf32> to vector<2x32xf32>
    %467 = vector.extract_strided_slice %464 {offsets = [0, 96], sizes = [2, 32], strides = [1, 1]} : vector<2x128xf32> to vector<2x32xf32>
    %468 = vector.extract_strided_slice %459 {offsets = [0, 64], sizes = [2, 32], strides = [1, 1]} : vector<2x128xf32> to vector<2x32xf32>
    %469 = math.tanh %468 : vector<2x32xf32>
    %470 = arith.mulf %466, %310 : vector<2x32xf32>
    %471 = arith.mulf %465, %469 : vector<2x32xf32>
    %472 = arith.addf %470, %471 : vector<2x32xf32>
    %473 = math.tanh %472 : vector<2x32xf32>
    %474 = arith.mulf %467, %473 : vector<2x32xf32>
    %475 = arith.truncf %474 : vector<2x32xf32> to vector<2x32xbf16>
    %cst_115 = arith.constant dense<0.000000e+00> : vector<2x128xf32>
    %476 = tpu.matmul %475, %3, %cst_115 {dimension_numbers = #tpu.dot_dimension_numbers<[1], [0], [0], [1], [0, 0, 1, 1], [], []>} : vector<2x32xbf16>, vector<32x128xbf16>, vector<2x128xf32> -> vector<2x128xf32>
    %477 = arith.addf %18, %476 : vector<2x128xf32>
    %478 = arith.truncf %333 : vector<2x32xf32> to vector<2x32xbf16>
    %cst_116 = arith.constant dense<0.000000e+00> : vector<2x128xf32>
    %479 = tpu.matmul %478, %4, %cst_116 {dimension_numbers = #tpu.dot_dimension_numbers<[1], [0], [0], [1], [0, 0, 1, 1], [], []>} : vector<2x32xbf16>, vector<32x128xbf16>, vector<2x128xf32> -> vector<2x128xf32>
    %480 = arith.addf %477, %479 : vector<2x128xf32>
    %481 = arith.negf %480 : vector<2x128xf32>
    %482 = math.exp %481 : vector<2x128xf32>
    %cst_117 = arith.constant 1.000000e+00 : f32
    %483 = vector.broadcast %cst_117 : f32 to vector<2x128xf32>
    %484 = arith.addf %483, %482 : vector<2x128xf32>
    %485 = arith.divf %483, %484 : vector<2x128xf32>
    %486 = vector.extract_strided_slice %485 {offsets = [0, 0], sizes = [2, 32], strides = [1, 1]} : vector<2x128xf32> to vector<2x32xf32>
    %487 = vector.extract_strided_slice %485 {offsets = [0, 32], sizes = [2, 32], strides = [1, 1]} : vector<2x128xf32> to vector<2x32xf32>
    %488 = vector.extract_strided_slice %485 {offsets = [0, 96], sizes = [2, 32], strides = [1, 1]} : vector<2x128xf32> to vector<2x32xf32>
    %489 = vector.extract_strided_slice %480 {offsets = [0, 64], sizes = [2, 32], strides = [1, 1]} : vector<2x128xf32> to vector<2x32xf32>
    %490 = math.tanh %489 : vector<2x32xf32>
    %491 = arith.mulf %487, %331 : vector<2x32xf32>
    %492 = arith.mulf %486, %490 : vector<2x32xf32>
    %493 = arith.addf %491, %492 : vector<2x32xf32>
    %494 = math.tanh %493 : vector<2x32xf32>
    %495 = arith.mulf %488, %494 : vector<2x32xf32>
    %496 = arith.truncf %495 : vector<2x32xf32> to vector<2x32xbf16>
    %cst_118 = arith.constant dense<0.000000e+00> : vector<2x128xf32>
    %497 = tpu.matmul %496, %5, %cst_118 {dimension_numbers = #tpu.dot_dimension_numbers<[1], [0], [0], [1], [0, 0, 1, 1], [], []>} : vector<2x32xbf16>, vector<32x128xbf16>, vector<2x128xf32> -> vector<2x128xf32>
    %498 = arith.addf %21, %497 : vector<2x128xf32>
    %499 = arith.truncf %450 : vector<2x32xf32> to vector<2x32xbf16>
    %cst_119 = arith.constant dense<0.000000e+00> : vector<2x128xf32>
    %500 = tpu.matmul %499, %6, %cst_119 {dimension_numbers = #tpu.dot_dimension_numbers<[1], [0], [0], [1], [0, 0, 1, 1], [], []>} : vector<2x32xbf16>, vector<32x128xbf16>, vector<2x128xf32> -> vector<2x128xf32>
    %501 = arith.addf %498, %500 : vector<2x128xf32>
    %cst_120 = arith.constant dense<0xFF800000> : vector<2xf32>
    %502 = vector.multi_reduction <maximumf>, %501, %cst_120 [1] : vector<2x128xf32> to vector<2xf32>
    %503 = vector.shape_cast %502 : vector<2xf32> to vector<2x1xf32>
    %504 = vector.broadcast %503 : vector<2x1xf32> to vector<2x128xf32>
    %505 = arith.cmpf oeq, %501, %504 : vector<2x128xf32>
    %c128_i32_121 = arith.constant 128 : i32
    %506 = vector.broadcast %c128_i32_121 : i32 to vector<2x128xi32>
    %507 = arith.select %505, %22, %506 : vector<2x128xi1>, vector<2x128xi32>
    %cst_122 = arith.constant dense<2147483647> : vector<2xi32>
    %508 = vector.multi_reduction <minsi>, %507, %cst_122 [1] : vector<2x128xi32> to vector<2xi32>
    %509 = vector.shape_cast %508 : vector<2xi32> to vector<2x1xi32>
    %510 = vector.broadcast %509 : vector<2x1xi32> to vector<2x128xi32>
    %511 = arith.cmpi eq, %22, %510 : vector<2x128xi32>
    %512 = arith.extui %511 : vector<2x128xi1> to vector<2x128xi32>
    %513 = arith.sitofp %512 : vector<2x128xi32> to vector<2x128xf32>
    %c3_i32_123 = arith.constant 3 : i32
    %514 = vector.broadcast %c3_i32_123 : i32 to vector<2x1xi32>
    %515 = arith.cmpi eq, %509, %514 : vector<2x1xi32>
    %c2_i32_124 = arith.constant 2 : i32
    %516 = vector.broadcast %c2_i32_124 : i32 to vector<2x1xi32>
    %517 = arith.cmpi eq, %509, %516 : vector<2x1xi32>
    %518 = arith.ori %515, %517 : vector<2x1xi1>
    %519 = vector.shape_cast %518 : vector<2x1xi1> to vector<2x1xi1>
    %520 = vector.broadcast %519 : vector<2x1xi1> to vector<2x128xi1>
    %521 = arith.select %520, %26, %501 : vector<2x128xi1>, vector<2x128xf32>
    %cst_125 = arith.constant 2.000000e+00 : f32
    %522 = vector.broadcast %cst_125 : f32 to vector<2x128xf32>
    %523 = arith.mulf %521, %522 : vector<2x128xf32>
    %cst_126 = arith.constant dense<0xFF800000> : vector<2xf32>
    %524 = vector.multi_reduction <maximumf>, %523, %cst_126 [1] : vector<2x128xf32> to vector<2xf32>
    %525 = vector.shape_cast %524 : vector<2xf32> to vector<2x1xf32>
    %526 = vector.broadcast %525 : vector<2x1xf32> to vector<2x128xf32>
    %527 = arith.subf %523, %526 : vector<2x128xf32>
    %528 = math.exp %527 : vector<2x128xf32>
    %cst_127 = arith.constant dense<0.000000e+00> : vector<2xf32>
    %529 = vector.multi_reduction <add>, %528, %cst_127 [1] : vector<2x128xf32> to vector<2xf32>
    %530 = vector.shape_cast %529 : vector<2xf32> to vector<2x1xf32>
    %531 = tpu.reciprocal %530 {approx = true} : vector<2x1xf32> -> vector<2x1xf32>
    %532 = vector.broadcast %531 : vector<2x1xf32> to vector<2x128xf32>
    %533 = arith.mulf %528, %532 : vector<2x128xf32>
    %534 = arith.truncf %533 : vector<2x128xf32> to vector<2x128xbf16>
    %cst_128 = arith.constant dense<0.000000e+00> : vector<2x128xf32>
    %535 = tpu.matmul %534, %8, %cst_128 {dimension_numbers = #tpu.dot_dimension_numbers<[1], [0], [0], [1], [0, 0, 1, 1], [], []>} : vector<2x128xbf16>, vector<128x128xbf16>, vector<2x128xf32> -> vector<2x128xf32>
    %536 = vector.extract_strided_slice %535 {offsets = [0, 0], sizes = [2, 32], strides = [1, 1]} : vector<2x128xf32> to vector<2x32xf32>
    %c2_i32_129 = arith.constant 2 : i32
    %537 = arith.addi %43, %c2_i32_129 : i32
    %538 = vector.broadcast %537 : i32 to vector<16x1xi32>
    %539 = arith.cmpi eq, %28, %538 : vector<16x1xi32>
    %540 = arith.andi %54, %539 : vector<16x1xi1>
    %541 = vector.extract_strided_slice %536 {offsets = [0, 0], sizes = [1, 32], strides = [1, 1]} : vector<2x32xf32> to vector<1x32xf32>
    %542 = vector.shape_cast %541 : vector<1x32xf32> to vector<1x32xf32>
    %543 = vector.broadcast %542 : vector<1x32xf32> to vector<16x32xf32>
    %544 = vector.shape_cast %540 : vector<16x1xi1> to vector<16x1xi1>
    %545 = vector.broadcast %544 : vector<16x1xi1> to vector<16x32xi1>
    %546 = arith.select %545, %543, %384 : vector<16x32xi1>, vector<16x32xf32>
    %c2_i32_130 = arith.constant 2 : i32
    %547 = arith.addi %57, %c2_i32_130 : i32
    %548 = vector.broadcast %547 : i32 to vector<16x1xi32>
    %549 = arith.cmpi eq, %28, %548 : vector<16x1xi32>
    %550 = arith.andi %68, %549 : vector<16x1xi1>
    %551 = vector.extract_strided_slice %536 {offsets = [1, 0], sizes = [1, 32], strides = [1, 1]} : vector<2x32xf32> to vector<1x32xf32>
    %552 = vector.shape_cast %551 : vector<1x32xf32> to vector<1x32xf32>
    %553 = vector.broadcast %552 : vector<1x32xf32> to vector<16x32xf32>
    %554 = vector.shape_cast %550 : vector<16x1xi1> to vector<16x1xi1>
    %555 = vector.broadcast %554 : vector<16x1xi1> to vector<16x32xi1>
    %556 = arith.select %555, %553, %394 : vector<16x32xi1>, vector<16x32xf32>
    %557 = arith.truncf %495 : vector<2x32xf32> to vector<2x32xbf16>
    %cst_131 = arith.constant dense<0.000000e+00> : vector<2x128xf32>
    %558 = tpu.matmul %557, %7, %cst_131 {dimension_numbers = #tpu.dot_dimension_numbers<[1], [0], [0], [1], [0, 0, 1, 1], [], []>} : vector<2x32xbf16>, vector<32x128xbf16>, vector<2x128xf32> -> vector<2x128xf32>
    %559 = vector.extract_strided_slice %558 {offsets = [0, 0], sizes = [2, 32], strides = [1, 1]} : vector<2x128xf32> to vector<2x32xf32>
    %560 = vector.extract_strided_slice %559 {offsets = [0, 0], sizes = [1, 32], strides = [1, 1]} : vector<2x32xf32> to vector<1x32xf32>
    %561 = vector.broadcast %560 : vector<1x32xf32> to vector<8x32xf32>
    %562 = arith.addf %561, %34 : vector<8x32xf32>
    %cst_132 = arith.constant 0.000000e+00 : f32
    %563 = vector.broadcast %cst_132 : f32 to vector<8x32xf32>
    %564 = arith.maximumf %562, %563 : vector<8x32xf32>
    %565 = arith.mulf %564, %12 : vector<8x32xf32>
    %cst_133 = arith.constant dense<0.000000e+00> : vector<8xf32>
    %566 = vector.multi_reduction <add>, %565, %cst_133 [1] : vector<8x32xf32> to vector<8xf32>
    %567 = vector.shape_cast %566 : vector<8xf32> to vector<8x1xf32>
    %cst_134 = arith.constant dense<0xFF800000> : vector<1xf32>
    %568 = vector.multi_reduction <maximumf>, %567, %cst_134 [0] : vector<8x1xf32> to vector<1xf32>
    %569 = vector.shape_cast %568 : vector<1xf32> to vector<1x1xf32>
    %570 = vector.broadcast %569 : vector<1x1xf32> to vector<8x1xf32>
    %571 = arith.subf %567, %570 : vector<8x1xf32>
    %572 = math.exp %571 : vector<8x1xf32>
    %cst_135 = arith.constant dense<0.000000e+00> : vector<1xf32>
    %573 = vector.multi_reduction <add>, %572, %cst_135 [0] : vector<8x1xf32> to vector<1xf32>
    %574 = vector.shape_cast %573 : vector<1xf32> to vector<1x1xf32>
    %575 = tpu.reciprocal %574 {approx = true} : vector<1x1xf32> -> vector<1x1xf32>
    %576 = vector.broadcast %575 : vector<1x1xf32> to vector<8x1xf32>
    %577 = arith.mulf %572, %576 : vector<8x1xf32>
    %578 = vector.broadcast %577 : vector<8x1xf32> to vector<8x32xf32>
    %579 = arith.mulf %578, %30 : vector<8x32xf32>
    %cst_136 = arith.constant dense<0.000000e+00> : vector<32xf32>
    %580 = vector.multi_reduction <add>, %579, %cst_136 [0] : vector<8x32xf32> to vector<32xf32>
    %581 = vector.shape_cast %580 : vector<32xf32> to vector<1x32xf32>
    %582 = vector.extract_strided_slice %559 {offsets = [1, 0], sizes = [1, 32], strides = [1, 1]} : vector<2x32xf32> to vector<1x32xf32>
    %583 = vector.broadcast %582 : vector<1x32xf32> to vector<8x32xf32>
    %584 = arith.addf %583, %36 : vector<8x32xf32>
    %cst_137 = arith.constant 0.000000e+00 : f32
    %585 = vector.broadcast %cst_137 : f32 to vector<8x32xf32>
    %586 = arith.maximumf %584, %585 : vector<8x32xf32>
    %587 = arith.mulf %586, %12 : vector<8x32xf32>
    %cst_138 = arith.constant dense<0.000000e+00> : vector<8xf32>
    %588 = vector.multi_reduction <add>, %587, %cst_138 [1] : vector<8x32xf32> to vector<8xf32>
    %589 = vector.shape_cast %588 : vector<8xf32> to vector<8x1xf32>
    %cst_139 = arith.constant dense<0xFF800000> : vector<1xf32>
    %590 = vector.multi_reduction <maximumf>, %589, %cst_139 [0] : vector<8x1xf32> to vector<1xf32>
    %591 = vector.shape_cast %590 : vector<1xf32> to vector<1x1xf32>
    %592 = vector.broadcast %591 : vector<1x1xf32> to vector<8x1xf32>
    %593 = arith.subf %589, %592 : vector<8x1xf32>
    %594 = math.exp %593 : vector<8x1xf32>
    %cst_140 = arith.constant dense<0.000000e+00> : vector<1xf32>
    %595 = vector.multi_reduction <add>, %594, %cst_140 [0] : vector<8x1xf32> to vector<1xf32>
    %596 = vector.shape_cast %595 : vector<1xf32> to vector<1x1xf32>
    %597 = tpu.reciprocal %596 {approx = true} : vector<1x1xf32> -> vector<1x1xf32>
    %598 = vector.broadcast %597 : vector<1x1xf32> to vector<8x1xf32>
    %599 = arith.mulf %594, %598 : vector<8x1xf32>
    %600 = vector.broadcast %599 : vector<8x1xf32> to vector<8x32xf32>
    %601 = arith.mulf %600, %32 : vector<8x32xf32>
    %cst_141 = arith.constant dense<0.000000e+00> : vector<32xf32>
    %602 = vector.multi_reduction <add>, %601, %cst_141 [0] : vector<8x32xf32> to vector<32xf32>
    %603 = vector.shape_cast %602 : vector<32xf32> to vector<1x32xf32>
    %604 = vector.shape_cast %581 : vector<1x32xf32> to vector<1x32xf32>
    %605 = vector.broadcast %604 : vector<1x32xf32> to vector<2x32xf32>
    %c1_i32_142 = arith.constant 1 : i32
    %606 = vector.broadcast %c1_i32_142 : i32 to vector<2x1xi32>
    %607 = arith.cmpi eq, %27, %606 : vector<2x1xi32>
    %608 = vector.shape_cast %603 : vector<1x32xf32> to vector<1x32xf32>
    %609 = vector.broadcast %608 : vector<1x32xf32> to vector<2x32xf32>
    %610 = vector.shape_cast %607 : vector<2x1xi1> to vector<2x1xi1>
    %611 = vector.broadcast %610 : vector<2x1xi1> to vector<2x32xi1>
    %612 = arith.select %611, %609, %605 : vector<2x32xi1>, vector<2x32xf32>
    %613 = arith.truncf %513 : vector<2x128xf32> to vector<2x128xbf16>
    %cst_143 = arith.constant dense<0.000000e+00> : vector<2x128xf32>
    %614 = tpu.matmul %613, %0, %cst_143 {dimension_numbers = #tpu.dot_dimension_numbers<[1], [0], [0], [1], [0, 0, 1, 1], [], []>} : vector<2x128xbf16>, vector<128x128xbf16>, vector<2x128xf32> -> vector<2x128xf32>
    %615 = arith.addf %15, %614 : vector<2x128xf32>
    %616 = arith.truncf %612 : vector<2x32xf32> to vector<2x32xbf16>
    %cst_144 = arith.constant dense<0.000000e+00> : vector<2x128xf32>
    %617 = tpu.matmul %616, %1, %cst_144 {dimension_numbers = #tpu.dot_dimension_numbers<[1], [0], [0], [1], [0, 0, 1, 1], [], []>} : vector<2x32xbf16>, vector<32x128xbf16>, vector<2x128xf32> -> vector<2x128xf32>
    %618 = arith.addf %615, %617 : vector<2x128xf32>
    %619 = arith.truncf %474 : vector<2x32xf32> to vector<2x32xbf16>
    %cst_145 = arith.constant dense<0.000000e+00> : vector<2x128xf32>
    %620 = tpu.matmul %619, %2, %cst_145 {dimension_numbers = #tpu.dot_dimension_numbers<[1], [0], [0], [1], [0, 0, 1, 1], [], []>} : vector<2x32xbf16>, vector<32x128xbf16>, vector<2x128xf32> -> vector<2x128xf32>
    %621 = arith.addf %618, %620 : vector<2x128xf32>
    %622 = arith.negf %621 : vector<2x128xf32>
    %623 = math.exp %622 : vector<2x128xf32>
    %cst_146 = arith.constant 1.000000e+00 : f32
    %624 = vector.broadcast %cst_146 : f32 to vector<2x128xf32>
    %625 = arith.addf %624, %623 : vector<2x128xf32>
    %626 = arith.divf %624, %625 : vector<2x128xf32>
    %627 = vector.extract_strided_slice %626 {offsets = [0, 0], sizes = [2, 32], strides = [1, 1]} : vector<2x128xf32> to vector<2x32xf32>
    %628 = vector.extract_strided_slice %626 {offsets = [0, 32], sizes = [2, 32], strides = [1, 1]} : vector<2x128xf32> to vector<2x32xf32>
    %629 = vector.extract_strided_slice %626 {offsets = [0, 96], sizes = [2, 32], strides = [1, 1]} : vector<2x128xf32> to vector<2x32xf32>
    %630 = vector.extract_strided_slice %621 {offsets = [0, 64], sizes = [2, 32], strides = [1, 1]} : vector<2x128xf32> to vector<2x32xf32>
    %631 = math.tanh %630 : vector<2x32xf32>
    %632 = arith.mulf %628, %472 : vector<2x32xf32>
    %633 = arith.mulf %627, %631 : vector<2x32xf32>
    %634 = arith.addf %632, %633 : vector<2x32xf32>
    %635 = math.tanh %634 : vector<2x32xf32>
    %636 = arith.mulf %629, %635 : vector<2x32xf32>
    %637 = arith.truncf %636 : vector<2x32xf32> to vector<2x32xbf16>
    %cst_147 = arith.constant dense<0.000000e+00> : vector<2x128xf32>
    %638 = tpu.matmul %637, %3, %cst_147 {dimension_numbers = #tpu.dot_dimension_numbers<[1], [0], [0], [1], [0, 0, 1, 1], [], []>} : vector<2x32xbf16>, vector<32x128xbf16>, vector<2x128xf32> -> vector<2x128xf32>
    %639 = arith.addf %18, %638 : vector<2x128xf32>
    %640 = arith.truncf %495 : vector<2x32xf32> to vector<2x32xbf16>
    %cst_148 = arith.constant dense<0.000000e+00> : vector<2x128xf32>
    %641 = tpu.matmul %640, %4, %cst_148 {dimension_numbers = #tpu.dot_dimension_numbers<[1], [0], [0], [1], [0, 0, 1, 1], [], []>} : vector<2x32xbf16>, vector<32x128xbf16>, vector<2x128xf32> -> vector<2x128xf32>
    %642 = arith.addf %639, %641 : vector<2x128xf32>
    %643 = arith.negf %642 : vector<2x128xf32>
    %644 = math.exp %643 : vector<2x128xf32>
    %cst_149 = arith.constant 1.000000e+00 : f32
    %645 = vector.broadcast %cst_149 : f32 to vector<2x128xf32>
    %646 = arith.addf %645, %644 : vector<2x128xf32>
    %647 = arith.divf %645, %646 : vector<2x128xf32>
    %648 = vector.extract_strided_slice %647 {offsets = [0, 0], sizes = [2, 32], strides = [1, 1]} : vector<2x128xf32> to vector<2x32xf32>
    %649 = vector.extract_strided_slice %647 {offsets = [0, 32], sizes = [2, 32], strides = [1, 1]} : vector<2x128xf32> to vector<2x32xf32>
    %650 = vector.extract_strided_slice %647 {offsets = [0, 96], sizes = [2, 32], strides = [1, 1]} : vector<2x128xf32> to vector<2x32xf32>
    %651 = vector.extract_strided_slice %642 {offsets = [0, 64], sizes = [2, 32], strides = [1, 1]} : vector<2x128xf32> to vector<2x32xf32>
    %652 = math.tanh %651 : vector<2x32xf32>
    %653 = arith.mulf %649, %493 : vector<2x32xf32>
    %654 = arith.mulf %648, %652 : vector<2x32xf32>
    %655 = arith.addf %653, %654 : vector<2x32xf32>
    %656 = math.tanh %655 : vector<2x32xf32>
    %657 = arith.mulf %650, %656 : vector<2x32xf32>
    %658 = arith.truncf %657 : vector<2x32xf32> to vector<2x32xbf16>
    %cst_150 = arith.constant dense<0.000000e+00> : vector<2x128xf32>
    %659 = tpu.matmul %658, %5, %cst_150 {dimension_numbers = #tpu.dot_dimension_numbers<[1], [0], [0], [1], [0, 0, 1, 1], [], []>} : vector<2x32xbf16>, vector<32x128xbf16>, vector<2x128xf32> -> vector<2x128xf32>
    %660 = arith.addf %21, %659 : vector<2x128xf32>
    %661 = arith.truncf %612 : vector<2x32xf32> to vector<2x32xbf16>
    %cst_151 = arith.constant dense<0.000000e+00> : vector<2x128xf32>
    %662 = tpu.matmul %661, %6, %cst_151 {dimension_numbers = #tpu.dot_dimension_numbers<[1], [0], [0], [1], [0, 0, 1, 1], [], []>} : vector<2x32xbf16>, vector<32x128xbf16>, vector<2x128xf32> -> vector<2x128xf32>
    %663 = arith.addf %660, %662 : vector<2x128xf32>
    %cst_152 = arith.constant dense<0xFF800000> : vector<2xf32>
    %664 = vector.multi_reduction <maximumf>, %663, %cst_152 [1] : vector<2x128xf32> to vector<2xf32>
    %665 = vector.shape_cast %664 : vector<2xf32> to vector<2x1xf32>
    %666 = vector.broadcast %665 : vector<2x1xf32> to vector<2x128xf32>
    %667 = arith.cmpf oeq, %663, %666 : vector<2x128xf32>
    %c128_i32_153 = arith.constant 128 : i32
    %668 = vector.broadcast %c128_i32_153 : i32 to vector<2x128xi32>
    %669 = arith.select %667, %22, %668 : vector<2x128xi1>, vector<2x128xi32>
    %cst_154 = arith.constant dense<2147483647> : vector<2xi32>
    %670 = vector.multi_reduction <minsi>, %669, %cst_154 [1] : vector<2x128xi32> to vector<2xi32>
    %671 = vector.shape_cast %670 : vector<2xi32> to vector<2x1xi32>
    %672 = vector.broadcast %671 : vector<2x1xi32> to vector<2x128xi32>
    %673 = arith.cmpi eq, %22, %672 : vector<2x128xi32>
    %674 = arith.extui %673 : vector<2x128xi1> to vector<2x128xi32>
    %675 = arith.sitofp %674 : vector<2x128xi32> to vector<2x128xf32>
    %c3_i32_155 = arith.constant 3 : i32
    %676 = vector.broadcast %c3_i32_155 : i32 to vector<2x1xi32>
    %677 = arith.cmpi eq, %671, %676 : vector<2x1xi32>
    %c2_i32_156 = arith.constant 2 : i32
    %678 = vector.broadcast %c2_i32_156 : i32 to vector<2x1xi32>
    %679 = arith.cmpi eq, %671, %678 : vector<2x1xi32>
    %680 = arith.ori %677, %679 : vector<2x1xi1>
    %681 = vector.shape_cast %680 : vector<2x1xi1> to vector<2x1xi1>
    %682 = vector.broadcast %681 : vector<2x1xi1> to vector<2x128xi1>
    %683 = arith.select %682, %26, %663 : vector<2x128xi1>, vector<2x128xf32>
    %cst_157 = arith.constant 2.000000e+00 : f32
    %684 = vector.broadcast %cst_157 : f32 to vector<2x128xf32>
    %685 = arith.mulf %683, %684 : vector<2x128xf32>
    %cst_158 = arith.constant dense<0xFF800000> : vector<2xf32>
    %686 = vector.multi_reduction <maximumf>, %685, %cst_158 [1] : vector<2x128xf32> to vector<2xf32>
    %687 = vector.shape_cast %686 : vector<2xf32> to vector<2x1xf32>
    %688 = vector.broadcast %687 : vector<2x1xf32> to vector<2x128xf32>
    %689 = arith.subf %685, %688 : vector<2x128xf32>
    %690 = math.exp %689 : vector<2x128xf32>
    %cst_159 = arith.constant dense<0.000000e+00> : vector<2xf32>
    %691 = vector.multi_reduction <add>, %690, %cst_159 [1] : vector<2x128xf32> to vector<2xf32>
    %692 = vector.shape_cast %691 : vector<2xf32> to vector<2x1xf32>
    %693 = tpu.reciprocal %692 {approx = true} : vector<2x1xf32> -> vector<2x1xf32>
    %694 = vector.broadcast %693 : vector<2x1xf32> to vector<2x128xf32>
    %695 = arith.mulf %690, %694 : vector<2x128xf32>
    %696 = arith.truncf %695 : vector<2x128xf32> to vector<2x128xbf16>
    %cst_160 = arith.constant dense<0.000000e+00> : vector<2x128xf32>
    %697 = tpu.matmul %696, %8, %cst_160 {dimension_numbers = #tpu.dot_dimension_numbers<[1], [0], [0], [1], [0, 0, 1, 1], [], []>} : vector<2x128xbf16>, vector<128x128xbf16>, vector<2x128xf32> -> vector<2x128xf32>
    %698 = vector.extract_strided_slice %697 {offsets = [0, 0], sizes = [2, 32], strides = [1, 1]} : vector<2x128xf32> to vector<2x32xf32>
    %c3_i32_161 = arith.constant 3 : i32
    %699 = arith.addi %43, %c3_i32_161 : i32
    %700 = vector.broadcast %699 : i32 to vector<16x1xi32>
    %701 = arith.cmpi eq, %28, %700 : vector<16x1xi32>
    %702 = arith.andi %54, %701 : vector<16x1xi1>
    %703 = vector.extract_strided_slice %698 {offsets = [0, 0], sizes = [1, 32], strides = [1, 1]} : vector<2x32xf32> to vector<1x32xf32>
    %704 = vector.shape_cast %703 : vector<1x32xf32> to vector<1x32xf32>
    %705 = vector.broadcast %704 : vector<1x32xf32> to vector<16x32xf32>
    %706 = vector.shape_cast %702 : vector<16x1xi1> to vector<16x1xi1>
    %707 = vector.broadcast %706 : vector<16x1xi1> to vector<16x32xi1>
    %708 = arith.select %707, %705, %546 : vector<16x32xi1>, vector<16x32xf32>
    %c3_i32_162 = arith.constant 3 : i32
    %709 = arith.addi %57, %c3_i32_162 : i32
    %710 = vector.broadcast %709 : i32 to vector<16x1xi32>
    %711 = arith.cmpi eq, %28, %710 : vector<16x1xi32>
    %712 = arith.andi %68, %711 : vector<16x1xi1>
    %713 = vector.extract_strided_slice %698 {offsets = [1, 0], sizes = [1, 32], strides = [1, 1]} : vector<2x32xf32> to vector<1x32xf32>
    %714 = vector.shape_cast %713 : vector<1x32xf32> to vector<1x32xf32>
    %715 = vector.broadcast %714 : vector<1x32xf32> to vector<16x32xf32>
    %716 = vector.shape_cast %712 : vector<16x1xi1> to vector<16x1xi1>
    %717 = vector.broadcast %716 : vector<16x1xi1> to vector<16x32xi1>
    %718 = arith.select %717, %715, %556 : vector<16x32xi1>, vector<16x32xf32>
    %719 = arith.truncf %657 : vector<2x32xf32> to vector<2x32xbf16>
    %cst_163 = arith.constant dense<0.000000e+00> : vector<2x128xf32>
    %720 = tpu.matmul %719, %7, %cst_163 {dimension_numbers = #tpu.dot_dimension_numbers<[1], [0], [0], [1], [0, 0, 1, 1], [], []>} : vector<2x32xbf16>, vector<32x128xbf16>, vector<2x128xf32> -> vector<2x128xf32>
    %721 = vector.extract_strided_slice %720 {offsets = [0, 0], sizes = [2, 32], strides = [1, 1]} : vector<2x128xf32> to vector<2x32xf32>
    %722 = vector.extract_strided_slice %721 {offsets = [0, 0], sizes = [1, 32], strides = [1, 1]} : vector<2x32xf32> to vector<1x32xf32>
    %723 = vector.broadcast %722 : vector<1x32xf32> to vector<8x32xf32>
    %724 = arith.addf %723, %34 : vector<8x32xf32>
    %cst_164 = arith.constant 0.000000e+00 : f32
    %725 = vector.broadcast %cst_164 : f32 to vector<8x32xf32>
    %726 = arith.maximumf %724, %725 : vector<8x32xf32>
    %727 = arith.mulf %726, %12 : vector<8x32xf32>
    %cst_165 = arith.constant dense<0.000000e+00> : vector<8xf32>
    %728 = vector.multi_reduction <add>, %727, %cst_165 [1] : vector<8x32xf32> to vector<8xf32>
    %729 = vector.shape_cast %728 : vector<8xf32> to vector<8x1xf32>
    %cst_166 = arith.constant dense<0xFF800000> : vector<1xf32>
    %730 = vector.multi_reduction <maximumf>, %729, %cst_166 [0] : vector<8x1xf32> to vector<1xf32>
    %731 = vector.shape_cast %730 : vector<1xf32> to vector<1x1xf32>
    %732 = vector.broadcast %731 : vector<1x1xf32> to vector<8x1xf32>
    %733 = arith.subf %729, %732 : vector<8x1xf32>
    %734 = math.exp %733 : vector<8x1xf32>
    %cst_167 = arith.constant dense<0.000000e+00> : vector<1xf32>
    %735 = vector.multi_reduction <add>, %734, %cst_167 [0] : vector<8x1xf32> to vector<1xf32>
    %736 = vector.shape_cast %735 : vector<1xf32> to vector<1x1xf32>
    %737 = tpu.reciprocal %736 {approx = true} : vector<1x1xf32> -> vector<1x1xf32>
    %738 = vector.broadcast %737 : vector<1x1xf32> to vector<8x1xf32>
    %739 = arith.mulf %734, %738 : vector<8x1xf32>
    %740 = vector.broadcast %739 : vector<8x1xf32> to vector<8x32xf32>
    %741 = arith.mulf %740, %30 : vector<8x32xf32>
    %cst_168 = arith.constant dense<0.000000e+00> : vector<32xf32>
    %742 = vector.multi_reduction <add>, %741, %cst_168 [0] : vector<8x32xf32> to vector<32xf32>
    %743 = vector.shape_cast %742 : vector<32xf32> to vector<1x32xf32>
    %744 = vector.extract_strided_slice %721 {offsets = [1, 0], sizes = [1, 32], strides = [1, 1]} : vector<2x32xf32> to vector<1x32xf32>
    %745 = vector.broadcast %744 : vector<1x32xf32> to vector<8x32xf32>
    %746 = arith.addf %745, %36 : vector<8x32xf32>
    %cst_169 = arith.constant 0.000000e+00 : f32
    %747 = vector.broadcast %cst_169 : f32 to vector<8x32xf32>
    %748 = arith.maximumf %746, %747 : vector<8x32xf32>
    %749 = arith.mulf %748, %12 : vector<8x32xf32>
    %cst_170 = arith.constant dense<0.000000e+00> : vector<8xf32>
    %750 = vector.multi_reduction <add>, %749, %cst_170 [1] : vector<8x32xf32> to vector<8xf32>
    %751 = vector.shape_cast %750 : vector<8xf32> to vector<8x1xf32>
    %cst_171 = arith.constant dense<0xFF800000> : vector<1xf32>
    %752 = vector.multi_reduction <maximumf>, %751, %cst_171 [0] : vector<8x1xf32> to vector<1xf32>
    %753 = vector.shape_cast %752 : vector<1xf32> to vector<1x1xf32>
    %754 = vector.broadcast %753 : vector<1x1xf32> to vector<8x1xf32>
    %755 = arith.subf %751, %754 : vector<8x1xf32>
    %756 = math.exp %755 : vector<8x1xf32>
    %cst_172 = arith.constant dense<0.000000e+00> : vector<1xf32>
    %757 = vector.multi_reduction <add>, %756, %cst_172 [0] : vector<8x1xf32> to vector<1xf32>
    %758 = vector.shape_cast %757 : vector<1xf32> to vector<1x1xf32>
    %759 = tpu.reciprocal %758 {approx = true} : vector<1x1xf32> -> vector<1x1xf32>
    %760 = vector.broadcast %759 : vector<1x1xf32> to vector<8x1xf32>
    %761 = arith.mulf %756, %760 : vector<8x1xf32>
    %762 = vector.broadcast %761 : vector<8x1xf32> to vector<8x32xf32>
    %763 = arith.mulf %762, %32 : vector<8x32xf32>
    %cst_173 = arith.constant dense<0.000000e+00> : vector<32xf32>
    %764 = vector.multi_reduction <add>, %763, %cst_173 [0] : vector<8x32xf32> to vector<32xf32>
    %765 = vector.shape_cast %764 : vector<32xf32> to vector<1x32xf32>
    %766 = vector.shape_cast %743 : vector<1x32xf32> to vector<1x32xf32>
    %767 = vector.broadcast %766 : vector<1x32xf32> to vector<2x32xf32>
    %c1_i32_174 = arith.constant 1 : i32
    %768 = vector.broadcast %c1_i32_174 : i32 to vector<2x1xi32>
    %769 = arith.cmpi eq, %27, %768 : vector<2x1xi32>
    %770 = vector.shape_cast %765 : vector<1x32xf32> to vector<1x32xf32>
    %771 = vector.broadcast %770 : vector<1x32xf32> to vector<2x32xf32>
    %772 = vector.shape_cast %769 : vector<2x1xi1> to vector<2x1xi1>
    %773 = vector.broadcast %772 : vector<2x1xi1> to vector<2x32xi1>
    %774 = arith.select %773, %771, %767 : vector<2x32xi1>, vector<2x32xf32>
    %775 = arith.truncf %675 : vector<2x128xf32> to vector<2x128xbf16>
    %cst_175 = arith.constant dense<0.000000e+00> : vector<2x128xf32>
    %776 = tpu.matmul %775, %0, %cst_175 {dimension_numbers = #tpu.dot_dimension_numbers<[1], [0], [0], [1], [0, 0, 1, 1], [], []>} : vector<2x128xbf16>, vector<128x128xbf16>, vector<2x128xf32> -> vector<2x128xf32>
    %777 = arith.addf %15, %776 : vector<2x128xf32>
    %778 = arith.truncf %774 : vector<2x32xf32> to vector<2x32xbf16>
    %cst_176 = arith.constant dense<0.000000e+00> : vector<2x128xf32>
    %779 = tpu.matmul %778, %1, %cst_176 {dimension_numbers = #tpu.dot_dimension_numbers<[1], [0], [0], [1], [0, 0, 1, 1], [], []>} : vector<2x32xbf16>, vector<32x128xbf16>, vector<2x128xf32> -> vector<2x128xf32>
    %780 = arith.addf %777, %779 : vector<2x128xf32>
    %781 = arith.truncf %636 : vector<2x32xf32> to vector<2x32xbf16>
    %cst_177 = arith.constant dense<0.000000e+00> : vector<2x128xf32>
    %782 = tpu.matmul %781, %2, %cst_177 {dimension_numbers = #tpu.dot_dimension_numbers<[1], [0], [0], [1], [0, 0, 1, 1], [], []>} : vector<2x32xbf16>, vector<32x128xbf16>, vector<2x128xf32> -> vector<2x128xf32>
    %783 = arith.addf %780, %782 : vector<2x128xf32>
    %784 = arith.negf %783 : vector<2x128xf32>
    %785 = math.exp %784 : vector<2x128xf32>
    %cst_178 = arith.constant 1.000000e+00 : f32
    %786 = vector.broadcast %cst_178 : f32 to vector<2x128xf32>
    %787 = arith.addf %786, %785 : vector<2x128xf32>
    %788 = arith.divf %786, %787 : vector<2x128xf32>
    %789 = vector.extract_strided_slice %788 {offsets = [0, 0], sizes = [2, 32], strides = [1, 1]} : vector<2x128xf32> to vector<2x32xf32>
    %790 = vector.extract_strided_slice %788 {offsets = [0, 32], sizes = [2, 32], strides = [1, 1]} : vector<2x128xf32> to vector<2x32xf32>
    %791 = vector.extract_strided_slice %788 {offsets = [0, 96], sizes = [2, 32], strides = [1, 1]} : vector<2x128xf32> to vector<2x32xf32>
    %792 = vector.extract_strided_slice %783 {offsets = [0, 64], sizes = [2, 32], strides = [1, 1]} : vector<2x128xf32> to vector<2x32xf32>
    %793 = math.tanh %792 : vector<2x32xf32>
    %794 = arith.mulf %790, %634 : vector<2x32xf32>
    %795 = arith.mulf %789, %793 : vector<2x32xf32>
    %796 = arith.addf %794, %795 : vector<2x32xf32>
    %797 = math.tanh %796 : vector<2x32xf32>
    %798 = arith.mulf %791, %797 : vector<2x32xf32>
    %799 = arith.truncf %798 : vector<2x32xf32> to vector<2x32xbf16>
    %cst_179 = arith.constant dense<0.000000e+00> : vector<2x128xf32>
    %800 = tpu.matmul %799, %3, %cst_179 {dimension_numbers = #tpu.dot_dimension_numbers<[1], [0], [0], [1], [0, 0, 1, 1], [], []>} : vector<2x32xbf16>, vector<32x128xbf16>, vector<2x128xf32> -> vector<2x128xf32>
    %801 = arith.addf %18, %800 : vector<2x128xf32>
    %802 = arith.truncf %657 : vector<2x32xf32> to vector<2x32xbf16>
    %cst_180 = arith.constant dense<0.000000e+00> : vector<2x128xf32>
    %803 = tpu.matmul %802, %4, %cst_180 {dimension_numbers = #tpu.dot_dimension_numbers<[1], [0], [0], [1], [0, 0, 1, 1], [], []>} : vector<2x32xbf16>, vector<32x128xbf16>, vector<2x128xf32> -> vector<2x128xf32>
    %804 = arith.addf %801, %803 : vector<2x128xf32>
    %805 = arith.negf %804 : vector<2x128xf32>
    %806 = math.exp %805 : vector<2x128xf32>
    %cst_181 = arith.constant 1.000000e+00 : f32
    %807 = vector.broadcast %cst_181 : f32 to vector<2x128xf32>
    %808 = arith.addf %807, %806 : vector<2x128xf32>
    %809 = arith.divf %807, %808 : vector<2x128xf32>
    %810 = vector.extract_strided_slice %809 {offsets = [0, 0], sizes = [2, 32], strides = [1, 1]} : vector<2x128xf32> to vector<2x32xf32>
    %811 = vector.extract_strided_slice %809 {offsets = [0, 32], sizes = [2, 32], strides = [1, 1]} : vector<2x128xf32> to vector<2x32xf32>
    %812 = vector.extract_strided_slice %809 {offsets = [0, 96], sizes = [2, 32], strides = [1, 1]} : vector<2x128xf32> to vector<2x32xf32>
    %813 = vector.extract_strided_slice %804 {offsets = [0, 64], sizes = [2, 32], strides = [1, 1]} : vector<2x128xf32> to vector<2x32xf32>
    %814 = math.tanh %813 : vector<2x32xf32>
    %815 = arith.mulf %811, %655 : vector<2x32xf32>
    %816 = arith.mulf %810, %814 : vector<2x32xf32>
    %817 = arith.addf %815, %816 : vector<2x32xf32>
    %818 = math.tanh %817 : vector<2x32xf32>
    %819 = arith.mulf %812, %818 : vector<2x32xf32>
    %820 = arith.truncf %819 : vector<2x32xf32> to vector<2x32xbf16>
    %cst_182 = arith.constant dense<0.000000e+00> : vector<2x128xf32>
    %821 = tpu.matmul %820, %5, %cst_182 {dimension_numbers = #tpu.dot_dimension_numbers<[1], [0], [0], [1], [0, 0, 1, 1], [], []>} : vector<2x32xbf16>, vector<32x128xbf16>, vector<2x128xf32> -> vector<2x128xf32>
    %822 = arith.addf %21, %821 : vector<2x128xf32>
    %823 = arith.truncf %774 : vector<2x32xf32> to vector<2x32xbf16>
    %cst_183 = arith.constant dense<0.000000e+00> : vector<2x128xf32>
    %824 = tpu.matmul %823, %6, %cst_183 {dimension_numbers = #tpu.dot_dimension_numbers<[1], [0], [0], [1], [0, 0, 1, 1], [], []>} : vector<2x32xbf16>, vector<32x128xbf16>, vector<2x128xf32> -> vector<2x128xf32>
    %825 = arith.addf %822, %824 : vector<2x128xf32>
    %cst_184 = arith.constant dense<0xFF800000> : vector<2xf32>
    %826 = vector.multi_reduction <maximumf>, %825, %cst_184 [1] : vector<2x128xf32> to vector<2xf32>
    %827 = vector.shape_cast %826 : vector<2xf32> to vector<2x1xf32>
    %828 = vector.broadcast %827 : vector<2x1xf32> to vector<2x128xf32>
    %829 = arith.cmpf oeq, %825, %828 : vector<2x128xf32>
    %c128_i32_185 = arith.constant 128 : i32
    %830 = vector.broadcast %c128_i32_185 : i32 to vector<2x128xi32>
    %831 = arith.select %829, %22, %830 : vector<2x128xi1>, vector<2x128xi32>
    %cst_186 = arith.constant dense<2147483647> : vector<2xi32>
    %832 = vector.multi_reduction <minsi>, %831, %cst_186 [1] : vector<2x128xi32> to vector<2xi32>
    %833 = vector.shape_cast %832 : vector<2xi32> to vector<2x1xi32>
    %834 = vector.broadcast %833 : vector<2x1xi32> to vector<2x128xi32>
    %835 = arith.cmpi eq, %22, %834 : vector<2x128xi32>
    %836 = arith.extui %835 : vector<2x128xi1> to vector<2x128xi32>
    %837 = arith.sitofp %836 : vector<2x128xi32> to vector<2x128xf32>
    %c3_i32_187 = arith.constant 3 : i32
    %838 = vector.broadcast %c3_i32_187 : i32 to vector<2x1xi32>
    %839 = arith.cmpi eq, %833, %838 : vector<2x1xi32>
    %c2_i32_188 = arith.constant 2 : i32
    %840 = vector.broadcast %c2_i32_188 : i32 to vector<2x1xi32>
    %841 = arith.cmpi eq, %833, %840 : vector<2x1xi32>
    %842 = arith.ori %839, %841 : vector<2x1xi1>
    %843 = vector.shape_cast %842 : vector<2x1xi1> to vector<2x1xi1>
    %844 = vector.broadcast %843 : vector<2x1xi1> to vector<2x128xi1>
    %845 = arith.select %844, %26, %825 : vector<2x128xi1>, vector<2x128xf32>
    %cst_189 = arith.constant 2.000000e+00 : f32
    %846 = vector.broadcast %cst_189 : f32 to vector<2x128xf32>
    %847 = arith.mulf %845, %846 : vector<2x128xf32>
    %cst_190 = arith.constant dense<0xFF800000> : vector<2xf32>
    %848 = vector.multi_reduction <maximumf>, %847, %cst_190 [1] : vector<2x128xf32> to vector<2xf32>
    %849 = vector.shape_cast %848 : vector<2xf32> to vector<2x1xf32>
    %850 = vector.broadcast %849 : vector<2x1xf32> to vector<2x128xf32>
    %851 = arith.subf %847, %850 : vector<2x128xf32>
    %852 = math.exp %851 : vector<2x128xf32>
    %cst_191 = arith.constant dense<0.000000e+00> : vector<2xf32>
    %853 = vector.multi_reduction <add>, %852, %cst_191 [1] : vector<2x128xf32> to vector<2xf32>
    %854 = vector.shape_cast %853 : vector<2xf32> to vector<2x1xf32>
    %855 = tpu.reciprocal %854 {approx = true} : vector<2x1xf32> -> vector<2x1xf32>
    %856 = vector.broadcast %855 : vector<2x1xf32> to vector<2x128xf32>
    %857 = arith.mulf %852, %856 : vector<2x128xf32>
    %858 = arith.truncf %857 : vector<2x128xf32> to vector<2x128xbf16>
    %cst_192 = arith.constant dense<0.000000e+00> : vector<2x128xf32>
    %859 = tpu.matmul %858, %8, %cst_192 {dimension_numbers = #tpu.dot_dimension_numbers<[1], [0], [0], [1], [0, 0, 1, 1], [], []>} : vector<2x128xbf16>, vector<128x128xbf16>, vector<2x128xf32> -> vector<2x128xf32>
    %860 = vector.extract_strided_slice %859 {offsets = [0, 0], sizes = [2, 32], strides = [1, 1]} : vector<2x128xf32> to vector<2x32xf32>
    %c4_i32 = arith.constant 4 : i32
    %861 = arith.addi %43, %c4_i32 : i32
    %862 = vector.broadcast %861 : i32 to vector<16x1xi32>
    %863 = arith.cmpi eq, %28, %862 : vector<16x1xi32>
    %864 = arith.andi %54, %863 : vector<16x1xi1>
    %865 = vector.extract_strided_slice %860 {offsets = [0, 0], sizes = [1, 32], strides = [1, 1]} : vector<2x32xf32> to vector<1x32xf32>
    %866 = vector.shape_cast %865 : vector<1x32xf32> to vector<1x32xf32>
    %867 = vector.broadcast %866 : vector<1x32xf32> to vector<16x32xf32>
    %868 = vector.shape_cast %864 : vector<16x1xi1> to vector<16x1xi1>
    %869 = vector.broadcast %868 : vector<16x1xi1> to vector<16x32xi1>
    %870 = arith.select %869, %867, %708 : vector<16x32xi1>, vector<16x32xf32>
    %c4_i32_193 = arith.constant 4 : i32
    %871 = arith.addi %57, %c4_i32_193 : i32
    %872 = vector.broadcast %871 : i32 to vector<16x1xi32>
    %873 = arith.cmpi eq, %28, %872 : vector<16x1xi32>
    %874 = arith.andi %68, %873 : vector<16x1xi1>
    %875 = vector.extract_strided_slice %860 {offsets = [1, 0], sizes = [1, 32], strides = [1, 1]} : vector<2x32xf32> to vector<1x32xf32>
    %876 = vector.shape_cast %875 : vector<1x32xf32> to vector<1x32xf32>
    %877 = vector.broadcast %876 : vector<1x32xf32> to vector<16x32xf32>
    %878 = vector.shape_cast %874 : vector<16x1xi1> to vector<16x1xi1>
    %879 = vector.broadcast %878 : vector<16x1xi1> to vector<16x32xi1>
    %880 = arith.select %879, %877, %718 : vector<16x32xi1>, vector<16x32xf32>
    %881 = arith.truncf %819 : vector<2x32xf32> to vector<2x32xbf16>
    %cst_194 = arith.constant dense<0.000000e+00> : vector<2x128xf32>
    %882 = tpu.matmul %881, %7, %cst_194 {dimension_numbers = #tpu.dot_dimension_numbers<[1], [0], [0], [1], [0, 0, 1, 1], [], []>} : vector<2x32xbf16>, vector<32x128xbf16>, vector<2x128xf32> -> vector<2x128xf32>
    %883 = vector.extract_strided_slice %882 {offsets = [0, 0], sizes = [2, 32], strides = [1, 1]} : vector<2x128xf32> to vector<2x32xf32>
    %884 = vector.extract_strided_slice %883 {offsets = [0, 0], sizes = [1, 32], strides = [1, 1]} : vector<2x32xf32> to vector<1x32xf32>
    %885 = vector.broadcast %884 : vector<1x32xf32> to vector<8x32xf32>
    %886 = arith.addf %885, %34 : vector<8x32xf32>
    %cst_195 = arith.constant 0.000000e+00 : f32
    %887 = vector.broadcast %cst_195 : f32 to vector<8x32xf32>
    %888 = arith.maximumf %886, %887 : vector<8x32xf32>
    %889 = arith.mulf %888, %12 : vector<8x32xf32>
    %cst_196 = arith.constant dense<0.000000e+00> : vector<8xf32>
    %890 = vector.multi_reduction <add>, %889, %cst_196 [1] : vector<8x32xf32> to vector<8xf32>
    %891 = vector.shape_cast %890 : vector<8xf32> to vector<8x1xf32>
    %cst_197 = arith.constant dense<0xFF800000> : vector<1xf32>
    %892 = vector.multi_reduction <maximumf>, %891, %cst_197 [0] : vector<8x1xf32> to vector<1xf32>
    %893 = vector.shape_cast %892 : vector<1xf32> to vector<1x1xf32>
    %894 = vector.broadcast %893 : vector<1x1xf32> to vector<8x1xf32>
    %895 = arith.subf %891, %894 : vector<8x1xf32>
    %896 = math.exp %895 : vector<8x1xf32>
    %cst_198 = arith.constant dense<0.000000e+00> : vector<1xf32>
    %897 = vector.multi_reduction <add>, %896, %cst_198 [0] : vector<8x1xf32> to vector<1xf32>
    %898 = vector.shape_cast %897 : vector<1xf32> to vector<1x1xf32>
    %899 = tpu.reciprocal %898 {approx = true} : vector<1x1xf32> -> vector<1x1xf32>
    %900 = vector.broadcast %899 : vector<1x1xf32> to vector<8x1xf32>
    %901 = arith.mulf %896, %900 : vector<8x1xf32>
    %902 = vector.broadcast %901 : vector<8x1xf32> to vector<8x32xf32>
    %903 = arith.mulf %902, %30 : vector<8x32xf32>
    %cst_199 = arith.constant dense<0.000000e+00> : vector<32xf32>
    %904 = vector.multi_reduction <add>, %903, %cst_199 [0] : vector<8x32xf32> to vector<32xf32>
    %905 = vector.shape_cast %904 : vector<32xf32> to vector<1x32xf32>
    %906 = vector.extract_strided_slice %883 {offsets = [1, 0], sizes = [1, 32], strides = [1, 1]} : vector<2x32xf32> to vector<1x32xf32>
    %907 = vector.broadcast %906 : vector<1x32xf32> to vector<8x32xf32>
    %908 = arith.addf %907, %36 : vector<8x32xf32>
    %cst_200 = arith.constant 0.000000e+00 : f32
    %909 = vector.broadcast %cst_200 : f32 to vector<8x32xf32>
    %910 = arith.maximumf %908, %909 : vector<8x32xf32>
    %911 = arith.mulf %910, %12 : vector<8x32xf32>
    %cst_201 = arith.constant dense<0.000000e+00> : vector<8xf32>
    %912 = vector.multi_reduction <add>, %911, %cst_201 [1] : vector<8x32xf32> to vector<8xf32>
    %913 = vector.shape_cast %912 : vector<8xf32> to vector<8x1xf32>
    %cst_202 = arith.constant dense<0xFF800000> : vector<1xf32>
    %914 = vector.multi_reduction <maximumf>, %913, %cst_202 [0] : vector<8x1xf32> to vector<1xf32>
    %915 = vector.shape_cast %914 : vector<1xf32> to vector<1x1xf32>
    %916 = vector.broadcast %915 : vector<1x1xf32> to vector<8x1xf32>
    %917 = arith.subf %913, %916 : vector<8x1xf32>
    %918 = math.exp %917 : vector<8x1xf32>
    %cst_203 = arith.constant dense<0.000000e+00> : vector<1xf32>
    %919 = vector.multi_reduction <add>, %918, %cst_203 [0] : vector<8x1xf32> to vector<1xf32>
    %920 = vector.shape_cast %919 : vector<1xf32> to vector<1x1xf32>
    %921 = tpu.reciprocal %920 {approx = true} : vector<1x1xf32> -> vector<1x1xf32>
    %922 = vector.broadcast %921 : vector<1x1xf32> to vector<8x1xf32>
    %923 = arith.mulf %918, %922 : vector<8x1xf32>
    %924 = vector.broadcast %923 : vector<8x1xf32> to vector<8x32xf32>
    %925 = arith.mulf %924, %32 : vector<8x32xf32>
    %cst_204 = arith.constant dense<0.000000e+00> : vector<32xf32>
    %926 = vector.multi_reduction <add>, %925, %cst_204 [0] : vector<8x32xf32> to vector<32xf32>
    %927 = vector.shape_cast %926 : vector<32xf32> to vector<1x32xf32>
    %928 = vector.shape_cast %905 : vector<1x32xf32> to vector<1x32xf32>
    %929 = vector.broadcast %928 : vector<1x32xf32> to vector<2x32xf32>
    %c1_i32_205 = arith.constant 1 : i32
    %930 = vector.broadcast %c1_i32_205 : i32 to vector<2x1xi32>
    %931 = arith.cmpi eq, %27, %930 : vector<2x1xi32>
    %932 = vector.shape_cast %927 : vector<1x32xf32> to vector<1x32xf32>
    %933 = vector.broadcast %932 : vector<1x32xf32> to vector<2x32xf32>
    %934 = vector.shape_cast %931 : vector<2x1xi1> to vector<2x1xi1>
    %935 = vector.broadcast %934 : vector<2x1xi1> to vector<2x32xi1>
    %936 = arith.select %935, %933, %929 : vector<2x32xi1>, vector<2x32xf32>
    %937 = arith.truncf %837 : vector<2x128xf32> to vector<2x128xbf16>
    %cst_206 = arith.constant dense<0.000000e+00> : vector<2x128xf32>
    %938 = tpu.matmul %937, %0, %cst_206 {dimension_numbers = #tpu.dot_dimension_numbers<[1], [0], [0], [1], [0, 0, 1, 1], [], []>} : vector<2x128xbf16>, vector<128x128xbf16>, vector<2x128xf32> -> vector<2x128xf32>
    %939 = arith.addf %15, %938 : vector<2x128xf32>
    %940 = arith.truncf %936 : vector<2x32xf32> to vector<2x32xbf16>
    %cst_207 = arith.constant dense<0.000000e+00> : vector<2x128xf32>
    %941 = tpu.matmul %940, %1, %cst_207 {dimension_numbers = #tpu.dot_dimension_numbers<[1], [0], [0], [1], [0, 0, 1, 1], [], []>} : vector<2x32xbf16>, vector<32x128xbf16>, vector<2x128xf32> -> vector<2x128xf32>
    %942 = arith.addf %939, %941 : vector<2x128xf32>
    %943 = arith.truncf %798 : vector<2x32xf32> to vector<2x32xbf16>
    %cst_208 = arith.constant dense<0.000000e+00> : vector<2x128xf32>
    %944 = tpu.matmul %943, %2, %cst_208 {dimension_numbers = #tpu.dot_dimension_numbers<[1], [0], [0], [1], [0, 0, 1, 1], [], []>} : vector<2x32xbf16>, vector<32x128xbf16>, vector<2x128xf32> -> vector<2x128xf32>
    %945 = arith.addf %942, %944 : vector<2x128xf32>
    %946 = arith.negf %945 : vector<2x128xf32>
    %947 = math.exp %946 : vector<2x128xf32>
    %cst_209 = arith.constant 1.000000e+00 : f32
    %948 = vector.broadcast %cst_209 : f32 to vector<2x128xf32>
    %949 = arith.addf %948, %947 : vector<2x128xf32>
    %950 = arith.divf %948, %949 : vector<2x128xf32>
    %951 = vector.extract_strided_slice %950 {offsets = [0, 0], sizes = [2, 32], strides = [1, 1]} : vector<2x128xf32> to vector<2x32xf32>
    %952 = vector.extract_strided_slice %950 {offsets = [0, 32], sizes = [2, 32], strides = [1, 1]} : vector<2x128xf32> to vector<2x32xf32>
    %953 = vector.extract_strided_slice %950 {offsets = [0, 96], sizes = [2, 32], strides = [1, 1]} : vector<2x128xf32> to vector<2x32xf32>
    %954 = vector.extract_strided_slice %945 {offsets = [0, 64], sizes = [2, 32], strides = [1, 1]} : vector<2x128xf32> to vector<2x32xf32>
    %955 = math.tanh %954 : vector<2x32xf32>
    %956 = arith.mulf %952, %796 : vector<2x32xf32>
    %957 = arith.mulf %951, %955 : vector<2x32xf32>
    %958 = arith.addf %956, %957 : vector<2x32xf32>
    %959 = math.tanh %958 : vector<2x32xf32>
    %960 = arith.mulf %953, %959 : vector<2x32xf32>
    %961 = arith.truncf %960 : vector<2x32xf32> to vector<2x32xbf16>
    %cst_210 = arith.constant dense<0.000000e+00> : vector<2x128xf32>
    %962 = tpu.matmul %961, %3, %cst_210 {dimension_numbers = #tpu.dot_dimension_numbers<[1], [0], [0], [1], [0, 0, 1, 1], [], []>} : vector<2x32xbf16>, vector<32x128xbf16>, vector<2x128xf32> -> vector<2x128xf32>
    %963 = arith.addf %18, %962 : vector<2x128xf32>
    %964 = arith.truncf %819 : vector<2x32xf32> to vector<2x32xbf16>
    %cst_211 = arith.constant dense<0.000000e+00> : vector<2x128xf32>
    %965 = tpu.matmul %964, %4, %cst_211 {dimension_numbers = #tpu.dot_dimension_numbers<[1], [0], [0], [1], [0, 0, 1, 1], [], []>} : vector<2x32xbf16>, vector<32x128xbf16>, vector<2x128xf32> -> vector<2x128xf32>
    %966 = arith.addf %963, %965 : vector<2x128xf32>
    %967 = arith.negf %966 : vector<2x128xf32>
    %968 = math.exp %967 : vector<2x128xf32>
    %cst_212 = arith.constant 1.000000e+00 : f32
    %969 = vector.broadcast %cst_212 : f32 to vector<2x128xf32>
    %970 = arith.addf %969, %968 : vector<2x128xf32>
    %971 = arith.divf %969, %970 : vector<2x128xf32>
    %972 = vector.extract_strided_slice %971 {offsets = [0, 0], sizes = [2, 32], strides = [1, 1]} : vector<2x128xf32> to vector<2x32xf32>
    %973 = vector.extract_strided_slice %971 {offsets = [0, 32], sizes = [2, 32], strides = [1, 1]} : vector<2x128xf32> to vector<2x32xf32>
    %974 = vector.extract_strided_slice %971 {offsets = [0, 96], sizes = [2, 32], strides = [1, 1]} : vector<2x128xf32> to vector<2x32xf32>
    %975 = vector.extract_strided_slice %966 {offsets = [0, 64], sizes = [2, 32], strides = [1, 1]} : vector<2x128xf32> to vector<2x32xf32>
    %976 = math.tanh %975 : vector<2x32xf32>
    %977 = arith.mulf %973, %817 : vector<2x32xf32>
    %978 = arith.mulf %972, %976 : vector<2x32xf32>
    %979 = arith.addf %977, %978 : vector<2x32xf32>
    %980 = math.tanh %979 : vector<2x32xf32>
    %981 = arith.mulf %974, %980 : vector<2x32xf32>
    %982 = arith.truncf %981 : vector<2x32xf32> to vector<2x32xbf16>
    %cst_213 = arith.constant dense<0.000000e+00> : vector<2x128xf32>
    %983 = tpu.matmul %982, %5, %cst_213 {dimension_numbers = #tpu.dot_dimension_numbers<[1], [0], [0], [1], [0, 0, 1, 1], [], []>} : vector<2x32xbf16>, vector<32x128xbf16>, vector<2x128xf32> -> vector<2x128xf32>
    %984 = arith.addf %21, %983 : vector<2x128xf32>
    %985 = arith.truncf %936 : vector<2x32xf32> to vector<2x32xbf16>
    %cst_214 = arith.constant dense<0.000000e+00> : vector<2x128xf32>
    %986 = tpu.matmul %985, %6, %cst_214 {dimension_numbers = #tpu.dot_dimension_numbers<[1], [0], [0], [1], [0, 0, 1, 1], [], []>} : vector<2x32xbf16>, vector<32x128xbf16>, vector<2x128xf32> -> vector<2x128xf32>
    %987 = arith.addf %984, %986 : vector<2x128xf32>
    %cst_215 = arith.constant dense<0xFF800000> : vector<2xf32>
    %988 = vector.multi_reduction <maximumf>, %987, %cst_215 [1] : vector<2x128xf32> to vector<2xf32>
    %989 = vector.shape_cast %988 : vector<2xf32> to vector<2x1xf32>
    %990 = vector.broadcast %989 : vector<2x1xf32> to vector<2x128xf32>
    %991 = arith.cmpf oeq, %987, %990 : vector<2x128xf32>
    %c128_i32_216 = arith.constant 128 : i32
    %992 = vector.broadcast %c128_i32_216 : i32 to vector<2x128xi32>
    %993 = arith.select %991, %22, %992 : vector<2x128xi1>, vector<2x128xi32>
    %cst_217 = arith.constant dense<2147483647> : vector<2xi32>
    %994 = vector.multi_reduction <minsi>, %993, %cst_217 [1] : vector<2x128xi32> to vector<2xi32>
    %995 = vector.shape_cast %994 : vector<2xi32> to vector<2x1xi32>
    %996 = vector.broadcast %995 : vector<2x1xi32> to vector<2x128xi32>
    %997 = arith.cmpi eq, %22, %996 : vector<2x128xi32>
    %998 = arith.extui %997 : vector<2x128xi1> to vector<2x128xi32>
    %999 = arith.sitofp %998 : vector<2x128xi32> to vector<2x128xf32>
    %c3_i32_218 = arith.constant 3 : i32
    %1000 = vector.broadcast %c3_i32_218 : i32 to vector<2x1xi32>
    %1001 = arith.cmpi eq, %995, %1000 : vector<2x1xi32>
    %c2_i32_219 = arith.constant 2 : i32
    %1002 = vector.broadcast %c2_i32_219 : i32 to vector<2x1xi32>
    %1003 = arith.cmpi eq, %995, %1002 : vector<2x1xi32>
    %1004 = arith.ori %1001, %1003 : vector<2x1xi1>
    %1005 = vector.shape_cast %1004 : vector<2x1xi1> to vector<2x1xi1>
    %1006 = vector.broadcast %1005 : vector<2x1xi1> to vector<2x128xi1>
    %1007 = arith.select %1006, %26, %987 : vector<2x128xi1>, vector<2x128xf32>
    %cst_220 = arith.constant 2.000000e+00 : f32
    %1008 = vector.broadcast %cst_220 : f32 to vector<2x128xf32>
    %1009 = arith.mulf %1007, %1008 : vector<2x128xf32>
    %cst_221 = arith.constant dense<0xFF800000> : vector<2xf32>
    %1010 = vector.multi_reduction <maximumf>, %1009, %cst_221 [1] : vector<2x128xf32> to vector<2xf32>
    %1011 = vector.shape_cast %1010 : vector<2xf32> to vector<2x1xf32>
    %1012 = vector.broadcast %1011 : vector<2x1xf32> to vector<2x128xf32>
    %1013 = arith.subf %1009, %1012 : vector<2x128xf32>
    %1014 = math.exp %1013 : vector<2x128xf32>
    %cst_222 = arith.constant dense<0.000000e+00> : vector<2xf32>
    %1015 = vector.multi_reduction <add>, %1014, %cst_222 [1] : vector<2x128xf32> to vector<2xf32>
    %1016 = vector.shape_cast %1015 : vector<2xf32> to vector<2x1xf32>
    %1017 = tpu.reciprocal %1016 {approx = true} : vector<2x1xf32> -> vector<2x1xf32>
    %1018 = vector.broadcast %1017 : vector<2x1xf32> to vector<2x128xf32>
    %1019 = arith.mulf %1014, %1018 : vector<2x128xf32>
    %1020 = arith.truncf %1019 : vector<2x128xf32> to vector<2x128xbf16>
    %cst_223 = arith.constant dense<0.000000e+00> : vector<2x128xf32>
    %1021 = tpu.matmul %1020, %8, %cst_223 {dimension_numbers = #tpu.dot_dimension_numbers<[1], [0], [0], [1], [0, 0, 1, 1], [], []>} : vector<2x128xbf16>, vector<128x128xbf16>, vector<2x128xf32> -> vector<2x128xf32>
    %1022 = vector.extract_strided_slice %1021 {offsets = [0, 0], sizes = [2, 32], strides = [1, 1]} : vector<2x128xf32> to vector<2x32xf32>
    %c5_i32 = arith.constant 5 : i32
    %1023 = arith.addi %43, %c5_i32 : i32
    %1024 = vector.broadcast %1023 : i32 to vector<16x1xi32>
    %1025 = arith.cmpi eq, %28, %1024 : vector<16x1xi32>
    %1026 = arith.andi %54, %1025 : vector<16x1xi1>
    %1027 = vector.extract_strided_slice %1022 {offsets = [0, 0], sizes = [1, 32], strides = [1, 1]} : vector<2x32xf32> to vector<1x32xf32>
    %1028 = vector.shape_cast %1027 : vector<1x32xf32> to vector<1x32xf32>
    %1029 = vector.broadcast %1028 : vector<1x32xf32> to vector<16x32xf32>
    %1030 = vector.shape_cast %1026 : vector<16x1xi1> to vector<16x1xi1>
    %1031 = vector.broadcast %1030 : vector<16x1xi1> to vector<16x32xi1>
    %1032 = arith.select %1031, %1029, %870 : vector<16x32xi1>, vector<16x32xf32>
    %c5_i32_224 = arith.constant 5 : i32
    %1033 = arith.addi %57, %c5_i32_224 : i32
    %1034 = vector.broadcast %1033 : i32 to vector<16x1xi32>
    %1035 = arith.cmpi eq, %28, %1034 : vector<16x1xi32>
    %1036 = arith.andi %68, %1035 : vector<16x1xi1>
    %1037 = vector.extract_strided_slice %1022 {offsets = [1, 0], sizes = [1, 32], strides = [1, 1]} : vector<2x32xf32> to vector<1x32xf32>
    %1038 = vector.shape_cast %1037 : vector<1x32xf32> to vector<1x32xf32>
    %1039 = vector.broadcast %1038 : vector<1x32xf32> to vector<16x32xf32>
    %1040 = vector.shape_cast %1036 : vector<16x1xi1> to vector<16x1xi1>
    %1041 = vector.broadcast %1040 : vector<16x1xi1> to vector<16x32xi1>
    %1042 = arith.select %1041, %1039, %880 : vector<16x32xi1>, vector<16x32xf32>
    %1043 = arith.truncf %981 : vector<2x32xf32> to vector<2x32xbf16>
    %cst_225 = arith.constant dense<0.000000e+00> : vector<2x128xf32>
    %1044 = tpu.matmul %1043, %7, %cst_225 {dimension_numbers = #tpu.dot_dimension_numbers<[1], [0], [0], [1], [0, 0, 1, 1], [], []>} : vector<2x32xbf16>, vector<32x128xbf16>, vector<2x128xf32> -> vector<2x128xf32>
    %1045 = vector.extract_strided_slice %1044 {offsets = [0, 0], sizes = [2, 32], strides = [1, 1]} : vector<2x128xf32> to vector<2x32xf32>
    %1046 = vector.extract_strided_slice %1045 {offsets = [0, 0], sizes = [1, 32], strides = [1, 1]} : vector<2x32xf32> to vector<1x32xf32>
    %1047 = vector.broadcast %1046 : vector<1x32xf32> to vector<8x32xf32>
    %1048 = arith.addf %1047, %34 : vector<8x32xf32>
    %cst_226 = arith.constant 0.000000e+00 : f32
    %1049 = vector.broadcast %cst_226 : f32 to vector<8x32xf32>
    %1050 = arith.maximumf %1048, %1049 : vector<8x32xf32>
    %1051 = arith.mulf %1050, %12 : vector<8x32xf32>
    %cst_227 = arith.constant dense<0.000000e+00> : vector<8xf32>
    %1052 = vector.multi_reduction <add>, %1051, %cst_227 [1] : vector<8x32xf32> to vector<8xf32>
    %1053 = vector.shape_cast %1052 : vector<8xf32> to vector<8x1xf32>
    %cst_228 = arith.constant dense<0xFF800000> : vector<1xf32>
    %1054 = vector.multi_reduction <maximumf>, %1053, %cst_228 [0] : vector<8x1xf32> to vector<1xf32>
    %1055 = vector.shape_cast %1054 : vector<1xf32> to vector<1x1xf32>
    %1056 = vector.broadcast %1055 : vector<1x1xf32> to vector<8x1xf32>
    %1057 = arith.subf %1053, %1056 : vector<8x1xf32>
    %1058 = math.exp %1057 : vector<8x1xf32>
    %cst_229 = arith.constant dense<0.000000e+00> : vector<1xf32>
    %1059 = vector.multi_reduction <add>, %1058, %cst_229 [0] : vector<8x1xf32> to vector<1xf32>
    %1060 = vector.shape_cast %1059 : vector<1xf32> to vector<1x1xf32>
    %1061 = tpu.reciprocal %1060 {approx = true} : vector<1x1xf32> -> vector<1x1xf32>
    %1062 = vector.broadcast %1061 : vector<1x1xf32> to vector<8x1xf32>
    %1063 = arith.mulf %1058, %1062 : vector<8x1xf32>
    %1064 = vector.broadcast %1063 : vector<8x1xf32> to vector<8x32xf32>
    %1065 = arith.mulf %1064, %30 : vector<8x32xf32>
    %cst_230 = arith.constant dense<0.000000e+00> : vector<32xf32>
    %1066 = vector.multi_reduction <add>, %1065, %cst_230 [0] : vector<8x32xf32> to vector<32xf32>
    %1067 = vector.shape_cast %1066 : vector<32xf32> to vector<1x32xf32>
    %1068 = vector.extract_strided_slice %1045 {offsets = [1, 0], sizes = [1, 32], strides = [1, 1]} : vector<2x32xf32> to vector<1x32xf32>
    %1069 = vector.broadcast %1068 : vector<1x32xf32> to vector<8x32xf32>
    %1070 = arith.addf %1069, %36 : vector<8x32xf32>
    %cst_231 = arith.constant 0.000000e+00 : f32
    %1071 = vector.broadcast %cst_231 : f32 to vector<8x32xf32>
    %1072 = arith.maximumf %1070, %1071 : vector<8x32xf32>
    %1073 = arith.mulf %1072, %12 : vector<8x32xf32>
    %cst_232 = arith.constant dense<0.000000e+00> : vector<8xf32>
    %1074 = vector.multi_reduction <add>, %1073, %cst_232 [1] : vector<8x32xf32> to vector<8xf32>
    %1075 = vector.shape_cast %1074 : vector<8xf32> to vector<8x1xf32>
    %cst_233 = arith.constant dense<0xFF800000> : vector<1xf32>
    %1076 = vector.multi_reduction <maximumf>, %1075, %cst_233 [0] : vector<8x1xf32> to vector<1xf32>
    %1077 = vector.shape_cast %1076 : vector<1xf32> to vector<1x1xf32>
    %1078 = vector.broadcast %1077 : vector<1x1xf32> to vector<8x1xf32>
    %1079 = arith.subf %1075, %1078 : vector<8x1xf32>
    %1080 = math.exp %1079 : vector<8x1xf32>
    %cst_234 = arith.constant dense<0.000000e+00> : vector<1xf32>
    %1081 = vector.multi_reduction <add>, %1080, %cst_234 [0] : vector<8x1xf32> to vector<1xf32>
    %1082 = vector.shape_cast %1081 : vector<1xf32> to vector<1x1xf32>
    %1083 = tpu.reciprocal %1082 {approx = true} : vector<1x1xf32> -> vector<1x1xf32>
    %1084 = vector.broadcast %1083 : vector<1x1xf32> to vector<8x1xf32>
    %1085 = arith.mulf %1080, %1084 : vector<8x1xf32>
    %1086 = vector.broadcast %1085 : vector<8x1xf32> to vector<8x32xf32>
    %1087 = arith.mulf %1086, %32 : vector<8x32xf32>
    %cst_235 = arith.constant dense<0.000000e+00> : vector<32xf32>
    %1088 = vector.multi_reduction <add>, %1087, %cst_235 [0] : vector<8x32xf32> to vector<32xf32>
    %1089 = vector.shape_cast %1088 : vector<32xf32> to vector<1x32xf32>
    %1090 = vector.shape_cast %1067 : vector<1x32xf32> to vector<1x32xf32>
    %1091 = vector.broadcast %1090 : vector<1x32xf32> to vector<2x32xf32>
    %c1_i32_236 = arith.constant 1 : i32
    %1092 = vector.broadcast %c1_i32_236 : i32 to vector<2x1xi32>
    %1093 = arith.cmpi eq, %27, %1092 : vector<2x1xi32>
    %1094 = vector.shape_cast %1089 : vector<1x32xf32> to vector<1x32xf32>
    %1095 = vector.broadcast %1094 : vector<1x32xf32> to vector<2x32xf32>
    %1096 = vector.shape_cast %1093 : vector<2x1xi1> to vector<2x1xi1>
    %1097 = vector.broadcast %1096 : vector<2x1xi1> to vector<2x32xi1>
    %1098 = arith.select %1097, %1095, %1091 : vector<2x32xi1>, vector<2x32xf32>
    %1099 = arith.truncf %999 : vector<2x128xf32> to vector<2x128xbf16>
    %cst_237 = arith.constant dense<0.000000e+00> : vector<2x128xf32>
    %1100 = tpu.matmul %1099, %0, %cst_237 {dimension_numbers = #tpu.dot_dimension_numbers<[1], [0], [0], [1], [0, 0, 1, 1], [], []>} : vector<2x128xbf16>, vector<128x128xbf16>, vector<2x128xf32> -> vector<2x128xf32>
    %1101 = arith.addf %15, %1100 : vector<2x128xf32>
    %1102 = arith.truncf %1098 : vector<2x32xf32> to vector<2x32xbf16>
    %cst_238 = arith.constant dense<0.000000e+00> : vector<2x128xf32>
    %1103 = tpu.matmul %1102, %1, %cst_238 {dimension_numbers = #tpu.dot_dimension_numbers<[1], [0], [0], [1], [0, 0, 1, 1], [], []>} : vector<2x32xbf16>, vector<32x128xbf16>, vector<2x128xf32> -> vector<2x128xf32>
    %1104 = arith.addf %1101, %1103 : vector<2x128xf32>
    %1105 = arith.truncf %960 : vector<2x32xf32> to vector<2x32xbf16>
    %cst_239 = arith.constant dense<0.000000e+00> : vector<2x128xf32>
    %1106 = tpu.matmul %1105, %2, %cst_239 {dimension_numbers = #tpu.dot_dimension_numbers<[1], [0], [0], [1], [0, 0, 1, 1], [], []>} : vector<2x32xbf16>, vector<32x128xbf16>, vector<2x128xf32> -> vector<2x128xf32>
    %1107 = arith.addf %1104, %1106 : vector<2x128xf32>
    %1108 = arith.negf %1107 : vector<2x128xf32>
    %1109 = math.exp %1108 : vector<2x128xf32>
    %cst_240 = arith.constant 1.000000e+00 : f32
    %1110 = vector.broadcast %cst_240 : f32 to vector<2x128xf32>
    %1111 = arith.addf %1110, %1109 : vector<2x128xf32>
    %1112 = arith.divf %1110, %1111 : vector<2x128xf32>
    %1113 = vector.extract_strided_slice %1112 {offsets = [0, 0], sizes = [2, 32], strides = [1, 1]} : vector<2x128xf32> to vector<2x32xf32>
    %1114 = vector.extract_strided_slice %1112 {offsets = [0, 32], sizes = [2, 32], strides = [1, 1]} : vector<2x128xf32> to vector<2x32xf32>
    %1115 = vector.extract_strided_slice %1112 {offsets = [0, 96], sizes = [2, 32], strides = [1, 1]} : vector<2x128xf32> to vector<2x32xf32>
    %1116 = vector.extract_strided_slice %1107 {offsets = [0, 64], sizes = [2, 32], strides = [1, 1]} : vector<2x128xf32> to vector<2x32xf32>
    %1117 = math.tanh %1116 : vector<2x32xf32>
    %1118 = arith.mulf %1114, %958 : vector<2x32xf32>
    %1119 = arith.mulf %1113, %1117 : vector<2x32xf32>
    %1120 = arith.addf %1118, %1119 : vector<2x32xf32>
    %1121 = math.tanh %1120 : vector<2x32xf32>
    %1122 = arith.mulf %1115, %1121 : vector<2x32xf32>
    %1123 = arith.truncf %1122 : vector<2x32xf32> to vector<2x32xbf16>
    %cst_241 = arith.constant dense<0.000000e+00> : vector<2x128xf32>
    %1124 = tpu.matmul %1123, %3, %cst_241 {dimension_numbers = #tpu.dot_dimension_numbers<[1], [0], [0], [1], [0, 0, 1, 1], [], []>} : vector<2x32xbf16>, vector<32x128xbf16>, vector<2x128xf32> -> vector<2x128xf32>
    %1125 = arith.addf %18, %1124 : vector<2x128xf32>
    %1126 = arith.truncf %981 : vector<2x32xf32> to vector<2x32xbf16>
    %cst_242 = arith.constant dense<0.000000e+00> : vector<2x128xf32>
    %1127 = tpu.matmul %1126, %4, %cst_242 {dimension_numbers = #tpu.dot_dimension_numbers<[1], [0], [0], [1], [0, 0, 1, 1], [], []>} : vector<2x32xbf16>, vector<32x128xbf16>, vector<2x128xf32> -> vector<2x128xf32>
    %1128 = arith.addf %1125, %1127 : vector<2x128xf32>
    %1129 = arith.negf %1128 : vector<2x128xf32>
    %1130 = math.exp %1129 : vector<2x128xf32>
    %cst_243 = arith.constant 1.000000e+00 : f32
    %1131 = vector.broadcast %cst_243 : f32 to vector<2x128xf32>
    %1132 = arith.addf %1131, %1130 : vector<2x128xf32>
    %1133 = arith.divf %1131, %1132 : vector<2x128xf32>
    %1134 = vector.extract_strided_slice %1133 {offsets = [0, 0], sizes = [2, 32], strides = [1, 1]} : vector<2x128xf32> to vector<2x32xf32>
    %1135 = vector.extract_strided_slice %1133 {offsets = [0, 32], sizes = [2, 32], strides = [1, 1]} : vector<2x128xf32> to vector<2x32xf32>
    %1136 = vector.extract_strided_slice %1133 {offsets = [0, 96], sizes = [2, 32], strides = [1, 1]} : vector<2x128xf32> to vector<2x32xf32>
    %1137 = vector.extract_strided_slice %1128 {offsets = [0, 64], sizes = [2, 32], strides = [1, 1]} : vector<2x128xf32> to vector<2x32xf32>
    %1138 = math.tanh %1137 : vector<2x32xf32>
    %1139 = arith.mulf %1135, %979 : vector<2x32xf32>
    %1140 = arith.mulf %1134, %1138 : vector<2x32xf32>
    %1141 = arith.addf %1139, %1140 : vector<2x32xf32>
    %1142 = math.tanh %1141 : vector<2x32xf32>
    %1143 = arith.mulf %1136, %1142 : vector<2x32xf32>
    %1144 = arith.truncf %1143 : vector<2x32xf32> to vector<2x32xbf16>
    %cst_244 = arith.constant dense<0.000000e+00> : vector<2x128xf32>
    %1145 = tpu.matmul %1144, %5, %cst_244 {dimension_numbers = #tpu.dot_dimension_numbers<[1], [0], [0], [1], [0, 0, 1, 1], [], []>} : vector<2x32xbf16>, vector<32x128xbf16>, vector<2x128xf32> -> vector<2x128xf32>
    %1146 = arith.addf %21, %1145 : vector<2x128xf32>
    %1147 = arith.truncf %1098 : vector<2x32xf32> to vector<2x32xbf16>
    %cst_245 = arith.constant dense<0.000000e+00> : vector<2x128xf32>
    %1148 = tpu.matmul %1147, %6, %cst_245 {dimension_numbers = #tpu.dot_dimension_numbers<[1], [0], [0], [1], [0, 0, 1, 1], [], []>} : vector<2x32xbf16>, vector<32x128xbf16>, vector<2x128xf32> -> vector<2x128xf32>
    %1149 = arith.addf %1146, %1148 : vector<2x128xf32>
    %cst_246 = arith.constant dense<0xFF800000> : vector<2xf32>
    %1150 = vector.multi_reduction <maximumf>, %1149, %cst_246 [1] : vector<2x128xf32> to vector<2xf32>
    %1151 = vector.shape_cast %1150 : vector<2xf32> to vector<2x1xf32>
    %1152 = vector.broadcast %1151 : vector<2x1xf32> to vector<2x128xf32>
    %1153 = arith.cmpf oeq, %1149, %1152 : vector<2x128xf32>
    %c128_i32_247 = arith.constant 128 : i32
    %1154 = vector.broadcast %c128_i32_247 : i32 to vector<2x128xi32>
    %1155 = arith.select %1153, %22, %1154 : vector<2x128xi1>, vector<2x128xi32>
    %cst_248 = arith.constant dense<2147483647> : vector<2xi32>
    %1156 = vector.multi_reduction <minsi>, %1155, %cst_248 [1] : vector<2x128xi32> to vector<2xi32>
    %1157 = vector.shape_cast %1156 : vector<2xi32> to vector<2x1xi32>
    %c3_i32_249 = arith.constant 3 : i32
    %1158 = vector.broadcast %c3_i32_249 : i32 to vector<2x1xi32>
    %1159 = arith.cmpi eq, %1157, %1158 : vector<2x1xi32>
    %c2_i32_250 = arith.constant 2 : i32
    %1160 = vector.broadcast %c2_i32_250 : i32 to vector<2x1xi32>
    %1161 = arith.cmpi eq, %1157, %1160 : vector<2x1xi32>
    %1162 = arith.ori %1159, %1161 : vector<2x1xi1>
    %1163 = vector.shape_cast %1162 : vector<2x1xi1> to vector<2x1xi1>
    %1164 = vector.broadcast %1163 : vector<2x1xi1> to vector<2x128xi1>
    %1165 = arith.select %1164, %26, %1149 : vector<2x128xi1>, vector<2x128xf32>
    %cst_251 = arith.constant 2.000000e+00 : f32
    %1166 = vector.broadcast %cst_251 : f32 to vector<2x128xf32>
    %1167 = arith.mulf %1165, %1166 : vector<2x128xf32>
    %cst_252 = arith.constant dense<0xFF800000> : vector<2xf32>
    %1168 = vector.multi_reduction <maximumf>, %1167, %cst_252 [1] : vector<2x128xf32> to vector<2xf32>
    %1169 = vector.shape_cast %1168 : vector<2xf32> to vector<2x1xf32>
    %1170 = vector.broadcast %1169 : vector<2x1xf32> to vector<2x128xf32>
    %1171 = arith.subf %1167, %1170 : vector<2x128xf32>
    %1172 = math.exp %1171 : vector<2x128xf32>
    %cst_253 = arith.constant dense<0.000000e+00> : vector<2xf32>
    %1173 = vector.multi_reduction <add>, %1172, %cst_253 [1] : vector<2x128xf32> to vector<2xf32>
    %1174 = vector.shape_cast %1173 : vector<2xf32> to vector<2x1xf32>
    %1175 = tpu.reciprocal %1174 {approx = true} : vector<2x1xf32> -> vector<2x1xf32>
    %1176 = vector.broadcast %1175 : vector<2x1xf32> to vector<2x128xf32>
    %1177 = arith.mulf %1172, %1176 : vector<2x128xf32>
    %1178 = arith.truncf %1177 : vector<2x128xf32> to vector<2x128xbf16>
    %cst_254 = arith.constant dense<0.000000e+00> : vector<2x128xf32>
    %1179 = tpu.matmul %1178, %8, %cst_254 {dimension_numbers = #tpu.dot_dimension_numbers<[1], [0], [0], [1], [0, 0, 1, 1], [], []>} : vector<2x128xbf16>, vector<128x128xbf16>, vector<2x128xf32> -> vector<2x128xf32>
    %1180 = vector.extract_strided_slice %1179 {offsets = [0, 0], sizes = [2, 32], strides = [1, 1]} : vector<2x128xf32> to vector<2x32xf32>
    %c6_i32 = arith.constant 6 : i32
    %1181 = arith.addi %43, %c6_i32 : i32
    %1182 = vector.broadcast %1181 : i32 to vector<16x1xi32>
    %1183 = arith.cmpi eq, %28, %1182 : vector<16x1xi32>
    %1184 = arith.andi %54, %1183 : vector<16x1xi1>
    %1185 = vector.extract_strided_slice %1180 {offsets = [0, 0], sizes = [1, 32], strides = [1, 1]} : vector<2x32xf32> to vector<1x32xf32>
    %1186 = vector.shape_cast %1185 : vector<1x32xf32> to vector<1x32xf32>
    %1187 = vector.broadcast %1186 : vector<1x32xf32> to vector<16x32xf32>
    %1188 = vector.shape_cast %1184 : vector<16x1xi1> to vector<16x1xi1>
    %1189 = vector.broadcast %1188 : vector<16x1xi1> to vector<16x32xi1>
    %1190 = arith.select %1189, %1187, %1032 : vector<16x32xi1>, vector<16x32xf32>
    %c6_i32_255 = arith.constant 6 : i32
    %1191 = arith.addi %57, %c6_i32_255 : i32
    %1192 = vector.broadcast %1191 : i32 to vector<16x1xi32>
    %1193 = arith.cmpi eq, %28, %1192 : vector<16x1xi32>
    %1194 = arith.andi %68, %1193 : vector<16x1xi1>
    %1195 = vector.extract_strided_slice %1180 {offsets = [1, 0], sizes = [1, 32], strides = [1, 1]} : vector<2x32xf32> to vector<1x32xf32>
    %1196 = vector.shape_cast %1195 : vector<1x32xf32> to vector<1x32xf32>
    %1197 = vector.broadcast %1196 : vector<1x32xf32> to vector<16x32xf32>
    %1198 = vector.shape_cast %1194 : vector<16x1xi1> to vector<16x1xi1>
    %1199 = vector.broadcast %1198 : vector<16x1xi1> to vector<16x32xi1>
    %1200 = arith.select %1199, %1197, %1042 : vector<16x32xi1>, vector<16x32xf32>
    %c0_256 = arith.constant 0 : index
    %c0_257 = arith.constant 0 : index
    %c0_258 = arith.constant 0 : index
    %1201 = vector.load %arg10[%c0_256, %c0_257, %c0_258] : memref<2x16x32xf32, #tpu.memory_space<vmem>>, vector<1x16x32xf32>
    %1202 = vector.shape_cast %1201 : vector<1x16x32xf32> to vector<16x32xf32>
    %1203 = vector.shape_cast %1190 : vector<16x32xf32> to vector<1x16x32xf32>
    tpu.vector_store %arg10[%c0_256, %c0_257, %c0_258], %1203 {strides = array<i32>} : memref<2x16x32xf32, #tpu.memory_space<vmem>>, vector<1x16x32xf32>,
    %c1_259 = arith.constant 1 : index
    %c0_260 = arith.constant 0 : index
    %c0_261 = arith.constant 0 : index
    %1204 = vector.load %arg10[%c1_259, %c0_260, %c0_261] : memref<2x16x32xf32, #tpu.memory_space<vmem>>, vector<1x16x32xf32>
    %1205 = vector.shape_cast %1204 : vector<1x16x32xf32> to vector<16x32xf32>
    %1206 = vector.shape_cast %1200 : vector<16x32xf32> to vector<1x16x32xf32>
    tpu.vector_store %arg10[%c1_259, %c0_260, %c0_261], %1206 {strides = array<i32>} : memref<2x16x32xf32, #tpu.memory_space<vmem>>, vector<1x16x32xf32>,
    return
  }
  func.func @transform_0(%arg0: i32, %arg1: memref<2xi32, #tpu.memory_space<smem>>, %arg2: memref<2xi32, #tpu.memory_space<smem>>) -> (i32, i32) {
    %c0_i32 = arith.constant 0 : i32
    %c0_i32_0 = arith.constant 0 : i32
    %c0_i32_1 = arith.constant 0 : i32
    return %c0_i32, %c0_i32_0 : i32, i32
  }
  func.func @transform_1(%arg0: i32, %arg1: memref<2xi32, #tpu.memory_space<smem>>, %arg2: memref<2xi32, #tpu.memory_space<smem>>) -> (i32, i32) {
    %c0_i32 = arith.constant 0 : i32
    %c0_i32_0 = arith.constant 0 : i32
    %c0_i32_1 = arith.constant 0 : i32
    return %c0_i32, %c0_i32_0 : i32, i32
  }
  func.func @transform_2(%arg0: i32, %arg1: memref<2xi32, #tpu.memory_space<smem>>, %arg2: memref<2xi32, #tpu.memory_space<smem>>) -> (i32, i32, i32) {
    %c0_i32 = arith.constant 0 : i32
    %c0_i32_0 = arith.constant 0 : i32
    %c0_i32_1 = arith.constant 0 : i32
    %c0_i32_2 = arith.constant 0 : i32
    return %c0_i32, %c0_i32_0, %c0_i32_1 : i32, i32, i32
  }
  func.func @transform_3(%arg0: i32, %arg1: memref<2xi32, #tpu.memory_space<smem>>, %arg2: memref<2xi32, #tpu.memory_space<smem>>) -> (i32, i32, i32) {
    %c0_i32 = arith.constant 0 : i32
    %c0_i32_0 = arith.constant 0 : i32
    %c0_i32_1 = arith.constant 0 : i32
    %c0_i32_2 = arith.constant 0 : i32
    return %c0_i32, %c0_i32_0, %c0_i32_1 : i32, i32, i32
  }
  func.func @transform_4(%arg0: i32, %arg1: memref<2xi32, #tpu.memory_space<smem>>, %arg2: memref<2xi32, #tpu.memory_space<smem>>) -> (i32, i32) {
    %c0_i32 = arith.constant 0 : i32
    %c0_i32_0 = arith.constant 0 : i32
    %c0_i32_1 = arith.constant 0 : i32
    return %c0_i32, %c0_i32_0 : i32, i32
  }
  func.func @transform_5(%arg0: i32, %arg1: memref<2xi32, #tpu.memory_space<smem>>, %arg2: memref<2xi32, #tpu.memory_space<smem>>) -> (i32, i32) {
    %c0_i32 = arith.constant 0 : i32
    %c0_i32_0 = arith.constant 0 : i32
    %c0_i32_1 = arith.constant 0 : i32
    return %c0_i32, %c0_i32_0 : i32, i32
  }
  func.func @transform_6(%arg0: i32, %arg1: memref<2xi32, #tpu.memory_space<smem>>, %arg2: memref<2xi32, #tpu.memory_space<smem>>) -> (i32, i32, i32) {
    %c0_i32 = arith.constant 0 : i32
    %c0_i32_0 = arith.constant 0 : i32
    %c0_i32_1 = arith.constant 0 : i32
    %c0_i32_2 = arith.constant 0 : i32
    return %c0_i32, %c0_i32_0, %c0_i32_1 : i32, i32, i32
  }
  func.func @transform_7(%arg0: i32, %arg1: memref<2xi32, #tpu.memory_space<smem>>, %arg2: memref<2xi32, #tpu.memory_space<smem>>) -> (i32, i32, i32) {
    %c0_i32 = arith.constant 0 : i32
    %c0_i32_0 = arith.constant 0 : i32
    %c0_i32_1 = arith.constant 0 : i32
    %c0_i32_2 = arith.constant 0 : i32
    return %c0_i32, %c0_i32_0, %c0_i32_1 : i32, i32, i32
  }
}

</mosaic_0001>

<llo_original>
// kernel: wrapped_seq_decoder_forward.1
$region0: #{wrapped_seq_decoder_forward.1}
  #allocation0 [shape = 'u32[]', space=smem, size = 0x4, offset = 0x4, fixed_abs, tag = 'smem constant byte address 0x4 - core index']
  #allocation1 [shape = 'u32[144,128]{1,0:T(1,128)}', space=vmem, size = 0x12000, scoped, tag = 'internal scratch']
  #allocation2 [shape = 's32[1]{0}', space=sflag, size = 0x4, scoped, tag = 'scoped memory for wrapped_seq_decoder_forward.1']
  #allocation3 [shape = 'u8[512]{0}', space=smem, size = 0x200, scoped, tag = 'prefetched SMEM operand 0']
  #allocation4 [shape = 'u8[512]{0}', space=smem, size = 0x200, scoped, tag = 'prefetched SMEM operand 1']
  %s0 = inlined_call_operand.vmem [shape: s32[2], index: 0, kind: input, shape index: {}]
  %s1 = inlined_call_operand.vmem [shape: s32[2], index: 1, kind: input, shape index: {}]
  %s2 = inlined_call_operand.vmem [shape: f32[2,128], index: 2, kind: input, shape index: {}]
  %s3 = inlined_call_operand.vmem [shape: f32[2,128], index: 3, kind: input, shape index: {}]
  %s4 = inlined_call_operand.vmem [shape: f32[2,8,32], index: 4, kind: input, shape index: {}]
  %s5 = inlined_call_operand.vmem [shape: f32[2,8,32], index: 5, kind: input, shape index: {}]
  %s6 = inlined_call_operand.vmem [shape: bf16[480,128], index: 6, kind: input, shape index: {}]
  %s7 = inlined_call_operand.vmem [shape: f32[4,128], index: 7, kind: input, shape index: {}]
  %s8 = inlined_call_operand.vmem [shape: f32[2,16,32], index: 8, kind: input, shape index: {}]
  %s9 = inlined_call_operand.vmem [shape: f32[2,16,32], index: 9, kind: output, shape index: {}]
  %s10 = sld [smem:[#allocation0]]
  $region38: #{wrapped_seq_decoder_forward.1} parent=0
    _
  %s12 = ssub.s32 1, %s10
  %s13 = scalar_select 0, %s12, %s10
  %s14 = sshll.u32 %s0, 4
  %s15 = int_to_ptr.vmem [resolvable:$true] %s14
  %17 = dma.vmem_to_smem %s15, 16, [#allocation3], [#allocation2]
  %s18 = sshll.u32 %s1, 4
  %s19 = int_to_ptr.vmem [resolvable:$true] %s18
  %21 = dma.vmem_to_smem %s19, 16, [#allocation4], [#allocation2]
  %22 = dma.done [#allocation2], 32
  %23 = sfence
  // Predicated region
  $region2: #{wrapped_seq_decoder_forward.1} parent=0 // pred_check
    _
  $region3: #{wrapped_seq_decoder_forward.1} parent=0 // pred_check_branch
    %25 = sbr.rel (0) target = $region5
  $region4: #{wrapped_seq_decoder_forward.1} parent=0 // pred_region
    _
  $region5: #{wrapped_seq_decoder_forward.1} parent=0 // pred_fallthru
    _
  // Predicated region
  $region6: #{wrapped_seq_decoder_forward.1} parent=0 // pred_check
    _
  $region7: #{wrapped_seq_decoder_forward.1} parent=0 // pred_check_branch
    %27 = sbr.rel (0) target = $region9
  $region8: #{wrapped_seq_decoder_forward.1} parent=0 // pred_region
    _
  $region9: #{wrapped_seq_decoder_forward.1} parent=0 // pred_fallthru
    _
  // Predicated region
  $region10: #{wrapped_seq_decoder_forward.1} parent=0 // pred_check
    _
  $region11: #{wrapped_seq_decoder_forward.1} parent=0 // pred_check_branch
    %29 = sbr.rel (0) target = $region13
  $region12: #{wrapped_seq_decoder_forward.1} parent=0 // pred_region
    _
  $region13: #{wrapped_seq_decoder_forward.1} parent=0 // pred_fallthru
    _
  // Predicated region
  $region14: #{wrapped_seq_decoder_forward.1} parent=0 // pred_check
    _
  $region15: #{wrapped_seq_decoder_forward.1} parent=0 // pred_check_branch
    %31 = sbr.rel (0) target = $region17
  $region16: #{wrapped_seq_decoder_forward.1} parent=0 // pred_region
    _
  $region17: #{wrapped_seq_decoder_forward.1} parent=0 // pred_fallthru
    _
  // Predicated region
  $region18: #{wrapped_seq_decoder_forward.1} parent=0 // pred_check
    _
  $region19: #{wrapped_seq_decoder_forward.1} parent=0 // pred_check_branch
    %33 = sbr.rel (0) target = $region21
  $region20: #{wrapped_seq_decoder_forward.1} parent=0 // pred_region
    _
  $region21: #{wrapped_seq_decoder_forward.1} parent=0 // pred_fallthru
    _
  // Predicated region
  $region22: #{wrapped_seq_decoder_forward.1} parent=0 // pred_check
    _
  $region23: #{wrapped_seq_decoder_forward.1} parent=0 // pred_check_branch
    %35 = sbr.rel (0) target = $region25
  $region24: #{wrapped_seq_decoder_forward.1} parent=0 // pred_region
    _
  $region25: #{wrapped_seq_decoder_forward.1} parent=0 // pred_fallthru
    _
  // Predicated region
  $region26: #{wrapped_seq_decoder_forward.1} parent=0 // pred_check
    _
  $region27: #{wrapped_seq_decoder_forward.1} parent=0 // pred_check_branch
    %37 = sbr.rel (0) target = $region29
  $region28: #{wrapped_seq_decoder_forward.1} parent=0 // pred_region
    _
  $region29: #{wrapped_seq_decoder_forward.1} parent=0 // pred_fallthru
    _
  %v39 = vld [vmem:[%s6] sm:$0xf]
  %v40 = vld [vmem:[%s6 + $0x4] sm:$0xf]
  %v41 = vld [vmem:[%s6 + $0x8] sm:$0xf]
  %v42 = vld [vmem:[%s6 + $0xc] sm:$0xf]
  %v43 = vld [vmem:[%s6 + $0x10] sm:$0xf]
  %v44 = vld [vmem:[%s6 + $0x14] sm:$0xf]
  %v45 = vld [vmem:[%s6 + $0x18] sm:$0xf]
  %v46 = vld [vmem:[%s6 + $0x1c] sm:$0xf]
  %v47 = vld [vmem:[%s6 + $0x20] sm:$0xf]
  %v48 = vld [vmem:[%s6 + $0x24] sm:$0xf]
  %v49 = vld [vmem:[%s6 + $0x28] sm:$0xf]
  %v50 = vld [vmem:[%s6 + $0x2c] sm:$0xf]
  %v51 = vld [vmem:[%s6 + $0x30] sm:$0xf]
  %v52 = vld [vmem:[%s6 + $0x34] sm:$0xf]
  %v53 = vld [vmem:[%s6 + $0x38] sm:$0xf]
  %v54 = vld [vmem:[%s6 + $0x3c] sm:$0xf]
  %v55 = vld [vmem:[%s6 + $0x40] sm:$0xf]
  %v56 = vld [vmem:[%s6 + $0x44] sm:$0xf]
  %v57 = vld [vmem:[%s6 + $0x48] sm:$0xf]
  %v58 = vld [vmem:[%s6 + $0x4c] sm:$0xf]
  %v59 = vld [vmem:[%s6 + $0x50] sm:$0xf]
  %v60 = vld [vmem:[%s6 + $0x54] sm:$0xf]
  %v61 = vld [vmem:[%s6 + $0x58] sm:$0xf]
  %v62 = vld [vmem:[%s6 + $0x5c] sm:$0xf]
  %v63 = vld [vmem:[%s6 + $0x60] sm:$0xf]
  %v64 = vld [vmem:[%s6 + $0x64] sm:$0xf]
  %v65 = vld [vmem:[%s6 + $0x68] sm:$0xf]
  %v66 = vld [vmem:[%s6 + $0x6c] sm:$0xf]
  %v67 = vld [vmem:[%s6 + $0x70] sm:$0xf]
  %v68 = vld [vmem:[%s6 + $0x74] sm:$0xf]
  %v69 = vld [vmem:[%s6 + $0x78] sm:$0xf]
  %v70 = vld [vmem:[%s6 + $0x7c] sm:$0xf]
  %v71 = vld [vmem:[%s6 + $0x80] sm:$0xf]
  %v72 = vld [vmem:[%s6 + $0x84] sm:$0xf]
  %v73 = vld [vmem:[%s6 + $0x88] sm:$0xf]
  %v74 = vld [vmem:[%s6 + $0x8c] sm:$0xf]
  %v75 = vld [vmem:[%s6 + $0x90] sm:$0xf]
  %v76 = vld [vmem:[%s6 + $0x94] sm:$0xf]
  %v77 = vld [vmem:[%s6 + $0x98] sm:$0xf]
  %v78 = vld [vmem:[%s6 + $0x9c] sm:$0xf]
  %v79 = vld [vmem:[%s6 + $0xa0] sm:$0xf]
  %v80 = vld [vmem:[%s6 + $0xa4] sm:$0xf]
  %v81 = vld [vmem:[%s6 + $0xa8] sm:$0xf]
  %v82 = vld [vmem:[%s6 + $0xac] sm:$0xf]
  %v83 = vld [vmem:[%s6 + $0xb0] sm:$0xf]
  %v84 = vld [vmem:[%s6 + $0xb4] sm:$0xf]
  %v85 = vld [vmem:[%s6 + $0xb8] sm:$0xf]
  %v86 = vld [vmem:[%s6 + $0xbc] sm:$0xf]
  %v87 = vld [vmem:[%s6 + $0xc0] sm:$0xf]
  %v88 = vld [vmem:[%s6 + $0xc4] sm:$0xf]
  %v89 = vld [vmem:[%s6 + $0xc8] sm:$0xf]
  %v90 = vld [vmem:[%s6 + $0xcc] sm:$0xf]
  %v91 = vld [vmem:[%s6 + $0xd0] sm:$0xf]
  %v92 = vld [vmem:[%s6 + $0xd4] sm:$0xf]
  %v93 = vld [vmem:[%s6 + $0xd8] sm:$0xf]
  %v94 = vld [vmem:[%s6 + $0xdc] sm:$0xf]
  %v95 = vld [vmem:[%s6 + $0xe0] sm:$0xf]
  %v96 = vld [vmem:[%s6 + $0xe4] sm:$0xf]
  %v97 = vld [vmem:[%s6 + $0xe8] sm:$0xf]
  %v98 = vld [vmem:[%s6 + $0xec] sm:$0xf]
  %v99 = vld [vmem:[%s7] sm:$0xf]
  %v100 = vlaneseq
  %v101 = vshrl.u32 %v100, 7
  %v102 = vsub.s32 0, %v101
  %v103 = vrot.slane %v99, %v102
  %v104 = vlaneseq
  %v105 = vshrl.u32 %v104, 7
  %v106 = vsub.s32 1, %v105
  %v107 = vrot.slane %v99, %v106
  %v108 = vlaneseq
  %v109 = vshrl.u32 %v108, 7
  %v110 = vsub.s32 2, %v109
  %v111 = vrot.slane %v99, %v110
  %v112 = vlaneseq
  %v113 = vshrl.u32 %v112, 7
  %v114 = vsub.s32 3, %v113
  %v115 = vrot.slane %v99, %v114
  %v116 = vlaneseq
  %v117 = vand.u32 %v116, 127
  %vm118 = vcmp.eq.s32.totalorder %v117, 0
  %v119 = vsel %vm118, 1, 0
  %v120 = vcvt.s32.f32 %v119
  %v121 = vlaneseq
  %v122 = vshrl.u32 %v121, 7
  %v123 = vadd.s32 %v122, 8
  %v124 = vld [vmem:[%s4] sm:$0xff]
  %s125 = scalar_lea.vmem %s4, 8
  %v126 = vld [vmem:[%s125] sm:$0xff]
  %v127 = vld [vmem:[%s5] sm:$0xff]
  %s128 = scalar_lea.vmem %s5, 8
  %v129 = vld [vmem:[%s128] sm:$0xff]
  %v130 = vld [vmem:[%s2] sm:$0x3]
  %v131 = vld [vmem:[%s3] sm:$0x3]
  %s132 = sld [smem:[#allocation3]]
  %s133 = sld [smem:[#allocation4]]
  %s134 = ssub.s32 %s133, %s132
  %p135 = scmp.le.s32.totalorder %s134, 7
  %p136 = scmp.le.s32.totalorder %s133, 16
  %p137 = scmp.ge.s32.totalorder %s132, 0
  %p138 = pnand %p136, %p137
  %p139 = pneg %p138
  %p140 = pnand %p135, %p139
  %p141 = pneg %p140
  %v142 = vstv %s133
  %vm143 = vcmp.lt.s32.totalorder %v122, %v142
  %vm144 = vcmp.lt.s32.totalorder %v123, %v142
  %s145 = scalar_select %p141, 1, 0
  %v146 = vstv %s145
  %vm147 = vcmp.eq.s32.totalorder %v146, 1
  %vm148 = vmand %vm143, %vm147
  %vm149 = vmand %vm144, %vm147
  %v150 = vld [vmem:[%s8] sm:$0xff]
  %v151 = vld [vmem:[%s8 + $0x8] sm:$0xff]
  %s152 = sld [smem:[#allocation3 + $0x1]]
  %s153 = sld [smem:[#allocation4 + $0x1]]
  %s154 = ssub.s32 %s153, %s152
  %p155 = scmp.le.s32.totalorder %s154, 7
  %p156 = scmp.le.s32.totalorder %s153, 16
  %p157 = scmp.ge.s32.totalorder %s152, 0
  %p158 = pnand %p156, %p157
  %p159 = pneg %p158
  %p160 = pnand %p155, %p159
  %p161 = pneg %p160
  %v162 = vstv %s153
  %vm163 = vcmp.lt.s32.totalorder %v122, %v162
  %vm164 = vcmp.lt.s32.totalorder %v123, %v162
  %s165 = scalar_select %p161, 1, 0
  %v166 = vstv %s165
  %vm167 = vcmp.eq.s32.totalorder %v166, 1
  %vm168 = vmand %vm163, %vm167
  %vm169 = vmand %vm164, %vm167
  %s170 = scalar_lea.vmem %s8, 16
  %v171 = vld [vmem:[%s170] sm:$0xff]
  %v172 = vld [vmem:[%s170 + $0x8] sm:$0xff]
  %v173 = vpack.c.bf16 %v130, %v130
  %175 = vrot.lane.b32.xlu0 %v173, 64
  %v176 = vpop.permute.xlu0 %175
  %v181 = vunpack.c.l.b16 %v79
  %v182 = vunpack.c.l.b16 %v80
  %v183 = vunpack.c.l.b16 %v81
  %v184 = vunpack.c.l.b16 %v82
  %v185 = vpack.c.b16 %v182, %v181
  %v186 = vpack.c.b16 %v184, %v183
  %vm189 = vcmask 261120
  %v191 = vsel %vm189, %v176, 0
  %193 = vmatprep.subr.bf16.mxu0 0
  %194 = vmatpush1.bf16.msra.mxu0 0
  %195 = vmatprep.subr.bf16.mxu0 0
  %196 = vmatpush1.bf16.msra.mxu0 0
  %197 = vmatprep.subr.bf16.mxu0 0
  %198 = vmatpush1.bf16.msra.mxu0 0
  %199 = vmatprep.subr.bf16.mxu0 0
  %200 = vmatpush1.bf16.msra.mxu0 0
  %201 = vmatprep.subr.bf16.mxu0 0
  %202 = vmatpush1.bf16.msra.mxu0 0
  %203 = vmatprep.subr.bf16.mxu0 0
  %204 = vmatpush1.bf16.msra.mxu0 0
  %205 = vmatprep.subr.bf16.mxu0 0
  %206 = vmatpush1.bf16.msra.mxu0 %v186
  %207 = vmatprep.subr.bf16.mxu0 0
  %208 = vmatpush1.bf16.msra.mxu0 %v185
  %209 = vmatprep.subr.bf16.mxu0 0
  %210 = vmatpush2.bf16.msra.mxu0 0
  %211 = vmatprep.subr.bf16.mxu0 0
  %212 = vmatpush2.bf16.msra.mxu0 0
  %213 = vmatprep.subr.bf16.mxu0 0
  %214 = vmatpush2.bf16.msra.mxu0 0
  %215 = vmatprep.subr.bf16.mxu0 0
  %216 = vmatpush2.bf16.msra.mxu0 0
  %217 = vmatprep.subr.bf16.mxu0 0
  %218 = vmatpush2.bf16.msra.mxu0 0
  %219 = vmatprep.subr.bf16.mxu0 0
  %220 = vmatpush2.bf16.msra.mxu0 0
  %221 = vmatprep.subr.bf16.mxu0 0
  %222 = vmatpush2.bf16.msra.mxu0 0
  %223 = vmatprep.subr.bf16.mxu0 0
  %224 = vmatpush2.bf16.msra.mxu0 0
  %225 = vmatprep.mubr.bf16.mxu0 0
  %226 = vmatmul.mubr.bf16.gmra.mxu0 %v191
  %v227 = vpop.f32.mrf.mxu0
  %v228 = vadd.f32 0.0, %v227
  %v229 = vpop.f32.mrf.mxu0
  %v230 = vpop.f32.mrf.mxu0
  %v231 = vpop.f32.mrf.mxu0
  %232 = vdwg.mxu0
  %v233 = vlaneseq
  %v234 = vshrl.u32 %v233, 7
  %v235 = vsub.s32 0, %v234
  %v236 = vrot.slane %v228, %v235
  %v237 = vadd.f32 %v236, %v127
  %v238 = vmax.f32 %v237, 0.0
  %v239 = vmul.f32 %v238, %v103
  %v240 = vsel %vm189, %v239, 0.0
  %241 = vadd.xlane.f32.xlu0 %v240
  %v242 = vpop.xlane.xlu0 %241
  %v243 = vrot.slane %v242, 4
  %v244 = vmax.f32 %v242, %v243
  %v245 = vrot.slane %v244, 2
  %v246 = vmax.f32 %v244, %v245
  %v247 = vrot.slane %v246, 1
  %v248 = vmax.f32 %v246, %v247
  %v249 = vsub.f32 %v242, %v248
  %v250 = vmul.f32 %v249, 1.442695
  %v251 = vpow.pop %v250
  %v252 = vrot.slane %v251, 4
  %v253 = vadd.f32 %v251, %v252
  %v254 = vrot.slane %v253, 2
  %v255 = vadd.f32 %v253, %v254
  %v256 = vrot.slane %v255, 1
  %v257 = vadd.f32 %v255, %v256
  %v258 = vrcp.pop %v257
  %v259 = vmul.f32 %v251, %v258
  %v260 = vmul.f32 %v259, %v124
  %v261 = vsel %vm189, %v260, 0.0
  %v262 = vrot.slane %v261, 4
  %v263 = vadd.f32 %v261, %v262
  %v264 = vrot.slane %v263, 2
  %v265 = vadd.f32 %v263, %v264
  %v266 = vrot.slane %v265, 1
  %v267 = vadd.f32 %v265, %v266
  %v268 = vlaneseq
  %v269 = vshrl.u32 %v268, 7
  %v270 = vsub.s32 1, %v269
  %v271 = vrot.slane %v228, %v270
  %v272 = vadd.f32 %v271, %v129
  %v273 = vmax.f32 %v272, 0.0
  %v274 = vmul.f32 %v273, %v103
  %v275 = vsel %vm189, %v274, 0.0
  %276 = vadd.xlane.f32.xlu0 %v275
  %v277 = vpop.xlane.xlu0 %276
  %v278 = vrot.slane %v277, 4
  %v279 = vmax.f32 %v277, %v278
  %v280 = vrot.slane %v279, 2
  %v281 = vmax.f32 %v279, %v280
  %v282 = vrot.slane %v281, 1
  %v283 = vmax.f32 %v281, %v282
  %v284 = vsub.f32 %v277, %v283
  %v285 = vmul.f32 %v284, 1.442695
  %v286 = vpow.pop %v285
  %v287 = vrot.slane %v286, 4
  %v288 = vadd.f32 %v286, %v287
  %v289 = vrot.slane %v288, 2
  %v290 = vadd.f32 %v288, %v289
  %v291 = vrot.slane %v290, 1
  %v292 = vadd.f32 %v290, %v291
  %v293 = vrcp.pop %v292
  %v294 = vmul.f32 %v286, %v293
  %v295 = vmul.f32 %v294, %v126
  %v296 = vsel %vm189, %v295, 0.0
  %v297 = vrot.slane %v296, 4
  %v298 = vadd.f32 %v296, %v297
  %v299 = vrot.slane %v298, 2
  %v300 = vadd.f32 %v298, %v299
  %v301 = vrot.slane %v300, 1
  %v302 = vadd.f32 %v300, %v301
  %vm303 = vcmp.eq.s32.totalorder %v122, 1
  %v304 = vsel %vm303, 1, 0
  %vm305 = vcmp.eq.s32.totalorder %v304, 1
  %v306 = vsel %vm305, %v302, %v267
  %v307 = vpack.c.bf16 %v131, %v131
  %v324 = vunpack.c.l.b16 %v39
  %v325 = vunpack.c.l.b16 %v40
  %v326 = vunpack.c.l.b16 %v41
  %v327 = vunpack.c.l.b16 %v42
  %v328 = vunpack.c.l.b16 %v43
  %v329 = vunpack.c.l.b16 %v44
  %v330 = vunpack.c.l.b16 %v45
  %v331 = vunpack.c.l.b16 %v46
  %v332 = vunpack.c.l.b16 %v47
  %v333 = vunpack.c.l.b16 %v48
  %v334 = vunpack.c.l.b16 %v49
  %v335 = vunpack.c.l.b16 %v50
  %v336 = vunpack.c.l.b16 %v51
  %v337 = vunpack.c.l.b16 %v52
  %v338 = vunpack.c.l.b16 %v53
  %v339 = vunpack.c.l.b16 %v54
  %v340 = vpack.c.b16 %v325, %v324
  %v341 = vpack.c.b16 %v327, %v326
  %v342 = vpack.c.b16 %v329, %v328
  %v343 = vpack.c.b16 %v331, %v330
  %v344 = vpack.c.b16 %v333, %v332
  %v345 = vpack.c.b16 %v335, %v334
  %v346 = vpack.c.b16 %v337, %v336
  %v347 = vpack.c.b16 %v339, %v338
  %356 = vmatprep.subr.bf16.mxu0 0
  %357 = vmatpush1.bf16.msra.mxu0 %v347
  %358 = vmatprep.subr.bf16.mxu0 0
  %359 = vmatpush1.bf16.msra.mxu0 %v346
  %360 = vmatprep.subr.bf16.mxu0 0
  %361 = vmatpush1.bf16.msra.mxu0 %v345
  %362 = vmatprep.subr.bf16.mxu0 0
  %363 = vmatpush1.bf16.msra.mxu0 %v344
  %364 = vmatprep.subr.bf16.mxu0 0
  %365 = vmatpush1.bf16.msra.mxu0 %v343
  %366 = vmatprep.subr.bf16.mxu0 0
  %367 = vmatpush1.bf16.msra.mxu0 %v342
  %368 = vmatprep.subr.bf16.mxu0 0
  %369 = vmatpush1.bf16.msra.mxu0 %v341
  %370 = vmatprep.subr.bf16.mxu0 0
  %371 = vmatpush1.bf16.msra.mxu0 %v340
  %372 = vmatprep.subr.bf16.mxu0 0
  %373 = vmatpush2.bf16.msra.mxu0 0
  %374 = vmatprep.subr.bf16.mxu0 0
  %375 = vmatpush2.bf16.msra.mxu0 0
  %376 = vmatprep.subr.bf16.mxu0 0
  %377 = vmatpush2.bf16.msra.mxu0 0
  %378 = vmatprep.subr.bf16.mxu0 0
  %379 = vmatpush2.bf16.msra.mxu0 0
  %380 = vmatprep.subr.bf16.mxu0 0
  %381 = vmatpush2.bf16.msra.mxu0 0
  %382 = vmatprep.subr.bf16.mxu0 0
  %383 = vmatpush2.bf16.msra.mxu0 0
  %384 = vmatprep.subr.bf16.mxu0 0
  %385 = vmatpush2.bf16.msra.mxu0 0
  %386 = vmatprep.subr.bf16.mxu0 0
  %387 = vmatpush2.bf16.msra.mxu0 0
  %388 = vmatprep.mubr.bf16.mxu0 0
  %389 = vmatmul.mubr.bf16.gmra.mxu0 %v307
  %v390 = vpop.f32.mrf.mxu0
  %v391 = vadd.f32 0.0, %v390
  %v392 = vpop.f32.mrf.mxu0
  %v393 = vpop.f32.mrf.mxu0
  %v394 = vpop.f32.mrf.mxu0
  %395 = vdwg.mxu0
  %v396 = vadd.f32 %v107, %v391
  %v397 = vpack.c.bf16 %v306, %v306
  %v402 = vunpack.c.l.b16 %v55
  %v403 = vunpack.c.l.b16 %v56
  %v404 = vunpack.c.l.b16 %v57
  %v405 = vunpack.c.l.b16 %v58
  %v406 = vpack.c.b16 %v403, %v402
  %v407 = vpack.c.b16 %v405, %v404
  %v411 = vsel %vm189, %v397, 0
  %413 = vmatprep.subr.bf16.mxu0 0
  %414 = vmatpush1.bf16.msra.mxu0 0
  %415 = vmatprep.subr.bf16.mxu0 0
  %416 = vmatpush1.bf16.msra.mxu0 0
  %417 = vmatprep.subr.bf16.mxu0 0
  %418 = vmatpush1.bf16.msra.mxu0 0
  %419 = vmatprep.subr.bf16.mxu0 0
  %420 = vmatpush1.bf16.msra.mxu0 0
  %421 = vmatprep.subr.bf16.mxu0 0
  %422 = vmatpush1.bf16.msra.mxu0 0
  %423 = vmatprep.subr.bf16.mxu0 0
  %424 = vmatpush1.bf16.msra.mxu0 0
  %425 = vmatprep.subr.bf16.mxu0 0
  %426 = vmatpush1.bf16.msra.mxu0 %v407
  %427 = vmatprep.subr.bf16.mxu0 0
  %428 = vmatpush1.bf16.msra.mxu0 %v406
  %429 = vmatprep.subr.bf16.mxu0 0
  %430 = vmatpush2.bf16.msra.mxu0 0
  %431 = vmatprep.subr.bf16.mxu0 0
  %432 = vmatpush2.bf16.msra.mxu0 0
  %433 = vmatprep.subr.bf16.mxu0 0
  %434 = vmatpush2.bf16.msra.mxu0 0
  %435 = vmatprep.subr.bf16.mxu0 0
  %436 = vmatpush2.bf16.msra.mxu0 0
  %437 = vmatprep.subr.bf16.mxu0 0
  %438 = vmatpush2.bf16.msra.mxu0 0
  %439 = vmatprep.subr.bf16.mxu0 0
  %440 = vmatpush2.bf16.msra.mxu0 0
  %441 = vmatprep.subr.bf16.mxu0 0
  %442 = vmatpush2.bf16.msra.mxu0 0
  %443 = vmatprep.subr.bf16.mxu0 0
  %444 = vmatpush2.bf16.msra.mxu0 0
  %445 = vmatprep.mubr.bf16.mxu0 0
  %446 = vmatmul.mubr.bf16.gmra.mxu0 %v411
  %v447 = vpop.f32.mrf.mxu0
  %v448 = vadd.f32 0.0, %v447
  %v449 = vpop.f32.mrf.mxu0
  %v450 = vpop.f32.mrf.mxu0
  %v451 = vpop.f32.mrf.mxu0
  %452 = vdwg.mxu0
  %v453 = vadd.f32 %v396, %v448
  %v458 = vunpack.c.l.b16 %v59
  %v459 = vunpack.c.l.b16 %v60
  %v460 = vunpack.c.l.b16 %v61
  %v461 = vunpack.c.l.b16 %v62
  %v462 = vpack.c.b16 %v459, %v458
  %v463 = vpack.c.b16 %v461, %v460
  %v467 = vsel %vm189, %v173, 0
  %469 = vmatprep.subr.bf16.mxu0 0
  %470 = vmatpush1.bf16.msra.mxu0 0
  %471 = vmatprep.subr.bf16.mxu0 0
  %472 = vmatpush1.bf16.msra.mxu0 0
  %473 = vmatprep.subr.bf16.mxu0 0
  %474 = vmatpush1.bf16.msra.mxu0 0
  %475 = vmatprep.subr.bf16.mxu0 0
  %476 = vmatpush1.bf16.msra.mxu0 0
  %477 = vmatprep.subr.bf16.mxu0 0
  %478 = vmatpush1.bf16.msra.mxu0 0
  %479 = vmatprep.subr.bf16.mxu0 0
  %480 = vmatpush1.bf16.msra.mxu0 0
  %481 = vmatprep.subr.bf16.mxu0 0
  %482 = vmatpush1.bf16.msra.mxu0 %v463
  %483 = vmatprep.subr.bf16.mxu0 0
  %484 = vmatpush1.bf16.msra.mxu0 %v462
  %485 = vmatprep.subr.bf16.mxu0 0
  %486 = vmatpush2.bf16.msra.mxu0 0
  %487 = vmatprep.subr.bf16.mxu0 0
  %488 = vmatpush2.bf16.msra.mxu0 0
  %489 = vmatprep.subr.bf16.mxu0 0
  %490 = vmatpush2.bf16.msra.mxu0 0
  %491 = vmatprep.subr.bf16.mxu0 0
  %492 = vmatpush2.bf16.msra.mxu0 0
  %493 = vmatprep.subr.bf16.mxu0 0
  %494 = vmatpush2.bf16.msra.mxu0 0
  %495 = vmatprep.subr.bf16.mxu0 0
  %496 = vmatpush2.bf16.msra.mxu0 0
  %497 = vmatprep.subr.bf16.mxu0 0
  %498 = vmatpush2.bf16.msra.mxu0 0
  %499 = vmatprep.subr.bf16.mxu0 0
  %500 = vmatpush2.bf16.msra.mxu0 0
  %501 = vmatprep.mubr.bf16.mxu0 0
  %502 = vmatmul.mubr.bf16.gmra.mxu0 %v467
  %v503 = vpop.f32.mrf.mxu0
  %v504 = vadd.f32 0.0, %v503
  %v505 = vpop.f32.mrf.mxu0
  %v506 = vpop.f32.mrf.mxu0
  %v507 = vpop.f32.mrf.mxu0
  %508 = vdwg.mxu0
  %v509 = vadd.f32 %v453, %v504
  %v510 = vxor.u32 %v509, 2147483648
  %v511 = vmul.f32 %v510, 1.442695
  %v512 = vpow.pop %v511
  %v513 = vadd.f32 %v512, 1.0
  %v514 = vrcp.pop %v513
  %v515 = vmul.f32 1.0, %v514
  %v516 = vtanh.pop %v509
  %v517 = vmul.f32 %v515, %v130
  %519 = vrot.lane.b32.xlu0 %v516, 64
  %v520 = vpop.permute.xlu0 %519
  %v522 = vmul.f32 %v515, %v520
  %524 = vrot.lane.b32.xlu0 %v522, 32
  %v525 = vpop.permute.xlu0 %524
  %v527 = vadd.f32 %v517, %v525
  %v528 = vtanh.pop %v527
  %530 = vrot.lane.b32.xlu0 %v528, 64
  %v531 = vpop.permute.xlu0 %530
  %v533 = vmul.f32 %v515, %v531
  %v534 = vpack.c.bf16 %v533, %v533
  %536 = vrot.lane.b32.xlu0 %v534, 32
  %v537 = vpop.permute.xlu0 %536
  %v542 = vunpack.c.l.b16 %v63
  %v543 = vunpack.c.l.b16 %v64
  %v544 = vunpack.c.l.b16 %v65
  %v545 = vunpack.c.l.b16 %v66
  %v546 = vpack.c.b16 %v543, %v542
  %v547 = vpack.c.b16 %v545, %v544
  %v551 = vsel %vm189, %v537, 0
  %553 = vmatprep.subr.bf16.mxu0 0
  %554 = vmatpush1.bf16.msra.mxu0 0
  %555 = vmatprep.subr.bf16.mxu0 0
  %556 = vmatpush1.bf16.msra.mxu0 0
  %557 = vmatprep.subr.bf16.mxu0 0
  %558 = vmatpush1.bf16.msra.mxu0 0
  %559 = vmatprep.subr.bf16.mxu0 0
  %560 = vmatpush1.bf16.msra.mxu0 0
  %561 = vmatprep.subr.bf16.mxu0 0
  %562 = vmatpush1.bf16.msra.mxu0 0
  %563 = vmatprep.subr.bf16.mxu0 0
  %564 = vmatpush1.bf16.msra.mxu0 0
  %565 = vmatprep.subr.bf16.mxu0 0
  %566 = vmatpush1.bf16.msra.mxu0 %v547
  %567 = vmatprep.subr.bf16.mxu0 0
  %568 = vmatpush1.bf16.msra.mxu0 %v546
  %569 = vmatprep.subr.bf16.mxu0 0
  %570 = vmatpush2.bf16.msra.mxu0 0
  %571 = vmatprep.subr.bf16.mxu0 0
  %572 = vmatpush2.bf16.msra.mxu0 0
  %573 = vmatprep.subr.bf16.mxu0 0
  %574 = vmatpush2.bf16.msra.mxu0 0
  %575 = vmatprep.subr.bf16.mxu0 0
  %576 = vmatpush2.bf16.msra.mxu0 0
  %577 = vmatprep.subr.bf16.mxu0 0
  %578 = vmatpush2.bf16.msra.mxu0 0
  %579 = vmatprep.subr.bf16.mxu0 0
  %580 = vmatpush2.bf16.msra.mxu0 0
  %581 = vmatprep.subr.bf16.mxu0 0
  %582 = vmatpush2.bf16.msra.mxu0 0
  %583 = vmatprep.subr.bf16.mxu0 0
  %584 = vmatpush2.bf16.msra.mxu0 0
  %585 = vmatprep.mubr.bf16.mxu0 0
  %586 = vmatmul.mubr.bf16.gmra.mxu0 %v551
  %v587 = vpop.f32.mrf.mxu0
  %v588 = vadd.f32 0.0, %v587
  %v589 = vpop.f32.mrf.mxu0
  %v590 = vpop.f32.mrf.mxu0
  %v591 = vpop.f32.mrf.mxu0
  %592 = vdwg.mxu0
  %v593 = vadd.f32 %v111, %v588
  %v598 = vunpack.c.l.b16 %v67
  %v599 = vunpack.c.l.b16 %v68
  %v600 = vunpack.c.l.b16 %v69
  %v601 = vunpack.c.l.b16 %v70
  %v602 = vpack.c.b16 %v599, %v598
  %v603 = vpack.c.b16 %v601, %v600
  %606 = vmatprep.subr.bf16.mxu0 0
  %607 = vmatpush1.bf16.msra.mxu0 0
  %608 = vmatprep.subr.bf16.mxu0 0
  %609 = vmatpush1.bf16.msra.mxu0 0
  %610 = vmatprep.subr.bf16.mxu0 0
  %611 = vmatpush1.bf16.msra.mxu0 0
  %612 = vmatprep.subr.bf16.mxu0 0
  %613 = vmatpush1.bf16.msra.mxu0 0
  %614 = vmatprep.subr.bf16.mxu0 0
  %615 = vmatpush1.bf16.msra.mxu0 0
  %616 = vmatprep.subr.bf16.mxu0 0
  %617 = vmatpush1.bf16.msra.mxu0 0
  %618 = vmatprep.subr.bf16.mxu0 0
  %619 = vmatpush1.bf16.msra.mxu0 %v603
  %620 = vmatprep.subr.bf16.mxu0 0
  %621 = vmatpush1.bf16.msra.mxu0 %v602
  %622 = vmatprep.subr.bf16.mxu0 0
  %623 = vmatpush2.bf16.msra.mxu0 0
  %624 = vmatprep.subr.bf16.mxu0 0
  %625 = vmatpush2.bf16.msra.mxu0 0
  %626 = vmatprep.subr.bf16.mxu0 0
  %627 = vmatpush2.bf16.msra.mxu0 0
  %628 = vmatprep.subr.bf16.mxu0 0
  %629 = vmatpush2.bf16.msra.mxu0 0
  %630 = vmatprep.subr.bf16.mxu0 0
  %631 = vmatpush2.bf16.msra.mxu0 0
  %632 = vmatprep.subr.bf16.mxu0 0
  %633 = vmatpush2.bf16.msra.mxu0 0
  %634 = vmatprep.subr.bf16.mxu0 0
  %635 = vmatpush2.bf16.msra.mxu0 0
  %636 = vmatprep.subr.bf16.mxu0 0
  %637 = vmatpush2.bf16.msra.mxu0 0
  %638 = vmatprep.mubr.bf16.mxu0 0
  %639 = vmatmul.mubr.bf16.gmra.mxu0 %v191
  %v640 = vpop.f32.mrf.mxu0
  %v641 = vadd.f32 0.0, %v640
  %v642 = vpop.f32.mrf.mxu0
  %v643 = vpop.f32.mrf.mxu0
  %v644 = vpop.f32.mrf.mxu0
  %645 = vdwg.mxu0
  %v646 = vadd.f32 %v593, %v641
  %v647 = vxor.u32 %v646, 2147483648
  %v648 = vmul.f32 %v647, 1.442695
  %v649 = vpow.pop %v648
  %v650 = vadd.f32 %v649, 1.0
  %v651 = vrcp.pop %v650
  %v652 = vmul.f32 1.0, %v651
  %v653 = vtanh.pop %v646
  %655 = vrot.lane.b32.xlu0 %v130, 64
  %v656 = vpop.permute.xlu0 %655
  %v658 = vmul.f32 %v652, %v656
  %660 = vrot.lane.b32.xlu0 %v653, 64
  %v661 = vpop.permute.xlu0 %660
  %v663 = vmul.f32 %v652, %v661
  %665 = vrot.lane.b32.xlu0 %v663, 32
  %v666 = vpop.permute.xlu0 %665
  %v668 = vadd.f32 %v658, %v666
  %v669 = vtanh.pop %v668
  %671 = vrot.lane.b32.xlu0 %v669, 64
  %v672 = vpop.permute.xlu0 %671
  %v674 = vmul.f32 %v652, %v672
  %v675 = vpack.c.bf16 %v674, %v674
  %677 = vrot.lane.b32.xlu0 %v675, 32
  %v678 = vpop.permute.xlu0 %677
  %v683 = vunpack.c.l.b16 %v71
  %v684 = vunpack.c.l.b16 %v72
  %v685 = vunpack.c.l.b16 %v73
  %v686 = vunpack.c.l.b16 %v74
  %v687 = vpack.c.b16 %v684, %v683
  %v688 = vpack.c.b16 %v686, %v685
  %v692 = vsel %vm189, %v678, 0
  %694 = vmatprep.subr.bf16.mxu0 0
  %695 = vmatpush1.bf16.msra.mxu0 0
  %696 = vmatprep.subr.bf16.mxu0 0
  %697 = vmatpush1.bf16.msra.mxu0 0
  %698 = vmatprep.subr.bf16.mxu0 0
  %699 = vmatpush1.bf16.msra.mxu0 0
  %700 = vmatprep.subr.bf16.mxu0 0
  %701 = vmatpush1.bf16.msra.mxu0 0
  %702 = vmatprep.subr.bf16.mxu0 0
  %703 = vmatpush1.bf16.msra.mxu0 0
  %704 = vmatprep.subr.bf16.mxu0 0
  %705 = vmatpush1.bf16.msra.mxu0 0
  %706 = vmatprep.subr.bf16.mxu0 0
  %707 = vmatpush1.bf16.msra.mxu0 %v688
  %708 = vmatprep.subr.bf16.mxu0 0
  %709 = vmatpush1.bf16.msra.mxu0 %v687
  %710 = vmatprep.subr.bf16.mxu0 0
  %711 = vmatpush2.bf16.msra.mxu0 0
  %712 = vmatprep.subr.bf16.mxu0 0
  %713 = vmatpush2.bf16.msra.mxu0 0
  %714 = vmatprep.subr.bf16.mxu0 0
  %715 = vmatpush2.bf16.msra.mxu0 0
  %716 = vmatprep.subr.bf16.mxu0 0
  %717 = vmatpush2.bf16.msra.mxu0 0
  %718 = vmatprep.subr.bf16.mxu0 0
  %719 = vmatpush2.bf16.msra.mxu0 0
  %720 = vmatprep.subr.bf16.mxu0 0
  %721 = vmatpush2.bf16.msra.mxu0 0
  %722 = vmatprep.subr.bf16.mxu0 0
  %723 = vmatpush2.bf16.msra.mxu0 0
  %724 = vmatprep.subr.bf16.mxu0 0
  %725 = vmatpush2.bf16.msra.mxu0 0
  %726 = vmatprep.mubr.bf16.mxu0 0
  %727 = vmatmul.mubr.bf16.gmra.mxu0 %v692
  %v728 = vpop.f32.mrf.mxu0
  %v729 = vadd.f32 0.0, %v728
  %v730 = vpop.f32.mrf.mxu0
  %v731 = vpop.f32.mrf.mxu0
  %v732 = vpop.f32.mrf.mxu0
  %733 = vdwg.mxu0
  %v734 = vadd.f32 %v115, %v729
  %v739 = vunpack.c.l.b16 %v75
  %v740 = vunpack.c.l.b16 %v76
  %v741 = vunpack.c.l.b16 %v77
  %v742 = vunpack.c.l.b16 %v78
  %v743 = vpack.c.b16 %v740, %v739
  %v744 = vpack.c.b16 %v742, %v741
  %747 = vmatprep.subr.bf16.mxu0 0
  %748 = vmatpush1.bf16.msra.mxu0 0
  %749 = vmatprep.subr.bf16.mxu0 0
  %750 = vmatpush1.bf16.msra.mxu0 0
  %751 = vmatprep.subr.bf16.mxu0 0
  %752 = vmatpush1.bf16.msra.mxu0 0
  %753 = vmatprep.subr.bf16.mxu0 0
  %754 = vmatpush1.bf16.msra.mxu0 0
  %755 = vmatprep.subr.bf16.mxu0 0
  %756 = vmatpush1.bf16.msra.mxu0 0
  %757 = vmatprep.subr.bf16.mxu0 0
  %758 = vmatpush1.bf16.msra.mxu0 0
  %759 = vmatprep.subr.bf16.mxu0 0
  %760 = vmatpush1.bf16.msra.mxu0 %v744
  %761 = vmatprep.subr.bf16.mxu0 0
  %762 = vmatpush1.bf16.msra.mxu0 %v743
  %763 = vmatprep.subr.bf16.mxu0 0
  %764 = vmatpush2.bf16.msra.mxu0 0
  %765 = vmatprep.subr.bf16.mxu0 0
  %766 = vmatpush2.bf16.msra.mxu0 0
  %767 = vmatprep.subr.bf16.mxu0 0
  %768 = vmatpush2.bf16.msra.mxu0 0
  %769 = vmatprep.subr.bf16.mxu0 0
  %770 = vmatpush2.bf16.msra.mxu0 0
  %771 = vmatprep.subr.bf16.mxu0 0
  %772 = vmatpush2.bf16.msra.mxu0 0
  %773 = vmatprep.subr.bf16.mxu0 0
  %774 = vmatpush2.bf16.msra.mxu0 0
  %775 = vmatprep.subr.bf16.mxu0 0
  %776 = vmatpush2.bf16.msra.mxu0 0
  %777 = vmatprep.subr.bf16.mxu0 0
  %778 = vmatpush2.bf16.msra.mxu0 0
  %779 = vmatprep.mubr.bf16.mxu0 0
  %780 = vmatmul.mubr.bf16.gmra.mxu0 %v411
  %v781 = vpop.f32.mrf.mxu0
  %v782 = vadd.f32 0.0, %v781
  %v783 = vpop.f32.mrf.mxu0
  %v784 = vpop.f32.mrf.mxu0
  %v785 = vpop.f32.mrf.mxu0
  %786 = vdwg.mxu0
  %v787 = vadd.f32 %v734, %v782
  %vm788 = vcmask 1041408
  %v789 = vsel %vm788, %v787, -inf
  %790 = vmax.xlane.f32.xlu0 %v789
  %v791 = vpop.xlane.xlu0 %790
  %vm792 = vcmp.eq.f32.partialorder %v787, %v791
  %v793 = vsel %vm792, %v117, 128
  %v794 = vsel %vm788, %v793, 2147483647
  %v795 = vand.u32 %v794, 65535
  %v796 = vshra.s32 %v794, 16
  %v797 = vcvt.s32.f32 %v795
  %v798 = vcvt.s32.f32 %v796
  %799 = vmin.xlane.f32.xlu0 %v798
  %v800 = vpop.xlane.xlu0 %799
  %vm801 = vcmp.eq.f32.partialorder %v798, %v800
  %v802 = vsel %vm801, %v797, inf
  %803 = vmin.xlane.f32.xlu0 %v802
  %v804 = vpop.xlane.xlu0 %803
  %v805 = vcvt.f32.s32 %v804
  %v806 = vcvt.f32.s32 %v800
  %v807 = vshll.u32 %v806, 16
  %v808 = vadd.s32 %v807, %v805
  %vm809 = vcmp.eq.s32.totalorder %v117, %v808
  %vm810 = vcmp.eq.s32.totalorder %v808, 3
  %vm811 = vcmp.eq.s32.totalorder %v808, 2
  %vm812 = vmor %vm810, %vm811
  %v813 = vsel %vm812, 1, 0
  %vm814 = vcmp.eq.s32.totalorder %v813, 1
  %v815 = vsel %vm814, %v120, %v787
  %v816 = vmul.f32 %v815, 2.0
  %v817 = vsel %vm788, %v816, -inf
  %818 = vmax.xlane.f32.xlu0 %v817
  %v819 = vpop.xlane.xlu0 %818
  %v820 = vsub.f32 %v816, %v819
  %v821 = vmul.f32 %v820, 1.442695
  %v822 = vpow.pop %v821
  %v823 = vsel %vm788, %v822, 0.0
  %824 = vadd.xlane.f32.xlu0 %v823
  %v825 = vpop.xlane.xlu0 %824
  %v826 = vrcp.pop %v825
  %v827 = vmul.f32 %v822, %v826
  %v828 = vpack.c.bf16 %v827, %v827
  %v845 = vunpack.c.l.b16 %v83
  %v846 = vunpack.c.l.b16 %v84
  %v847 = vunpack.c.l.b16 %v85
  %v848 = vunpack.c.l.b16 %v86
  %v849 = vunpack.c.l.b16 %v87
  %v850 = vunpack.c.l.b16 %v88
  %v851 = vunpack.c.l.b16 %v89
  %v852 = vunpack.c.l.b16 %v90
  %v853 = vunpack.c.l.b16 %v91
  %v854 = vunpack.c.l.b16 %v92
  %v855 = vunpack.c.l.b16 %v93
  %v856 = vunpack.c.l.b16 %v94
  %v857 = vunpack.c.l.b16 %v95
  %v858 = vunpack.c.l.b16 %v96
  %v859 = vunpack.c.l.b16 %v97
  %v860 = vunpack.c.l.b16 %v98
  %v861 = vpack.c.b16 %v846, %v845
  %v862 = vpack.c.b16 %v848, %v847
  %v863 = vpack.c.b16 %v850, %v849
  %v864 = vpack.c.b16 %v852, %v851
  %v865 = vpack.c.b16 %v854, %v853
  %v866 = vpack.c.b16 %v856, %v855
  %v867 = vpack.c.b16 %v858, %v857
  %v868 = vpack.c.b16 %v860, %v859
  %877 = vmatprep.subr.bf16.mxu0 0
  %878 = vmatpush1.bf16.msra.mxu0 %v868
  %879 = vmatprep.subr.bf16.mxu0 0
  %880 = vmatpush1.bf16.msra.mxu0 %v867
  %881 = vmatprep.subr.bf16.mxu0 0
  %882 = vmatpush1.bf16.msra.mxu0 %v866
  %883 = vmatprep.subr.bf16.mxu0 0
  %884 = vmatpush1.bf16.msra.mxu0 %v865
  %885 = vmatprep.subr.bf16.mxu0 0
  %886 = vmatpush1.bf16.msra.mxu0 %v864
  %887 = vmatprep.subr.bf16.mxu0 0
  %888 = vmatpush1.bf16.msra.mxu0 %v863
  %889 = vmatprep.subr.bf16.mxu0 0
  %890 = vmatpush1.bf16.msra.mxu0 %v862
  %891 = vmatprep.subr.bf16.mxu0 0
  %892 = vmatpush1.bf16.msra.mxu0 %v861
  %893 = vmatprep.subr.bf16.mxu0 0
  %894 = vmatpush2.bf16.msra.mxu0 0
  %895 = vmatprep.subr.bf16.mxu0 0
  %896 = vmatpush2.bf16.msra.mxu0 0
  %897 = vmatprep.subr.bf16.mxu0 0
  %898 = vmatpush2.bf16.msra.mxu0 0
  %899 = vmatprep.subr.bf16.mxu0 0
  %900 = vmatpush2.bf16.msra.mxu0 0
  %901 = vmatprep.subr.bf16.mxu0 0
  %902 = vmatpush2.bf16.msra.mxu0 0
  %903 = vmatprep.subr.bf16.mxu0 0
  %904 = vmatpush2.bf16.msra.mxu0 0
  %905 = vmatprep.subr.bf16.mxu0 0
  %906 = vmatpush2.bf16.msra.mxu0 0
  %907 = vmatprep.subr.bf16.mxu0 0
  %908 = vmatpush2.bf16.msra.mxu0 0
  %909 = vmatprep.mubr.bf16.mxu0 0
  %910 = vmatmul.mubr.bf16.gmra.mxu0 %v828
  %v911 = vpop.f32.mrf.mxu0
  %v912 = vadd.f32 0.0, %v911
  %v913 = vpop.f32.mrf.mxu0
  %v914 = vpop.f32.mrf.mxu0
  %v915 = vpop.f32.mrf.mxu0
  %916 = vdwg.mxu0
  %v917 = vstv %s132
  %vm918 = vcmp.eq.s32.totalorder %v122, %v917
  %vm919 = vcmp.eq.s32.totalorder %v123, %v917
  %vm920 = vmand %vm148, %vm918
  %vm921 = vmand %vm149, %vm919
  %v922 = vlaneseq
  %v923 = vshrl.u32 %v922, 7
  %v924 = vsub.s32 0, %v923
  %v925 = vrot.slane %v912, %v924
  %v926 = vsel %vm920, 1, 0
  %v927 = vsel %vm921, 1, 0
  %vm928 = vcmp.eq.s32.totalorder %v926, 1
  %vm929 = vcmp.eq.s32.totalorder %v927, 1
  %v930 = vsel %vm928, %v925, %v150
  %v931 = vsel %vm929, %v925, %v151
  %v932 = vstv %s152
  %vm933 = vcmp.eq.s32.totalorder %v122, %v932
  %vm934 = vcmp.eq.s32.totalorder %v123, %v932
  %vm935 = vmand %vm168, %vm933
  %vm936 = vmand %vm169, %vm934
  %v937 = vlaneseq
  %v938 = vshrl.u32 %v937, 7
  %v939 = vsub.s32 1, %v938
  %v940 = vrot.slane %v912, %v939
  %v941 = vsel %vm935, 1, 0
  %v942 = vsel %vm936, 1, 0
  %vm943 = vcmp.eq.s32.totalorder %v941, 1
  %vm944 = vcmp.eq.s32.totalorder %v942, 1
  %v945 = vsel %vm943, %v940, %v171
  %v946 = vsel %vm944, %v940, %v172
  %947 = vmatprep.subr.bf16.mxu0 0
  %948 = vmatpush1.bf16.msra.mxu0 0
  %949 = vmatprep.subr.bf16.mxu0 0
  %950 = vmatpush1.bf16.msra.mxu0 0
  %951 = vmatprep.subr.bf16.mxu0 0
  %952 = vmatpush1.bf16.msra.mxu0 0
  %953 = vmatprep.subr.bf16.mxu0 0
  %954 = vmatpush1.bf16.msra.mxu0 0
  %955 = vmatprep.subr.bf16.mxu0 0
  %956 = vmatpush1.bf16.msra.mxu0 0
  %957 = vmatprep.subr.bf16.mxu0 0
  %958 = vmatpush1.bf16.msra.mxu0 0
  %959 = vmatprep.subr.bf16.mxu0 0
  %960 = vmatpush1.bf16.msra.mxu0 %v186
  %961 = vmatprep.subr.bf16.mxu0 0
  %962 = vmatpush1.bf16.msra.mxu0 %v185
  %963 = vmatprep.subr.bf16.mxu0 0
  %964 = vmatpush2.bf16.msra.mxu0 0
  %965 = vmatprep.subr.bf16.mxu0 0
  %966 = vmatpush2.bf16.msra.mxu0 0
  %967 = vmatprep.subr.bf16.mxu0 0
  %968 = vmatpush2.bf16.msra.mxu0 0
  %969 = vmatprep.subr.bf16.mxu0 0
  %970 = vmatpush2.bf16.msra.mxu0 0
  %971 = vmatprep.subr.bf16.mxu0 0
  %972 = vmatpush2.bf16.msra.mxu0 0
  %973 = vmatprep.subr.bf16.mxu0 0
  %974 = vmatpush2.bf16.msra.mxu0 0
  %975 = vmatprep.subr.bf16.mxu0 0
  %976 = vmatpush2.bf16.msra.mxu0 0
  %977 = vmatprep.subr.bf16.mxu0 0
  %978 = vmatpush2.bf16.msra.mxu0 0
  %979 = vmatprep.mubr.bf16.mxu0 0
  %980 = vmatmul.mubr.bf16.gmra.mxu0 %v692
  %v981 = vpop.f32.mrf.mxu0
  %v982 = vadd.f32 0.0, %v981
  %v983 = vpop.f32.mrf.mxu0
  %v984 = vpop.f32.mrf.mxu0
  %v985 = vpop.f32.mrf.mxu0
  %986 = vdwg.mxu0
  %v987 = vlaneseq
  %v988 = vshrl.u32 %v987, 7
  %v989 = vsub.s32 0, %v988
  %v990 = vrot.slane %v982, %v989
  %v991 = vadd.f32 %v990, %v127
  %v992 = vmax.f32 %v991, 0.0
  %v993 = vmul.f32 %v992, %v103
  %v994 = vsel %vm189, %v993, 0.0
  %995 = vadd.xlane.f32.xlu0 %v994
  %v996 = vpop.xlane.xlu0 %995
  %v997 = vrot.slane %v996, 4
  %v998 = vmax.f32 %v996, %v997
  %v999 = vrot.slane %v998, 2
  %v1000 = vmax.f32 %v998, %v999
  %v1001 = vrot.slane %v1000, 1
  %v1002 = vmax.f32 %v1000, %v1001
  %v1003 = vsub.f32 %v996, %v1002
  %v1004 = vmul.f32 %v1003, 1.442695
  %v1005 = vpow.pop %v1004
  %v1006 = vrot.slane %v1005, 4
  %v1007 = vadd.f32 %v1005, %v1006
  %v1008 = vrot.slane %v1007, 2
  %v1009 = vadd.f32 %v1007, %v1008
  %v1010 = vrot.slane %v1009, 1
  %v1011 = vadd.f32 %v1009, %v1010
  %v1012 = vrcp.pop %v1011
  %v1013 = vmul.f32 %v1005, %v1012
  %v1014 = vmul.f32 %v1013, %v124
  %v1015 = vsel %vm189, %v1014, 0.0
  %v1016 = vrot.slane %v1015, 4
  %v1017 = vadd.f32 %v1015, %v1016
  %v1018 = vrot.slane %v1017, 2
  %v1019 = vadd.f32 %v1017, %v1018
  %v1020 = vrot.slane %v1019, 1
  %v1021 = vadd.f32 %v1019, %v1020
  %v1022 = vlaneseq
  %v1023 = vshrl.u32 %v1022, 7
  %v1024 = vsub.s32 1, %v1023
  %v1025 = vrot.slane %v982, %v1024
  %v1026 = vadd.f32 %v1025, %v129
  %v1027 = vmax.f32 %v1026, 0.0
  %v1028 = vmul.f32 %v1027, %v103
  %v1029 = vsel %vm189, %v1028, 0.0
  %1030 = vadd.xlane.f32.xlu0 %v1029
  %v1031 = vpop.xlane.xlu0 %1030
  %v1032 = vrot.slane %v1031, 4
  %v1033 = vmax.f32 %v1031, %v1032
  %v1034 = vrot.slane %v1033, 2
  %v1035 = vmax.f32 %v1033, %v1034
  %v1036 = vrot.slane %v1035, 1
  %v1037 = vmax.f32 %v1035, %v1036
  %v1038 = vsub.f32 %v1031, %v1037
  %v1039 = vmul.f32 %v1038, 1.442695
  %v1040 = vpow.pop %v1039
  %v1041 = vrot.slane %v1040, 4
  %v1042 = vadd.f32 %v1040, %v1041
  %v1043 = vrot.slane %v1042, 2
  %v1044 = vadd.f32 %v1042, %v1043
  %v1045 = vrot.slane %v1044, 1
  %v1046 = vadd.f32 %v1044, %v1045
  %v1047 = vrcp.pop %v1046
  %v1048 = vmul.f32 %v1040, %v1047
  %v1049 = vmul.f32 %v1048, %v126
  %v1050 = vsel %vm189, %v1049, 0.0
  %v1051 = vrot.slane %v1050, 4
  %v1052 = vadd.f32 %v1050, %v1051
  %v1053 = vrot.slane %v1052, 2
  %v1054 = vadd.f32 %v1052, %v1053
  %v1055 = vrot.slane %v1054, 1
  %v1056 = vadd.f32 %v1054, %v1055
  %v1057 = vsel %vm305, %v1056, %v1021
  %v1058 = vsel %vm809, 1, 0
  %v1059 = vcvt.s32.f32 %v1058
  %v1060 = vpack.c.bf16 %v1059, %v1059
  %1061 = vmatprep.subr.bf16.mxu0 0
  %1062 = vmatpush1.bf16.msra.mxu0 %v347
  %1063 = vmatprep.subr.bf16.mxu0 0
  %1064 = vmatpush1.bf16.msra.mxu0 %v346
  %1065 = vmatprep.subr.bf16.mxu0 0
  %1066 = vmatpush1.bf16.msra.mxu0 %v345
  %1067 = vmatprep.subr.bf16.mxu0 0
  %1068 = vmatpush1.bf16.msra.mxu0 %v344
  %1069 = vmatprep.subr.bf16.mxu0 0
  %1070 = vmatpush1.bf16.msra.mxu0 %v343
  %1071 = vmatprep.subr.bf16.mxu0 0
  %1072 = vmatpush1.bf16.msra.mxu0 %v342
  %1073 = vmatprep.subr.bf16.mxu0 0
  %1074 = vmatpush1.bf16.msra.mxu0 %v341
  %1075 = vmatprep.subr.bf16.mxu0 0
  %1076 = vmatpush1.bf16.msra.mxu0 %v340
  %1077 = vmatprep.subr.bf16.mxu0 0
  %1078 = vmatpush2.bf16.msra.mxu0 0
  %1079 = vmatprep.subr.bf16.mxu0 0
  %1080 = vmatpush2.bf16.msra.mxu0 0
  %1081 = vmatprep.subr.bf16.mxu0 0
  %1082 = vmatpush2.bf16.msra.mxu0 0
  %1083 = vmatprep.subr.bf16.mxu0 0
  %1084 = vmatpush2.bf16.msra.mxu0 0
  %1085 = vmatprep.subr.bf16.mxu0 0
  %1086 = vmatpush2.bf16.msra.mxu0 0
  %1087 = vmatprep.subr.bf16.mxu0 0
  %1088 = vmatpush2.bf16.msra.mxu0 0
  %1089 = vmatprep.subr.bf16.mxu0 0
  %1090 = vmatpush2.bf16.msra.mxu0 0
  %1091 = vmatprep.subr.bf16.mxu0 0
  %1092 = vmatpush2.bf16.msra.mxu0 0
  %1093 = vmatprep.mubr.bf16.mxu0 0
  %1094 = vmatmul.mubr.bf16.gmra.mxu0 %v1060
  %v1095 = vpop.f32.mrf.mxu0
  %v1096 = vadd.f32 0.0, %v1095
  %v1097 = vpop.f32.mrf.mxu0
  %v1098 = vpop.f32.mrf.mxu0
  %v1099 = vpop.f32.mrf.mxu0
  %1100 = vdwg.mxu0
  %v1101 = vadd.f32 %v107, %v1096
  %v1102 = vpack.c.bf16 %v1057, %v1057
  %v1104 = vsel %vm189, %v1102, 0
  %1106 = vmatprep.subr.bf16.mxu0 0
  %1107 = vmatpush1.bf16.msra.mxu0 0
  %1108 = vmatprep.subr.bf16.mxu0 0
  %1109 = vmatpush1.bf16.msra.mxu0 0
  %1110 = vmatprep.subr.bf16.mxu0 0
  %1111 = vmatpush1.bf16.msra.mxu0 0
  %1112 = vmatprep.subr.bf16.mxu0 0
  %1113 = vmatpush1.bf16.msra.mxu0 0
  %1114 = vmatprep.subr.bf16.mxu0 0
  %1115 = vmatpush1.bf16.msra.mxu0 0
  %1116 = vmatprep.subr.bf16.mxu0 0
  %1117 = vmatpush1.bf16.msra.mxu0 0
  %1118 = vmatprep.subr.bf16.mxu0 0
  %1119 = vmatpush1.bf16.msra.mxu0 %v407
  %1120 = vmatprep.subr.bf16.mxu0 0
  %1121 = vmatpush1.bf16.msra.mxu0 %v406
  %1122 = vmatprep.subr.bf16.mxu0 0
  %1123 = vmatpush2.bf16.msra.mxu0 0
  %1124 = vmatprep.subr.bf16.mxu0 0
  %1125 = vmatpush2.bf16.msra.mxu0 0
  %1126 = vmatprep.subr.bf16.mxu0 0
  %1127 = vmatpush2.bf16.msra.mxu0 0
  %1128 = vmatprep.subr.bf16.mxu0 0
  %1129 = vmatpush2.bf16.msra.mxu0 0
  %1130 = vmatprep.subr.bf16.mxu0 0
  %1131 = vmatpush2.bf16.msra.mxu0 0
  %1132 = vmatprep.subr.bf16.mxu0 0
  %1133 = vmatpush2.bf16.msra.mxu0 0
  %1134 = vmatprep.subr.bf16.mxu0 0
  %1135 = vmatpush2.bf16.msra.mxu0 0
  %1136 = vmatprep.subr.bf16.mxu0 0
  %1137 = vmatpush2.bf16.msra.mxu0 0
  %1138 = vmatprep.mubr.bf16.mxu0 0
  %1139 = vmatmul.mubr.bf16.gmra.mxu0 %v1104
  %v1140 = vpop.f32.mrf.mxu0
  %v1141 = vadd.f32 0.0, %v1140
  %v1142 = vpop.f32.mrf.mxu0
  %v1143 = vpop.f32.mrf.mxu0
  %v1144 = vpop.f32.mrf.mxu0
  %1145 = vdwg.mxu0
  %v1146 = vadd.f32 %v1101, %v1141
  %1147 = vmatprep.subr.bf16.mxu0 0
  %1148 = vmatpush1.bf16.msra.mxu0 0
  %1149 = vmatprep.subr.bf16.mxu0 0
  %1150 = vmatpush1.bf16.msra.mxu0 0
  %1151 = vmatprep.subr.bf16.mxu0 0
  %1152 = vmatpush1.bf16.msra.mxu0 0
  %1153 = vmatprep.subr.bf16.mxu0 0
  %1154 = vmatpush1.bf16.msra.mxu0 0
  %1155 = vmatprep.subr.bf16.mxu0 0
  %1156 = vmatpush1.bf16.msra.mxu0 0
  %1157 = vmatprep.subr.bf16.mxu0 0
  %1158 = vmatpush1.bf16.msra.mxu0 0
  %1159 = vmatprep.subr.bf16.mxu0 0
  %1160 = vmatpush1.bf16.msra.mxu0 %v463
  %1161 = vmatprep.subr.bf16.mxu0 0
  %1162 = vmatpush1.bf16.msra.mxu0 %v462
  %1163 = vmatprep.subr.bf16.mxu0 0
  %1164 = vmatpush2.bf16.msra.mxu0 0
  %1165 = vmatprep.subr.bf16.mxu0 0
  %1166 = vmatpush2.bf16.msra.mxu0 0
  %1167 = vmatprep.subr.bf16.mxu0 0
  %1168 = vmatpush2.bf16.msra.mxu0 0
  %1169 = vmatprep.subr.bf16.mxu0 0
  %1170 = vmatpush2.bf16.msra.mxu0 0
  %1171 = vmatprep.subr.bf16.mxu0 0
  %1172 = vmatpush2.bf16.msra.mxu0 0
  %1173 = vmatprep.subr.bf16.mxu0 0
  %1174 = vmatpush2.bf16.msra.mxu0 0
  %1175 = vmatprep.subr.bf16.mxu0 0
  %1176 = vmatpush2.bf16.msra.mxu0 0
  %1177 = vmatprep.subr.bf16.mxu0 0
  %1178 = vmatpush2.bf16.msra.mxu0 0
  %1179 = vmatprep.mubr.bf16.mxu0 0
  %1180 = vmatmul.mubr.bf16.gmra.mxu0 %v551
  %v1181 = vpop.f32.mrf.mxu0
  %v1182 = vadd.f32 0.0, %v1181
  %v1183 = vpop.f32.mrf.mxu0
  %v1184 = vpop.f32.mrf.mxu0
  %v1185 = vpop.f32.mrf.mxu0
  %1186 = vdwg.mxu0
  %v1187 = vadd.f32 %v1146, %v1182
  %v1188 = vxor.u32 %v1187, 2147483648
  %v1189 = vmul.f32 %v1188, 1.442695
  %v1190 = vpow.pop %v1189
  %v1191 = vadd.f32 %v1190, 1.0
  %v1192 = vrcp.pop %v1191
  %v1193 = vmul.f32 1.0, %v1192
  %v1194 = vtanh.pop %v1187
  %v1195 = vmul.f32 %v1193, %v527
  %1197 = vrot.lane.b32.xlu0 %v1194, 64
  %v1198 = vpop.permute.xlu0 %1197
  %v1200 = vmul.f32 %v1193, %v1198
  %1202 = vrot.lane.b32.xlu0 %v1200, 32
  %v1203 = vpop.permute.xlu0 %1202
  %v1205 = vadd.f32 %v1195, %v1203
  %v1206 = vtanh.pop %v1205
  %1208 = vrot.lane.b32.xlu0 %v1206, 64
  %v1209 = vpop.permute.xlu0 %1208
  %v1211 = vmul.f32 %v1193, %v1209
  %v1212 = vpack.c.bf16 %v1211, %v1211
  %1214 = vrot.lane.b32.xlu0 %v1212, 32
  %v1215 = vpop.permute.xlu0 %1214
  %v1217 = vsel %vm189, %v1215, 0
  %1219 = vmatprep.subr.bf16.mxu0 0
  %1220 = vmatpush1.bf16.msra.mxu0 0
  %1221 = vmatprep.subr.bf16.mxu0 0
  %1222 = vmatpush1.bf16.msra.mxu0 0
  %1223 = vmatprep.subr.bf16.mxu0 0
  %1224 = vmatpush1.bf16.msra.mxu0 0
  %1225 = vmatprep.subr.bf16.mxu0 0
  %1226 = vmatpush1.bf16.msra.mxu0 0
  %1227 = vmatprep.subr.bf16.mxu0 0
  %1228 = vmatpush1.bf16.msra.mxu0 0
  %1229 = vmatprep.subr.bf16.mxu0 0
  %1230 = vmatpush1.bf16.msra.mxu0 0
  %1231 = vmatprep.subr.bf16.mxu0 0
  %1232 = vmatpush1.bf16.msra.mxu0 %v547
  %1233 = vmatprep.subr.bf16.mxu0 0
  %1234 = vmatpush1.bf16.msra.mxu0 %v546
  %1235 = vmatprep.subr.bf16.mxu0 0
  %1236 = vmatpush2.bf16.msra.mxu0 0
  %1237 = vmatprep.subr.bf16.mxu0 0
  %1238 = vmatpush2.bf16.msra.mxu0 0
  %1239 = vmatprep.subr.bf16.mxu0 0
  %1240 = vmatpush2.bf16.msra.mxu0 0
  %1241 = vmatprep.subr.bf16.mxu0 0
  %1242 = vmatpush2.bf16.msra.mxu0 0
  %1243 = vmatprep.subr.bf16.mxu0 0
  %1244 = vmatpush2.bf16.msra.mxu0 0
  %1245 = vmatprep.subr.bf16.mxu0 0
  %1246 = vmatpush2.bf16.msra.mxu0 0
  %1247 = vmatprep.subr.bf16.mxu0 0
  %1248 = vmatpush2.bf16.msra.mxu0 0
  %1249 = vmatprep.subr.bf16.mxu0 0
  %1250 = vmatpush2.bf16.msra.mxu0 0
  %1251 = vmatprep.mubr.bf16.mxu0 0
  %1252 = vmatmul.mubr.bf16.gmra.mxu0 %v1217
  %v1253 = vpop.f32.mrf.mxu0
  %v1254 = vadd.f32 0.0, %v1253
  %v1255 = vpop.f32.mrf.mxu0
  %v1256 = vpop.f32.mrf.mxu0
  %v1257 = vpop.f32.mrf.mxu0
  %1258 = vdwg.mxu0
  %v1259 = vadd.f32 %v111, %v1254
  %1260 = vmatprep.subr.bf16.mxu0 0
  %1261 = vmatpush1.bf16.msra.mxu0 0
  %1262 = vmatprep.subr.bf16.mxu0 0
  %1263 = vmatpush1.bf16.msra.mxu0 0
  %1264 = vmatprep.subr.bf16.mxu0 0
  %1265 = vmatpush1.bf16.msra.mxu0 0
  %1266 = vmatprep.subr.bf16.mxu0 0
  %1267 = vmatpush1.bf16.msra.mxu0 0
  %1268 = vmatprep.subr.bf16.mxu0 0
  %1269 = vmatpush1.bf16.msra.mxu0 0
  %1270 = vmatprep.subr.bf16.mxu0 0
  %1271 = vmatpush1.bf16.msra.mxu0 0
  %1272 = vmatprep.subr.bf16.mxu0 0
  %1273 = vmatpush1.bf16.msra.mxu0 %v603
  %1274 = vmatprep.subr.bf16.mxu0 0
  %1275 = vmatpush1.bf16.msra.mxu0 %v602
  %1276 = vmatprep.subr.bf16.mxu0 0
  %1277 = vmatpush2.bf16.msra.mxu0 0
  %1278 = vmatprep.subr.bf16.mxu0 0
  %1279 = vmatpush2.bf16.msra.mxu0 0
  %1280 = vmatprep.subr.bf16.mxu0 0
  %1281 = vmatpush2.bf16.msra.mxu0 0
  %1282 = vmatprep.subr.bf16.mxu0 0
  %1283 = vmatpush2.bf16.msra.mxu0 0
  %1284 = vmatprep.subr.bf16.mxu0 0
  %1285 = vmatpush2.bf16.msra.mxu0 0
  %1286 = vmatprep.subr.bf16.mxu0 0
  %1287 = vmatpush2.bf16.msra.mxu0 0
  %1288 = vmatprep.subr.bf16.mxu0 0
  %1289 = vmatpush2.bf16.msra.mxu0 0
  %1290 = vmatprep.subr.bf16.mxu0 0
  %1291 = vmatpush2.bf16.msra.mxu0 0
  %1292 = vmatprep.mubr.bf16.mxu0 0
  %1293 = vmatmul.mubr.bf16.gmra.mxu0 %v692
  %v1294 = vpop.f32.mrf.mxu0
  %v1295 = vadd.f32 0.0, %v1294
  %v1296 = vpop.f32.mrf.mxu0
  %v1297 = vpop.f32.mrf.mxu0
  %v1298 = vpop.f32.mrf.mxu0
  %1299 = vdwg.mxu0
  %v1300 = vadd.f32 %v1259, %v1295
  %v1301 = vxor.u32 %v1300, 2147483648
  %v1302 = vmul.f32 %v1301, 1.442695
  %v1303 = vpow.pop %v1302
  %v1304 = vadd.f32 %v1303, 1.0
  %v1305 = vrcp.pop %v1304
  %v1306 = vmul.f32 1.0, %v1305
  %v1307 = vtanh.pop %v1300
  %v1308 = vmul.f32 %v1306, %v668
  %1310 = vrot.lane.b32.xlu0 %v1307, 64
  %v1311 = vpop.permute.xlu0 %1310
  %v1313 = vmul.f32 %v1306, %v1311
  %1315 = vrot.lane.b32.xlu0 %v1313, 32
  %v1316 = vpop.permute.xlu0 %1315
  %v1318 = vadd.f32 %v1308, %v1316
  %v1319 = vtanh.pop %v1318
  %1321 = vrot.lane.b32.xlu0 %v1319, 64
  %v1322 = vpop.permute.xlu0 %1321
  %v1324 = vmul.f32 %v1306, %v1322
  %v1325 = vpack.c.bf16 %v1324, %v1324
  %1327 = vrot.lane.b32.xlu0 %v1325, 32
  %v1328 = vpop.permute.xlu0 %1327
  %v1330 = vsel %vm189, %v1328, 0
  %1332 = vmatprep.subr.bf16.mxu0 0
  %1333 = vmatpush1.bf16.msra.mxu0 0
  %1334 = vmatprep.subr.bf16.mxu0 0
  %1335 = vmatpush1.bf16.msra.mxu0 0
  %1336 = vmatprep.subr.bf16.mxu0 0
  %1337 = vmatpush1.bf16.msra.mxu0 0
  %1338 = vmatprep.subr.bf16.mxu0 0
  %1339 = vmatpush1.bf16.msra.mxu0 0
  %1340 = vmatprep.subr.bf16.mxu0 0
  %1341 = vmatpush1.bf16.msra.mxu0 0
  %1342 = vmatprep.subr.bf16.mxu0 0
  %1343 = vmatpush1.bf16.msra.mxu0 0
  %1344 = vmatprep.subr.bf16.mxu0 0
  %1345 = vmatpush1.bf16.msra.mxu0 %v688
  %1346 = vmatprep.subr.bf16.mxu0 0
  %1347 = vmatpush1.bf16.msra.mxu0 %v687
  %1348 = vmatprep.subr.bf16.mxu0 0
  %1349 = vmatpush2.bf16.msra.mxu0 0
  %1350 = vmatprep.subr.bf16.mxu0 0
  %1351 = vmatpush2.bf16.msra.mxu0 0
  %1352 = vmatprep.subr.bf16.mxu0 0
  %1353 = vmatpush2.bf16.msra.mxu0 0
  %1354 = vmatprep.subr.bf16.mxu0 0
  %1355 = vmatpush2.bf16.msra.mxu0 0
  %1356 = vmatprep.subr.bf16.mxu0 0
  %1357 = vmatpush2.bf16.msra.mxu0 0
  %1358 = vmatprep.subr.bf16.mxu0 0
  %1359 = vmatpush2.bf16.msra.mxu0 0
  %1360 = vmatprep.subr.bf16.mxu0 0
  %1361 = vmatpush2.bf16.msra.mxu0 0
  %1362 = vmatprep.subr.bf16.mxu0 0
  %1363 = vmatpush2.bf16.msra.mxu0 0
  %1364 = vmatprep.mubr.bf16.mxu0 0
  %1365 = vmatmul.mubr.bf16.gmra.mxu0 %v1330
  %v1366 = vpop.f32.mrf.mxu0
  %v1367 = vadd.f32 0.0, %v1366
  %v1368 = vpop.f32.mrf.mxu0
  %v1369 = vpop.f32.mrf.mxu0
  %v1370 = vpop.f32.mrf.mxu0
  %1371 = vdwg.mxu0
  %v1372 = vadd.f32 %v115, %v1367
  %1373 = vmatprep.subr.bf16.mxu0 0
  %1374 = vmatpush1.bf16.msra.mxu0 0
  %1375 = vmatprep.subr.bf16.mxu0 0
  %1376 = vmatpush1.bf16.msra.mxu0 0
  %1377 = vmatprep.subr.bf16.mxu0 0
  %1378 = vmatpush1.bf16.msra.mxu0 0
  %1379 = vmatprep.subr.bf16.mxu0 0
  %1380 = vmatpush1.bf16.msra.mxu0 0
  %1381 = vmatprep.subr.bf16.mxu0 0
  %1382 = vmatpush1.bf16.msra.mxu0 0
  %1383 = vmatprep.subr.bf16.mxu0 0
  %1384 = vmatpush1.bf16.msra.mxu0 0
  %1385 = vmatprep.subr.bf16.mxu0 0
  %1386 = vmatpush1.bf16.msra.mxu0 %v744
  %1387 = vmatprep.subr.bf16.mxu0 0
  %1388 = vmatpush1.bf16.msra.mxu0 %v743
  %1389 = vmatprep.subr.bf16.mxu0 0
  %1390 = vmatpush2.bf16.msra.mxu0 0
  %1391 = vmatprep.subr.bf16.mxu0 0
  %1392 = vmatpush2.bf16.msra.mxu0 0
  %1393 = vmatprep.subr.bf16.mxu0 0
  %1394 = vmatpush2.bf16.msra.mxu0 0
  %1395 = vmatprep.subr.bf16.mxu0 0
  %1396 = vmatpush2.bf16.msra.mxu0 0
  %1397 = vmatprep.subr.bf16.mxu0 0
  %1398 = vmatpush2.bf16.msra.mxu0 0
  %1399 = vmatprep.subr.bf16.mxu0 0
  %1400 = vmatpush2.bf16.msra.mxu0 0
  %1401 = vmatprep.subr.bf16.mxu0 0
  %1402 = vmatpush2.bf16.msra.mxu0 0
  %1403 = vmatprep.subr.bf16.mxu0 0
  %1404 = vmatpush2.bf16.msra.mxu0 0
  %1405 = vmatprep.mubr.bf16.mxu0 0
  %1406 = vmatmul.mubr.bf16.gmra.mxu0 %v1104
  %v1407 = vpop.f32.mrf.mxu0
  %v1408 = vadd.f32 0.0, %v1407
  %v1409 = vpop.f32.mrf.mxu0
  %v1410 = vpop.f32.mrf.mxu0
  %v1411 = vpop.f32.mrf.mxu0
  %1412 = vdwg.mxu0
  %v1413 = vadd.f32 %v1372, %v1408
  %v1414 = vsel %vm788, %v1413, -inf
  %1415 = vmax.xlane.f32.xlu0 %v1414
  %v1416 = vpop.xlane.xlu0 %1415
  %vm1417 = vcmp.eq.f32.partialorder %v1413, %v1416
  %v1418 = vsel %vm1417, %v117, 128
  %v1419 = vsel %vm788, %v1418, 2147483647
  %v1420 = vand.u32 %v1419, 65535
  %v1421 = vshra.s32 %v1419, 16
  %v1422 = vcvt.s32.f32 %v1420
  %v1423 = vcvt.s32.f32 %v1421
  %1424 = vmin.xlane.f32.xlu0 %v1423
  %v1425 = vpop.xlane.xlu0 %1424
  %vm1426 = vcmp.eq.f32.partialorder %v1423, %v1425
  %v1427 = vsel %vm1426, %v1422, inf
  %1428 = vmin.xlane.f32.xlu0 %v1427
  %v1429 = vpop.xlane.xlu0 %1428
  %v1430 = vcvt.f32.s32 %v1429
  %v1431 = vcvt.f32.s32 %v1425
  %v1432 = vshll.u32 %v1431, 16
  %v1433 = vadd.s32 %v1432, %v1430
  %vm1434 = vcmp.eq.s32.totalorder %v117, %v1433
  %vm1435 = vcmp.eq.s32.totalorder %v1433, 3
  %vm1436 = vcmp.eq.s32.totalorder %v1433, 2
  %vm1437 = vmor %vm1435, %vm1436
  %v1438 = vsel %vm1437, 1, 0
  %vm1439 = vcmp.eq.s32.totalorder %v1438, 1
  %v1440 = vsel %vm1439, %v120, %v1413
  %v1441 = vmul.f32 %v1440, 2.0
  %v1442 = vsel %vm788, %v1441, -inf
  %1443 = vmax.xlane.f32.xlu0 %v1442
  %v1444 = vpop.xlane.xlu0 %1443
  %v1445 = vsub.f32 %v1441, %v1444
  %v1446 = vmul.f32 %v1445, 1.442695
  %v1447 = vpow.pop %v1446
  %v1448 = vsel %vm788, %v1447, 0.0
  %1449 = vadd.xlane.f32.xlu0 %v1448
  %v1450 = vpop.xlane.xlu0 %1449
  %v1451 = vrcp.pop %v1450
  %v1452 = vmul.f32 %v1447, %v1451
  %v1453 = vpack.c.bf16 %v1452, %v1452
  %1454 = vmatprep.subr.bf16.mxu0 0
  %1455 = vmatpush1.bf16.msra.mxu0 %v868
  %1456 = vmatprep.subr.bf16.mxu0 0
  %1457 = vmatpush1.bf16.msra.mxu0 %v867
  %1458 = vmatprep.subr.bf16.mxu0 0
  %1459 = vmatpush1.bf16.msra.mxu0 %v866
  %1460 = vmatprep.subr.bf16.mxu0 0
  %1461 = vmatpush1.bf16.msra.mxu0 %v865
  %1462 = vmatprep.subr.bf16.mxu0 0
  %1463 = vmatpush1.bf16.msra.mxu0 %v864
  %1464 = vmatprep.subr.bf16.mxu0 0
  %1465 = vmatpush1.bf16.msra.mxu0 %v863
  %1466 = vmatprep.subr.bf16.mxu0 0
  %1467 = vmatpush1.bf16.msra.mxu0 %v862
  %1468 = vmatprep.subr.bf16.mxu0 0
  %1469 = vmatpush1.bf16.msra.mxu0 %v861
  %1470 = vmatprep.subr.bf16.mxu0 0
  %1471 = vmatpush2.bf16.msra.mxu0 0
  %1472 = vmatprep.subr.bf16.mxu0 0
  %1473 = vmatpush2.bf16.msra.mxu0 0
  %1474 = vmatprep.subr.bf16.mxu0 0
  %1475 = vmatpush2.bf16.msra.mxu0 0
  %1476 = vmatprep.subr.bf16.mxu0 0
  %1477 = vmatpush2.bf16.msra.mxu0 0
  %1478 = vmatprep.subr.bf16.mxu0 0
  %1479 = vmatpush2.bf16.msra.mxu0 0
  %1480 = vmatprep.subr.bf16.mxu0 0
  %1481 = vmatpush2.bf16.msra.mxu0 0
  %1482 = vmatprep.subr.bf16.mxu0 0
  %1483 = vmatpush2.bf16.msra.mxu0 0
  %1484 = vmatprep.subr.bf16.mxu0 0
  %1485 = vmatpush2.bf16.msra.mxu0 0
  %1486 = vmatprep.mubr.bf16.mxu0 0
  %1487 = vmatmul.mubr.bf16.gmra.mxu0 %v1453
  %v1488 = vpop.f32.mrf.mxu0
  %v1489 = vadd.f32 0.0, %v1488
  %v1490 = vpop.f32.mrf.mxu0
  %v1491 = vpop.f32.mrf.mxu0
  %v1492 = vpop.f32.mrf.mxu0
  %1493 = vdwg.mxu0
  %s1494 = sadd.s32 %s132, 1
  %v1495 = vstv %s1494
  %vm1496 = vcmp.eq.s32.totalorder %v122, %v1495
  %vm1497 = vcmp.eq.s32.totalorder %v123, %v1495
  %vm1498 = vmand %vm148, %vm1496
  %vm1499 = vmand %vm149, %vm1497
  %v1500 = vlaneseq
  %v1501 = vshrl.u32 %v1500, 7
  %v1502 = vsub.s32 0, %v1501
  %v1503 = vrot.slane %v1489, %v1502
  %v1504 = vsel %vm1498, 1, 0
  %v1505 = vsel %vm1499, 1, 0
  %vm1506 = vcmp.eq.s32.totalorder %v1504, 1
  %vm1507 = vcmp.eq.s32.totalorder %v1505, 1
  %v1508 = vsel %vm1506, %v1503, %v930
  %v1509 = vsel %vm1507, %v1503, %v931
  %s1510 = sadd.s32 %s152, 1
  %v1511 = vstv %s1510
  %vm1512 = vcmp.eq.s32.totalorder %v122, %v1511
  %vm1513 = vcmp.eq.s32.totalorder %v123, %v1511
  %vm1514 = vmand %vm168, %vm1512
  %vm1515 = vmand %vm169, %vm1513
  %v1516 = vlaneseq
  %v1517 = vshrl.u32 %v1516, 7
  %v1518 = vsub.s32 1, %v1517
  %v1519 = vrot.slane %v1489, %v1518
  %v1520 = vsel %vm1514, 1, 0
  %v1521 = vsel %vm1515, 1, 0
  %vm1522 = vcmp.eq.s32.totalorder %v1520, 1
  %vm1523 = vcmp.eq.s32.totalorder %v1521, 1
  %v1524 = vsel %vm1522, %v1519, %v945
  %v1525 = vsel %vm1523, %v1519, %v946
  %1526 = vmatprep.subr.bf16.mxu0 0
  %1527 = vmatpush1.bf16.msra.mxu0 0
  %1528 = vmatprep.subr.bf16.mxu0 0
  %1529 = vmatpush1.bf16.msra.mxu0 0
  %1530 = vmatprep.subr.bf16.mxu0 0
  %1531 = vmatpush1.bf16.msra.mxu0 0
  %1532 = vmatprep.subr.bf16.mxu0 0
  %1533 = vmatpush1.bf16.msra.mxu0 0
  %1534 = vmatprep.subr.bf16.mxu0 0
  %1535 = vmatpush1.bf16.msra.mxu0 0
  %1536 = vmatprep.subr.bf16.mxu0 0
  %1537 = vmatpush1.bf16.msra.mxu0 0
  %1538 = vmatprep.subr.bf16.mxu0 0
  %1539 = vmatpush1.bf16.msra.mxu0 %v186
  %1540 = vmatprep.subr.bf16.mxu0 0
  %1541 = vmatpush1.bf16.msra.mxu0 %v185
  %1542 = vmatprep.subr.bf16.mxu0 0
  %1543 = vmatpush2.bf16.msra.mxu0 0
  %1544 = vmatprep.subr.bf16.mxu0 0
  %1545 = vmatpush2.bf16.msra.mxu0 0
  %1546 = vmatprep.subr.bf16.mxu0 0
  %1547 = vmatpush2.bf16.msra.mxu0 0
  %1548 = vmatprep.subr.bf16.mxu0 0
  %1549 = vmatpush2.bf16.msra.mxu0 0
  %1550 = vmatprep.subr.bf16.mxu0 0
  %1551 = vmatpush2.bf16.msra.mxu0 0
  %1552 = vmatprep.subr.bf16.mxu0 0
  %1553 = vmatpush2.bf16.msra.mxu0 0
  %1554 = vmatprep.subr.bf16.mxu0 0
  %1555 = vmatpush2.bf16.msra.mxu0 0
  %1556 = vmatprep.subr.bf16.mxu0 0
  %1557 = vmatpush2.bf16.msra.mxu0 0
  %1558 = vmatprep.mubr.bf16.mxu0 0
  %1559 = vmatmul.mubr.bf16.gmra.mxu0 %v1330
  %v1560 = vpop.f32.mrf.mxu0
  %v1561 = vadd.f32 0.0, %v1560
  %v1562 = vpop.f32.mrf.mxu0
  %v1563 = vpop.f32.mrf.mxu0
  %v1564 = vpop.f32.mrf.mxu0
  %1565 = vdwg.mxu0
  %v1566 = vlaneseq
  %v1567 = vshrl.u32 %v1566, 7
  %v1568 = vsub.s32 0, %v1567
  %v1569 = vrot.slane %v1561, %v1568
  %v1570 = vadd.f32 %v1569, %v127
  %v1571 = vmax.f32 %v1570, 0.0
  %v1572 = vmul.f32 %v1571, %v103
  %v1573 = vsel %vm189, %v1572, 0.0
  %1574 = vadd.xlane.f32.xlu0 %v1573
  %v1575 = vpop.xlane.xlu0 %1574
  %v1576 = vrot.slane %v1575, 4
  %v1577 = vmax.f32 %v1575, %v1576
  %v1578 = vrot.slane %v1577, 2
  %v1579 = vmax.f32 %v1577, %v1578
  %v1580 = vrot.slane %v1579, 1
  %v1581 = vmax.f32 %v1579, %v1580
  %v1582 = vsub.f32 %v1575, %v1581
  %v1583 = vmul.f32 %v1582, 1.442695
  %v1584 = vpow.pop %v1583
  %v1585 = vrot.slane %v1584, 4
  %v1586 = vadd.f32 %v1584, %v1585
  %v1587 = vrot.slane %v1586, 2
  %v1588 = vadd.f32 %v1586, %v1587
  %v1589 = vrot.slane %v1588, 1
  %v1590 = vadd.f32 %v1588, %v1589
  %v1591 = vrcp.pop %v1590
  %v1592 = vmul.f32 %v1584, %v1591
  %v1593 = vmul.f32 %v1592, %v124
  %v1594 = vsel %vm189, %v1593, 0.0
  %v1595 = vrot.slane %v1594, 4
  %v1596 = vadd.f32 %v1594, %v1595
  %v1597 = vrot.slane %v1596, 2
  %v1598 = vadd.f32 %v1596, %v1597
  %v1599 = vrot.slane %v1598, 1
  %v1600 = vadd.f32 %v1598, %v1599
  %v1601 = vlaneseq
  %v1602 = vshrl.u32 %v1601, 7
  %v1603 = vsub.s32 1, %v1602
  %v1604 = vrot.slane %v1561, %v1603
  %v1605 = vadd.f32 %v1604, %v129
  %v1606 = vmax.f32 %v1605, 0.0
  %v1607 = vmul.f32 %v1606, %v103
  %v1608 = vsel %vm189, %v1607, 0.0
  %1609 = vadd.xlane.f32.xlu0 %v1608
  %v1610 = vpop.xlane.xlu0 %1609
  %v1611 = vrot.slane %v1610, 4
  %v1612 = vmax.f32 %v1610, %v1611
  %v1613 = vrot.slane %v1612, 2
  %v1614 = vmax.f32 %v1612, %v1613
  %v1615 = vrot.slane %v1614, 1
  %v1616 = vmax.f32 %v1614, %v1615
  %v1617 = vsub.f32 %v1610, %v1616
  %v1618 = vmul.f32 %v1617, 1.442695
  %v1619 = vpow.pop %v1618
  %v1620 = vrot.slane %v1619, 4
  %v1621 = vadd.f32 %v1619, %v1620
  %v1622 = vrot.slane %v1621, 2
  %v1623 = vadd.f32 %v1621, %v1622
  %v1624 = vrot.slane %v1623, 1
  %v1625 = vadd.f32 %v1623, %v1624
  %v1626 = vrcp.pop %v1625
  %v1627 = vmul.f32 %v1619, %v1626
  %v1628 = vmul.f32 %v1627, %v126
  %v1629 = vsel %vm189, %v1628, 0.0
  %v1630 = vrot.slane %v1629, 4
  %v1631 = vadd.f32 %v1629, %v1630
  %v1632 = vrot.slane %v1631, 2
  %v1633 = vadd.f32 %v1631, %v1632
  %v1634 = vrot.slane %v1633, 1
  %v1635 = vadd.f32 %v1633, %v1634
  %v1636 = vsel %vm305, %v1635, %v1600
  %v1637 = vsel %vm1434, 1, 0
  %v1638 = vcvt.s32.f32 %v1637
  %v1639 = vpack.c.bf16 %v1638, %v1638
  %1640 = vmatprep.subr.bf16.mxu0 0
  %1641 = vmatpush1.bf16.msra.mxu0 %v347
  %1642 = vmatprep.subr.bf16.mxu0 0
  %1643 = vmatpush1.bf16.msra.mxu0 %v346
  %1644 = vmatprep.subr.bf16.mxu0 0
  %1645 = vmatpush1.bf16.msra.mxu0 %v345
  %1646 = vmatprep.subr.bf16.mxu0 0
  %1647 = vmatpush1.bf16.msra.mxu0 %v344
  %1648 = vmatprep.subr.bf16.mxu0 0
  %1649 = vmatpush1.bf16.msra.mxu0 %v343
  %1650 = vmatprep.subr.bf16.mxu0 0
  %1651 = vmatpush1.bf16.msra.mxu0 %v342
  %1652 = vmatprep.subr.bf16.mxu0 0
  %1653 = vmatpush1.bf16.msra.mxu0 %v341
  %1654 = vmatprep.subr.bf16.mxu0 0
  %1655 = vmatpush1.bf16.msra.mxu0 %v340
  %1656 = vmatprep.subr.bf16.mxu0 0
  %1657 = vmatpush2.bf16.msra.mxu0 0
  %1658 = vmatprep.subr.bf16.mxu0 0
  %1659 = vmatpush2.bf16.msra.mxu0 0
  %1660 = vmatprep.subr.bf16.mxu0 0
  %1661 = vmatpush2.bf16.msra.mxu0 0
  %1662 = vmatprep.subr.bf16.mxu0 0
  %1663 = vmatpush2.bf16.msra.mxu0 0
  %1664 = vmatprep.subr.bf16.mxu0 0
  %1665 = vmatpush2.bf16.msra.mxu0 0
  %1666 = vmatprep.subr.bf16.mxu0 0
  %1667 = vmatpush2.bf16.msra.mxu0 0
  %1668 = vmatprep.subr.bf16.mxu0 0
  %1669 = vmatpush2.bf16.msra.mxu0 0
  %1670 = vmatprep.subr.bf16.mxu0 0
  %1671 = vmatpush2.bf16.msra.mxu0 0
  %1672 = vmatprep.mubr.bf16.mxu0 0
  %1673 = vmatmul.mubr.bf16.gmra.mxu0 %v1639
  %v1674 = vpop.f32.mrf.mxu0
  %v1675 = vadd.f32 0.0, %v1674
  %v1676 = vpop.f32.mrf.mxu0
  %v1677 = vpop.f32.mrf.mxu0
  %v1678 = vpop.f32.mrf.mxu0
  %1679 = vdwg.mxu0
  %v1680 = vadd.f32 %v107, %v1675
  %v1681 = vpack.c.bf16 %v1636, %v1636
  %v1683 = vsel %vm189, %v1681, 0
  %1685 = vmatprep.subr.bf16.mxu0 0
  %1686 = vmatpush1.bf16.msra.mxu0 0
  %1687 = vmatprep.subr.bf16.mxu0 0
  %1688 = vmatpush1.bf16.msra.mxu0 0
  %1689 = vmatprep.subr.bf16.mxu0 0
  %1690 = vmatpush1.bf16.msra.mxu0 0
  %1691 = vmatprep.subr.bf16.mxu0 0
  %1692 = vmatpush1.bf16.msra.mxu0 0
  %1693 = vmatprep.subr.bf16.mxu0 0
  %1694 = vmatpush1.bf16.msra.mxu0 0
  %1695 = vmatprep.subr.bf16.mxu0 0
  %1696 = vmatpush1.bf16.msra.mxu0 0
  %1697 = vmatprep.subr.bf16.mxu0 0
  %1698 = vmatpush1.bf16.msra.mxu0 %v407
  %1699 = vmatprep.subr.bf16.mxu0 0
  %1700 = vmatpush1.bf16.msra.mxu0 %v406
  %1701 = vmatprep.subr.bf16.mxu0 0
  %1702 = vmatpush2.bf16.msra.mxu0 0
  %1703 = vmatprep.subr.bf16.mxu0 0
  %1704 = vmatpush2.bf16.msra.mxu0 0
  %1705 = vmatprep.subr.bf16.mxu0 0
  %1706 = vmatpush2.bf16.msra.mxu0 0
  %1707 = vmatprep.subr.bf16.mxu0 0
  %1708 = vmatpush2.bf16.msra.mxu0 0
  %1709 = vmatprep.subr.bf16.mxu0 0
  %1710 = vmatpush2.bf16.msra.mxu0 0
  %1711 = vmatprep.subr.bf16.mxu0 0
  %1712 = vmatpush2.bf16.msra.mxu0 0
  %1713 = vmatprep.subr.bf16.mxu0 0
  %1714 = vmatpush2.bf16.msra.mxu0 0
  %1715 = vmatprep.subr.bf16.mxu0 0
  %1716 = vmatpush2.bf16.msra.mxu0 0
  %1717 = vmatprep.mubr.bf16.mxu0 0
  %1718 = vmatmul.mubr.bf16.gmra.mxu0 %v1683
  %v1719 = vpop.f32.mrf.mxu0
  %v1720 = vadd.f32 0.0, %v1719
  %v1721 = vpop.f32.mrf.mxu0
  %v1722 = vpop.f32.mrf.mxu0
  %v1723 = vpop.f32.mrf.mxu0
  %1724 = vdwg.mxu0
  %v1725 = vadd.f32 %v1680, %v1720
  %1726 = vmatprep.subr.bf16.mxu0 0
  %1727 = vmatpush1.bf16.msra.mxu0 0
  %1728 = vmatprep.subr.bf16.mxu0 0
  %1729 = vmatpush1.bf16.msra.mxu0 0
  %1730 = vmatprep.subr.bf16.mxu0 0
  %1731 = vmatpush1.bf16.msra.mxu0 0
  %1732 = vmatprep.subr.bf16.mxu0 0
  %1733 = vmatpush1.bf16.msra.mxu0 0
  %1734 = vmatprep.subr.bf16.mxu0 0
  %1735 = vmatpush1.bf16.msra.mxu0 0
  %1736 = vmatprep.subr.bf16.mxu0 0
  %1737 = vmatpush1.bf16.msra.mxu0 0
  %1738 = vmatprep.subr.bf16.mxu0 0
  %1739 = vmatpush1.bf16.msra.mxu0 %v463
  %1740 = vmatprep.subr.bf16.mxu0 0
  %1741 = vmatpush1.bf16.msra.mxu0 %v462
  %1742 = vmatprep.subr.bf16.mxu0 0
  %1743 = vmatpush2.bf16.msra.mxu0 0
  %1744 = vmatprep.subr.bf16.mxu0 0
  %1745 = vmatpush2.bf16.msra.mxu0 0
  %1746 = vmatprep.subr.bf16.mxu0 0
  %1747 = vmatpush2.bf16.msra.mxu0 0
  %1748 = vmatprep.subr.bf16.mxu0 0
  %1749 = vmatpush2.bf16.msra.mxu0 0
  %1750 = vmatprep.subr.bf16.mxu0 0
  %1751 = vmatpush2.bf16.msra.mxu0 0
  %1752 = vmatprep.subr.bf16.mxu0 0
  %1753 = vmatpush2.bf16.msra.mxu0 0
  %1754 = vmatprep.subr.bf16.mxu0 0
  %1755 = vmatpush2.bf16.msra.mxu0 0
  %1756 = vmatprep.subr.bf16.mxu0 0
  %1757 = vmatpush2.bf16.msra.mxu0 0
  %1758 = vmatprep.mubr.bf16.mxu0 0
  %1759 = vmatmul.mubr.bf16.gmra.mxu0 %v1217
  %v1760 = vpop.f32.mrf.mxu0
  %v1761 = vadd.f32 0.0, %v1760
  %v1762 = vpop.f32.mrf.mxu0
  %v1763 = vpop.f32.mrf.mxu0
  %v1764 = vpop.f32.mrf.mxu0
  %1765 = vdwg.mxu0
  %v1766 = vadd.f32 %v1725, %v1761
  %v1767 = vxor.u32 %v1766, 2147483648
  %v1768 = vmul.f32 %v1767, 1.442695
  %v1769 = vpow.pop %v1768
  %v1770 = vadd.f32 %v1769, 1.0
  %v1771 = vrcp.pop %v1770
  %v1772 = vmul.f32 1.0, %v1771
  %v1773 = vtanh.pop %v1766
  %v1774 = vmul.f32 %v1772, %v1205
  %1776 = vrot.lane.b32.xlu0 %v1773, 64
  %v1777 = vpop.permute.xlu0 %1776
  %v1779 = vmul.f32 %v1772, %v1777
  %1781 = vrot.lane.b32.xlu0 %v1779, 32
  %v1782 = vpop.permute.xlu0 %1781
  %v1784 = vadd.f32 %v1774, %v1782
  %v1785 = vtanh.pop %v1784
  %1787 = vrot.lane.b32.xlu0 %v1785, 64
  %v1788 = vpop.permute.xlu0 %1787
  %v1790 = vmul.f32 %v1772, %v1788
  %v1791 = vpack.c.bf16 %v1790, %v1790
  %1793 = vrot.lane.b32.xlu0 %v1791, 32
  %v1794 = vpop.permute.xlu0 %1793
  %v1796 = vsel %vm189, %v1794, 0
  %1798 = vmatprep.subr.bf16.mxu0 0
  %1799 = vmatpush1.bf16.msra.mxu0 0
  %1800 = vmatprep.subr.bf16.mxu0 0
  %1801 = vmatpush1.bf16.msra.mxu0 0
  %1802 = vmatprep.subr.bf16.mxu0 0
  %1803 = vmatpush1.bf16.msra.mxu0 0
  %1804 = vmatprep.subr.bf16.mxu0 0
  %1805 = vmatpush1.bf16.msra.mxu0 0
  %1806 = vmatprep.subr.bf16.mxu0 0
  %1807 = vmatpush1.bf16.msra.mxu0 0
  %1808 = vmatprep.subr.bf16.mxu0 0
  %1809 = vmatpush1.bf16.msra.mxu0 0
  %1810 = vmatprep.subr.bf16.mxu0 0
  %1811 = vmatpush1.bf16.msra.mxu0 %v547
  %1812 = vmatprep.subr.bf16.mxu0 0
  %1813 = vmatpush1.bf16.msra.mxu0 %v546
  %1814 = vmatprep.subr.bf16.mxu0 0
  %1815 = vmatpush2.bf16.msra.mxu0 0
  %1816 = vmatprep.subr.bf16.mxu0 0
  %1817 = vmatpush2.bf16.msra.mxu0 0
  %1818 = vmatprep.subr.bf16.mxu0 0
  %1819 = vmatpush2.bf16.msra.mxu0 0
  %1820 = vmatprep.subr.bf16.mxu0 0
  %1821 = vmatpush2.bf16.msra.mxu0 0
  %1822 = vmatprep.subr.bf16.mxu0 0
  %1823 = vmatpush2.bf16.msra.mxu0 0
  %1824 = vmatprep.subr.bf16.mxu0 0
  %1825 = vmatpush2.bf16.msra.mxu0 0
  %1826 = vmatprep.subr.bf16.mxu0 0
  %1827 = vmatpush2.bf16.msra.mxu0 0
  %1828 = vmatprep.subr.bf16.mxu0 0
  %1829 = vmatpush2.bf16.msra.mxu0 0
  %1830 = vmatprep.mubr.bf16.mxu0 0
  %1831 = vmatmul.mubr.bf16.gmra.mxu0 %v1796
  %v1832 = vpop.f32.mrf.mxu0
  %v1833 = vadd.f32 0.0, %v1832
  %v1834 = vpop.f32.mrf.mxu0
  %v1835 = vpop.f32.mrf.mxu0
  %v1836 = vpop.f32.mrf.mxu0
  %1837 = vdwg.mxu0
  %v1838 = vadd.f32 %v111, %v1833
  %1839 = vmatprep.subr.bf16.mxu0 0
  %1840 = vmatpush1.bf16.msra.mxu0 0
  %1841 = vmatprep.subr.bf16.mxu0 0
  %1842 = vmatpush1.bf16.msra.mxu0 0
  %1843 = vmatprep.subr.bf16.mxu0 0
  %1844 = vmatpush1.bf16.msra.mxu0 0
  %1845 = vmatprep.subr.bf16.mxu0 0
  %1846 = vmatpush1.bf16.msra.mxu0 0
  %1847 = vmatprep.subr.bf16.mxu0 0
  %1848 = vmatpush1.bf16.msra.mxu0 0
  %1849 = vmatprep.subr.bf16.mxu0 0
  %1850 = vmatpush1.bf16.msra.mxu0 0
  %1851 = vmatprep.subr.bf16.mxu0 0
  %1852 = vmatpush1.bf16.msra.mxu0 %v603
  %1853 = vmatprep.subr.bf16.mxu0 0
  %1854 = vmatpush1.bf16.msra.mxu0 %v602
  %1855 = vmatprep.subr.bf16.mxu0 0
  %1856 = vmatpush2.bf16.msra.mxu0 0
  %1857 = vmatprep.subr.bf16.mxu0 0
  %1858 = vmatpush2.bf16.msra.mxu0 0
  %1859 = vmatprep.subr.bf16.mxu0 0
  %1860 = vmatpush2.bf16.msra.mxu0 0
  %1861 = vmatprep.subr.bf16.mxu0 0
  %1862 = vmatpush2.bf16.msra.mxu0 0
  %1863 = vmatprep.subr.bf16.mxu0 0
  %1864 = vmatpush2.bf16.msra.mxu0 0
  %1865 = vmatprep.subr.bf16.mxu0 0
  %1866 = vmatpush2.bf16.msra.mxu0 0
  %1867 = vmatprep.subr.bf16.mxu0 0
  %1868 = vmatpush2.bf16.msra.mxu0 0
  %1869 = vmatprep.subr.bf16.mxu0 0
  %1870 = vmatpush2.bf16.msra.mxu0 0
  %1871 = vmatprep.mubr.bf16.mxu0 0
  %1872 = vmatmul.mubr.bf16.gmra.mxu0 %v1330
  %v1873 = vpop.f32.mrf.mxu0
  %v1874 = vadd.f32 0.0, %v1873
  %v1875 = vpop.f32.mrf.mxu0
  %v1876 = vpop.f32.mrf.mxu0
  %v1877 = vpop.f32.mrf.mxu0
  %1878 = vdwg.mxu0
  %v1879 = vadd.f32 %v1838, %v1874
  %v1880 = vxor.u32 %v1879, 2147483648
  %v1881 = vmul.f32 %v1880, 1.442695
  %v1882 = vpow.pop %v1881
  %v1883 = vadd.f32 %v1882, 1.0
  %v1884 = vrcp.pop %v1883
  %v1885 = vmul.f32 1.0, %v1884
  %v1886 = vtanh.pop %v1879
  %v1887 = vmul.f32 %v1885, %v1318
  %1889 = vrot.lane.b32.xlu0 %v1886, 64
  %v1890 = vpop.permute.xlu0 %1889
  %v1892 = vmul.f32 %v1885, %v1890
  %1894 = vrot.lane.b32.xlu0 %v1892, 32
  %v1895 = vpop.permute.xlu0 %1894
  %v1897 = vadd.f32 %v1887, %v1895
  %v1898 = vtanh.pop %v1897
  %1900 = vrot.lane.b32.xlu0 %v1898, 64
  %v1901 = vpop.permute.xlu0 %1900
  %v1903 = vmul.f32 %v1885, %v1901
  %v1904 = vpack.c.bf16 %v1903, %v1903
  %1906 = vrot.lane.b32.xlu0 %v1904, 32
  %v1907 = vpop.permute.xlu0 %1906
  %v1909 = vsel %vm189, %v1907, 0
  %1911 = vmatprep.subr.bf16.mxu0 0
  %1912 = vmatpush1.bf16.msra.mxu0 0
  %1913 = vmatprep.subr.bf16.mxu0 0
  %1914 = vmatpush1.bf16.msra.mxu0 0
  %1915 = vmatprep.subr.bf16.mxu0 0
  %1916 = vmatpush1.bf16.msra.mxu0 0
  %1917 = vmatprep.subr.bf16.mxu0 0
  %1918 = vmatpush1.bf16.msra.mxu0 0
  %1919 = vmatprep.subr.bf16.mxu0 0
  %1920 = vmatpush1.bf16.msra.mxu0 0
  %1921 = vmatprep.subr.bf16.mxu0 0
  %1922 = vmatpush1.bf16.msra.mxu0 0
  %1923 = vmatprep.subr.bf16.mxu0 0
  %1924 = vmatpush1.bf16.msra.mxu0 %v688
  %1925 = vmatprep.subr.bf16.mxu0 0
  %1926 = vmatpush1.bf16.msra.mxu0 %v687
  %1927 = vmatprep.subr.bf16.mxu0 0
  %1928 = vmatpush2.bf16.msra.mxu0 0
  %1929 = vmatprep.subr.bf16.mxu0 0
  %1930 = vmatpush2.bf16.msra.mxu0 0
  %1931 = vmatprep.subr.bf16.mxu0 0
  %1932 = vmatpush2.bf16.msra.mxu0 0
  %1933 = vmatprep.subr.bf16.mxu0 0
  %1934 = vmatpush2.bf16.msra.mxu0 0
  %1935 = vmatprep.subr.bf16.mxu0 0
  %1936 = vmatpush2.bf16.msra.mxu0 0
  %1937 = vmatprep.subr.bf16.mxu0 0
  %1938 = vmatpush2.bf16.msra.mxu0 0
  %1939 = vmatprep.subr.bf16.mxu0 0
  %1940 = vmatpush2.bf16.msra.mxu0 0
  %1941 = vmatprep.subr.bf16.mxu0 0
  %1942 = vmatpush2.bf16.msra.mxu0 0
  %1943 = vmatprep.mubr.bf16.mxu0 0
  %1944 = vmatmul.mubr.bf16.gmra.mxu0 %v1909
  %v1945 = vpop.f32.mrf.mxu0
  %v1946 = vadd.f32 0.0, %v1945
  %v1947 = vpop.f32.mrf.mxu0
  %v1948 = vpop.f32.mrf.mxu0
  %v1949 = vpop.f32.mrf.mxu0
  %1950 = vdwg.mxu0
  %v1951 = vadd.f32 %v115, %v1946
  %1952 = vmatprep.subr.bf16.mxu0 0
  %1953 = vmatpush1.bf16.msra.mxu0 0
  %1954 = vmatprep.subr.bf16.mxu0 0
  %1955 = vmatpush1.bf16.msra.mxu0 0
  %1956 = vmatprep.subr.bf16.mxu0 0
  %1957 = vmatpush1.bf16.msra.mxu0 0
  %1958 = vmatprep.subr.bf16.mxu0 0
  %1959 = vmatpush1.bf16.msra.mxu0 0
  %1960 = vmatprep.subr.bf16.mxu0 0
  %1961 = vmatpush1.bf16.msra.mxu0 0
  %1962 = vmatprep.subr.bf16.mxu0 0
  %1963 = vmatpush1.bf16.msra.mxu0 0
  %1964 = vmatprep.subr.bf16.mxu0 0
  %1965 = vmatpush1.bf16.msra.mxu0 %v744
  %1966 = vmatprep.subr.bf16.mxu0 0
  %1967 = vmatpush1.bf16.msra.mxu0 %v743
  %1968 = vmatprep.subr.bf16.mxu0 0
  %1969 = vmatpush2.bf16.msra.mxu0 0
  %1970 = vmatprep.subr.bf16.mxu0 0
  %1971 = vmatpush2.bf16.msra.mxu0 0
  %1972 = vmatprep.subr.bf16.mxu0 0
  %1973 = vmatpush2.bf16.msra.mxu0 0
  %1974 = vmatprep.subr.bf16.mxu0 0
  %1975 = vmatpush2.bf16.msra.mxu0 0
  %1976 = vmatprep.subr.bf16.mxu0 0
  %1977 = vmatpush2.bf16.msra.mxu0 0
  %1978 = vmatprep.subr.bf16.mxu0 0
  %1979 = vmatpush2.bf16.msra.mxu0 0
  %1980 = vmatprep.subr.bf16.mxu0 0
  %1981 = vmatpush2.bf16.msra.mxu0 0
  %1982 = vmatprep.subr.bf16.mxu0 0
  %1983 = vmatpush2.bf16.msra.mxu0 0
  %1984 = vmatprep.mubr.bf16.mxu0 0
  %1985 = vmatmul.mubr.bf16.gmra.mxu0 %v1683
  %v1986 = vpop.f32.mrf.mxu0
  %v1987 = vadd.f32 0.0, %v1986
  %v1988 = vpop.f32.mrf.mxu0
  %v1989 = vpop.f32.mrf.mxu0
  %v1990 = vpop.f32.mrf.mxu0
  %1991 = vdwg.mxu0
  %v1992 = vadd.f32 %v1951, %v1987
  %v1993 = vsel %vm788, %v1992, -inf
  %1994 = vmax.xlane.f32.xlu0 %v1993
  %v1995 = vpop.xlane.xlu0 %1994
  %vm1996 = vcmp.eq.f32.partialorder %v1992, %v1995
  %v1997 = vsel %vm1996, %v117, 128
  %v1998 = vsel %vm788, %v1997, 2147483647
  %v1999 = vand.u32 %v1998, 65535
  %v2000 = vshra.s32 %v1998, 16
  %v2001 = vcvt.s32.f32 %v1999
  %v2002 = vcvt.s32.f32 %v2000
  %2003 = vmin.xlane.f32.xlu0 %v2002
  %v2004 = vpop.xlane.xlu0 %2003
  %vm2005 = vcmp.eq.f32.partialorder %v2002, %v2004
  %v2006 = vsel %vm2005, %v2001, inf
  %2007 = vmin.xlane.f32.xlu0 %v2006
  %v2008 = vpop.xlane.xlu0 %2007
  %v2009 = vcvt.f32.s32 %v2008
  %v2010 = vcvt.f32.s32 %v2004
  %v2011 = vshll.u32 %v2010, 16
  %v2012 = vadd.s32 %v2011, %v2009
  %vm2013 = vcmp.eq.s32.totalorder %v117, %v2012
  %vm2014 = vcmp.eq.s32.totalorder %v2012, 3
  %vm2015 = vcmp.eq.s32.totalorder %v2012, 2
  %vm2016 = vmor %vm2014, %vm2015
  %v2017 = vsel %vm2016, 1, 0
  %vm2018 = vcmp.eq.s32.totalorder %v2017, 1
  %v2019 = vsel %vm2018, %v120, %v1992
  %v2020 = vmul.f32 %v2019, 2.0
  %v2021 = vsel %vm788, %v2020, -inf
  %2022 = vmax.xlane.f32.xlu0 %v2021
  %v2023 = vpop.xlane.xlu0 %2022
  %v2024 = vsub.f32 %v2020, %v2023
  %v2025 = vmul.f32 %v2024, 1.442695
  %v2026 = vpow.pop %v2025
  %v2027 = vsel %vm788, %v2026, 0.0
  %2028 = vadd.xlane.f32.xlu0 %v2027
  %v2029 = vpop.xlane.xlu0 %2028
  %v2030 = vrcp.pop %v2029
  %v2031 = vmul.f32 %v2026, %v2030
  %v2032 = vpack.c.bf16 %v2031, %v2031
  %2033 = vmatprep.subr.bf16.mxu0 0
  %2034 = vmatpush1.bf16.msra.mxu0 %v868
  %2035 = vmatprep.subr.bf16.mxu0 0
  %2036 = vmatpush1.bf16.msra.mxu0 %v867
  %2037 = vmatprep.subr.bf16.mxu0 0
  %2038 = vmatpush1.bf16.msra.mxu0 %v866
  %2039 = vmatprep.subr.bf16.mxu0 0
  %2040 = vmatpush1.bf16.msra.mxu0 %v865
  %2041 = vmatprep.subr.bf16.mxu0 0
  %2042 = vmatpush1.bf16.msra.mxu0 %v864
  %2043 = vmatprep.subr.bf16.mxu0 0
  %2044 = vmatpush1.bf16.msra.mxu0 %v863
  %2045 = vmatprep.subr.bf16.mxu0 0
  %2046 = vmatpush1.bf16.msra.mxu0 %v862
  %2047 = vmatprep.subr.bf16.mxu0 0
  %2048 = vmatpush1.bf16.msra.mxu0 %v861
  %2049 = vmatprep.subr.bf16.mxu0 0
  %2050 = vmatpush2.bf16.msra.mxu0 0
  %2051 = vmatprep.subr.bf16.mxu0 0
  %2052 = vmatpush2.bf16.msra.mxu0 0
  %2053 = vmatprep.subr.bf16.mxu0 0
  %2054 = vmatpush2.bf16.msra.mxu0 0
  %2055 = vmatprep.subr.bf16.mxu0 0
  %2056 = vmatpush2.bf16.msra.mxu0 0
  %2057 = vmatprep.subr.bf16.mxu0 0
  %2058 = vmatpush2.bf16.msra.mxu0 0
  %2059 = vmatprep.subr.bf16.mxu0 0
  %2060 = vmatpush2.bf16.msra.mxu0 0
  %2061 = vmatprep.subr.bf16.mxu0 0
  %2062 = vmatpush2.bf16.msra.mxu0 0
  %2063 = vmatprep.subr.bf16.mxu0 0
  %2064 = vmatpush2.bf16.msra.mxu0 0
  %2065 = vmatprep.mubr.bf16.mxu0 0
  %2066 = vmatmul.mubr.bf16.gmra.mxu0 %v2032
  %v2067 = vpop.f32.mrf.mxu0
  %v2068 = vadd.f32 0.0, %v2067
  %v2069 = vpop.f32.mrf.mxu0
  %v2070 = vpop.f32.mrf.mxu0
  %v2071 = vpop.f32.mrf.mxu0
  %2072 = vdwg.mxu0
  %s2073 = sadd.s32 %s132, 2
  %v2074 = vstv %s2073
  %vm2075 = vcmp.eq.s32.totalorder %v122, %v2074
  %vm2076 = vcmp.eq.s32.totalorder %v123, %v2074
  %vm2077 = vmand %vm148, %vm2075
  %vm2078 = vmand %vm149, %vm2076
  %v2079 = vlaneseq
  %v2080 = vshrl.u32 %v2079, 7
  %v2081 = vsub.s32 0, %v2080
  %v2082 = vrot.slane %v2068, %v2081
  %v2083 = vsel %vm2077, 1, 0
  %v2084 = vsel %vm2078, 1, 0
  %vm2085 = vcmp.eq.s32.totalorder %v2083, 1
  %vm2086 = vcmp.eq.s32.totalorder %v2084, 1
  %v2087 = vsel %vm2085, %v2082, %v1508
  %v2088 = vsel %vm2086, %v2082, %v1509
  %s2089 = sadd.s32 %s152, 2
  %v2090 = vstv %s2089
  %vm2091 = vcmp.eq.s32.totalorder %v122, %v2090
  %vm2092 = vcmp.eq.s32.totalorder %v123, %v2090
  %vm2093 = vmand %vm168, %vm2091
  %vm2094 = vmand %vm169, %vm2092
  %v2095 = vlaneseq
  %v2096 = vshrl.u32 %v2095, 7
  %v2097 = vsub.s32 1, %v2096
  %v2098 = vrot.slane %v2068, %v2097
  %v2099 = vsel %vm2093, 1, 0
  %v2100 = vsel %vm2094, 1, 0
  %vm2101 = vcmp.eq.s32.totalorder %v2099, 1
  %vm2102 = vcmp.eq.s32.totalorder %v2100, 1
  %v2103 = vsel %vm2101, %v2098, %v1524
  %v2104 = vsel %vm2102, %v2098, %v1525
  %2105 = vmatprep.subr.bf16.mxu0 0
  %2106 = vmatpush1.bf16.msra.mxu0 0
  %2107 = vmatprep.subr.bf16.mxu0 0
  %2108 = vmatpush1.bf16.msra.mxu0 0
  %2109 = vmatprep.subr.bf16.mxu0 0
  %2110 = vmatpush1.bf16.msra.mxu0 0
  %2111 = vmatprep.subr.bf16.mxu0 0
  %2112 = vmatpush1.bf16.msra.mxu0 0
  %2113 = vmatprep.subr.bf16.mxu0 0
  %2114 = vmatpush1.bf16.msra.mxu0 0
  %2115 = vmatprep.subr.bf16.mxu0 0
  %2116 = vmatpush1.bf16.msra.mxu0 0
  %2117 = vmatprep.subr.bf16.mxu0 0
  %2118 = vmatpush1.bf16.msra.mxu0 %v186
  %2119 = vmatprep.subr.bf16.mxu0 0
  %2120 = vmatpush1.bf16.msra.mxu0 %v185
  %2121 = vmatprep.subr.bf16.mxu0 0
  %2122 = vmatpush2.bf16.msra.mxu0 0
  %2123 = vmatprep.subr.bf16.mxu0 0
  %2124 = vmatpush2.bf16.msra.mxu0 0
  %2125 = vmatprep.subr.bf16.mxu0 0
  %2126 = vmatpush2.bf16.msra.mxu0 0
  %2127 = vmatprep.subr.bf16.mxu0 0
  %2128 = vmatpush2.bf16.msra.mxu0 0
  %2129 = vmatprep.subr.bf16.mxu0 0
  %2130 = vmatpush2.bf16.msra.mxu0 0
  %2131 = vmatprep.subr.bf16.mxu0 0
  %2132 = vmatpush2.bf16.msra.mxu0 0
  %2133 = vmatprep.subr.bf16.mxu0 0
  %2134 = vmatpush2.bf16.msra.mxu0 0
  %2135 = vmatprep.subr.bf16.mxu0 0
  %2136 = vmatpush2.bf16.msra.mxu0 0
  %2137 = vmatprep.mubr.bf16.mxu0 0
  %2138 = vmatmul.mubr.bf16.gmra.mxu0 %v1909
  %v2139 = vpop.f32.mrf.mxu0
  %v2140 = vadd.f32 0.0, %v2139
  %v2141 = vpop.f32.mrf.mxu0
  %v2142 = vpop.f32.mrf.mxu0
  %v2143 = vpop.f32.mrf.mxu0
  %2144 = vdwg.mxu0
  %v2145 = vlaneseq
  %v2146 = vshrl.u32 %v2145, 7
  %v2147 = vsub.s32 0, %v2146
  %v2148 = vrot.slane %v2140, %v2147
  %v2149 = vadd.f32 %v2148, %v127
  %v2150 = vmax.f32 %v2149, 0.0
  %v2151 = vmul.f32 %v2150, %v103
  %v2152 = vsel %vm189, %v2151, 0.0
  %2153 = vadd.xlane.f32.xlu0 %v2152
  %v2154 = vpop.xlane.xlu0 %2153
  %v2155 = vrot.slane %v2154, 4
  %v2156 = vmax.f32 %v2154, %v2155
  %v2157 = vrot.slane %v2156, 2
  %v2158 = vmax.f32 %v2156, %v2157
  %v2159 = vrot.slane %v2158, 1
  %v2160 = vmax.f32 %v2158, %v2159
  %v2161 = vsub.f32 %v2154, %v2160
  %v2162 = vmul.f32 %v2161, 1.442695
  %v2163 = vpow.pop %v2162
  %v2164 = vrot.slane %v2163, 4
  %v2165 = vadd.f32 %v2163, %v2164
  %v2166 = vrot.slane %v2165, 2
  %v2167 = vadd.f32 %v2165, %v2166
  %v2168 = vrot.slane %v2167, 1
  %v2169 = vadd.f32 %v2167, %v2168
  %v2170 = vrcp.pop %v2169
  %v2171 = vmul.f32 %v2163, %v2170
  %v2172 = vmul.f32 %v2171, %v124
  %v2173 = vsel %vm189, %v2172, 0.0
  %v2174 = vrot.slane %v2173, 4
  %v2175 = vadd.f32 %v2173, %v2174
  %v2176 = vrot.slane %v2175, 2
  %v2177 = vadd.f32 %v2175, %v2176
  %v2178 = vrot.slane %v2177, 1
  %v2179 = vadd.f32 %v2177, %v2178
  %v2180 = vlaneseq
  %v2181 = vshrl.u32 %v2180, 7
  %v2182 = vsub.s32 1, %v2181
  %v2183 = vrot.slane %v2140, %v2182
  %v2184 = vadd.f32 %v2183, %v129
  %v2185 = vmax.f32 %v2184, 0.0
  %v2186 = vmul.f32 %v2185, %v103
  %v2187 = vsel %vm189, %v2186, 0.0
  %2188 = vadd.xlane.f32.xlu0 %v2187
  %v2189 = vpop.xlane.xlu0 %2188
  %v2190 = vrot.slane %v2189, 4
  %v2191 = vmax.f32 %v2189, %v2190
  %v2192 = vrot.slane %v2191, 2
  %v2193 = vmax.f32 %v2191, %v2192
  %v2194 = vrot.slane %v2193, 1
  %v2195 = vmax.f32 %v2193, %v2194
  %v2196 = vsub.f32 %v2189, %v2195
  %v2197 = vmul.f32 %v2196, 1.442695
  %v2198 = vpow.pop %v2197
  %v2199 = vrot.slane %v2198, 4
  %v2200 = vadd.f32 %v2198, %v2199
  %v2201 = vrot.slane %v2200, 2
  %v2202 = vadd.f32 %v2200, %v2201
  %v2203 = vrot.slane %v2202, 1
  %v2204 = vadd.f32 %v2202, %v2203
  %v2205 = vrcp.pop %v2204
  %v2206 = vmul.f32 %v2198, %v2205
  %v2207 = vmul.f32 %v2206, %v126
  %v2208 = vsel %vm189, %v2207, 0.0
  %v2209 = vrot.slane %v2208, 4
  %v2210 = vadd.f32 %v2208, %v2209
  %v2211 = vrot.slane %v2210, 2
  %v2212 = vadd.f32 %v2210, %v2211
  %v2213 = vrot.slane %v2212, 1
  %v2214 = vadd.f32 %v2212, %v2213
  %v2215 = vsel %vm305, %v2214, %v2179
  %v2216 = vsel %vm2013, 1, 0
  %v2217 = vcvt.s32.f32 %v2216
  %v2218 = vpack.c.bf16 %v2217, %v2217
  %2219 = vmatprep.subr.bf16.mxu0 0
  %2220 = vmatpush1.bf16.msra.mxu0 %v347
  %2221 = vmatprep.subr.bf16.mxu0 0
  %2222 = vmatpush1.bf16.msra.mxu0 %v346
  %2223 = vmatprep.subr.bf16.mxu0 0
  %2224 = vmatpush1.bf16.msra.mxu0 %v345
  %2225 = vmatprep.subr.bf16.mxu0 0
  %2226 = vmatpush1.bf16.msra.mxu0 %v344
  %2227 = vmatprep.subr.bf16.mxu0 0
  %2228 = vmatpush1.bf16.msra.mxu0 %v343
  %2229 = vmatprep.subr.bf16.mxu0 0
  %2230 = vmatpush1.bf16.msra.mxu0 %v342
  %2231 = vmatprep.subr.bf16.mxu0 0
  %2232 = vmatpush1.bf16.msra.mxu0 %v341
  %2233 = vmatprep.subr.bf16.mxu0 0
  %2234 = vmatpush1.bf16.msra.mxu0 %v340
  %2235 = vmatprep.subr.bf16.mxu0 0
  %2236 = vmatpush2.bf16.msra.mxu0 0
  %2237 = vmatprep.subr.bf16.mxu0 0
  %2238 = vmatpush2.bf16.msra.mxu0 0
  %2239 = vmatprep.subr.bf16.mxu0 0
  %2240 = vmatpush2.bf16.msra.mxu0 0
  %2241 = vmatprep.subr.bf16.mxu0 0
  %2242 = vmatpush2.bf16.msra.mxu0 0
  %2243 = vmatprep.subr.bf16.mxu0 0
  %2244 = vmatpush2.bf16.msra.mxu0 0
  %2245 = vmatprep.subr.bf16.mxu0 0
  %2246 = vmatpush2.bf16.msra.mxu0 0
  %2247 = vmatprep.subr.bf16.mxu0 0
  %2248 = vmatpush2.bf16.msra.mxu0 0
  %2249 = vmatprep.subr.bf16.mxu0 0
  %2250 = vmatpush2.bf16.msra.mxu0 0
  %2251 = vmatprep.mubr.bf16.mxu0 0
  %2252 = vmatmul.mubr.bf16.gmra.mxu0 %v2218
  %v2253 = vpop.f32.mrf.mxu0
  %v2254 = vadd.f32 0.0, %v2253
  %v2255 = vpop.f32.mrf.mxu0
  %v2256 = vpop.f32.mrf.mxu0
  %v2257 = vpop.f32.mrf.mxu0
  %2258 = vdwg.mxu0
  %v2259 = vadd.f32 %v107, %v2254
  %v2260 = vpack.c.bf16 %v2215, %v2215
  %v2262 = vsel %vm189, %v2260, 0
  %2264 = vmatprep.subr.bf16.mxu0 0
  %2265 = vmatpush1.bf16.msra.mxu0 0
  %2266 = vmatprep.subr.bf16.mxu0 0
  %2267 = vmatpush1.bf16.msra.mxu0 0
  %2268 = vmatprep.subr.bf16.mxu0 0
  %2269 = vmatpush1.bf16.msra.mxu0 0
  %2270 = vmatprep.subr.bf16.mxu0 0
  %2271 = vmatpush1.bf16.msra.mxu0 0
  %2272 = vmatprep.subr.bf16.mxu0 0
  %2273 = vmatpush1.bf16.msra.mxu0 0
  %2274 = vmatprep.subr.bf16.mxu0 0
  %2275 = vmatpush1.bf16.msra.mxu0 0
  %2276 = vmatprep.subr.bf16.mxu0 0
  %2277 = vmatpush1.bf16.msra.mxu0 %v407
  %2278 = vmatprep.subr.bf16.mxu0 0
  %2279 = vmatpush1.bf16.msra.mxu0 %v406
  %2280 = vmatprep.subr.bf16.mxu0 0
  %2281 = vmatpush2.bf16.msra.mxu0 0
  %2282 = vmatprep.subr.bf16.mxu0 0
  %2283 = vmatpush2.bf16.msra.mxu0 0
  %2284 = vmatprep.subr.bf16.mxu0 0
  %2285 = vmatpush2.bf16.msra.mxu0 0
  %2286 = vmatprep.subr.bf16.mxu0 0
  %2287 = vmatpush2.bf16.msra.mxu0 0
  %2288 = vmatprep.subr.bf16.mxu0 0
  %2289 = vmatpush2.bf16.msra.mxu0 0
  %2290 = vmatprep.subr.bf16.mxu0 0
  %2291 = vmatpush2.bf16.msra.mxu0 0
  %2292 = vmatprep.subr.bf16.mxu0 0
  %2293 = vmatpush2.bf16.msra.mxu0 0
  %2294 = vmatprep.subr.bf16.mxu0 0
  %2295 = vmatpush2.bf16.msra.mxu0 0
  %2296 = vmatprep.mubr.bf16.mxu0 0
  %2297 = vmatmul.mubr.bf16.gmra.mxu0 %v2262
  %v2298 = vpop.f32.mrf.mxu0
  %v2299 = vadd.f32 0.0, %v2298
  %v2300 = vpop.f32.mrf.mxu0
  %v2301 = vpop.f32.mrf.mxu0
  %v2302 = vpop.f32.mrf.mxu0
  %2303 = vdwg.mxu0
  %v2304 = vadd.f32 %v2259, %v2299
  %2305 = vmatprep.subr.bf16.mxu0 0
  %2306 = vmatpush1.bf16.msra.mxu0 0
  %2307 = vmatprep.subr.bf16.mxu0 0
  %2308 = vmatpush1.bf16.msra.mxu0 0
  %2309 = vmatprep.subr.bf16.mxu0 0
  %2310 = vmatpush1.bf16.msra.mxu0 0
  %2311 = vmatprep.subr.bf16.mxu0 0
  %2312 = vmatpush1.bf16.msra.mxu0 0
  %2313 = vmatprep.subr.bf16.mxu0 0
  %2314 = vmatpush1.bf16.msra.mxu0 0
  %2315 = vmatprep.subr.bf16.mxu0 0
  %2316 = vmatpush1.bf16.msra.mxu0 0
  %2317 = vmatprep.subr.bf16.mxu0 0
  %2318 = vmatpush1.bf16.msra.mxu0 %v463
  %2319 = vmatprep.subr.bf16.mxu0 0
  %2320 = vmatpush1.bf16.msra.mxu0 %v462
  %2321 = vmatprep.subr.bf16.mxu0 0
  %2322 = vmatpush2.bf16.msra.mxu0 0
  %2323 = vmatprep.subr.bf16.mxu0 0
  %2324 = vmatpush2.bf16.msra.mxu0 0
  %2325 = vmatprep.subr.bf16.mxu0 0
  %2326 = vmatpush2.bf16.msra.mxu0 0
  %2327 = vmatprep.subr.bf16.mxu0 0
  %2328 = vmatpush2.bf16.msra.mxu0 0
  %2329 = vmatprep.subr.bf16.mxu0 0
  %2330 = vmatpush2.bf16.msra.mxu0 0
  %2331 = vmatprep.subr.bf16.mxu0 0
  %2332 = vmatpush2.bf16.msra.mxu0 0
  %2333 = vmatprep.subr.bf16.mxu0 0
  %2334 = vmatpush2.bf16.msra.mxu0 0
  %2335 = vmatprep.subr.bf16.mxu0 0
  %2336 = vmatpush2.bf16.msra.mxu0 0
  %2337 = vmatprep.mubr.bf16.mxu0 0
  %2338 = vmatmul.mubr.bf16.gmra.mxu0 %v1796
  %v2339 = vpop.f32.mrf.mxu0
  %v2340 = vadd.f32 0.0, %v2339
  %v2341 = vpop.f32.mrf.mxu0
  %v2342 = vpop.f32.mrf.mxu0
  %v2343 = vpop.f32.mrf.mxu0
  %2344 = vdwg.mxu0
  %v2345 = vadd.f32 %v2304, %v2340
  %v2346 = vxor.u32 %v2345, 2147483648
  %v2347 = vmul.f32 %v2346, 1.442695
  %v2348 = vpow.pop %v2347
  %v2349 = vadd.f32 %v2348, 1.0
  %v2350 = vrcp.pop %v2349
  %v2351 = vmul.f32 1.0, %v2350
  %v2352 = vtanh.pop %v2345
  %v2353 = vmul.f32 %v2351, %v1784
  %2355 = vrot.lane.b32.xlu0 %v2352, 64
  %v2356 = vpop.permute.xlu0 %2355
  %v2358 = vmul.f32 %v2351, %v2356
  %2360 = vrot.lane.b32.xlu0 %v2358, 32
  %v2361 = vpop.permute.xlu0 %2360
  %v2363 = vadd.f32 %v2353, %v2361
  %v2364 = vtanh.pop %v2363
  %2366 = vrot.lane.b32.xlu0 %v2364, 64
  %v2367 = vpop.permute.xlu0 %2366
  %v2369 = vmul.f32 %v2351, %v2367
  %v2370 = vpack.c.bf16 %v2369, %v2369
  %2372 = vrot.lane.b32.xlu0 %v2370, 32
  %v2373 = vpop.permute.xlu0 %2372
  %v2375 = vsel %vm189, %v2373, 0
  %2377 = vmatprep.subr.bf16.mxu0 0
  %2378 = vmatpush1.bf16.msra.mxu0 0
  %2379 = vmatprep.subr.bf16.mxu0 0
  %2380 = vmatpush1.bf16.msra.mxu0 0
  %2381 = vmatprep.subr.bf16.mxu0 0
  %2382 = vmatpush1.bf16.msra.mxu0 0
  %2383 = vmatprep.subr.bf16.mxu0 0
  %2384 = vmatpush1.bf16.msra.mxu0 0
  %2385 = vmatprep.subr.bf16.mxu0 0
  %2386 = vmatpush1.bf16.msra.mxu0 0
  %2387 = vmatprep.subr.bf16.mxu0 0
  %2388 = vmatpush1.bf16.msra.mxu0 0
  %2389 = vmatprep.subr.bf16.mxu0 0
  %2390 = vmatpush1.bf16.msra.mxu0 %v547
  %2391 = vmatprep.subr.bf16.mxu0 0
  %2392 = vmatpush1.bf16.msra.mxu0 %v546
  %2393 = vmatprep.subr.bf16.mxu0 0
  %2394 = vmatpush2.bf16.msra.mxu0 0
  %2395 = vmatprep.subr.bf16.mxu0 0
  %2396 = vmatpush2.bf16.msra.mxu0 0
  %2397 = vmatprep.subr.bf16.mxu0 0
  %2398 = vmatpush2.bf16.msra.mxu0 0
  %2399 = vmatprep.subr.bf16.mxu0 0
  %2400 = vmatpush2.bf16.msra.mxu0 0
  %2401 = vmatprep.subr.bf16.mxu0 0
  %2402 = vmatpush2.bf16.msra.mxu0 0
  %2403 = vmatprep.subr.bf16.mxu0 0
  %2404 = vmatpush2.bf16.msra.mxu0 0
  %2405 = vmatprep.subr.bf16.mxu0 0
  %2406 = vmatpush2.bf16.msra.mxu0 0
  %2407 = vmatprep.subr.bf16.mxu0 0
  %2408 = vmatpush2.bf16.msra.mxu0 0
  %2409 = vmatprep.mubr.bf16.mxu0 0
  %2410 = vmatmul.mubr.bf16.gmra.mxu0 %v2375
  %v2411 = vpop.f32.mrf.mxu0
  %v2412 = vadd.f32 0.0, %v2411
  %v2413 = vpop.f32.mrf.mxu0
  %v2414 = vpop.f32.mrf.mxu0
  %v2415 = vpop.f32.mrf.mxu0
  %2416 = vdwg.mxu0
  %v2417 = vadd.f32 %v111, %v2412
  %2418 = vmatprep.subr.bf16.mxu0 0
  %2419 = vmatpush1.bf16.msra.mxu0 0
  %2420 = vmatprep.subr.bf16.mxu0 0
  %2421 = vmatpush1.bf16.msra.mxu0 0
  %2422 = vmatprep.subr.bf16.mxu0 0
  %2423 = vmatpush1.bf16.msra.mxu0 0
  %2424 = vmatprep.subr.bf16.mxu0 0
  %2425 = vmatpush1.bf16.msra.mxu0 0
  %2426 = vmatprep.subr.bf16.mxu0 0
  %2427 = vmatpush1.bf16.msra.mxu0 0
  %2428 = vmatprep.subr.bf16.mxu0 0
  %2429 = vmatpush1.bf16.msra.mxu0 0
  %2430 = vmatprep.subr.bf16.mxu0 0
  %2431 = vmatpush1.bf16.msra.mxu0 %v603
  %2432 = vmatprep.subr.bf16.mxu0 0
  %2433 = vmatpush1.bf16.msra.mxu0 %v602
  %2434 = vmatprep.subr.bf16.mxu0 0
  %2435 = vmatpush2.bf16.msra.mxu0 0
  %2436 = vmatprep.subr.bf16.mxu0 0
  %2437 = vmatpush2.bf16.msra.mxu0 0
  %2438 = vmatprep.subr.bf16.mxu0 0
  %2439 = vmatpush2.bf16.msra.mxu0 0
  %2440 = vmatprep.subr.bf16.mxu0 0
  %2441 = vmatpush2.bf16.msra.mxu0 0
  %2442 = vmatprep.subr.bf16.mxu0 0
  %2443 = vmatpush2.bf16.msra.mxu0 0
  %2444 = vmatprep.subr.bf16.mxu0 0
  %2445 = vmatpush2.bf16.msra.mxu0 0
  %2446 = vmatprep.subr.bf16.mxu0 0
  %2447 = vmatpush2.bf16.msra.mxu0 0
  %2448 = vmatprep.subr.bf16.mxu0 0
  %2449 = vmatpush2.bf16.msra.mxu0 0
  %2450 = vmatprep.mubr.bf16.mxu0 0
  %2451 = vmatmul.mubr.bf16.gmra.mxu0 %v1909
  %v2452 = vpop.f32.mrf.mxu0
  %v2453 = vadd.f32 0.0, %v2452
  %v2454 = vpop.f32.mrf.mxu0
  %v2455 = vpop.f32.mrf.mxu0
  %v2456 = vpop.f32.mrf.mxu0
  %2457 = vdwg.mxu0
  %v2458 = vadd.f32 %v2417, %v2453
  %v2459 = vxor.u32 %v2458, 2147483648
  %v2460 = vmul.f32 %v2459, 1.442695
  %v2461 = vpow.pop %v2460
  %v2462 = vadd.f32 %v2461, 1.0
  %v2463 = vrcp.pop %v2462
  %v2464 = vmul.f32 1.0, %v2463
  %v2465 = vtanh.pop %v2458
  %v2466 = vmul.f32 %v2464, %v1897
  %2468 = vrot.lane.b32.xlu0 %v2465, 64
  %v2469 = vpop.permute.xlu0 %2468
  %v2471 = vmul.f32 %v2464, %v2469
  %2473 = vrot.lane.b32.xlu0 %v2471, 32
  %v2474 = vpop.permute.xlu0 %2473
  %v2476 = vadd.f32 %v2466, %v2474
  %v2477 = vtanh.pop %v2476
  %2479 = vrot.lane.b32.xlu0 %v2477, 64
  %v2480 = vpop.permute.xlu0 %2479
  %v2482 = vmul.f32 %v2464, %v2480
  %v2483 = vpack.c.bf16 %v2482, %v2482
  %2485 = vrot.lane.b32.xlu0 %v2483, 32
  %v2486 = vpop.permute.xlu0 %2485
  %v2488 = vsel %vm189, %v2486, 0
  %2490 = vmatprep.subr.bf16.mxu0 0
  %2491 = vmatpush1.bf16.msra.mxu0 0
  %2492 = vmatprep.subr.bf16.mxu0 0
  %2493 = vmatpush1.bf16.msra.mxu0 0
  %2494 = vmatprep.subr.bf16.mxu0 0
  %2495 = vmatpush1.bf16.msra.mxu0 0
  %2496 = vmatprep.subr.bf16.mxu0 0
  %2497 = vmatpush1.bf16.msra.mxu0 0
  %2498 = vmatprep.subr.bf16.mxu0 0
  %2499 = vmatpush1.bf16.msra.mxu0 0
  %2500 = vmatprep.subr.bf16.mxu0 0
  %2501 = vmatpush1.bf16.msra.mxu0 0
  %2502 = vmatprep.subr.bf16.mxu0 0
  %2503 = vmatpush1.bf16.msra.mxu0 %v688
  %2504 = vmatprep.subr.bf16.mxu0 0
  %2505 = vmatpush1.bf16.msra.mxu0 %v687
  %2506 = vmatprep.subr.bf16.mxu0 0
  %2507 = vmatpush2.bf16.msra.mxu0 0
  %2508 = vmatprep.subr.bf16.mxu0 0
  %2509 = vmatpush2.bf16.msra.mxu0 0
  %2510 = vmatprep.subr.bf16.mxu0 0
  %2511 = vmatpush2.bf16.msra.mxu0 0
  %2512 = vmatprep.subr.bf16.mxu0 0
  %2513 = vmatpush2.bf16.msra.mxu0 0
  %2514 = vmatprep.subr.bf16.mxu0 0
  %2515 = vmatpush2.bf16.msra.mxu0 0
  %2516 = vmatprep.subr.bf16.mxu0 0
  %2517 = vmatpush2.bf16.msra.mxu0 0
  %2518 = vmatprep.subr.bf16.mxu0 0
  %2519 = vmatpush2.bf16.msra.mxu0 0
  %2520 = vmatprep.subr.bf16.mxu0 0
  %2521 = vmatpush2.bf16.msra.mxu0 0
  %2522 = vmatprep.mubr.bf16.mxu0 0
  %2523 = vmatmul.mubr.bf16.gmra.mxu0 %v2488
  %v2524 = vpop.f32.mrf.mxu0
  %v2525 = vadd.f32 0.0, %v2524
  %v2526 = vpop.f32.mrf.mxu0
  %v2527 = vpop.f32.mrf.mxu0
  %v2528 = vpop.f32.mrf.mxu0
  %2529 = vdwg.mxu0
  %v2530 = vadd.f32 %v115, %v2525
  %2531 = vmatprep.subr.bf16.mxu0 0
  %2532 = vmatpush1.bf16.msra.mxu0 0
  %2533 = vmatprep.subr.bf16.mxu0 0
  %2534 = vmatpush1.bf16.msra.mxu0 0
  %2535 = vmatprep.subr.bf16.mxu0 0
  %2536 = vmatpush1.bf16.msra.mxu0 0
  %2537 = vmatprep.subr.bf16.mxu0 0
  %2538 = vmatpush1.bf16.msra.mxu0 0
  %2539 = vmatprep.subr.bf16.mxu0 0
  %2540 = vmatpush1.bf16.msra.mxu0 0
  %2541 = vmatprep.subr.bf16.mxu0 0
  %2542 = vmatpush1.bf16.msra.mxu0 0
  %2543 = vmatprep.subr.bf16.mxu0 0
  %2544 = vmatpush1.bf16.msra.mxu0 %v744
  %2545 = vmatprep.subr.bf16.mxu0 0
  %2546 = vmatpush1.bf16.msra.mxu0 %v743
  %2547 = vmatprep.subr.bf16.mxu0 0
  %2548 = vmatpush2.bf16.msra.mxu0 0
  %2549 = vmatprep.subr.bf16.mxu0 0
  %2550 = vmatpush2.bf16.msra.mxu0 0
  %2551 = vmatprep.subr.bf16.mxu0 0
  %2552 = vmatpush2.bf16.msra.mxu0 0
  %2553 = vmatprep.subr.bf16.mxu0 0
  %2554 = vmatpush2.bf16.msra.mxu0 0
  %2555 = vmatprep.subr.bf16.mxu0 0
  %2556 = vmatpush2.bf16.msra.mxu0 0
  %2557 = vmatprep.subr.bf16.mxu0 0
  %2558 = vmatpush2.bf16.msra.mxu0 0
  %2559 = vmatprep.subr.bf16.mxu0 0
  %2560 = vmatpush2.bf16.msra.mxu0 0
  %2561 = vmatprep.subr.bf16.mxu0 0
  %2562 = vmatpush2.bf16.msra.mxu0 0
  %2563 = vmatprep.mubr.bf16.mxu0 0
  %2564 = vmatmul.mubr.bf16.gmra.mxu0 %v2262
  %v2565 = vpop.f32.mrf.mxu0
  %v2566 = vadd.f32 0.0, %v2565
  %v2567 = vpop.f32.mrf.mxu0
  %v2568 = vpop.f32.mrf.mxu0
  %v2569 = vpop.f32.mrf.mxu0
  %2570 = vdwg.mxu0
  %v2571 = vadd.f32 %v2530, %v2566
  %v2572 = vsel %vm788, %v2571, -inf
  %2573 = vmax.xlane.f32.xlu0 %v2572
  %v2574 = vpop.xlane.xlu0 %2573
  %vm2575 = vcmp.eq.f32.partialorder %v2571, %v2574
  %v2576 = vsel %vm2575, %v117, 128
  %v2577 = vsel %vm788, %v2576, 2147483647
  %v2578 = vand.u32 %v2577, 65535
  %v2579 = vshra.s32 %v2577, 16
  %v2580 = vcvt.s32.f32 %v2578
  %v2581 = vcvt.s32.f32 %v2579
  %2582 = vmin.xlane.f32.xlu0 %v2581
  %v2583 = vpop.xlane.xlu0 %2582
  %vm2584 = vcmp.eq.f32.partialorder %v2581, %v2583
  %v2585 = vsel %vm2584, %v2580, inf
  %2586 = vmin.xlane.f32.xlu0 %v2585
  %v2587 = vpop.xlane.xlu0 %2586
  %v2588 = vcvt.f32.s32 %v2587
  %v2589 = vcvt.f32.s32 %v2583
  %v2590 = vshll.u32 %v2589, 16
  %v2591 = vadd.s32 %v2590, %v2588
  %vm2592 = vcmp.eq.s32.totalorder %v117, %v2591
  %vm2593 = vcmp.eq.s32.totalorder %v2591, 3
  %vm2594 = vcmp.eq.s32.totalorder %v2591, 2
  %vm2595 = vmor %vm2593, %vm2594
  %v2596 = vsel %vm2595, 1, 0
  %vm2597 = vcmp.eq.s32.totalorder %v2596, 1
  %v2598 = vsel %vm2597, %v120, %v2571
  %v2599 = vmul.f32 %v2598, 2.0
  %v2600 = vsel %vm788, %v2599, -inf
  %2601 = vmax.xlane.f32.xlu0 %v2600
  %v2602 = vpop.xlane.xlu0 %2601
  %v2603 = vsub.f32 %v2599, %v2602
  %v2604 = vmul.f32 %v2603, 1.442695
  %v2605 = vpow.pop %v2604
  %v2606 = vsel %vm788, %v2605, 0.0
  %2607 = vadd.xlane.f32.xlu0 %v2606
  %v2608 = vpop.xlane.xlu0 %2607
  %v2609 = vrcp.pop %v2608
  %v2610 = vmul.f32 %v2605, %v2609
  %v2611 = vpack.c.bf16 %v2610, %v2610
  %2612 = vmatprep.subr.bf16.mxu0 0
  %2613 = vmatpush1.bf16.msra.mxu0 %v868
  %2614 = vmatprep.subr.bf16.mxu0 0
  %2615 = vmatpush1.bf16.msra.mxu0 %v867
  %2616 = vmatprep.subr.bf16.mxu0 0
  %2617 = vmatpush1.bf16.msra.mxu0 %v866
  %2618 = vmatprep.subr.bf16.mxu0 0
  %2619 = vmatpush1.bf16.msra.mxu0 %v865
  %2620 = vmatprep.subr.bf16.mxu0 0
  %2621 = vmatpush1.bf16.msra.mxu0 %v864
  %2622 = vmatprep.subr.bf16.mxu0 0
  %2623 = vmatpush1.bf16.msra.mxu0 %v863
  %2624 = vmatprep.subr.bf16.mxu0 0
  %2625 = vmatpush1.bf16.msra.mxu0 %v862
  %2626 = vmatprep.subr.bf16.mxu0 0
  %2627 = vmatpush1.bf16.msra.mxu0 %v861
  %2628 = vmatprep.subr.bf16.mxu0 0
  %2629 = vmatpush2.bf16.msra.mxu0 0
  %2630 = vmatprep.subr.bf16.mxu0 0
  %2631 = vmatpush2.bf16.msra.mxu0 0
  %2632 = vmatprep.subr.bf16.mxu0 0
  %2633 = vmatpush2.bf16.msra.mxu0 0
  %2634 = vmatprep.subr.bf16.mxu0 0
  %2635 = vmatpush2.bf16.msra.mxu0 0
  %2636 = vmatprep.subr.bf16.mxu0 0
  %2637 = vmatpush2.bf16.msra.mxu0 0
  %2638 = vmatprep.subr.bf16.mxu0 0
  %2639 = vmatpush2.bf16.msra.mxu0 0
  %2640 = vmatprep.subr.bf16.mxu0 0
  %2641 = vmatpush2.bf16.msra.mxu0 0
  %2642 = vmatprep.subr.bf16.mxu0 0
  %2643 = vmatpush2.bf16.msra.mxu0 0
  %2644 = vmatprep.mubr.bf16.mxu0 0
  %2645 = vmatmul.mubr.bf16.gmra.mxu0 %v2611
  %v2646 = vpop.f32.mrf.mxu0
  %v2647 = vadd.f32 0.0, %v2646
  %v2648 = vpop.f32.mrf.mxu0
  %v2649 = vpop.f32.mrf.mxu0
  %v2650 = vpop.f32.mrf.mxu0
  %2651 = vdwg.mxu0
  %s2652 = sadd.s32 %s132, 3
  %v2653 = vstv %s2652
  %vm2654 = vcmp.eq.s32.totalorder %v122, %v2653
  %vm2655 = vcmp.eq.s32.totalorder %v123, %v2653
  %vm2656 = vmand %vm148, %vm2654
  %vm2657 = vmand %vm149, %vm2655
  %v2658 = vlaneseq
  %v2659 = vshrl.u32 %v2658, 7
  %v2660 = vsub.s32 0, %v2659
  %v2661 = vrot.slane %v2647, %v2660
  %v2662 = vsel %vm2656, 1, 0
  %v2663 = vsel %vm2657, 1, 0
  %vm2664 = vcmp.eq.s32.totalorder %v2662, 1
  %vm2665 = vcmp.eq.s32.totalorder %v2663, 1
  %v2666 = vsel %vm2664, %v2661, %v2087
  %v2667 = vsel %vm2665, %v2661, %v2088
  %s2668 = sadd.s32 %s152, 3
  %v2669 = vstv %s2668
  %vm2670 = vcmp.eq.s32.totalorder %v122, %v2669
  %vm2671 = vcmp.eq.s32.totalorder %v123, %v2669
  %vm2672 = vmand %vm168, %vm2670
  %vm2673 = vmand %vm169, %vm2671
  %v2674 = vlaneseq
  %v2675 = vshrl.u32 %v2674, 7
  %v2676 = vsub.s32 1, %v2675
  %v2677 = vrot.slane %v2647, %v2676
  %v2678 = vsel %vm2672, 1, 0
  %v2679 = vsel %vm2673, 1, 0
  %vm2680 = vcmp.eq.s32.totalorder %v2678, 1
  %vm2681 = vcmp.eq.s32.totalorder %v2679, 1
  %v2682 = vsel %vm2680, %v2677, %v2103
  %v2683 = vsel %vm2681, %v2677, %v2104
  %2684 = vmatprep.subr.bf16.mxu0 0
  %2685 = vmatpush1.bf16.msra.mxu0 0
  %2686 = vmatprep.subr.bf16.mxu0 0
  %2687 = vmatpush1.bf16.msra.mxu0 0
  %2688 = vmatprep.subr.bf16.mxu0 0
  %2689 = vmatpush1.bf16.msra.mxu0 0
  %2690 = vmatprep.subr.bf16.mxu0 0
  %2691 = vmatpush1.bf16.msra.mxu0 0
  %2692 = vmatprep.subr.bf16.mxu0 0
  %2693 = vmatpush1.bf16.msra.mxu0 0
  %2694 = vmatprep.subr.bf16.mxu0 0
  %2695 = vmatpush1.bf16.msra.mxu0 0
  %2696 = vmatprep.subr.bf16.mxu0 0
  %2697 = vmatpush1.bf16.msra.mxu0 %v186
  %2698 = vmatprep.subr.bf16.mxu0 0
  %2699 = vmatpush1.bf16.msra.mxu0 %v185
  %2700 = vmatprep.subr.bf16.mxu0 0
  %2701 = vmatpush2.bf16.msra.mxu0 0
  %2702 = vmatprep.subr.bf16.mxu0 0
  %2703 = vmatpush2.bf16.msra.mxu0 0
  %2704 = vmatprep.subr.bf16.mxu0 0
  %2705 = vmatpush2.bf16.msra.mxu0 0
  %2706 = vmatprep.subr.bf16.mxu0 0
  %2707 = vmatpush2.bf16.msra.mxu0 0
  %2708 = vmatprep.subr.bf16.mxu0 0
  %2709 = vmatpush2.bf16.msra.mxu0 0
  %2710 = vmatprep.subr.bf16.mxu0 0
  %2711 = vmatpush2.bf16.msra.mxu0 0
  %2712 = vmatprep.subr.bf16.mxu0 0
  %2713 = vmatpush2.bf16.msra.mxu0 0
  %2714 = vmatprep.subr.bf16.mxu0 0
  %2715 = vmatpush2.bf16.msra.mxu0 0
  %2716 = vmatprep.mubr.bf16.mxu0 0
  %2717 = vmatmul.mubr.bf16.gmra.mxu0 %v2488
  %v2718 = vpop.f32.mrf.mxu0
  %v2719 = vadd.f32 0.0, %v2718
  %v2720 = vpop.f32.mrf.mxu0
  %v2721 = vpop.f32.mrf.mxu0
  %v2722 = vpop.f32.mrf.mxu0
  %2723 = vdwg.mxu0
  %v2724 = vlaneseq
  %v2725 = vshrl.u32 %v2724, 7
  %v2726 = vsub.s32 0, %v2725
  %v2727 = vrot.slane %v2719, %v2726
  %v2728 = vadd.f32 %v2727, %v127
  %v2729 = vmax.f32 %v2728, 0.0
  %v2730 = vmul.f32 %v2729, %v103
  %v2731 = vsel %vm189, %v2730, 0.0
  %2732 = vadd.xlane.f32.xlu0 %v2731
  %v2733 = vpop.xlane.xlu0 %2732
  %v2734 = vrot.slane %v2733, 4
  %v2735 = vmax.f32 %v2733, %v2734
  %v2736 = vrot.slane %v2735, 2
  %v2737 = vmax.f32 %v2735, %v2736
  %v2738 = vrot.slane %v2737, 1
  %v2739 = vmax.f32 %v2737, %v2738
  %v2740 = vsub.f32 %v2733, %v2739
  %v2741 = vmul.f32 %v2740, 1.442695
  %v2742 = vpow.pop %v2741
  %v2743 = vrot.slane %v2742, 4
  %v2744 = vadd.f32 %v2742, %v2743
  %v2745 = vrot.slane %v2744, 2
  %v2746 = vadd.f32 %v2744, %v2745
  %v2747 = vrot.slane %v2746, 1
  %v2748 = vadd.f32 %v2746, %v2747
  %v2749 = vrcp.pop %v2748
  %v2750 = vmul.f32 %v2742, %v2749
  %v2751 = vmul.f32 %v2750, %v124
  %v2752 = vsel %vm189, %v2751, 0.0
  %v2753 = vrot.slane %v2752, 4
  %v2754 = vadd.f32 %v2752, %v2753
  %v2755 = vrot.slane %v2754, 2
  %v2756 = vadd.f32 %v2754, %v2755
  %v2757 = vrot.slane %v2756, 1
  %v2758 = vadd.f32 %v2756, %v2757
  %v2759 = vlaneseq
  %v2760 = vshrl.u32 %v2759, 7
  %v2761 = vsub.s32 1, %v2760
  %v2762 = vrot.slane %v2719, %v2761
  %v2763 = vadd.f32 %v2762, %v129
  %v2764 = vmax.f32 %v2763, 0.0
  %v2765 = vmul.f32 %v2764, %v103
  %v2766 = vsel %vm189, %v2765, 0.0
  %2767 = vadd.xlane.f32.xlu0 %v2766
  %v2768 = vpop.xlane.xlu0 %2767
  %v2769 = vrot.slane %v2768, 4
  %v2770 = vmax.f32 %v2768, %v2769
  %v2771 = vrot.slane %v2770, 2
  %v2772 = vmax.f32 %v2770, %v2771
  %v2773 = vrot.slane %v2772, 1
  %v2774 = vmax.f32 %v2772, %v2773
  %v2775 = vsub.f32 %v2768, %v2774
  %v2776 = vmul.f32 %v2775, 1.442695
  %v2777 = vpow.pop %v2776
  %v2778 = vrot.slane %v2777, 4
  %v2779 = vadd.f32 %v2777, %v2778
  %v2780 = vrot.slane %v2779, 2
  %v2781 = vadd.f32 %v2779, %v2780
  %v2782 = vrot.slane %v2781, 1
  %v2783 = vadd.f32 %v2781, %v2782
  %v2784 = vrcp.pop %v2783
  %v2785 = vmul.f32 %v2777, %v2784
  %v2786 = vmul.f32 %v2785, %v126
  %v2787 = vsel %vm189, %v2786, 0.0
  %v2788 = vrot.slane %v2787, 4
  %v2789 = vadd.f32 %v2787, %v2788
  %v2790 = vrot.slane %v2789, 2
  %v2791 = vadd.f32 %v2789, %v2790
  %v2792 = vrot.slane %v2791, 1
  %v2793 = vadd.f32 %v2791, %v2792
  %v2794 = vsel %vm305, %v2793, %v2758
  %v2795 = vsel %vm2592, 1, 0
  %v2796 = vcvt.s32.f32 %v2795
  %v2797 = vpack.c.bf16 %v2796, %v2796
  %2798 = vmatprep.subr.bf16.mxu0 0
  %2799 = vmatpush1.bf16.msra.mxu0 %v347
  %2800 = vmatprep.subr.bf16.mxu0 0
  %2801 = vmatpush1.bf16.msra.mxu0 %v346
  %2802 = vmatprep.subr.bf16.mxu0 0
  %2803 = vmatpush1.bf16.msra.mxu0 %v345
  %2804 = vmatprep.subr.bf16.mxu0 0
  %2805 = vmatpush1.bf16.msra.mxu0 %v344
  %2806 = vmatprep.subr.bf16.mxu0 0
  %2807 = vmatpush1.bf16.msra.mxu0 %v343
  %2808 = vmatprep.subr.bf16.mxu0 0
  %2809 = vmatpush1.bf16.msra.mxu0 %v342
  %2810 = vmatprep.subr.bf16.mxu0 0
  %2811 = vmatpush1.bf16.msra.mxu0 %v341
  %2812 = vmatprep.subr.bf16.mxu0 0
  %2813 = vmatpush1.bf16.msra.mxu0 %v340
  %2814 = vmatprep.subr.bf16.mxu0 0
  %2815 = vmatpush2.bf16.msra.mxu0 0
  %2816 = vmatprep.subr.bf16.mxu0 0
  %2817 = vmatpush2.bf16.msra.mxu0 0
  %2818 = vmatprep.subr.bf16.mxu0 0
  %2819 = vmatpush2.bf16.msra.mxu0 0
  %2820 = vmatprep.subr.bf16.mxu0 0
  %2821 = vmatpush2.bf16.msra.mxu0 0
  %2822 = vmatprep.subr.bf16.mxu0 0
  %2823 = vmatpush2.bf16.msra.mxu0 0
  %2824 = vmatprep.subr.bf16.mxu0 0
  %2825 = vmatpush2.bf16.msra.mxu0 0
  %2826 = vmatprep.subr.bf16.mxu0 0
  %2827 = vmatpush2.bf16.msra.mxu0 0
  %2828 = vmatprep.subr.bf16.mxu0 0
  %2829 = vmatpush2.bf16.msra.mxu0 0
  %2830 = vmatprep.mubr.bf16.mxu0 0
  %2831 = vmatmul.mubr.bf16.gmra.mxu0 %v2797
  %v2832 = vpop.f32.mrf.mxu0
  %v2833 = vadd.f32 0.0, %v2832
  %v2834 = vpop.f32.mrf.mxu0
  %v2835 = vpop.f32.mrf.mxu0
  %v2836 = vpop.f32.mrf.mxu0
  %2837 = vdwg.mxu0
  %v2838 = vadd.f32 %v107, %v2833
  %v2839 = vpack.c.bf16 %v2794, %v2794
  %v2841 = vsel %vm189, %v2839, 0
  %2843 = vmatprep.subr.bf16.mxu0 0
  %2844 = vmatpush1.bf16.msra.mxu0 0
  %2845 = vmatprep.subr.bf16.mxu0 0
  %2846 = vmatpush1.bf16.msra.mxu0 0
  %2847 = vmatprep.subr.bf16.mxu0 0
  %2848 = vmatpush1.bf16.msra.mxu0 0
  %2849 = vmatprep.subr.bf16.mxu0 0
  %2850 = vmatpush1.bf16.msra.mxu0 0
  %2851 = vmatprep.subr.bf16.mxu0 0
  %2852 = vmatpush1.bf16.msra.mxu0 0
  %2853 = vmatprep.subr.bf16.mxu0 0
  %2854 = vmatpush1.bf16.msra.mxu0 0
  %2855 = vmatprep.subr.bf16.mxu0 0
  %2856 = vmatpush1.bf16.msra.mxu0 %v407
  %2857 = vmatprep.subr.bf16.mxu0 0
  %2858 = vmatpush1.bf16.msra.mxu0 %v406
  %2859 = vmatprep.subr.bf16.mxu0 0
  %2860 = vmatpush2.bf16.msra.mxu0 0
  %2861 = vmatprep.subr.bf16.mxu0 0
  %2862 = vmatpush2.bf16.msra.mxu0 0
  %2863 = vmatprep.subr.bf16.mxu0 0
  %2864 = vmatpush2.bf16.msra.mxu0 0
  %2865 = vmatprep.subr.bf16.mxu0 0
  %2866 = vmatpush2.bf16.msra.mxu0 0
  %2867 = vmatprep.subr.bf16.mxu0 0
  %2868 = vmatpush2.bf16.msra.mxu0 0
  %2869 = vmatprep.subr.bf16.mxu0 0
  %2870 = vmatpush2.bf16.msra.mxu0 0
  %2871 = vmatprep.subr.bf16.mxu0 0
  %2872 = vmatpush2.bf16.msra.mxu0 0
  %2873 = vmatprep.subr.bf16.mxu0 0
  %2874 = vmatpush2.bf16.msra.mxu0 0
  %2875 = vmatprep.mubr.bf16.mxu0 0
  %2876 = vmatmul.mubr.bf16.gmra.mxu0 %v2841
  %v2877 = vpop.f32.mrf.mxu0
  %v2878 = vadd.f32 0.0, %v2877
  %v2879 = vpop.f32.mrf.mxu0
  %v2880 = vpop.f32.mrf.mxu0
  %v2881 = vpop.f32.mrf.mxu0
  %2882 = vdwg.mxu0
  %v2883 = vadd.f32 %v2838, %v2878
  %2884 = vmatprep.subr.bf16.mxu0 0
  %2885 = vmatpush1.bf16.msra.mxu0 0
  %2886 = vmatprep.subr.bf16.mxu0 0
  %2887 = vmatpush1.bf16.msra.mxu0 0
  %2888 = vmatprep.subr.bf16.mxu0 0
  %2889 = vmatpush1.bf16.msra.mxu0 0
  %2890 = vmatprep.subr.bf16.mxu0 0
  %2891 = vmatpush1.bf16.msra.mxu0 0
  %2892 = vmatprep.subr.bf16.mxu0 0
  %2893 = vmatpush1.bf16.msra.mxu0 0
  %2894 = vmatprep.subr.bf16.mxu0 0
  %2895 = vmatpush1.bf16.msra.mxu0 0
  %2896 = vmatprep.subr.bf16.mxu0 0
  %2897 = vmatpush1.bf16.msra.mxu0 %v463
  %2898 = vmatprep.subr.bf16.mxu0 0
  %2899 = vmatpush1.bf16.msra.mxu0 %v462
  %2900 = vmatprep.subr.bf16.mxu0 0
  %2901 = vmatpush2.bf16.msra.mxu0 0
  %2902 = vmatprep.subr.bf16.mxu0 0
  %2903 = vmatpush2.bf16.msra.mxu0 0
  %2904 = vmatprep.subr.bf16.mxu0 0
  %2905 = vmatpush2.bf16.msra.mxu0 0
  %2906 = vmatprep.subr.bf16.mxu0 0
  %2907 = vmatpush2.bf16.msra.mxu0 0
  %2908 = vmatprep.subr.bf16.mxu0 0
  %2909 = vmatpush2.bf16.msra.mxu0 0
  %2910 = vmatprep.subr.bf16.mxu0 0
  %2911 = vmatpush2.bf16.msra.mxu0 0
  %2912 = vmatprep.subr.bf16.mxu0 0
  %2913 = vmatpush2.bf16.msra.mxu0 0
  %2914 = vmatprep.subr.bf16.mxu0 0
  %2915 = vmatpush2.bf16.msra.mxu0 0
  %2916 = vmatprep.mubr.bf16.mxu0 0
  %2917 = vmatmul.mubr.bf16.gmra.mxu0 %v2375
  %v2918 = vpop.f32.mrf.mxu0
  %v2919 = vadd.f32 0.0, %v2918
  %v2920 = vpop.f32.mrf.mxu0
  %v2921 = vpop.f32.mrf.mxu0
  %v2922 = vpop.f32.mrf.mxu0
  %2923 = vdwg.mxu0
  %v2924 = vadd.f32 %v2883, %v2919
  %v2925 = vxor.u32 %v2924, 2147483648
  %v2926 = vmul.f32 %v2925, 1.442695
  %v2927 = vpow.pop %v2926
  %v2928 = vadd.f32 %v2927, 1.0
  %v2929 = vrcp.pop %v2928
  %v2930 = vmul.f32 1.0, %v2929
  %v2931 = vtanh.pop %v2924
  %v2932 = vmul.f32 %v2930, %v2363
  %2934 = vrot.lane.b32.xlu0 %v2931, 64
  %v2935 = vpop.permute.xlu0 %2934
  %v2937 = vmul.f32 %v2930, %v2935
  %2939 = vrot.lane.b32.xlu0 %v2937, 32
  %v2940 = vpop.permute.xlu0 %2939
  %v2942 = vadd.f32 %v2932, %v2940
  %v2943 = vtanh.pop %v2942
  %2945 = vrot.lane.b32.xlu0 %v2943, 64
  %v2946 = vpop.permute.xlu0 %2945
  %v2948 = vmul.f32 %v2930, %v2946
  %v2949 = vpack.c.bf16 %v2948, %v2948
  %2951 = vrot.lane.b32.xlu0 %v2949, 32
  %v2952 = vpop.permute.xlu0 %2951
  %v2954 = vsel %vm189, %v2952, 0
  %2956 = vmatprep.subr.bf16.mxu0 0
  %2957 = vmatpush1.bf16.msra.mxu0 0
  %2958 = vmatprep.subr.bf16.mxu0 0
  %2959 = vmatpush1.bf16.msra.mxu0 0
  %2960 = vmatprep.subr.bf16.mxu0 0
  %2961 = vmatpush1.bf16.msra.mxu0 0
  %2962 = vmatprep.subr.bf16.mxu0 0
  %2963 = vmatpush1.bf16.msra.mxu0 0
  %2964 = vmatprep.subr.bf16.mxu0 0
  %2965 = vmatpush1.bf16.msra.mxu0 0
  %2966 = vmatprep.subr.bf16.mxu0 0
  %2967 = vmatpush1.bf16.msra.mxu0 0
  %2968 = vmatprep.subr.bf16.mxu0 0
  %2969 = vmatpush1.bf16.msra.mxu0 %v547
  %2970 = vmatprep.subr.bf16.mxu0 0
  %2971 = vmatpush1.bf16.msra.mxu0 %v546
  %2972 = vmatprep.subr.bf16.mxu0 0
  %2973 = vmatpush2.bf16.msra.mxu0 0
  %2974 = vmatprep.subr.bf16.mxu0 0
  %2975 = vmatpush2.bf16.msra.mxu0 0
  %2976 = vmatprep.subr.bf16.mxu0 0
  %2977 = vmatpush2.bf16.msra.mxu0 0
  %2978 = vmatprep.subr.bf16.mxu0 0
  %2979 = vmatpush2.bf16.msra.mxu0 0
  %2980 = vmatprep.subr.bf16.mxu0 0
  %2981 = vmatpush2.bf16.msra.mxu0 0
  %2982 = vmatprep.subr.bf16.mxu0 0
  %2983 = vmatpush2.bf16.msra.mxu0 0
  %2984 = vmatprep.subr.bf16.mxu0 0
  %2985 = vmatpush2.bf16.msra.mxu0 0
  %2986 = vmatprep.subr.bf16.mxu0 0
  %2987 = vmatpush2.bf16.msra.mxu0 0
  %2988 = vmatprep.mubr.bf16.mxu0 0
  %2989 = vmatmul.mubr.bf16.gmra.mxu0 %v2954
  %v2990 = vpop.f32.mrf.mxu0
  %v2991 = vadd.f32 0.0, %v2990
  %v2992 = vpop.f32.mrf.mxu0
  %v2993 = vpop.f32.mrf.mxu0
  %v2994 = vpop.f32.mrf.mxu0
  %2995 = vdwg.mxu0
  %v2996 = vadd.f32 %v111, %v2991
  %2997 = vmatprep.subr.bf16.mxu0 0
  %2998 = vmatpush1.bf16.msra.mxu0 0
  %2999 = vmatprep.subr.bf16.mxu0 0
  %3000 = vmatpush1.bf16.msra.mxu0 0
  %3001 = vmatprep.subr.bf16.mxu0 0
  %3002 = vmatpush1.bf16.msra.mxu0 0
  %3003 = vmatprep.subr.bf16.mxu0 0
  %3004 = vmatpush1.bf16.msra.mxu0 0
  %3005 = vmatprep.subr.bf16.mxu0 0
  %3006 = vmatpush1.bf16.msra.mxu0 0
  %3007 = vmatprep.subr.bf16.mxu0 0
  %3008 = vmatpush1.bf16.msra.mxu0 0
  %3009 = vmatprep.subr.bf16.mxu0 0
  %3010 = vmatpush1.bf16.msra.mxu0 %v603
  %3011 = vmatprep.subr.bf16.mxu0 0
  %3012 = vmatpush1.bf16.msra.mxu0 %v602
  %3013 = vmatprep.subr.bf16.mxu0 0
  %3014 = vmatpush2.bf16.msra.mxu0 0
  %3015 = vmatprep.subr.bf16.mxu0 0
  %3016 = vmatpush2.bf16.msra.mxu0 0
  %3017 = vmatprep.subr.bf16.mxu0 0
  %3018 = vmatpush2.bf16.msra.mxu0 0
  %3019 = vmatprep.subr.bf16.mxu0 0
  %3020 = vmatpush2.bf16.msra.mxu0 0
  %3021 = vmatprep.subr.bf16.mxu0 0
  %3022 = vmatpush2.bf16.msra.mxu0 0
  %3023 = vmatprep.subr.bf16.mxu0 0
  %3024 = vmatpush2.bf16.msra.mxu0 0
  %3025 = vmatprep.subr.bf16.mxu0 0
  %3026 = vmatpush2.bf16.msra.mxu0 0
  %3027 = vmatprep.subr.bf16.mxu0 0
  %3028 = vmatpush2.bf16.msra.mxu0 0
  %3029 = vmatprep.mubr.bf16.mxu0 0
  %3030 = vmatmul.mubr.bf16.gmra.mxu0 %v2488
  %v3031 = vpop.f32.mrf.mxu0
  %v3032 = vadd.f32 0.0, %v3031
  %v3033 = vpop.f32.mrf.mxu0
  %v3034 = vpop.f32.mrf.mxu0
  %v3035 = vpop.f32.mrf.mxu0
  %3036 = vdwg.mxu0
  %v3037 = vadd.f32 %v2996, %v3032
  %v3038 = vxor.u32 %v3037, 2147483648
  %v3039 = vmul.f32 %v3038, 1.442695
  %v3040 = vpow.pop %v3039
  %v3041 = vadd.f32 %v3040, 1.0
  %v3042 = vrcp.pop %v3041
  %v3043 = vmul.f32 1.0, %v3042
  %v3044 = vtanh.pop %v3037
  %v3045 = vmul.f32 %v3043, %v2476
  %3047 = vrot.lane.b32.xlu0 %v3044, 64
  %v3048 = vpop.permute.xlu0 %3047
  %v3050 = vmul.f32 %v3043, %v3048
  %3052 = vrot.lane.b32.xlu0 %v3050, 32
  %v3053 = vpop.permute.xlu0 %3052
  %v3055 = vadd.f32 %v3045, %v3053
  %v3056 = vtanh.pop %v3055
  %3058 = vrot.lane.b32.xlu0 %v3056, 64
  %v3059 = vpop.permute.xlu0 %3058
  %v3061 = vmul.f32 %v3043, %v3059
  %v3062 = vpack.c.bf16 %v3061, %v3061
  %3064 = vrot.lane.b32.xlu0 %v3062, 32
  %v3065 = vpop.permute.xlu0 %3064
  %v3067 = vsel %vm189, %v3065, 0
  %3069 = vmatprep.subr.bf16.mxu0 0
  %3070 = vmatpush1.bf16.msra.mxu0 0
  %3071 = vmatprep.subr.bf16.mxu0 0
  %3072 = vmatpush1.bf16.msra.mxu0 0
  %3073 = vmatprep.subr.bf16.mxu0 0
  %3074 = vmatpush1.bf16.msra.mxu0 0
  %3075 = vmatprep.subr.bf16.mxu0 0
  %3076 = vmatpush1.bf16.msra.mxu0 0
  %3077 = vmatprep.subr.bf16.mxu0 0
  %3078 = vmatpush1.bf16.msra.mxu0 0
  %3079 = vmatprep.subr.bf16.mxu0 0
  %3080 = vmatpush1.bf16.msra.mxu0 0
  %3081 = vmatprep.subr.bf16.mxu0 0
  %3082 = vmatpush1.bf16.msra.mxu0 %v688
  %3083 = vmatprep.subr.bf16.mxu0 0
  %3084 = vmatpush1.bf16.msra.mxu0 %v687
  %3085 = vmatprep.subr.bf16.mxu0 0
  %3086 = vmatpush2.bf16.msra.mxu0 0
  %3087 = vmatprep.subr.bf16.mxu0 0
  %3088 = vmatpush2.bf16.msra.mxu0 0
  %3089 = vmatprep.subr.bf16.mxu0 0
  %3090 = vmatpush2.bf16.msra.mxu0 0
  %3091 = vmatprep.subr.bf16.mxu0 0
  %3092 = vmatpush2.bf16.msra.mxu0 0
  %3093 = vmatprep.subr.bf16.mxu0 0
  %3094 = vmatpush2.bf16.msra.mxu0 0
  %3095 = vmatprep.subr.bf16.mxu0 0
  %3096 = vmatpush2.bf16.msra.mxu0 0
  %3097 = vmatprep.subr.bf16.mxu0 0
  %3098 = vmatpush2.bf16.msra.mxu0 0
  %3099 = vmatprep.subr.bf16.mxu0 0
  %3100 = vmatpush2.bf16.msra.mxu0 0
  %3101 = vmatprep.mubr.bf16.mxu0 0
  %3102 = vmatmul.mubr.bf16.gmra.mxu0 %v3067
  %v3103 = vpop.f32.mrf.mxu0
  %v3104 = vadd.f32 0.0, %v3103
  %v3105 = vpop.f32.mrf.mxu0
  %v3106 = vpop.f32.mrf.mxu0
  %v3107 = vpop.f32.mrf.mxu0
  %3108 = vdwg.mxu0
  %v3109 = vadd.f32 %v115, %v3104
  %3110 = vmatprep.subr.bf16.mxu0 0
  %3111 = vmatpush1.bf16.msra.mxu0 0
  %3112 = vmatprep.subr.bf16.mxu0 0
  %3113 = vmatpush1.bf16.msra.mxu0 0
  %3114 = vmatprep.subr.bf16.mxu0 0
  %3115 = vmatpush1.bf16.msra.mxu0 0
  %3116 = vmatprep.subr.bf16.mxu0 0
  %3117 = vmatpush1.bf16.msra.mxu0 0
  %3118 = vmatprep.subr.bf16.mxu0 0
  %3119 = vmatpush1.bf16.msra.mxu0 0
  %3120 = vmatprep.subr.bf16.mxu0 0
  %3121 = vmatpush1.bf16.msra.mxu0 0
  %3122 = vmatprep.subr.bf16.mxu0 0
  %3123 = vmatpush1.bf16.msra.mxu0 %v744
  %3124 = vmatprep.subr.bf16.mxu0 0
  %3125 = vmatpush1.bf16.msra.mxu0 %v743
  %3126 = vmatprep.subr.bf16.mxu0 0
  %3127 = vmatpush2.bf16.msra.mxu0 0
  %3128 = vmatprep.subr.bf16.mxu0 0
  %3129 = vmatpush2.bf16.msra.mxu0 0
  %3130 = vmatprep.subr.bf16.mxu0 0
  %3131 = vmatpush2.bf16.msra.mxu0 0
  %3132 = vmatprep.subr.bf16.mxu0 0
  %3133 = vmatpush2.bf16.msra.mxu0 0
  %3134 = vmatprep.subr.bf16.mxu0 0
  %3135 = vmatpush2.bf16.msra.mxu0 0
  %3136 = vmatprep.subr.bf16.mxu0 0
  %3137 = vmatpush2.bf16.msra.mxu0 0
  %3138 = vmatprep.subr.bf16.mxu0 0
  %3139 = vmatpush2.bf16.msra.mxu0 0
  %3140 = vmatprep.subr.bf16.mxu0 0
  %3141 = vmatpush2.bf16.msra.mxu0 0
  %3142 = vmatprep.mubr.bf16.mxu0 0
  %3143 = vmatmul.mubr.bf16.gmra.mxu0 %v2841
  %v3144 = vpop.f32.mrf.mxu0
  %v3145 = vadd.f32 0.0, %v3144
  %v3146 = vpop.f32.mrf.mxu0
  %v3147 = vpop.f32.mrf.mxu0
  %v3148 = vpop.f32.mrf.mxu0
  %3149 = vdwg.mxu0
  %v3150 = vadd.f32 %v3109, %v3145
  %v3151 = vsel %vm788, %v3150, -inf
  %3152 = vmax.xlane.f32.xlu0 %v3151
  %v3153 = vpop.xlane.xlu0 %3152
  %vm3154 = vcmp.eq.f32.partialorder %v3150, %v3153
  %v3155 = vsel %vm3154, %v117, 128
  %v3156 = vsel %vm788, %v3155, 2147483647
  %v3157 = vand.u32 %v3156, 65535
  %v3158 = vshra.s32 %v3156, 16
  %v3159 = vcvt.s32.f32 %v3157
  %v3160 = vcvt.s32.f32 %v3158
  %3161 = vmin.xlane.f32.xlu0 %v3160
  %v3162 = vpop.xlane.xlu0 %3161
  %vm3163 = vcmp.eq.f32.partialorder %v3160, %v3162
  %v3164 = vsel %vm3163, %v3159, inf
  %3165 = vmin.xlane.f32.xlu0 %v3164
  %v3166 = vpop.xlane.xlu0 %3165
  %v3167 = vcvt.f32.s32 %v3166
  %v3168 = vcvt.f32.s32 %v3162
  %v3169 = vshll.u32 %v3168, 16
  %v3170 = vadd.s32 %v3169, %v3167
  %vm3171 = vcmp.eq.s32.totalorder %v117, %v3170
  %vm3172 = vcmp.eq.s32.totalorder %v3170, 3
  %vm3173 = vcmp.eq.s32.totalorder %v3170, 2
  %vm3174 = vmor %vm3172, %vm3173
  %v3175 = vsel %vm3174, 1, 0
  %vm3176 = vcmp.eq.s32.totalorder %v3175, 1
  %v3177 = vsel %vm3176, %v120, %v3150
  %v3178 = vmul.f32 %v3177, 2.0
  %v3179 = vsel %vm788, %v3178, -inf
  %3180 = vmax.xlane.f32.xlu0 %v3179
  %v3181 = vpop.xlane.xlu0 %3180
  %v3182 = vsub.f32 %v3178, %v3181
  %v3183 = vmul.f32 %v3182, 1.442695
  %v3184 = vpow.pop %v3183
  %v3185 = vsel %vm788, %v3184, 0.0
  %3186 = vadd.xlane.f32.xlu0 %v3185
  %v3187 = vpop.xlane.xlu0 %3186
  %v3188 = vrcp.pop %v3187
  %v3189 = vmul.f32 %v3184, %v3188
  %v3190 = vpack.c.bf16 %v3189, %v3189
  %3191 = vmatprep.subr.bf16.mxu0 0
  %3192 = vmatpush1.bf16.msra.mxu0 %v868
  %3193 = vmatprep.subr.bf16.mxu0 0
  %3194 = vmatpush1.bf16.msra.mxu0 %v867
  %3195 = vmatprep.subr.bf16.mxu0 0
  %3196 = vmatpush1.bf16.msra.mxu0 %v866
  %3197 = vmatprep.subr.bf16.mxu0 0
  %3198 = vmatpush1.bf16.msra.mxu0 %v865
  %3199 = vmatprep.subr.bf16.mxu0 0
  %3200 = vmatpush1.bf16.msra.mxu0 %v864
  %3201 = vmatprep.subr.bf16.mxu0 0
  %3202 = vmatpush1.bf16.msra.mxu0 %v863
  %3203 = vmatprep.subr.bf16.mxu0 0
  %3204 = vmatpush1.bf16.msra.mxu0 %v862
  %3205 = vmatprep.subr.bf16.mxu0 0
  %3206 = vmatpush1.bf16.msra.mxu0 %v861
  %3207 = vmatprep.subr.bf16.mxu0 0
  %3208 = vmatpush2.bf16.msra.mxu0 0
  %3209 = vmatprep.subr.bf16.mxu0 0
  %3210 = vmatpush2.bf16.msra.mxu0 0
  %3211 = vmatprep.subr.bf16.mxu0 0
  %3212 = vmatpush2.bf16.msra.mxu0 0
  %3213 = vmatprep.subr.bf16.mxu0 0
  %3214 = vmatpush2.bf16.msra.mxu0 0
  %3215 = vmatprep.subr.bf16.mxu0 0
  %3216 = vmatpush2.bf16.msra.mxu0 0
  %3217 = vmatprep.subr.bf16.mxu0 0
  %3218 = vmatpush2.bf16.msra.mxu0 0
  %3219 = vmatprep.subr.bf16.mxu0 0
  %3220 = vmatpush2.bf16.msra.mxu0 0
  %3221 = vmatprep.subr.bf16.mxu0 0
  %3222 = vmatpush2.bf16.msra.mxu0 0
  %3223 = vmatprep.mubr.bf16.mxu0 0
  %3224 = vmatmul.mubr.bf16.gmra.mxu0 %v3190
  %v3225 = vpop.f32.mrf.mxu0
  %v3226 = vadd.f32 0.0, %v3225
  %v3227 = vpop.f32.mrf.mxu0
  %v3228 = vpop.f32.mrf.mxu0
  %v3229 = vpop.f32.mrf.mxu0
  %3230 = vdwg.mxu0
  %s3231 = sadd.s32 %s132, 4
  %v3232 = vstv %s3231
  %vm3233 = vcmp.eq.s32.totalorder %v122, %v3232
  %vm3234 = vcmp.eq.s32.totalorder %v123, %v3232
  %vm3235 = vmand %vm148, %vm3233
  %vm3236 = vmand %vm149, %vm3234
  %v3237 = vlaneseq
  %v3238 = vshrl.u32 %v3237, 7
  %v3239 = vsub.s32 0, %v3238
  %v3240 = vrot.slane %v3226, %v3239
  %v3241 = vsel %vm3235, 1, 0
  %v3242 = vsel %vm3236, 1, 0
  %vm3243 = vcmp.eq.s32.totalorder %v3241, 1
  %vm3244 = vcmp.eq.s32.totalorder %v3242, 1
  %v3245 = vsel %vm3243, %v3240, %v2666
  %v3246 = vsel %vm3244, %v3240, %v2667
  %s3247 = sadd.s32 %s152, 4
  %v3248 = vstv %s3247
  %vm3249 = vcmp.eq.s32.totalorder %v122, %v3248
  %vm3250 = vcmp.eq.s32.totalorder %v123, %v3248
  %vm3251 = vmand %vm168, %vm3249
  %vm3252 = vmand %vm169, %vm3250
  %v3253 = vlaneseq
  %v3254 = vshrl.u32 %v3253, 7
  %v3255 = vsub.s32 1, %v3254
  %v3256 = vrot.slane %v3226, %v3255
  %v3257 = vsel %vm3251, 1, 0
  %v3258 = vsel %vm3252, 1, 0
  %vm3259 = vcmp.eq.s32.totalorder %v3257, 1
  %vm3260 = vcmp.eq.s32.totalorder %v3258, 1
  %v3261 = vsel %vm3259, %v3256, %v2682
  %v3262 = vsel %vm3260, %v3256, %v2683
  %3263 = vmatprep.subr.bf16.mxu0 0
  %3264 = vmatpush1.bf16.msra.mxu0 0
  %3265 = vmatprep.subr.bf16.mxu0 0
  %3266 = vmatpush1.bf16.msra.mxu0 0
  %3267 = vmatprep.subr.bf16.mxu0 0
  %3268 = vmatpush1.bf16.msra.mxu0 0
  %3269 = vmatprep.subr.bf16.mxu0 0
  %3270 = vmatpush1.bf16.msra.mxu0 0
  %3271 = vmatprep.subr.bf16.mxu0 0
  %3272 = vmatpush1.bf16.msra.mxu0 0
  %3273 = vmatprep.subr.bf16.mxu0 0
  %3274 = vmatpush1.bf16.msra.mxu0 0
  %3275 = vmatprep.subr.bf16.mxu0 0
  %3276 = vmatpush1.bf16.msra.mxu0 %v186
  %3277 = vmatprep.subr.bf16.mxu0 0
  %3278 = vmatpush1.bf16.msra.mxu0 %v185
  %3279 = vmatprep.subr.bf16.mxu0 0
  %3280 = vmatpush2.bf16.msra.mxu0 0
  %3281 = vmatprep.subr.bf16.mxu0 0
  %3282 = vmatpush2.bf16.msra.mxu0 0
  %3283 = vmatprep.subr.bf16.mxu0 0
  %3284 = vmatpush2.bf16.msra.mxu0 0
  %3285 = vmatprep.subr.bf16.mxu0 0
  %3286 = vmatpush2.bf16.msra.mxu0 0
  %3287 = vmatprep.subr.bf16.mxu0 0
  %3288 = vmatpush2.bf16.msra.mxu0 0
  %3289 = vmatprep.subr.bf16.mxu0 0
  %3290 = vmatpush2.bf16.msra.mxu0 0
  %3291 = vmatprep.subr.bf16.mxu0 0
  %3292 = vmatpush2.bf16.msra.mxu0 0
  %3293 = vmatprep.subr.bf16.mxu0 0
  %3294 = vmatpush2.bf16.msra.mxu0 0
  %3295 = vmatprep.mubr.bf16.mxu0 0
  %3296 = vmatmul.mubr.bf16.gmra.mxu0 %v3067
  %v3297 = vpop.f32.mrf.mxu0
  %v3298 = vadd.f32 0.0, %v3297
  %v3299 = vpop.f32.mrf.mxu0
  %v3300 = vpop.f32.mrf.mxu0
  %v3301 = vpop.f32.mrf.mxu0
  %3302 = vdwg.mxu0
  %v3303 = vlaneseq
  %v3304 = vshrl.u32 %v3303, 7
  %v3305 = vsub.s32 0, %v3304
  %v3306 = vrot.slane %v3298, %v3305
  %v3307 = vadd.f32 %v3306, %v127
  %v3308 = vmax.f32 %v3307, 0.0
  %v3309 = vmul.f32 %v3308, %v103
  %v3310 = vsel %vm189, %v3309, 0.0
  %3311 = vadd.xlane.f32.xlu0 %v3310
  %v3312 = vpop.xlane.xlu0 %3311
  %v3313 = vrot.slane %v3312, 4
  %v3314 = vmax.f32 %v3312, %v3313
  %v3315 = vrot.slane %v3314, 2
  %v3316 = vmax.f32 %v3314, %v3315
  %v3317 = vrot.slane %v3316, 1
  %v3318 = vmax.f32 %v3316, %v3317
  %v3319 = vsub.f32 %v3312, %v3318
  %v3320 = vmul.f32 %v3319, 1.442695
  %v3321 = vpow.pop %v3320
  %v3322 = vrot.slane %v3321, 4
  %v3323 = vadd.f32 %v3321, %v3322
  %v3324 = vrot.slane %v3323, 2
  %v3325 = vadd.f32 %v3323, %v3324
  %v3326 = vrot.slane %v3325, 1
  %v3327 = vadd.f32 %v3325, %v3326
  %v3328 = vrcp.pop %v3327
  %v3329 = vmul.f32 %v3321, %v3328
  %v3330 = vmul.f32 %v3329, %v124
  %v3331 = vsel %vm189, %v3330, 0.0
  %v3332 = vrot.slane %v3331, 4
  %v3333 = vadd.f32 %v3331, %v3332
  %v3334 = vrot.slane %v3333, 2
  %v3335 = vadd.f32 %v3333, %v3334
  %v3336 = vrot.slane %v3335, 1
  %v3337 = vadd.f32 %v3335, %v3336
  %v3338 = vlaneseq
  %v3339 = vshrl.u32 %v3338, 7
  %v3340 = vsub.s32 1, %v3339
  %v3341 = vrot.slane %v3298, %v3340
  %v3342 = vadd.f32 %v3341, %v129
  %v3343 = vmax.f32 %v3342, 0.0
  %v3344 = vmul.f32 %v3343, %v103
  %v3345 = vsel %vm189, %v3344, 0.0
  %3346 = vadd.xlane.f32.xlu0 %v3345
  %v3347 = vpop.xlane.xlu0 %3346
  %v3348 = vrot.slane %v3347, 4
  %v3349 = vmax.f32 %v3347, %v3348
  %v3350 = vrot.slane %v3349, 2
  %v3351 = vmax.f32 %v3349, %v3350
  %v3352 = vrot.slane %v3351, 1
  %v3353 = vmax.f32 %v3351, %v3352
  %v3354 = vsub.f32 %v3347, %v3353
  %v3355 = vmul.f32 %v3354, 1.442695
  %v3356 = vpow.pop %v3355
  %v3357 = vrot.slane %v3356, 4
  %v3358 = vadd.f32 %v3356, %v3357
  %v3359 = vrot.slane %v3358, 2
  %v3360 = vadd.f32 %v3358, %v3359
  %v3361 = vrot.slane %v3360, 1
  %v3362 = vadd.f32 %v3360, %v3361
  %v3363 = vrcp.pop %v3362
  %v3364 = vmul.f32 %v3356, %v3363
  %v3365 = vmul.f32 %v3364, %v126
  %v3366 = vsel %vm189, %v3365, 0.0
  %v3367 = vrot.slane %v3366, 4
  %v3368 = vadd.f32 %v3366, %v3367
  %v3369 = vrot.slane %v3368, 2
  %v3370 = vadd.f32 %v3368, %v3369
  %v3371 = vrot.slane %v3370, 1
  %v3372 = vadd.f32 %v3370, %v3371
  %v3373 = vsel %vm305, %v3372, %v3337
  %v3374 = vsel %vm3171, 1, 0
  %v3375 = vcvt.s32.f32 %v3374
  %v3376 = vpack.c.bf16 %v3375, %v3375
  %3377 = vmatprep.subr.bf16.mxu0 0
  %3378 = vmatpush1.bf16.msra.mxu0 %v347
  %3379 = vmatprep.subr.bf16.mxu0 0
  %3380 = vmatpush1.bf16.msra.mxu0 %v346
  %3381 = vmatprep.subr.bf16.mxu0 0
  %3382 = vmatpush1.bf16.msra.mxu0 %v345
  %3383 = vmatprep.subr.bf16.mxu0 0
  %3384 = vmatpush1.bf16.msra.mxu0 %v344
  %3385 = vmatprep.subr.bf16.mxu0 0
  %3386 = vmatpush1.bf16.msra.mxu0 %v343
  %3387 = vmatprep.subr.bf16.mxu0 0
  %3388 = vmatpush1.bf16.msra.mxu0 %v342
  %3389 = vmatprep.subr.bf16.mxu0 0
  %3390 = vmatpush1.bf16.msra.mxu0 %v341
  %3391 = vmatprep.subr.bf16.mxu0 0
  %3392 = vmatpush1.bf16.msra.mxu0 %v340
  %3393 = vmatprep.subr.bf16.mxu0 0
  %3394 = vmatpush2.bf16.msra.mxu0 0
  %3395 = vmatprep.subr.bf16.mxu0 0
  %3396 = vmatpush2.bf16.msra.mxu0 0
  %3397 = vmatprep.subr.bf16.mxu0 0
  %3398 = vmatpush2.bf16.msra.mxu0 0
  %3399 = vmatprep.subr.bf16.mxu0 0
  %3400 = vmatpush2.bf16.msra.mxu0 0
  %3401 = vmatprep.subr.bf16.mxu0 0
  %3402 = vmatpush2.bf16.msra.mxu0 0
  %3403 = vmatprep.subr.bf16.mxu0 0
  %3404 = vmatpush2.bf16.msra.mxu0 0
  %3405 = vmatprep.subr.bf16.mxu0 0
  %3406 = vmatpush2.bf16.msra.mxu0 0
  %3407 = vmatprep.subr.bf16.mxu0 0
  %3408 = vmatpush2.bf16.msra.mxu0 0
  %3409 = vmatprep.mubr.bf16.mxu0 0
  %3410 = vmatmul.mubr.bf16.gmra.mxu0 %v3376
  %v3411 = vpop.f32.mrf.mxu0
  %v3412 = vadd.f32 0.0, %v3411
  %v3413 = vpop.f32.mrf.mxu0
  %v3414 = vpop.f32.mrf.mxu0
  %v3415 = vpop.f32.mrf.mxu0
  %3416 = vdwg.mxu0
  %v3417 = vadd.f32 %v107, %v3412
  %v3418 = vpack.c.bf16 %v3373, %v3373
  %v3420 = vsel %vm189, %v3418, 0
  %3422 = vmatprep.subr.bf16.mxu0 0
  %3423 = vmatpush1.bf16.msra.mxu0 0
  %3424 = vmatprep.subr.bf16.mxu0 0
  %3425 = vmatpush1.bf16.msra.mxu0 0
  %3426 = vmatprep.subr.bf16.mxu0 0
  %3427 = vmatpush1.bf16.msra.mxu0 0
  %3428 = vmatprep.subr.bf16.mxu0 0
  %3429 = vmatpush1.bf16.msra.mxu0 0
  %3430 = vmatprep.subr.bf16.mxu0 0
  %3431 = vmatpush1.bf16.msra.mxu0 0
  %3432 = vmatprep.subr.bf16.mxu0 0
  %3433 = vmatpush1.bf16.msra.mxu0 0
  %3434 = vmatprep.subr.bf16.mxu0 0
  %3435 = vmatpush1.bf16.msra.mxu0 %v407
  %3436 = vmatprep.subr.bf16.mxu0 0
  %3437 = vmatpush1.bf16.msra.mxu0 %v406
  %3438 = vmatprep.subr.bf16.mxu0 0
  %3439 = vmatpush2.bf16.msra.mxu0 0
  %3440 = vmatprep.subr.bf16.mxu0 0
  %3441 = vmatpush2.bf16.msra.mxu0 0
  %3442 = vmatprep.subr.bf16.mxu0 0
  %3443 = vmatpush2.bf16.msra.mxu0 0
  %3444 = vmatprep.subr.bf16.mxu0 0
  %3445 = vmatpush2.bf16.msra.mxu0 0
  %3446 = vmatprep.subr.bf16.mxu0 0
  %3447 = vmatpush2.bf16.msra.mxu0 0
  %3448 = vmatprep.subr.bf16.mxu0 0
  %3449 = vmatpush2.bf16.msra.mxu0 0
  %3450 = vmatprep.subr.bf16.mxu0 0
  %3451 = vmatpush2.bf16.msra.mxu0 0
  %3452 = vmatprep.subr.bf16.mxu0 0
  %3453 = vmatpush2.bf16.msra.mxu0 0
  %3454 = vmatprep.mubr.bf16.mxu0 0
  %3455 = vmatmul.mubr.bf16.gmra.mxu0 %v3420
  %v3456 = vpop.f32.mrf.mxu0
  %v3457 = vadd.f32 0.0, %v3456
  %v3458 = vpop.f32.mrf.mxu0
  %v3459 = vpop.f32.mrf.mxu0
  %v3460 = vpop.f32.mrf.mxu0
  %3461 = vdwg.mxu0
  %v3462 = vadd.f32 %v3417, %v3457
  %3463 = vmatprep.subr.bf16.mxu0 0
  %3464 = vmatpush1.bf16.msra.mxu0 0
  %3465 = vmatprep.subr.bf16.mxu0 0
  %3466 = vmatpush1.bf16.msra.mxu0 0
  %3467 = vmatprep.subr.bf16.mxu0 0
  %3468 = vmatpush1.bf16.msra.mxu0 0
  %3469 = vmatprep.subr.bf16.mxu0 0
  %3470 = vmatpush1.bf16.msra.mxu0 0
  %3471 = vmatprep.subr.bf16.mxu0 0
  %3472 = vmatpush1.bf16.msra.mxu0 0
  %3473 = vmatprep.subr.bf16.mxu0 0
  %3474 = vmatpush1.bf16.msra.mxu0 0
  %3475 = vmatprep.subr.bf16.mxu0 0
  %3476 = vmatpush1.bf16.msra.mxu0 %v463
  %3477 = vmatprep.subr.bf16.mxu0 0
  %3478 = vmatpush1.bf16.msra.mxu0 %v462
  %3479 = vmatprep.subr.bf16.mxu0 0
  %3480 = vmatpush2.bf16.msra.mxu0 0
  %3481 = vmatprep.subr.bf16.mxu0 0
  %3482 = vmatpush2.bf16.msra.mxu0 0
  %3483 = vmatprep.subr.bf16.mxu0 0
  %3484 = vmatpush2.bf16.msra.mxu0 0
  %3485 = vmatprep.subr.bf16.mxu0 0
  %3486 = vmatpush2.bf16.msra.mxu0 0
  %3487 = vmatprep.subr.bf16.mxu0 0
  %3488 = vmatpush2.bf16.msra.mxu0 0
  %3489 = vmatprep.subr.bf16.mxu0 0
  %3490 = vmatpush2.bf16.msra.mxu0 0
  %3491 = vmatprep.subr.bf16.mxu0 0
  %3492 = vmatpush2.bf16.msra.mxu0 0
  %3493 = vmatprep.subr.bf16.mxu0 0
  %3494 = vmatpush2.bf16.msra.mxu0 0
  %3495 = vmatprep.mubr.bf16.mxu0 0
  %3496 = vmatmul.mubr.bf16.gmra.mxu0 %v2954
  %v3497 = vpop.f32.mrf.mxu0
  %v3498 = vadd.f32 0.0, %v3497
  %v3499 = vpop.f32.mrf.mxu0
  %v3500 = vpop.f32.mrf.mxu0
  %v3501 = vpop.f32.mrf.mxu0
  %3502 = vdwg.mxu0
  %v3503 = vadd.f32 %v3462, %v3498
  %v3504 = vxor.u32 %v3503, 2147483648
  %v3505 = vmul.f32 %v3504, 1.442695
  %v3506 = vpow.pop %v3505
  %v3507 = vadd.f32 %v3506, 1.0
  %v3508 = vrcp.pop %v3507
  %v3509 = vmul.f32 1.0, %v3508
  %v3510 = vtanh.pop %v3503
  %v3511 = vmul.f32 %v3509, %v2942
  %3513 = vrot.lane.b32.xlu0 %v3510, 64
  %v3514 = vpop.permute.xlu0 %3513
  %v3516 = vmul.f32 %v3509, %v3514
  %3518 = vrot.lane.b32.xlu0 %v3516, 32
  %v3519 = vpop.permute.xlu0 %3518
  %v3521 = vadd.f32 %v3511, %v3519
  %v3522 = vtanh.pop %v3521
  %3524 = vrot.lane.b32.xlu0 %v3522, 64
  %v3525 = vpop.permute.xlu0 %3524
  %v3527 = vmul.f32 %v3509, %v3525
  %v3528 = vpack.c.bf16 %v3527, %v3527
  %3530 = vrot.lane.b32.xlu0 %v3528, 32
  %v3531 = vpop.permute.xlu0 %3530
  %v3533 = vsel %vm189, %v3531, 0
  %3535 = vmatprep.subr.bf16.mxu0 0
  %3536 = vmatpush1.bf16.msra.mxu0 0
  %3537 = vmatprep.subr.bf16.mxu0 0
  %3538 = vmatpush1.bf16.msra.mxu0 0
  %3539 = vmatprep.subr.bf16.mxu0 0
  %3540 = vmatpush1.bf16.msra.mxu0 0
  %3541 = vmatprep.subr.bf16.mxu0 0
  %3542 = vmatpush1.bf16.msra.mxu0 0
  %3543 = vmatprep.subr.bf16.mxu0 0
  %3544 = vmatpush1.bf16.msra.mxu0 0
  %3545 = vmatprep.subr.bf16.mxu0 0
  %3546 = vmatpush1.bf16.msra.mxu0 0
  %3547 = vmatprep.subr.bf16.mxu0 0
  %3548 = vmatpush1.bf16.msra.mxu0 %v547
  %3549 = vmatprep.subr.bf16.mxu0 0
  %3550 = vmatpush1.bf16.msra.mxu0 %v546
  %3551 = vmatprep.subr.bf16.mxu0 0
  %3552 = vmatpush2.bf16.msra.mxu0 0
  %3553 = vmatprep.subr.bf16.mxu0 0
  %3554 = vmatpush2.bf16.msra.mxu0 0
  %3555 = vmatprep.subr.bf16.mxu0 0
  %3556 = vmatpush2.bf16.msra.mxu0 0
  %3557 = vmatprep.subr.bf16.mxu0 0
  %3558 = vmatpush2.bf16.msra.mxu0 0
  %3559 = vmatprep.subr.bf16.mxu0 0
  %3560 = vmatpush2.bf16.msra.mxu0 0
  %3561 = vmatprep.subr.bf16.mxu0 0
  %3562 = vmatpush2.bf16.msra.mxu0 0
  %3563 = vmatprep.subr.bf16.mxu0 0
  %3564 = vmatpush2.bf16.msra.mxu0 0
  %3565 = vmatprep.subr.bf16.mxu0 0
  %3566 = vmatpush2.bf16.msra.mxu0 0
  %3567 = vmatprep.mubr.bf16.mxu0 0
  %3568 = vmatmul.mubr.bf16.gmra.mxu0 %v3533
  %v3569 = vpop.f32.mrf.mxu0
  %v3570 = vadd.f32 0.0, %v3569
  %v3571 = vpop.f32.mrf.mxu0
  %v3572 = vpop.f32.mrf.mxu0
  %v3573 = vpop.f32.mrf.mxu0
  %3574 = vdwg.mxu0
  %v3575 = vadd.f32 %v111, %v3570
  %3576 = vmatprep.subr.bf16.mxu0 0
  %3577 = vmatpush1.bf16.msra.mxu0 0
  %3578 = vmatprep.subr.bf16.mxu0 0
  %3579 = vmatpush1.bf16.msra.mxu0 0
  %3580 = vmatprep.subr.bf16.mxu0 0
  %3581 = vmatpush1.bf16.msra.mxu0 0
  %3582 = vmatprep.subr.bf16.mxu0 0
  %3583 = vmatpush1.bf16.msra.mxu0 0
  %3584 = vmatprep.subr.bf16.mxu0 0
  %3585 = vmatpush1.bf16.msra.mxu0 0
  %3586 = vmatprep.subr.bf16.mxu0 0
  %3587 = vmatpush1.bf16.msra.mxu0 0
  %3588 = vmatprep.subr.bf16.mxu0 0
  %3589 = vmatpush1.bf16.msra.mxu0 %v603
  %3590 = vmatprep.subr.bf16.mxu0 0
  %3591 = vmatpush1.bf16.msra.mxu0 %v602
  %3592 = vmatprep.subr.bf16.mxu0 0
  %3593 = vmatpush2.bf16.msra.mxu0 0
  %3594 = vmatprep.subr.bf16.mxu0 0
  %3595 = vmatpush2.bf16.msra.mxu0 0
  %3596 = vmatprep.subr.bf16.mxu0 0
  %3597 = vmatpush2.bf16.msra.mxu0 0
  %3598 = vmatprep.subr.bf16.mxu0 0
  %3599 = vmatpush2.bf16.msra.mxu0 0
  %3600 = vmatprep.subr.bf16.mxu0 0
  %3601 = vmatpush2.bf16.msra.mxu0 0
  %3602 = vmatprep.subr.bf16.mxu0 0
  %3603 = vmatpush2.bf16.msra.mxu0 0
  %3604 = vmatprep.subr.bf16.mxu0 0
  %3605 = vmatpush2.bf16.msra.mxu0 0
  %3606 = vmatprep.subr.bf16.mxu0 0
  %3607 = vmatpush2.bf16.msra.mxu0 0
  %3608 = vmatprep.mubr.bf16.mxu0 0
  %3609 = vmatmul.mubr.bf16.gmra.mxu0 %v3067
  %v3610 = vpop.f32.mrf.mxu0
  %v3611 = vadd.f32 0.0, %v3610
  %v3612 = vpop.f32.mrf.mxu0
  %v3613 = vpop.f32.mrf.mxu0
  %v3614 = vpop.f32.mrf.mxu0
  %3615 = vdwg.mxu0
  %v3616 = vadd.f32 %v3575, %v3611
  %v3617 = vxor.u32 %v3616, 2147483648
  %v3618 = vmul.f32 %v3617, 1.442695
  %v3619 = vpow.pop %v3618
  %v3620 = vadd.f32 %v3619, 1.0
  %v3621 = vrcp.pop %v3620
  %v3622 = vmul.f32 1.0, %v3621
  %v3623 = vtanh.pop %v3616
  %v3624 = vmul.f32 %v3622, %v3055
  %3626 = vrot.lane.b32.xlu0 %v3623, 64
  %v3627 = vpop.permute.xlu0 %3626
  %v3629 = vmul.f32 %v3622, %v3627
  %3631 = vrot.lane.b32.xlu0 %v3629, 32
  %v3632 = vpop.permute.xlu0 %3631
  %v3634 = vadd.f32 %v3624, %v3632
  %v3635 = vtanh.pop %v3634
  %3637 = vrot.lane.b32.xlu0 %v3635, 64
  %v3638 = vpop.permute.xlu0 %3637
  %v3640 = vmul.f32 %v3622, %v3638
  %v3641 = vpack.c.bf16 %v3640, %v3640
  %3643 = vrot.lane.b32.xlu0 %v3641, 32
  %v3644 = vpop.permute.xlu0 %3643
  %v3646 = vsel %vm189, %v3644, 0
  %3648 = vmatprep.subr.bf16.mxu0 0
  %3649 = vmatpush1.bf16.msra.mxu0 0
  %3650 = vmatprep.subr.bf16.mxu0 0
  %3651 = vmatpush1.bf16.msra.mxu0 0
  %3652 = vmatprep.subr.bf16.mxu0 0
  %3653 = vmatpush1.bf16.msra.mxu0 0
  %3654 = vmatprep.subr.bf16.mxu0 0
  %3655 = vmatpush1.bf16.msra.mxu0 0
  %3656 = vmatprep.subr.bf16.mxu0 0
  %3657 = vmatpush1.bf16.msra.mxu0 0
  %3658 = vmatprep.subr.bf16.mxu0 0
  %3659 = vmatpush1.bf16.msra.mxu0 0
  %3660 = vmatprep.subr.bf16.mxu0 0
  %3661 = vmatpush1.bf16.msra.mxu0 %v688
  %3662 = vmatprep.subr.bf16.mxu0 0
  %3663 = vmatpush1.bf16.msra.mxu0 %v687
  %3664 = vmatprep.subr.bf16.mxu0 0
  %3665 = vmatpush2.bf16.msra.mxu0 0
  %3666 = vmatprep.subr.bf16.mxu0 0
  %3667 = vmatpush2.bf16.msra.mxu0 0
  %3668 = vmatprep.subr.bf16.mxu0 0
  %3669 = vmatpush2.bf16.msra.mxu0 0
  %3670 = vmatprep.subr.bf16.mxu0 0
  %3671 = vmatpush2.bf16.msra.mxu0 0
  %3672 = vmatprep.subr.bf16.mxu0 0
  %3673 = vmatpush2.bf16.msra.mxu0 0
  %3674 = vmatprep.subr.bf16.mxu0 0
  %3675 = vmatpush2.bf16.msra.mxu0 0
  %3676 = vmatprep.subr.bf16.mxu0 0
  %3677 = vmatpush2.bf16.msra.mxu0 0
  %3678 = vmatprep.subr.bf16.mxu0 0
  %3679 = vmatpush2.bf16.msra.mxu0 0
  %3680 = vmatprep.mubr.bf16.mxu0 0
  %3681 = vmatmul.mubr.bf16.gmra.mxu0 %v3646
  %v3682 = vpop.f32.mrf.mxu0
  %v3683 = vadd.f32 0.0, %v3682
  %v3684 = vpop.f32.mrf.mxu0
  %v3685 = vpop.f32.mrf.mxu0
  %v3686 = vpop.f32.mrf.mxu0
  %3687 = vdwg.mxu0
  %v3688 = vadd.f32 %v115, %v3683
  %3689 = vmatprep.subr.bf16.mxu0 0
  %3690 = vmatpush1.bf16.msra.mxu0 0
  %3691 = vmatprep.subr.bf16.mxu0 0
  %3692 = vmatpush1.bf16.msra.mxu0 0
  %3693 = vmatprep.subr.bf16.mxu0 0
  %3694 = vmatpush1.bf16.msra.mxu0 0
  %3695 = vmatprep.subr.bf16.mxu0 0
  %3696 = vmatpush1.bf16.msra.mxu0 0
  %3697 = vmatprep.subr.bf16.mxu0 0
  %3698 = vmatpush1.bf16.msra.mxu0 0
  %3699 = vmatprep.subr.bf16.mxu0 0
  %3700 = vmatpush1.bf16.msra.mxu0 0
  %3701 = vmatprep.subr.bf16.mxu0 0
  %3702 = vmatpush1.bf16.msra.mxu0 %v744
  %3703 = vmatprep.subr.bf16.mxu0 0
  %3704 = vmatpush1.bf16.msra.mxu0 %v743
  %3705 = vmatprep.subr.bf16.mxu0 0
  %3706 = vmatpush2.bf16.msra.mxu0 0
  %3707 = vmatprep.subr.bf16.mxu0 0
  %3708 = vmatpush2.bf16.msra.mxu0 0
  %3709 = vmatprep.subr.bf16.mxu0 0
  %3710 = vmatpush2.bf16.msra.mxu0 0
  %3711 = vmatprep.subr.bf16.mxu0 0
  %3712 = vmatpush2.bf16.msra.mxu0 0
  %3713 = vmatprep.subr.bf16.mxu0 0
  %3714 = vmatpush2.bf16.msra.mxu0 0
  %3715 = vmatprep.subr.bf16.mxu0 0
  %3716 = vmatpush2.bf16.msra.mxu0 0
  %3717 = vmatprep.subr.bf16.mxu0 0
  %3718 = vmatpush2.bf16.msra.mxu0 0
  %3719 = vmatprep.subr.bf16.mxu0 0
  %3720 = vmatpush2.bf16.msra.mxu0 0
  %3721 = vmatprep.mubr.bf16.mxu0 0
  %3722 = vmatmul.mubr.bf16.gmra.mxu0 %v3420
  %v3723 = vpop.f32.mrf.mxu0
  %v3724 = vadd.f32 0.0, %v3723
  %v3725 = vpop.f32.mrf.mxu0
  %v3726 = vpop.f32.mrf.mxu0
  %v3727 = vpop.f32.mrf.mxu0
  %3728 = vdwg.mxu0
  %v3729 = vadd.f32 %v3688, %v3724
  %v3730 = vsel %vm788, %v3729, -inf
  %3731 = vmax.xlane.f32.xlu0 %v3730
  %v3732 = vpop.xlane.xlu0 %3731
  %vm3733 = vcmp.eq.f32.partialorder %v3729, %v3732
  %v3734 = vsel %vm3733, %v117, 128
  %v3735 = vsel %vm788, %v3734, 2147483647
  %v3736 = vand.u32 %v3735, 65535
  %v3737 = vshra.s32 %v3735, 16
  %v3738 = vcvt.s32.f32 %v3736
  %v3739 = vcvt.s32.f32 %v3737
  %3740 = vmin.xlane.f32.xlu0 %v3739
  %v3741 = vpop.xlane.xlu0 %3740
  %vm3742 = vcmp.eq.f32.partialorder %v3739, %v3741
  %v3743 = vsel %vm3742, %v3738, inf
  %3744 = vmin.xlane.f32.xlu0 %v3743
  %v3745 = vpop.xlane.xlu0 %3744
  %v3746 = vcvt.f32.s32 %v3745
  %v3747 = vcvt.f32.s32 %v3741
  %v3748 = vshll.u32 %v3747, 16
  %v3749 = vadd.s32 %v3748, %v3746
  %vm3750 = vcmp.eq.s32.totalorder %v117, %v3749
  %vm3751 = vcmp.eq.s32.totalorder %v3749, 3
  %vm3752 = vcmp.eq.s32.totalorder %v3749, 2
  %vm3753 = vmor %vm3751, %vm3752
  %v3754 = vsel %vm3753, 1, 0
  %vm3755 = vcmp.eq.s32.totalorder %v3754, 1
  %v3756 = vsel %vm3755, %v120, %v3729
  %v3757 = vmul.f32 %v3756, 2.0
  %v3758 = vsel %vm788, %v3757, -inf
  %3759 = vmax.xlane.f32.xlu0 %v3758
  %v3760 = vpop.xlane.xlu0 %3759
  %v3761 = vsub.f32 %v3757, %v3760
  %v3762 = vmul.f32 %v3761, 1.442695
  %v3763 = vpow.pop %v3762
  %v3764 = vsel %vm788, %v3763, 0.0
  %3765 = vadd.xlane.f32.xlu0 %v3764
  %v3766 = vpop.xlane.xlu0 %3765
  %v3767 = vrcp.pop %v3766
  %v3768 = vmul.f32 %v3763, %v3767
  %v3769 = vpack.c.bf16 %v3768, %v3768
  %3770 = vmatprep.subr.bf16.mxu0 0
  %3771 = vmatpush1.bf16.msra.mxu0 %v868
  %3772 = vmatprep.subr.bf16.mxu0 0
  %3773 = vmatpush1.bf16.msra.mxu0 %v867
  %3774 = vmatprep.subr.bf16.mxu0 0
  %3775 = vmatpush1.bf16.msra.mxu0 %v866
  %3776 = vmatprep.subr.bf16.mxu0 0
  %3777 = vmatpush1.bf16.msra.mxu0 %v865
  %3778 = vmatprep.subr.bf16.mxu0 0
  %3779 = vmatpush1.bf16.msra.mxu0 %v864
  %3780 = vmatprep.subr.bf16.mxu0 0
  %3781 = vmatpush1.bf16.msra.mxu0 %v863
  %3782 = vmatprep.subr.bf16.mxu0 0
  %3783 = vmatpush1.bf16.msra.mxu0 %v862
  %3784 = vmatprep.subr.bf16.mxu0 0
  %3785 = vmatpush1.bf16.msra.mxu0 %v861
  %3786 = vmatprep.subr.bf16.mxu0 0
  %3787 = vmatpush2.bf16.msra.mxu0 0
  %3788 = vmatprep.subr.bf16.mxu0 0
  %3789 = vmatpush2.bf16.msra.mxu0 0
  %3790 = vmatprep.subr.bf16.mxu0 0
  %3791 = vmatpush2.bf16.msra.mxu0 0
  %3792 = vmatprep.subr.bf16.mxu0 0
  %3793 = vmatpush2.bf16.msra.mxu0 0
  %3794 = vmatprep.subr.bf16.mxu0 0
  %3795 = vmatpush2.bf16.msra.mxu0 0
  %3796 = vmatprep.subr.bf16.mxu0 0
  %3797 = vmatpush2.bf16.msra.mxu0 0
  %3798 = vmatprep.subr.bf16.mxu0 0
  %3799 = vmatpush2.bf16.msra.mxu0 0
  %3800 = vmatprep.subr.bf16.mxu0 0
  %3801 = vmatpush2.bf16.msra.mxu0 0
  %3802 = vmatprep.mubr.bf16.mxu0 0
  %3803 = vmatmul.mubr.bf16.gmra.mxu0 %v3769
  %v3804 = vpop.f32.mrf.mxu0
  %v3805 = vadd.f32 0.0, %v3804
  %v3806 = vpop.f32.mrf.mxu0
  %v3807 = vpop.f32.mrf.mxu0
  %v3808 = vpop.f32.mrf.mxu0
  %3809 = vdwg.mxu0
  %s3810 = sadd.s32 %s132, 5
  %v3811 = vstv %s3810
  %vm3812 = vcmp.eq.s32.totalorder %v122, %v3811
  %vm3813 = vcmp.eq.s32.totalorder %v123, %v3811
  %vm3814 = vmand %vm148, %vm3812
  %vm3815 = vmand %vm149, %vm3813
  %v3816 = vlaneseq
  %v3817 = vshrl.u32 %v3816, 7
  %v3818 = vsub.s32 0, %v3817
  %v3819 = vrot.slane %v3805, %v3818
  %v3820 = vsel %vm3814, 1, 0
  %v3821 = vsel %vm3815, 1, 0
  %vm3822 = vcmp.eq.s32.totalorder %v3820, 1
  %vm3823 = vcmp.eq.s32.totalorder %v3821, 1
  %v3824 = vsel %vm3822, %v3819, %v3245
  %v3825 = vsel %vm3823, %v3819, %v3246
  %s3826 = sadd.s32 %s152, 5
  %v3827 = vstv %s3826
  %vm3828 = vcmp.eq.s32.totalorder %v122, %v3827
  %vm3829 = vcmp.eq.s32.totalorder %v123, %v3827
  %vm3830 = vmand %vm168, %vm3828
  %vm3831 = vmand %vm169, %vm3829
  %v3832 = vlaneseq
  %v3833 = vshrl.u32 %v3832, 7
  %v3834 = vsub.s32 1, %v3833
  %v3835 = vrot.slane %v3805, %v3834
  %v3836 = vsel %vm3830, 1, 0
  %v3837 = vsel %vm3831, 1, 0
  %vm3838 = vcmp.eq.s32.totalorder %v3836, 1
  %vm3839 = vcmp.eq.s32.totalorder %v3837, 1
  %v3840 = vsel %vm3838, %v3835, %v3261
  %v3841 = vsel %vm3839, %v3835, %v3262
  %3842 = vmatprep.subr.bf16.mxu0 0
  %3843 = vmatpush1.bf16.msra.mxu0 0
  %3844 = vmatprep.subr.bf16.mxu0 0
  %3845 = vmatpush1.bf16.msra.mxu0 0
  %3846 = vmatprep.subr.bf16.mxu0 0
  %3847 = vmatpush1.bf16.msra.mxu0 0
  %3848 = vmatprep.subr.bf16.mxu0 0
  %3849 = vmatpush1.bf16.msra.mxu0 0
  %3850 = vmatprep.subr.bf16.mxu0 0
  %3851 = vmatpush1.bf16.msra.mxu0 0
  %3852 = vmatprep.subr.bf16.mxu0 0
  %3853 = vmatpush1.bf16.msra.mxu0 0
  %3854 = vmatprep.subr.bf16.mxu0 0
  %3855 = vmatpush1.bf16.msra.mxu0 %v186
  %3856 = vmatprep.subr.bf16.mxu0 0
  %3857 = vmatpush1.bf16.msra.mxu0 %v185
  %3858 = vmatprep.subr.bf16.mxu0 0
  %3859 = vmatpush2.bf16.msra.mxu0 0
  %3860 = vmatprep.subr.bf16.mxu0 0
  %3861 = vmatpush2.bf16.msra.mxu0 0
  %3862 = vmatprep.subr.bf16.mxu0 0
  %3863 = vmatpush2.bf16.msra.mxu0 0
  %3864 = vmatprep.subr.bf16.mxu0 0
  %3865 = vmatpush2.bf16.msra.mxu0 0
  %3866 = vmatprep.subr.bf16.mxu0 0
  %3867 = vmatpush2.bf16.msra.mxu0 0
  %3868 = vmatprep.subr.bf16.mxu0 0
  %3869 = vmatpush2.bf16.msra.mxu0 0
  %3870 = vmatprep.subr.bf16.mxu0 0
  %3871 = vmatpush2.bf16.msra.mxu0 0
  %3872 = vmatprep.subr.bf16.mxu0 0
  %3873 = vmatpush2.bf16.msra.mxu0 0
  %3874 = vmatprep.mubr.bf16.mxu0 0
  %3875 = vmatmul.mubr.bf16.gmra.mxu0 %v3646
  %v3876 = vpop.f32.mrf.mxu0
  %v3877 = vadd.f32 0.0, %v3876
  %v3878 = vpop.f32.mrf.mxu0
  %v3879 = vpop.f32.mrf.mxu0
  %v3880 = vpop.f32.mrf.mxu0
  %3881 = vdwg.mxu0
  %v3882 = vlaneseq
  %v3883 = vshrl.u32 %v3882, 7
  %v3884 = vsub.s32 0, %v3883
  %v3885 = vrot.slane %v3877, %v3884
  %v3886 = vadd.f32 %v3885, %v127
  %v3887 = vmax.f32 %v3886, 0.0
  %v3888 = vmul.f32 %v3887, %v103
  %v3889 = vsel %vm189, %v3888, 0.0
  %3890 = vadd.xlane.f32.xlu0 %v3889
  %v3891 = vpop.xlane.xlu0 %3890
  %v3892 = vrot.slane %v3891, 4
  %v3893 = vmax.f32 %v3891, %v3892
  %v3894 = vrot.slane %v3893, 2
  %v3895 = vmax.f32 %v3893, %v3894
  %v3896 = vrot.slane %v3895, 1
  %v3897 = vmax.f32 %v3895, %v3896
  %v3898 = vsub.f32 %v3891, %v3897
  %v3899 = vmul.f32 %v3898, 1.442695
  %v3900 = vpow.pop %v3899
  %v3901 = vrot.slane %v3900, 4
  %v3902 = vadd.f32 %v3900, %v3901
  %v3903 = vrot.slane %v3902, 2
  %v3904 = vadd.f32 %v3902, %v3903
  %v3905 = vrot.slane %v3904, 1
  %v3906 = vadd.f32 %v3904, %v3905
  %v3907 = vrcp.pop %v3906
  %v3908 = vmul.f32 %v3900, %v3907
  %v3909 = vmul.f32 %v3908, %v124
  %v3910 = vsel %vm189, %v3909, 0.0
  %v3911 = vrot.slane %v3910, 4
  %v3912 = vadd.f32 %v3910, %v3911
  %v3913 = vrot.slane %v3912, 2
  %v3914 = vadd.f32 %v3912, %v3913
  %v3915 = vrot.slane %v3914, 1
  %v3916 = vadd.f32 %v3914, %v3915
  %v3917 = vlaneseq
  %v3918 = vshrl.u32 %v3917, 7
  %v3919 = vsub.s32 1, %v3918
  %v3920 = vrot.slane %v3877, %v3919
  %v3921 = vadd.f32 %v3920, %v129
  %v3922 = vmax.f32 %v3921, 0.0
  %v3923 = vmul.f32 %v3922, %v103
  %v3924 = vsel %vm189, %v3923, 0.0
  %3925 = vadd.xlane.f32.xlu0 %v3924
  %v3926 = vpop.xlane.xlu0 %3925
  %v3927 = vrot.slane %v3926, 4
  %v3928 = vmax.f32 %v3926, %v3927
  %v3929 = vrot.slane %v3928, 2
  %v3930 = vmax.f32 %v3928, %v3929
  %v3931 = vrot.slane %v3930, 1
  %v3932 = vmax.f32 %v3930, %v3931
  %v3933 = vsub.f32 %v3926, %v3932
  %v3934 = vmul.f32 %v3933, 1.442695
  %v3935 = vpow.pop %v3934
  %v3936 = vrot.slane %v3935, 4
  %v3937 = vadd.f32 %v3935, %v3936
  %v3938 = vrot.slane %v3937, 2
  %v3939 = vadd.f32 %v3937, %v3938
  %v3940 = vrot.slane %v3939, 1
  %v3941 = vadd.f32 %v3939, %v3940
  %v3942 = vrcp.pop %v3941
  %v3943 = vmul.f32 %v3935, %v3942
  %v3944 = vmul.f32 %v3943, %v126
  %v3945 = vsel %vm189, %v3944, 0.0
  %v3946 = vrot.slane %v3945, 4
  %v3947 = vadd.f32 %v3945, %v3946
  %v3948 = vrot.slane %v3947, 2
  %v3949 = vadd.f32 %v3947, %v3948
  %v3950 = vrot.slane %v3949, 1
  %v3951 = vadd.f32 %v3949, %v3950
  %v3952 = vsel %vm305, %v3951, %v3916
  %v3953 = vsel %vm3750, 1, 0
  %v3954 = vcvt.s32.f32 %v3953
  %v3955 = vpack.c.bf16 %v3954, %v3954
  %3956 = vmatprep.subr.bf16.mxu0 0
  %3957 = vmatpush1.bf16.msra.mxu0 %v347
  %3958 = vmatprep.subr.bf16.mxu0 0
  %3959 = vmatpush1.bf16.msra.mxu0 %v346
  %3960 = vmatprep.subr.bf16.mxu0 0
  %3961 = vmatpush1.bf16.msra.mxu0 %v345
  %3962 = vmatprep.subr.bf16.mxu0 0
  %3963 = vmatpush1.bf16.msra.mxu0 %v344
  %3964 = vmatprep.subr.bf16.mxu0 0
  %3965 = vmatpush1.bf16.msra.mxu0 %v343
  %3966 = vmatprep.subr.bf16.mxu0 0
  %3967 = vmatpush1.bf16.msra.mxu0 %v342
  %3968 = vmatprep.subr.bf16.mxu0 0
  %3969 = vmatpush1.bf16.msra.mxu0 %v341
  %3970 = vmatprep.subr.bf16.mxu0 0
  %3971 = vmatpush1.bf16.msra.mxu0 %v340
  %3972 = vmatprep.subr.bf16.mxu0 0
  %3973 = vmatpush2.bf16.msra.mxu0 0
  %3974 = vmatprep.subr.bf16.mxu0 0
  %3975 = vmatpush2.bf16.msra.mxu0 0
  %3976 = vmatprep.subr.bf16.mxu0 0
  %3977 = vmatpush2.bf16.msra.mxu0 0
  %3978 = vmatprep.subr.bf16.mxu0 0
  %3979 = vmatpush2.bf16.msra.mxu0 0
  %3980 = vmatprep.subr.bf16.mxu0 0
  %3981 = vmatpush2.bf16.msra.mxu0 0
  %3982 = vmatprep.subr.bf16.mxu0 0
  %3983 = vmatpush2.bf16.msra.mxu0 0
  %3984 = vmatprep.subr.bf16.mxu0 0
  %3985 = vmatpush2.bf16.msra.mxu0 0
  %3986 = vmatprep.subr.bf16.mxu0 0
  %3987 = vmatpush2.bf16.msra.mxu0 0
  %3988 = vmatprep.mubr.bf16.mxu0 0
  %3989 = vmatmul.mubr.bf16.gmra.mxu0 %v3955
  %v3990 = vpop.f32.mrf.mxu0
  %v3991 = vadd.f32 0.0, %v3990
  %v3992 = vpop.f32.mrf.mxu0
  %v3993 = vpop.f32.mrf.mxu0
  %v3994 = vpop.f32.mrf.mxu0
  %3995 = vdwg.mxu0
  %v3996 = vadd.f32 %v107, %v3991
  %v3997 = vpack.c.bf16 %v3952, %v3952
  %v3999 = vsel %vm189, %v3997, 0
  %4001 = vmatprep.subr.bf16.mxu0 0
  %4002 = vmatpush1.bf16.msra.mxu0 0
  %4003 = vmatprep.subr.bf16.mxu0 0
  %4004 = vmatpush1.bf16.msra.mxu0 0
  %4005 = vmatprep.subr.bf16.mxu0 0
  %4006 = vmatpush1.bf16.msra.mxu0 0
  %4007 = vmatprep.subr.bf16.mxu0 0
  %4008 = vmatpush1.bf16.msra.mxu0 0
  %4009 = vmatprep.subr.bf16.mxu0 0
  %4010 = vmatpush1.bf16.msra.mxu0 0
  %4011 = vmatprep.subr.bf16.mxu0 0
  %4012 = vmatpush1.bf16.msra.mxu0 0
  %4013 = vmatprep.subr.bf16.mxu0 0
  %4014 = vmatpush1.bf16.msra.mxu0 %v407
  %4015 = vmatprep.subr.bf16.mxu0 0
  %4016 = vmatpush1.bf16.msra.mxu0 %v406
  %4017 = vmatprep.subr.bf16.mxu0 0
  %4018 = vmatpush2.bf16.msra.mxu0 0
  %4019 = vmatprep.subr.bf16.mxu0 0
  %4020 = vmatpush2.bf16.msra.mxu0 0
  %4021 = vmatprep.subr.bf16.mxu0 0
  %4022 = vmatpush2.bf16.msra.mxu0 0
  %4023 = vmatprep.subr.bf16.mxu0 0
  %4024 = vmatpush2.bf16.msra.mxu0 0
  %4025 = vmatprep.subr.bf16.mxu0 0
  %4026 = vmatpush2.bf16.msra.mxu0 0
  %4027 = vmatprep.subr.bf16.mxu0 0
  %4028 = vmatpush2.bf16.msra.mxu0 0
  %4029 = vmatprep.subr.bf16.mxu0 0
  %4030 = vmatpush2.bf16.msra.mxu0 0
  %4031 = vmatprep.subr.bf16.mxu0 0
  %4032 = vmatpush2.bf16.msra.mxu0 0
  %4033 = vmatprep.mubr.bf16.mxu0 0
  %4034 = vmatmul.mubr.bf16.gmra.mxu0 %v3999
  %v4035 = vpop.f32.mrf.mxu0
  %v4036 = vadd.f32 0.0, %v4035
  %v4037 = vpop.f32.mrf.mxu0
  %v4038 = vpop.f32.mrf.mxu0
  %v4039 = vpop.f32.mrf.mxu0
  %4040 = vdwg.mxu0
  %v4041 = vadd.f32 %v3996, %v4036
  %4042 = vmatprep.subr.bf16.mxu0 0
  %4043 = vmatpush1.bf16.msra.mxu0 0
  %4044 = vmatprep.subr.bf16.mxu0 0
  %4045 = vmatpush1.bf16.msra.mxu0 0
  %4046 = vmatprep.subr.bf16.mxu0 0
  %4047 = vmatpush1.bf16.msra.mxu0 0
  %4048 = vmatprep.subr.bf16.mxu0 0
  %4049 = vmatpush1.bf16.msra.mxu0 0
  %4050 = vmatprep.subr.bf16.mxu0 0
  %4051 = vmatpush1.bf16.msra.mxu0 0
  %4052 = vmatprep.subr.bf16.mxu0 0
  %4053 = vmatpush1.bf16.msra.mxu0 0
  %4054 = vmatprep.subr.bf16.mxu0 0
  %4055 = vmatpush1.bf16.msra.mxu0 %v463
  %4056 = vmatprep.subr.bf16.mxu0 0
  %4057 = vmatpush1.bf16.msra.mxu0 %v462
  %4058 = vmatprep.subr.bf16.mxu0 0
  %4059 = vmatpush2.bf16.msra.mxu0 0
  %4060 = vmatprep.subr.bf16.mxu0 0
  %4061 = vmatpush2.bf16.msra.mxu0 0
  %4062 = vmatprep.subr.bf16.mxu0 0
  %4063 = vmatpush2.bf16.msra.mxu0 0
  %4064 = vmatprep.subr.bf16.mxu0 0
  %4065 = vmatpush2.bf16.msra.mxu0 0
  %4066 = vmatprep.subr.bf16.mxu0 0
  %4067 = vmatpush2.bf16.msra.mxu0 0
  %4068 = vmatprep.subr.bf16.mxu0 0
  %4069 = vmatpush2.bf16.msra.mxu0 0
  %4070 = vmatprep.subr.bf16.mxu0 0
  %4071 = vmatpush2.bf16.msra.mxu0 0
  %4072 = vmatprep.subr.bf16.mxu0 0
  %4073 = vmatpush2.bf16.msra.mxu0 0
  %4074 = vmatprep.mubr.bf16.mxu0 0
  %4075 = vmatmul.mubr.bf16.gmra.mxu0 %v3533
  %v4076 = vpop.f32.mrf.mxu0
  %v4077 = vadd.f32 0.0, %v4076
  %v4078 = vpop.f32.mrf.mxu0
  %v4079 = vpop.f32.mrf.mxu0
  %v4080 = vpop.f32.mrf.mxu0
  %4081 = vdwg.mxu0
  %v4082 = vadd.f32 %v4041, %v4077
  %v4083 = vxor.u32 %v4082, 2147483648
  %v4084 = vmul.f32 %v4083, 1.442695
  %v4085 = vpow.pop %v4084
  %v4086 = vadd.f32 %v4085, 1.0
  %v4087 = vrcp.pop %v4086
  %v4088 = vmul.f32 1.0, %v4087
  %v4089 = vtanh.pop %v4082
  %v4090 = vmul.f32 %v4088, %v3521
  %4092 = vrot.lane.b32.xlu0 %v4089, 64
  %v4093 = vpop.permute.xlu0 %4092
  %v4095 = vmul.f32 %v4088, %v4093
  %4097 = vrot.lane.b32.xlu0 %v4095, 32
  %v4098 = vpop.permute.xlu0 %4097
  %v4100 = vadd.f32 %v4090, %v4098
  %v4101 = vtanh.pop %v4100
  %4103 = vrot.lane.b32.xlu0 %v4101, 64
  %v4104 = vpop.permute.xlu0 %4103
  %v4106 = vmul.f32 %v4088, %v4104
  %v4107 = vpack.c.bf16 %v4106, %v4106
  %4109 = vrot.lane.b32.xlu0 %v4107, 32
  %v4110 = vpop.permute.xlu0 %4109
  %v4112 = vsel %vm189, %v4110, 0
  %4114 = vmatprep.subr.bf16.mxu0 0
  %4115 = vmatpush1.bf16.msra.mxu0 0
  %4116 = vmatprep.subr.bf16.mxu0 0
  %4117 = vmatpush1.bf16.msra.mxu0 0
  %4118 = vmatprep.subr.bf16.mxu0 0
  %4119 = vmatpush1.bf16.msra.mxu0 0
  %4120 = vmatprep.subr.bf16.mxu0 0
  %4121 = vmatpush1.bf16.msra.mxu0 0
  %4122 = vmatprep.subr.bf16.mxu0 0
  %4123 = vmatpush1.bf16.msra.mxu0 0
  %4124 = vmatprep.subr.bf16.mxu0 0
  %4125 = vmatpush1.bf16.msra.mxu0 0
  %4126 = vmatprep.subr.bf16.mxu0 0
  %4127 = vmatpush1.bf16.msra.mxu0 %v547
  %4128 = vmatprep.subr.bf16.mxu0 0
  %4129 = vmatpush1.bf16.msra.mxu0 %v546
  %4130 = vmatprep.subr.bf16.mxu0 0
  %4131 = vmatpush2.bf16.msra.mxu0 0
  %4132 = vmatprep.subr.bf16.mxu0 0
  %4133 = vmatpush2.bf16.msra.mxu0 0
  %4134 = vmatprep.subr.bf16.mxu0 0
  %4135 = vmatpush2.bf16.msra.mxu0 0
  %4136 = vmatprep.subr.bf16.mxu0 0
  %4137 = vmatpush2.bf16.msra.mxu0 0
  %4138 = vmatprep.subr.bf16.mxu0 0
  %4139 = vmatpush2.bf16.msra.mxu0 0
  %4140 = vmatprep.subr.bf16.mxu0 0
  %4141 = vmatpush2.bf16.msra.mxu0 0
  %4142 = vmatprep.subr.bf16.mxu0 0
  %4143 = vmatpush2.bf16.msra.mxu0 0
  %4144 = vmatprep.subr.bf16.mxu0 0
  %4145 = vmatpush2.bf16.msra.mxu0 0
  %4146 = vmatprep.mubr.bf16.mxu0 0
  %4147 = vmatmul.mubr.bf16.gmra.mxu0 %v4112
  %v4148 = vpop.f32.mrf.mxu0
  %v4149 = vadd.f32 0.0, %v4148
  %v4150 = vpop.f32.mrf.mxu0
  %v4151 = vpop.f32.mrf.mxu0
  %v4152 = vpop.f32.mrf.mxu0
  %4153 = vdwg.mxu0
  %v4154 = vadd.f32 %v111, %v4149
  %4155 = vmatprep.subr.bf16.mxu0 0
  %4156 = vmatpush1.bf16.msra.mxu0 0
  %4157 = vmatprep.subr.bf16.mxu0 0
  %4158 = vmatpush1.bf16.msra.mxu0 0
  %4159 = vmatprep.subr.bf16.mxu0 0
  %4160 = vmatpush1.bf16.msra.mxu0 0
  %4161 = vmatprep.subr.bf16.mxu0 0
  %4162 = vmatpush1.bf16.msra.mxu0 0
  %4163 = vmatprep.subr.bf16.mxu0 0
  %4164 = vmatpush1.bf16.msra.mxu0 0
  %4165 = vmatprep.subr.bf16.mxu0 0
  %4166 = vmatpush1.bf16.msra.mxu0 0
  %4167 = vmatprep.subr.bf16.mxu0 0
  %4168 = vmatpush1.bf16.msra.mxu0 %v603
  %4169 = vmatprep.subr.bf16.mxu0 0
  %4170 = vmatpush1.bf16.msra.mxu0 %v602
  %4171 = vmatprep.subr.bf16.mxu0 0
  %4172 = vmatpush2.bf16.msra.mxu0 0
  %4173 = vmatprep.subr.bf16.mxu0 0
  %4174 = vmatpush2.bf16.msra.mxu0 0
  %4175 = vmatprep.subr.bf16.mxu0 0
  %4176 = vmatpush2.bf16.msra.mxu0 0
  %4177 = vmatprep.subr.bf16.mxu0 0
  %4178 = vmatpush2.bf16.msra.mxu0 0
  %4179 = vmatprep.subr.bf16.mxu0 0
  %4180 = vmatpush2.bf16.msra.mxu0 0
  %4181 = vmatprep.subr.bf16.mxu0 0
  %4182 = vmatpush2.bf16.msra.mxu0 0
  %4183 = vmatprep.subr.bf16.mxu0 0
  %4184 = vmatpush2.bf16.msra.mxu0 0
  %4185 = vmatprep.subr.bf16.mxu0 0
  %4186 = vmatpush2.bf16.msra.mxu0 0
  %4187 = vmatprep.mubr.bf16.mxu0 0
  %4188 = vmatmul.mubr.bf16.gmra.mxu0 %v3646
  %v4189 = vpop.f32.mrf.mxu0
  %v4190 = vadd.f32 0.0, %v4189
  %v4191 = vpop.f32.mrf.mxu0
  %v4192 = vpop.f32.mrf.mxu0
  %v4193 = vpop.f32.mrf.mxu0
  %4194 = vdwg.mxu0
  %v4195 = vadd.f32 %v4154, %v4190
  %v4196 = vxor.u32 %v4195, 2147483648
  %v4197 = vmul.f32 %v4196, 1.442695
  %v4198 = vpow.pop %v4197
  %v4199 = vadd.f32 %v4198, 1.0
  %v4200 = vrcp.pop %v4199
  %v4201 = vmul.f32 1.0, %v4200
  %v4202 = vtanh.pop %v4195
  %v4203 = vmul.f32 %v4201, %v3634
  %4205 = vrot.lane.b32.xlu0 %v4202, 64
  %v4206 = vpop.permute.xlu0 %4205
  %v4208 = vmul.f32 %v4201, %v4206
  %4210 = vrot.lane.b32.xlu0 %v4208, 32
  %v4211 = vpop.permute.xlu0 %4210
  %v4213 = vadd.f32 %v4203, %v4211
  %v4214 = vtanh.pop %v4213
  %4216 = vrot.lane.b32.xlu0 %v4214, 64
  %v4217 = vpop.permute.xlu0 %4216
  %v4219 = vmul.f32 %v4201, %v4217
  %v4220 = vpack.c.bf16 %v4219, %v4219
  %4222 = vrot.lane.b32.xlu0 %v4220, 32
  %v4223 = vpop.permute.xlu0 %4222
  %v4225 = vsel %vm189, %v4223, 0
  %4227 = vmatprep.subr.bf16.mxu0 0
  %4228 = vmatpush1.bf16.msra.mxu0 0
  %4229 = vmatprep.subr.bf16.mxu0 0
  %4230 = vmatpush1.bf16.msra.mxu0 0
  %4231 = vmatprep.subr.bf16.mxu0 0
  %4232 = vmatpush1.bf16.msra.mxu0 0
  %4233 = vmatprep.subr.bf16.mxu0 0
  %4234 = vmatpush1.bf16.msra.mxu0 0
  %4235 = vmatprep.subr.bf16.mxu0 0
  %4236 = vmatpush1.bf16.msra.mxu0 0
  %4237 = vmatprep.subr.bf16.mxu0 0
  %4238 = vmatpush1.bf16.msra.mxu0 0
  %4239 = vmatprep.subr.bf16.mxu0 0
  %4240 = vmatpush1.bf16.msra.mxu0 %v688
  %4241 = vmatprep.subr.bf16.mxu0 0
  %4242 = vmatpush1.bf16.msra.mxu0 %v687
  %4243 = vmatprep.subr.bf16.mxu0 0
  %4244 = vmatpush2.bf16.msra.mxu0 0
  %4245 = vmatprep.subr.bf16.mxu0 0
  %4246 = vmatpush2.bf16.msra.mxu0 0
  %4247 = vmatprep.subr.bf16.mxu0 0
  %4248 = vmatpush2.bf16.msra.mxu0 0
  %4249 = vmatprep.subr.bf16.mxu0 0
  %4250 = vmatpush2.bf16.msra.mxu0 0
  %4251 = vmatprep.subr.bf16.mxu0 0
  %4252 = vmatpush2.bf16.msra.mxu0 0
  %4253 = vmatprep.subr.bf16.mxu0 0
  %4254 = vmatpush2.bf16.msra.mxu0 0
  %4255 = vmatprep.subr.bf16.mxu0 0
  %4256 = vmatpush2.bf16.msra.mxu0 0
  %4257 = vmatprep.subr.bf16.mxu0 0
  %4258 = vmatpush2.bf16.msra.mxu0 0
  %4259 = vmatprep.mubr.bf16.mxu0 0
  %4260 = vmatmul.mubr.bf16.gmra.mxu0 %v4225
  %v4261 = vpop.f32.mrf.mxu0
  %v4262 = vadd.f32 0.0, %v4261
  %v4263 = vpop.f32.mrf.mxu0
  %v4264 = vpop.f32.mrf.mxu0
  %v4265 = vpop.f32.mrf.mxu0
  %4266 = vdwg.mxu0
  %v4267 = vadd.f32 %v115, %v4262
  %4268 = vmatprep.subr.bf16.mxu0 0
  %4269 = vmatpush1.bf16.msra.mxu0 0
  %4270 = vmatprep.subr.bf16.mxu0 0
  %4271 = vmatpush1.bf16.msra.mxu0 0
  %4272 = vmatprep.subr.bf16.mxu0 0
  %4273 = vmatpush1.bf16.msra.mxu0 0
  %4274 = vmatprep.subr.bf16.mxu0 0
  %4275 = vmatpush1.bf16.msra.mxu0 0
  %4276 = vmatprep.subr.bf16.mxu0 0
  %4277 = vmatpush1.bf16.msra.mxu0 0
  %4278 = vmatprep.subr.bf16.mxu0 0
  %4279 = vmatpush1.bf16.msra.mxu0 0
  %4280 = vmatprep.subr.bf16.mxu0 0
  %4281 = vmatpush1.bf16.msra.mxu0 %v744
  %4282 = vmatprep.subr.bf16.mxu0 0
  %4283 = vmatpush1.bf16.msra.mxu0 %v743
  %4284 = vmatprep.subr.bf16.mxu0 0
  %4285 = vmatpush2.bf16.msra.mxu0 0
  %4286 = vmatprep.subr.bf16.mxu0 0
  %4287 = vmatpush2.bf16.msra.mxu0 0
  %4288 = vmatprep.subr.bf16.mxu0 0
  %4289 = vmatpush2.bf16.msra.mxu0 0
  %4290 = vmatprep.subr.bf16.mxu0 0
  %4291 = vmatpush2.bf16.msra.mxu0 0
  %4292 = vmatprep.subr.bf16.mxu0 0
  %4293 = vmatpush2.bf16.msra.mxu0 0
  %4294 = vmatprep.subr.bf16.mxu0 0
  %4295 = vmatpush2.bf16.msra.mxu0 0
  %4296 = vmatprep.subr.bf16.mxu0 0
  %4297 = vmatpush2.bf16.msra.mxu0 0
  %4298 = vmatprep.subr.bf16.mxu0 0
  %4299 = vmatpush2.bf16.msra.mxu0 0
  %4300 = vmatprep.mubr.bf16.mxu0 0
  %4301 = vmatmul.mubr.bf16.gmra.mxu0 %v3999
  %v4302 = vpop.f32.mrf.mxu0
  %v4303 = vadd.f32 0.0, %v4302
  %v4304 = vpop.f32.mrf.mxu0
  %v4305 = vpop.f32.mrf.mxu0
  %v4306 = vpop.f32.mrf.mxu0
  %4307 = vdwg.mxu0
  %v4308 = vadd.f32 %v4267, %v4303
  %v4309 = vsel %vm788, %v4308, -inf
  %4310 = vmax.xlane.f32.xlu0 %v4309
  %v4311 = vpop.xlane.xlu0 %4310
  %vm4312 = vcmp.eq.f32.partialorder %v4308, %v4311
  %v4313 = vsel %vm4312, %v117, 128
  %v4314 = vsel %vm788, %v4313, 2147483647
  %v4315 = vand.u32 %v4314, 65535
  %v4316 = vshra.s32 %v4314, 16
  %v4317 = vcvt.s32.f32 %v4315
  %v4318 = vcvt.s32.f32 %v4316
  %4319 = vmin.xlane.f32.xlu0 %v4318
  %v4320 = vpop.xlane.xlu0 %4319
  %vm4321 = vcmp.eq.f32.partialorder %v4318, %v4320
  %v4322 = vsel %vm4321, %v4317, inf
  %4323 = vmin.xlane.f32.xlu0 %v4322
  %v4324 = vpop.xlane.xlu0 %4323
  %v4325 = vcvt.f32.s32 %v4324
  %v4326 = vcvt.f32.s32 %v4320
  %v4327 = vshll.u32 %v4326, 16
  %v4328 = vadd.s32 %v4327, %v4325
  %vm4329 = vcmp.eq.s32.totalorder %v4328, 3
  %vm4330 = vcmp.eq.s32.totalorder %v4328, 2
  %vm4331 = vmor %vm4329, %vm4330
  %v4332 = vsel %vm4331, 1, 0
  %vm4333 = vcmp.eq.s32.totalorder %v4332, 1
  %v4334 = vsel %vm4333, %v120, %v4308
  %v4335 = vmul.f32 %v4334, 2.0
  %v4336 = vsel %vm788, %v4335, -inf
  %4337 = vmax.xlane.f32.xlu0 %v4336
  %v4338 = vpop.xlane.xlu0 %4337
  %v4339 = vsub.f32 %v4335, %v4338
  %v4340 = vmul.f32 %v4339, 1.442695
  %v4341 = vpow.pop %v4340
  %v4342 = vsel %vm788, %v4341, 0.0
  %4343 = vadd.xlane.f32.xlu0 %v4342
  %v4344 = vpop.xlane.xlu0 %4343
  %v4345 = vrcp.pop %v4344
  %v4346 = vmul.f32 %v4341, %v4345
  %v4347 = vpack.c.bf16 %v4346, %v4346
  %4348 = vmatprep.subr.bf16.mxu0 0
  %4349 = vmatpush1.bf16.msra.mxu0 %v868
  %4350 = vmatprep.subr.bf16.mxu0 0
  %4351 = vmatpush1.bf16.msra.mxu0 %v867
  %4352 = vmatprep.subr.bf16.mxu0 0
  %4353 = vmatpush1.bf16.msra.mxu0 %v866
  %4354 = vmatprep.subr.bf16.mxu0 0
  %4355 = vmatpush1.bf16.msra.mxu0 %v865
  %4356 = vmatprep.subr.bf16.mxu0 0
  %4357 = vmatpush1.bf16.msra.mxu0 %v864
  %4358 = vmatprep.subr.bf16.mxu0 0
  %4359 = vmatpush1.bf16.msra.mxu0 %v863
  %4360 = vmatprep.subr.bf16.mxu0 0
  %4361 = vmatpush1.bf16.msra.mxu0 %v862
  %4362 = vmatprep.subr.bf16.mxu0 0
  %4363 = vmatpush1.bf16.msra.mxu0 %v861
  %4364 = vmatprep.subr.bf16.mxu0 0
  %4365 = vmatpush2.bf16.msra.mxu0 0
  %4366 = vmatprep.subr.bf16.mxu0 0
  %4367 = vmatpush2.bf16.msra.mxu0 0
  %4368 = vmatprep.subr.bf16.mxu0 0
  %4369 = vmatpush2.bf16.msra.mxu0 0
  %4370 = vmatprep.subr.bf16.mxu0 0
  %4371 = vmatpush2.bf16.msra.mxu0 0
  %4372 = vmatprep.subr.bf16.mxu0 0
  %4373 = vmatpush2.bf16.msra.mxu0 0
  %4374 = vmatprep.subr.bf16.mxu0 0
  %4375 = vmatpush2.bf16.msra.mxu0 0
  %4376 = vmatprep.subr.bf16.mxu0 0
  %4377 = vmatpush2.bf16.msra.mxu0 0
  %4378 = vmatprep.subr.bf16.mxu0 0
  %4379 = vmatpush2.bf16.msra.mxu0 0
  %4380 = vmatprep.mubr.bf16.mxu0 0
  %4381 = vmatmul.mubr.bf16.gmra.mxu0 %v4347
  %v4382 = vpop.f32.mrf.mxu0
  %v4383 = vadd.f32 0.0, %v4382
  %v4384 = vpop.f32.mrf.mxu0
  %v4385 = vpop.f32.mrf.mxu0
  %v4386 = vpop.f32.mrf.mxu0
  %4387 = vdwg.mxu0
  %s4388 = sadd.s32 %s132, 6
  %v4389 = vstv %s4388
  %vm4390 = vcmp.eq.s32.totalorder %v122, %v4389
  %vm4391 = vcmp.eq.s32.totalorder %v123, %v4389
  %vm4392 = vmand %vm148, %vm4390
  %vm4393 = vmand %vm149, %vm4391
  %v4394 = vlaneseq
  %v4395 = vshrl.u32 %v4394, 7
  %v4396 = vsub.s32 0, %v4395
  %v4397 = vrot.slane %v4383, %v4396
  %v4398 = vsel %vm4392, 1, 0
  %v4399 = vsel %vm4393, 1, 0
  %vm4400 = vcmp.eq.s32.totalorder %v4398, 1
  %vm4401 = vcmp.eq.s32.totalorder %v4399, 1
  %v4402 = vsel %vm4400, %v4397, %v3824
  %v4403 = vsel %vm4401, %v4397, %v3825
  %s4404 = sadd.s32 %s152, 6
  %v4405 = vstv %s4404
  %vm4406 = vcmp.eq.s32.totalorder %v122, %v4405
  %vm4407 = vcmp.eq.s32.totalorder %v123, %v4405
  %vm4408 = vmand %vm168, %vm4406
  %vm4409 = vmand %vm169, %vm4407
  %v4410 = vlaneseq
  %v4411 = vshrl.u32 %v4410, 7
  %v4412 = vsub.s32 1, %v4411
  %v4413 = vrot.slane %v4383, %v4412
  %v4414 = vsel %vm4408, 1, 0
  %v4415 = vsel %vm4409, 1, 0
  %vm4416 = vcmp.eq.s32.totalorder %v4414, 1
  %vm4417 = vcmp.eq.s32.totalorder %v4415, 1
  %v4418 = vsel %vm4416, %v4413, %v3840
  %v4419 = vsel %vm4417, %v4413, %v3841
  %4420 = vst.msk [vmem:[%s9] sm:$0xff] %vm189, %v4402
  %4421 = vst.msk [vmem:[%s9 + $0x8] sm:$0xff] %vm189, %v4403
  %s4422 = scalar_lea.vmem %s9, 16
  %4423 = vst.msk [vmem:[%s4422] sm:$0xff] %vm189, %v4418
  %4424 = vst.msk [vmem:[%s4422 + $0x8] sm:$0xff] %vm189, %v4419
  // Predicated region
  $region30: #{wrapped_seq_decoder_forward.1} parent=0 // pred_check
    _
  $region31: #{wrapped_seq_decoder_forward.1} parent=0 // pred_check_branch
    %4426 = sbr.rel (0) target = $region33
  $region32: #{wrapped_seq_decoder_forward.1} parent=0 // pred_region
    _
  $region33: #{wrapped_seq_decoder_forward.1} parent=0 // pred_fallthru
    _
  // Predicated region
  $region34: #{wrapped_seq_decoder_forward.1} parent=0 // pred_check
    _
  $region35: #{wrapped_seq_decoder_forward.1} parent=0 // pred_check_branch
    %4428 = sbr.rel (0) target = $region37
  $region36: #{wrapped_seq_decoder_forward.1} parent=0 // pred_region
    _
  $region37: #{wrapped_seq_decoder_forward.1} parent=0 // pred_fallthru
    _

</llo_original>
